<compile_context>
chip_gen: v7x
topology: tpu7x:2x2x1
jax: 0.10.0
libtpu: 0.0.40
codegen_flags: <defaults>
</compile_context>

<pallas_src>
import jax
import jax.numpy as jnp
import numpy as np
from jax import lax
from jax.experimental import pallas as pl
from jax.experimental.pallas import tpu as pltpu


# Fixed architecture sizes (32x32x3 input, 5x5 valid convs, 2x2 pools; the fc
# layer hard-codes 64*5*5 features, so the spatial geometry is fixed).
H1 = 14            # layer-1 pooled spatial size (28/2); o1 row index p = 14*ph + pw
PP1 = 200          # layer-1 pooled positions 196 padded to a sublane multiple
F1P = 128          # layer-1 im2col features 5*5*3 = 75 padded to a lane multiple
CP = 128           # padded channel lane width (32 and 64 -> 128)
M2 = 144           # layer-2 conv rows: 10 valid i-rows x 14 cols = 140, padded to 144
O1_ROWS = 208      # o1 scratch rows: 196 valid + padding (>= max slab end 60+144)
KK2 = 25           # 5x5 kernel offsets for layer 2


# ----------------------------- Pallas kernel -------------------------------

def fused_cnn_kernel(p1_ref, w1_ref, b1_ref, w2_ref, b2_ref, s_ref, o_ref, o1_scr):
    """Fused conv1+pool1+relu1 -> conv2+pool2+relu2 for one batch block.

    p1_ref : [bblk, 800, 128] bf16  layer-1 im2col patches, pool-offset-major
                                    (4 groups of 200 rows, row p = 14*ph + pw)
    w1_ref : [128, 128]       bf16  flattened conv1 weight (zero-padded)
    b1_ref : [1, 128]         f32   conv1 bias (zero-padded)
    w2_ref : [25, 32, 128]    bf16  conv2 weight per kernel offset kk = 5*kh+kw
    b2_ref : [1, 128]         f32   conv2 bias (zero-padded)
    s_ref  : [32, 128]        f32   one-hot pool-row selector S[q, 28*(q//5)+2*(q%5)]=1
    o_ref  : [bblk, 32, 128]  f32   pooled layer-2 output (valid region [25, 64])
    o1_scr : [208, 128]       bf16  VMEM scratch holding the layer-1 pooled activation
    """
    bblk = p1_ref.shape[0]
    for bi in range(bblk):
        # ---- layer 1: conv-as-matmul per 2x2 pool-offset group, running max.
        # Bias + ReLU once after the max (exact: per-channel bias, monotone ReLU).
        m1 = jnp.dot(p1_ref[bi, 0:PP1, :], w1_ref[...],
                     preferred_element_type=jnp.float32)
        for g in range(1, 4):
            r = jnp.dot(p1_ref[bi, g * PP1:(g + 1) * PP1, :], w1_ref[...],
                        preferred_element_type=jnp.float32)
            m1 = jnp.maximum(m1, r)
        o1 = jnp.maximum(m1 + b1_ref[...], 0.0).astype(jnp.bfloat16)  # [200,128]
        o1_scr[0:PP1, :] = o1
        o1_scr[PP1:O1_ROWS, :] = jnp.zeros((O1_ROWS - PP1, CP), jnp.bfloat16)

        # ---- layer 2 conv from VMEM-resident o1: for each kernel offset
        # (kh, kw), the needed LHS rows o1[i+kh, j+kw, :] form a CONTIGUOUS
        # 144-row slab of o1_scr starting at 14*kh + kw (row m = 14*i + j with
        # j extended to 0..13; j >= 10 / i >= 10 rows are finite garbage that
        # is never selected below).  25 accumulating K=32 MXU matmuls.
        acc = jnp.zeros((M2, CP), jnp.float32)
        for kh in range(5):
            for kw in range(5):
                start = H1 * kh + kw
                lhs = o1_scr[start:start + M2, 0:32]            # [144, 32] bf16
                acc = acc + jnp.dot(lhs, w2_ref[kh * 5 + kw],
                                    preferred_element_type=jnp.float32)

        # ---- 2x2 max-pool over (i, j): two shifted-slab VPU maxes give
        # b[m] = max(acc[m], acc[m+1], acc[m+14], acc[m+15]); the 25 pooled
        # rows sit at m = 28*pi + 2*pj and are extracted with a one-hot
        # selection matmul (keeps everything lane-dense, no strided gathers).
        a = jnp.maximum(acc[0:M2 - 2, :], acc[1:M2 - 1, :])     # [142, 128]
        b = jnp.maximum(a[0:128, :], a[14:142, :])              # [128, 128]
        pooled = jnp.dot(s_ref[...], b, preferred_element_type=jnp.float32)
        # Bias + ReLU once, after the pool max (exact reassociation).
        o_ref[bi] = jnp.maximum(pooled + b2_ref[...], 0.0).astype(o_ref.dtype)


def choose_bblk(batch, max_bblk=8):
    """Largest batch-block that divides B, keeps >=2 grid steps (2 TCs on v7x)
    and stays far below the v5e 16 MiB scoped-VMEM default."""
    for cand in range(min(batch, max_bblk), 0, -1):
        if batch % cand == 0 and batch // cand >= 2:
            return cand
    return 1


def cnn_pallas_forward(p1, w1m, b1p, w2m, b2p, sel):
    """p1:[B,800,128] bf16 -> pooled layer-2 output [B, 32, 128] f32."""
    B = p1.shape[0]
    assert p1.shape[1:] == (4 * PP1, F1P)
    bblk = choose_bblk(B)
    grid = B // bblk
    return pl.pallas_call(
        fused_cnn_kernel,
        out_shape=jax.ShapeDtypeStruct((B, 32, CP), jnp.float32),
        grid_spec=pltpu.PrefetchScalarGridSpec(
            num_scalar_prefetch=0,
            grid=(grid,),
            in_specs=[
                pl.BlockSpec((bblk, 4 * PP1, F1P), lambda i: (i, 0, 0)),
                pl.BlockSpec((F1P, CP), lambda i: (0, 0)),
                pl.BlockSpec((1, CP), lambda i: (0, 0)),
                pl.BlockSpec((KK2, 32, CP), lambda i: (0, 0, 0)),
                pl.BlockSpec((1, CP), lambda i: (0, 0)),
                pl.BlockSpec((32, CP), lambda i: (0, 0)),
            ],
            out_specs=pl.BlockSpec((bblk, 32, CP), lambda i: (i, 0, 0)),
            scratch_shapes=[pltpu.VMEM((O1_ROWS, CP), jnp.bfloat16)],
        ),
        compiler_params=pltpu.CompilerParams(
            dimension_semantics=("parallel",)),
    )(p1, w1m, b1p, w2m, b2p, sel)


# ------------------------------ JAX glue ------------------------------------

def round_up(n, m):
    return ((n + m - 1) // m) * m


def pad_axis(x, axis, target):
    pad = target - x.shape[axis]
    if pad == 0:
        return x
    widths = [(0, 0)] * x.ndim
    widths[axis] = (0, pad)
    return jnp.pad(x, widths)


def im2col_nhwc(x, k):
    """x: [B,H,W,C] -> patches [B,Ho,Wo,k*k*C]; feature index = (kh*k+kw)*C + c."""
    B, H, W, C = x.shape
    Ho, Wo = H - k + 1, W - k + 1
    cols = [x[:, kh:kh + Ho, kw:kw + Wo, :] for kh in range(k) for kw in range(k)]
    p = jnp.stack(cols, axis=3)                       # [B, Ho, Wo, k*k, C]
    return p.reshape(B, Ho, Wo, k * k * C)


def group_for_pool(p):
    """[B,Ho,Wo,F] -> [B,4,(Ho//2)*(Wo//2),F]; group index = 2x2 pool offset."""
    B, Ho, Wo, F = p.shape
    Hp, Wp = Ho // 2, Wo // 2
    g = p.reshape(B, Hp, 2, Wp, 2, F).transpose(0, 2, 4, 1, 3, 5)  # [B,2,2,Hp,Wp,F]
    return g.reshape(B, 4, Hp * Wp, F)


def prep_patches(x_nhwc, k):
    """NHWC input -> padded pool-grouped patches [B, 4*Pp, Fp]."""
    p = group_for_pool(im2col_nhwc(x_nhwc, k))        # [B, 4, P, F]
    B, _, P, F = p.shape
    Pp, Fp = round_up(P, 8), round_up(F, 128)
    p = pad_axis(pad_axis(p, 2, Pp), 3, Fp)           # [B, 4, Pp, Fp]
    return p.reshape(B, 4 * Pp, Fp), Pp, P


def prep_weight1(w, b, cp=CP):
    """OIHW conv1 weight -> [Fp, cp] matmul weight matching (kh,kw,c) patch order."""
    O, I, kh, kw = w.shape
    w_mat = jnp.transpose(w, (2, 3, 1, 0)).reshape(kh * kw * I, O)  # [F, O]
    Fp = round_up(kh * kw * I, 128)
    w_mat = pad_axis(pad_axis(w_mat, 0, Fp), 1, cp)                 # [Fp, cp]
    return w_mat.astype(jnp.bfloat16), pad_axis(b, 0, cp)


def prep_weight2(w, cp=CP):
    """OIHW conv2 weight -> [25, 32, cp]: one [C_in, C_out] slab per (kh, kw)."""
    O, I, kh, kw = w.shape                                          # 64, 32, 5, 5
    wk = jnp.transpose(w, (2, 3, 1, 0)).reshape(kh * kw, I, O)      # [25, 32, 64]
    return pad_axis(wk, 2, cp).astype(jnp.bfloat16)


def pool_select_matrix():
    """[32, 128] one-hot row selector: row q picks conv2 row m = 28*(q//5)+2*(q%5)."""
    s = np.zeros((32, CP), np.float32)
    for q in range(25):
        s[q, 28 * (q // 5) + 2 * (q % 5)] = 1.0
    return jnp.asarray(s)


def cnn_forward(x, params):
    """x: [B, 3, 32, 32] NCHW -> logits [B, 10]. Dropout2d == identity (eval)."""
    w1, b1, w2, b2, wf, bf_ = params
    B = x.shape[0]
    xh = jnp.transpose(x, (0, 2, 3, 1))               # NHWC [B, 32, 32, 3]

    # Layer-1 im2col (+ pool-offset grouping + padding) stays in XLA.
    # TODO(synk): move this into the kernel too; with C_in=3 the in-kernel
    # patch build needs sub-128-lane shuffles that aren't worth the risk here.
    p1, _, _ = prep_patches(xh, 5)                    # [B, 800, 128] f32
    p1 = p1.astype(jnp.bfloat16)

    w1m, b1p = prep_weight1(w1, b1)                   # [128,128] bf16, [128] f32
    w2m = prep_weight2(w2)                            # [25, 32, 128] bf16
    sel = pool_select_matrix()                        # [32, 128] f32

    out = cnn_pallas_forward(p1, w1m, b1p.reshape(1, CP), w2m,
                             pad_axis(b2, 0, CP).reshape(1, CP), sel)  # [B,32,128]

    # Flatten in PyTorch NCHW .view order (index = c*25 + p) + fc.
    # The fc ([B,1600]x[1600,10]) is left to a plain XLA dot (per perf review).
    o2 = out[:, :25, :64]                             # [B, 25(p), 64(c)]
    flat = jnp.transpose(o2, (0, 2, 1)).reshape(B, 64 * 5 * 5)
    return flat @ wf.T + bf_


# --------------------------- pure-JAX reference -----------------------------

def ref_forward(x, params):
    w1, b1, w2, b2, wf, bf_ = params
    B = x.shape[0]

    def conv_relu_pool_ref(inp, w, b):
        y = lax.conv_general_dilated(
            inp, w, window_strides=(1, 1), padding="VALID",
            dimension_numbers=("NCHW", "OIHW", "NCHW"))
        y = y + b[None, :, None, None]
        y = jnp.maximum(y, 0.0)
        Bc, C, H, W = y.shape
        return y.reshape(Bc, C, H // 2, 2, W // 2, 2).max(axis=(3, 5))

    o1 = conv_relu_pool_ref(x, w1, b1)
    o2 = conv_relu_pool_ref(o1, w2, b2)
    flat = o2.reshape(B, -1)
    return flat @ wf.T + bf_


# --------------------------------- main --------------------------------------

if __name__ == "__main__":
    key = jax.random.PRNGKey(0)
    k_x, k_w1, k_b1, k_w2, k_b2, k_wf, k_bf = jax.random.split(key, 7)

    B = 2
    # Spatial size fixed at 32x32 by the module (fc expects 64*5*5 features).
    x = jax.random.normal(k_x, (B, 3, 32, 32), dtype=jnp.float32)

    # Deterministic synthetic parameters (PyTorch layouts: OIHW / [out, in]).
    w1 = jax.random.normal(k_w1, (32, 3, 5, 5), dtype=jnp.float32) * 0.1
    b1 = jax.random.normal(k_b1, (32,), dtype=jnp.float32) * 0.1
    w2 = jax.random.normal(k_w2, (64, 32, 5, 5), dtype=jnp.float32) * 0.05
    b2 = jax.random.normal(k_b2, (64,), dtype=jnp.float32) * 0.1
    wf = jax.random.normal(k_wf, (10, 64 * 5 * 5), dtype=jnp.float32) * 0.02
    bf_ = jax.random.normal(k_bf, (10,), dtype=jnp.float32) * 0.1
    params = (w1, b1, w2, b2, wf, bf_)

    y = jax.jit(cnn_forward)(x, params)
    y = jax.block_until_ready(y)

    y_ref = jax.block_until_ready(ref_forward(x, params))
    # bf16 MXU inputs with f32 accumulation -> ~1e-2 relative agreement.
    np.testing.assert_allclose(np.asarray(y), np.asarray(y_ref),
                               rtol=2e-2, atol=2e-2)

    assert y.shape == (B, 10) and y.dtype == jnp.float32
    print("KERNEL_OK")
</pallas_src>

<mosaic_0001>
module attributes {stable_mosaic.version = 11 : i64} {
  func.func @fused_cnn_kernel(%arg0: i32, %arg1: memref<1x800x128xbf16, #tpu.memory_space<vmem>>, %arg2: memref<128x128xbf16, #tpu.memory_space<vmem>>, %arg3: memref<1x128xf32, #tpu.memory_space<vmem>>, %arg4: memref<25x32x128xbf16, #tpu.memory_space<vmem>>, %arg5: memref<1x128xf32, #tpu.memory_space<vmem>>, %arg6: memref<32x128xf32, #tpu.memory_space<vmem>>, %arg7: memref<1x32x128xf32, #tpu.memory_space<vmem>>, %arg8: memref<208x128xbf16, #tpu.memory_space<vmem>>) attributes {dimension_semantics = [#tpu.dimension_semantics<parallel>], iteration_bounds = array<i64: 2>, scalar_prefetch = 0 : i64, scratch_operands = 1 : i64, tpu.core_type = #tpu.core_type<tc>, window_params = [{transform_indices = @transform_0, window_bounds = array<i64: 1, 800, 128>}, {pipeline_mode = #tpu.pipeline_mode<synchronous>, transform_indices = @transform_1, window_bounds = array<i64: 128, 128>}, {pipeline_mode = #tpu.pipeline_mode<synchronous>, transform_indices = @transform_2, window_bounds = array<i64: 1, 128>}, {pipeline_mode = #tpu.pipeline_mode<synchronous>, transform_indices = @transform_3, window_bounds = array<i64: 25, 32, 128>}, {pipeline_mode = #tpu.pipeline_mode<synchronous>, transform_indices = @transform_4, window_bounds = array<i64: 1, 128>}, {pipeline_mode = #tpu.pipeline_mode<synchronous>, transform_indices = @transform_5, window_bounds = array<i64: 32, 128>}, {transform_indices = @transform_6, window_bounds = array<i64: 1, 32, 128>}]} {
    %c0 = arith.constant 0 : index
    %c0_0 = arith.constant 0 : index
    %c0_1 = arith.constant 0 : index
    %0 = vector.load %arg1[%c0, %c0_0, %c0_1] : memref<1x800x128xbf16, #tpu.memory_space<vmem>>, vector<1x200x128xbf16>
    %1 = vector.shape_cast %0 : vector<1x200x128xbf16> to vector<200x128xbf16>
    %c0_2 = arith.constant 0 : index
    %c0_3 = arith.constant 0 : index
    %2 = vector.load %arg2[%c0_2, %c0_3] : memref<128x128xbf16, #tpu.memory_space<vmem>>, vector<128x128xbf16>
    %cst = arith.constant dense<0.000000e+00> : vector<200x128xf32>
    %3 = tpu.matmul %1, %2, %cst {dimension_numbers = #tpu.dot_dimension_numbers<[1], [0], [0], [1], [0, 0, 1, 1], [], []>} : vector<200x128xbf16>, vector<128x128xbf16>, vector<200x128xf32> -> vector<200x128xf32>
    %c0_4 = arith.constant 0 : index
    %c200 = arith.constant 200 : index
    %c0_5 = arith.constant 0 : index
    %4 = vector.load %arg1[%c0_4, %c200, %c0_5] : memref<1x800x128xbf16, #tpu.memory_space<vmem>>, vector<1x200x128xbf16>
    %5 = vector.shape_cast %4 : vector<1x200x128xbf16> to vector<200x128xbf16>
    %c0_6 = arith.constant 0 : index
    %c0_7 = arith.constant 0 : index
    %6 = vector.load %arg2[%c0_6, %c0_7] : memref<128x128xbf16, #tpu.memory_space<vmem>>, vector<128x128xbf16>
    %cst_8 = arith.constant dense<0.000000e+00> : vector<200x128xf32>
    %7 = tpu.matmul %5, %6, %cst_8 {dimension_numbers = #tpu.dot_dimension_numbers<[1], [0], [0], [1], [0, 0, 1, 1], [], []>} : vector<200x128xbf16>, vector<128x128xbf16>, vector<200x128xf32> -> vector<200x128xf32>
    %8 = arith.maximumf %3, %7 : vector<200x128xf32>
    %c0_9 = arith.constant 0 : index
    %c400 = arith.constant 400 : index
    %c0_10 = arith.constant 0 : index
    %9 = vector.load %arg1[%c0_9, %c400, %c0_10] : memref<1x800x128xbf16, #tpu.memory_space<vmem>>, vector<1x200x128xbf16>
    %10 = vector.shape_cast %9 : vector<1x200x128xbf16> to vector<200x128xbf16>
    %c0_11 = arith.constant 0 : index
    %c0_12 = arith.constant 0 : index
    %11 = vector.load %arg2[%c0_11, %c0_12] : memref<128x128xbf16, #tpu.memory_space<vmem>>, vector<128x128xbf16>
    %cst_13 = arith.constant dense<0.000000e+00> : vector<200x128xf32>
    %12 = tpu.matmul %10, %11, %cst_13 {dimension_numbers = #tpu.dot_dimension_numbers<[1], [0], [0], [1], [0, 0, 1, 1], [], []>} : vector<200x128xbf16>, vector<128x128xbf16>, vector<200x128xf32> -> vector<200x128xf32>
    %13 = arith.maximumf %8, %12 : vector<200x128xf32>
    %c0_14 = arith.constant 0 : index
    %c600 = arith.constant 600 : index
    %c0_15 = arith.constant 0 : index
    %14 = vector.load %arg1[%c0_14, %c600, %c0_15] : memref<1x800x128xbf16, #tpu.memory_space<vmem>>, vector<1x200x128xbf16>
    %15 = vector.shape_cast %14 : vector<1x200x128xbf16> to vector<200x128xbf16>
    %c0_16 = arith.constant 0 : index
    %c0_17 = arith.constant 0 : index
    %16 = vector.load %arg2[%c0_16, %c0_17] : memref<128x128xbf16, #tpu.memory_space<vmem>>, vector<128x128xbf16>
    %cst_18 = arith.constant dense<0.000000e+00> : vector<200x128xf32>
    %17 = tpu.matmul %15, %16, %cst_18 {dimension_numbers = #tpu.dot_dimension_numbers<[1], [0], [0], [1], [0, 0, 1, 1], [], []>} : vector<200x128xbf16>, vector<128x128xbf16>, vector<200x128xf32> -> vector<200x128xf32>
    %18 = arith.maximumf %13, %17 : vector<200x128xf32>
    %c0_19 = arith.constant 0 : index
    %c0_20 = arith.constant 0 : index
    %19 = vector.load %arg3[%c0_19, %c0_20] : memref<1x128xf32, #tpu.memory_space<vmem>>, vector<1x128xf32>
    %20 = vector.broadcast %19 : vector<1x128xf32> to vector<200x128xf32>
    %21 = arith.addf %18, %20 : vector<200x128xf32>
    %cst_21 = arith.constant 0.000000e+00 : f32
    %22 = vector.broadcast %cst_21 : f32 to vector<200x128xf32>
    %23 = arith.maximumf %21, %22 : vector<200x128xf32>
    %24 = arith.truncf %23 : vector<200x128xf32> to vector<200x128xbf16>
    %c0_22 = arith.constant 0 : index
    %c0_23 = arith.constant 0 : index
    %25 = vector.load %arg8[%c0_22, %c0_23] : memref<208x128xbf16, #tpu.memory_space<vmem>>, vector<200x128xbf16>
    tpu.vector_store %arg8[%c0_22, %c0_23], %24 {strides = array<i32>} : memref<208x128xbf16, #tpu.memory_space<vmem>>, vector<200x128xbf16>,
    %cst_24 = arith.constant 0.000000e+00 : bf16
    %26 = vector.broadcast %cst_24 : bf16 to vector<8x128xbf16>
    %c200_25 = arith.constant 200 : index
    %c0_26 = arith.constant 0 : index
    %27 = vector.load %arg8[%c200_25, %c0_26] : memref<208x128xbf16, #tpu.memory_space<vmem>>, vector<8x128xbf16>
    tpu.vector_store %arg8[%c200_25, %c0_26], %26 {strides = array<i32>} : memref<208x128xbf16, #tpu.memory_space<vmem>>, vector<8x128xbf16>,
    %cst_27 = arith.constant 0.000000e+00 : f32
    %28 = vector.broadcast %cst_27 : f32 to vector<144x128xf32>
    %c0_28 = arith.constant 0 : index
    %c0_29 = arith.constant 0 : index
    %29 = vector.load %arg8[%c0_28, %c0_29] : memref<208x128xbf16, #tpu.memory_space<vmem>>, vector<144x32xbf16>
    %c0_30 = arith.constant 0 : index
    %c0_31 = arith.constant 0 : index
    %c0_32 = arith.constant 0 : index
    %30 = vector.load %arg4[%c0_30, %c0_31, %c0_32] : memref<25x32x128xbf16, #tpu.memory_space<vmem>>, vector<1x32x128xbf16>
    %31 = vector.shape_cast %30 : vector<1x32x128xbf16> to vector<32x128xbf16>
    %cst_33 = arith.constant dense<0.000000e+00> : vector<144x128xf32>
    %32 = tpu.matmul %29, %31, %cst_33 {dimension_numbers = #tpu.dot_dimension_numbers<[1], [0], [0], [1], [0, 0, 1, 1], [], []>} : vector<144x32xbf16>, vector<32x128xbf16>, vector<144x128xf32> -> vector<144x128xf32>
    %33 = arith.addf %28, %32 : vector<144x128xf32>
    %c1 = arith.constant 1 : index
    %c0_34 = arith.constant 0 : index
    %34 = vector.load %arg8[%c1, %c0_34] : memref<208x128xbf16, #tpu.memory_space<vmem>>, vector<144x32xbf16>
    %c1_35 = arith.constant 1 : index
    %c0_36 = arith.constant 0 : index
    %c0_37 = arith.constant 0 : index
    %35 = vector.load %arg4[%c1_35, %c0_36, %c0_37] : memref<25x32x128xbf16, #tpu.memory_space<vmem>>, vector<1x32x128xbf16>
    %36 = vector.shape_cast %35 : vector<1x32x128xbf16> to vector<32x128xbf16>
    %cst_38 = arith.constant dense<0.000000e+00> : vector<144x128xf32>
    %37 = tpu.matmul %34, %36, %cst_38 {dimension_numbers = #tpu.dot_dimension_numbers<[1], [0], [0], [1], [0, 0, 1, 1], [], []>} : vector<144x32xbf16>, vector<32x128xbf16>, vector<144x128xf32> -> vector<144x128xf32>
    %38 = arith.addf %33, %37 : vector<144x128xf32>
    %c2 = arith.constant 2 : index
    %c0_39 = arith.constant 0 : index
    %39 = vector.load %arg8[%c2, %c0_39] : memref<208x128xbf16, #tpu.memory_space<vmem>>, vector<144x32xbf16>
    %c2_40 = arith.constant 2 : index
    %c0_41 = arith.constant 0 : index
    %c0_42 = arith.constant 0 : index
    %40 = vector.load %arg4[%c2_40, %c0_41, %c0_42] : memref<25x32x128xbf16, #tpu.memory_space<vmem>>, vector<1x32x128xbf16>
    %41 = vector.shape_cast %40 : vector<1x32x128xbf16> to vector<32x128xbf16>
    %cst_43 = arith.constant dense<0.000000e+00> : vector<144x128xf32>
    %42 = tpu.matmul %39, %41, %cst_43 {dimension_numbers = #tpu.dot_dimension_numbers<[1], [0], [0], [1], [0, 0, 1, 1], [], []>} : vector<144x32xbf16>, vector<32x128xbf16>, vector<144x128xf32> -> vector<144x128xf32>
    %43 = arith.addf %38, %42 : vector<144x128xf32>
    %c3 = arith.constant 3 : index
    %c0_44 = arith.constant 0 : index
    %44 = vector.load %arg8[%c3, %c0_44] : memref<208x128xbf16, #tpu.memory_space<vmem>>, vector<144x32xbf16>
    %c3_45 = arith.constant 3 : index
    %c0_46 = arith.constant 0 : index
    %c0_47 = arith.constant 0 : index
    %45 = vector.load %arg4[%c3_45, %c0_46, %c0_47] : memref<25x32x128xbf16, #tpu.memory_space<vmem>>, vector<1x32x128xbf16>
    %46 = vector.shape_cast %45 : vector<1x32x128xbf16> to vector<32x128xbf16>
    %cst_48 = arith.constant dense<0.000000e+00> : vector<144x128xf32>
    %47 = tpu.matmul %44, %46, %cst_48 {dimension_numbers = #tpu.dot_dimension_numbers<[1], [0], [0], [1], [0, 0, 1, 1], [], []>} : vector<144x32xbf16>, vector<32x128xbf16>, vector<144x128xf32> -> vector<144x128xf32>
    %48 = arith.addf %43, %47 : vector<144x128xf32>
    %c4 = arith.constant 4 : index
    %c0_49 = arith.constant 0 : index
    %49 = vector.load %arg8[%c4, %c0_49] : memref<208x128xbf16, #tpu.memory_space<vmem>>, vector<144x32xbf16>
    %c4_50 = arith.constant 4 : index
    %c0_51 = arith.constant 0 : index
    %c0_52 = arith.constant 0 : index
    %50 = vector.load %arg4[%c4_50, %c0_51, %c0_52] : memref<25x32x128xbf16, #tpu.memory_space<vmem>>, vector<1x32x128xbf16>
    %51 = vector.shape_cast %50 : vector<1x32x128xbf16> to vector<32x128xbf16>
    %cst_53 = arith.constant dense<0.000000e+00> : vector<144x128xf32>
    %52 = tpu.matmul %49, %51, %cst_53 {dimension_numbers = #tpu.dot_dimension_numbers<[1], [0], [0], [1], [0, 0, 1, 1], [], []>} : vector<144x32xbf16>, vector<32x128xbf16>, vector<144x128xf32> -> vector<144x128xf32>
    %53 = arith.addf %48, %52 : vector<144x128xf32>
    %c14 = arith.constant 14 : index
    %c0_54 = arith.constant 0 : index
    %54 = vector.load %arg8[%c14, %c0_54] : memref<208x128xbf16, #tpu.memory_space<vmem>>, vector<144x32xbf16>
    %c5 = arith.constant 5 : index
    %c0_55 = arith.constant 0 : index
    %c0_56 = arith.constant 0 : index
    %55 = vector.load %arg4[%c5, %c0_55, %c0_56] : memref<25x32x128xbf16, #tpu.memory_space<vmem>>, vector<1x32x128xbf16>
    %56 = vector.shape_cast %55 : vector<1x32x128xbf16> to vector<32x128xbf16>
    %cst_57 = arith.constant dense<0.000000e+00> : vector<144x128xf32>
    %57 = tpu.matmul %54, %56, %cst_57 {dimension_numbers = #tpu.dot_dimension_numbers<[1], [0], [0], [1], [0, 0, 1, 1], [], []>} : vector<144x32xbf16>, vector<32x128xbf16>, vector<144x128xf32> -> vector<144x128xf32>
    %58 = arith.addf %53, %57 : vector<144x128xf32>
    %c15 = arith.constant 15 : index
    %c0_58 = arith.constant 0 : index
    %59 = vector.load %arg8[%c15, %c0_58] : memref<208x128xbf16, #tpu.memory_space<vmem>>, vector<144x32xbf16>
    %c6 = arith.constant 6 : index
    %c0_59 = arith.constant 0 : index
    %c0_60 = arith.constant 0 : index
    %60 = vector.load %arg4[%c6, %c0_59, %c0_60] : memref<25x32x128xbf16, #tpu.memory_space<vmem>>, vector<1x32x128xbf16>
    %61 = vector.shape_cast %60 : vector<1x32x128xbf16> to vector<32x128xbf16>
    %cst_61 = arith.constant dense<0.000000e+00> : vector<144x128xf32>
    %62 = tpu.matmul %59, %61, %cst_61 {dimension_numbers = #tpu.dot_dimension_numbers<[1], [0], [0], [1], [0, 0, 1, 1], [], []>} : vector<144x32xbf16>, vector<32x128xbf16>, vector<144x128xf32> -> vector<144x128xf32>
    %63 = arith.addf %58, %62 : vector<144x128xf32>
    %c16 = arith.constant 16 : index
    %c0_62 = arith.constant 0 : index
    %64 = vector.load %arg8[%c16, %c0_62] : memref<208x128xbf16, #tpu.memory_space<vmem>>, vector<144x32xbf16>
    %c7 = arith.constant 7 : index
    %c0_63 = arith.constant 0 : index
    %c0_64 = arith.constant 0 : index
    %65 = vector.load %arg4[%c7, %c0_63, %c0_64] : memref<25x32x128xbf16, #tpu.memory_space<vmem>>, vector<1x32x128xbf16>
    %66 = vector.shape_cast %65 : vector<1x32x128xbf16> to vector<32x128xbf16>
    %cst_65 = arith.constant dense<0.000000e+00> : vector<144x128xf32>
    %67 = tpu.matmul %64, %66, %cst_65 {dimension_numbers = #tpu.dot_dimension_numbers<[1], [0], [0], [1], [0, 0, 1, 1], [], []>} : vector<144x32xbf16>, vector<32x128xbf16>, vector<144x128xf32> -> vector<144x128xf32>
    %68 = arith.addf %63, %67 : vector<144x128xf32>
    %c17 = arith.constant 17 : index
    %c0_66 = arith.constant 0 : index
    %69 = vector.load %arg8[%c17, %c0_66] : memref<208x128xbf16, #tpu.memory_space<vmem>>, vector<144x32xbf16>
    %c8 = arith.constant 8 : index
    %c0_67 = arith.constant 0 : index
    %c0_68 = arith.constant 0 : index
    %70 = vector.load %arg4[%c8, %c0_67, %c0_68] : memref<25x32x128xbf16, #tpu.memory_space<vmem>>, vector<1x32x128xbf16>
    %71 = vector.shape_cast %70 : vector<1x32x128xbf16> to vector<32x128xbf16>
    %cst_69 = arith.constant dense<0.000000e+00> : vector<144x128xf32>
    %72 = tpu.matmul %69, %71, %cst_69 {dimension_numbers = #tpu.dot_dimension_numbers<[1], [0], [0], [1], [0, 0, 1, 1], [], []>} : vector<144x32xbf16>, vector<32x128xbf16>, vector<144x128xf32> -> vector<144x128xf32>
    %73 = arith.addf %68, %72 : vector<144x128xf32>
    %c18 = arith.constant 18 : index
    %c0_70 = arith.constant 0 : index
    %74 = vector.load %arg8[%c18, %c0_70] : memref<208x128xbf16, #tpu.memory_space<vmem>>, vector<144x32xbf16>
    %c9 = arith.constant 9 : index
    %c0_71 = arith.constant 0 : index
    %c0_72 = arith.constant 0 : index
    %75 = vector.load %arg4[%c9, %c0_71, %c0_72] : memref<25x32x128xbf16, #tpu.memory_space<vmem>>, vector<1x32x128xbf16>
    %76 = vector.shape_cast %75 : vector<1x32x128xbf16> to vector<32x128xbf16>
    %cst_73 = arith.constant dense<0.000000e+00> : vector<144x128xf32>
    %77 = tpu.matmul %74, %76, %cst_73 {dimension_numbers = #tpu.dot_dimension_numbers<[1], [0], [0], [1], [0, 0, 1, 1], [], []>} : vector<144x32xbf16>, vector<32x128xbf16>, vector<144x128xf32> -> vector<144x128xf32>
    %78 = arith.addf %73, %77 : vector<144x128xf32>
    %c28 = arith.constant 28 : index
    %c0_74 = arith.constant 0 : index
    %79 = vector.load %arg8[%c28, %c0_74] : memref<208x128xbf16, #tpu.memory_space<vmem>>, vector<144x32xbf16>
    %c10 = arith.constant 10 : index
    %c0_75 = arith.constant 0 : index
    %c0_76 = arith.constant 0 : index
    %80 = vector.load %arg4[%c10, %c0_75, %c0_76] : memref<25x32x128xbf16, #tpu.memory_space<vmem>>, vector<1x32x128xbf16>
    %81 = vector.shape_cast %80 : vector<1x32x128xbf16> to vector<32x128xbf16>
    %cst_77 = arith.constant dense<0.000000e+00> : vector<144x128xf32>
    %82 = tpu.matmul %79, %81, %cst_77 {dimension_numbers = #tpu.dot_dimension_numbers<[1], [0], [0], [1], [0, 0, 1, 1], [], []>} : vector<144x32xbf16>, vector<32x128xbf16>, vector<144x128xf32> -> vector<144x128xf32>
    %83 = arith.addf %78, %82 : vector<144x128xf32>
    %c29 = arith.constant 29 : index
    %c0_78 = arith.constant 0 : index
    %84 = vector.load %arg8[%c29, %c0_78] : memref<208x128xbf16, #tpu.memory_space<vmem>>, vector<144x32xbf16>
    %c11 = arith.constant 11 : index
    %c0_79 = arith.constant 0 : index
    %c0_80 = arith.constant 0 : index
    %85 = vector.load %arg4[%c11, %c0_79, %c0_80] : memref<25x32x128xbf16, #tpu.memory_space<vmem>>, vector<1x32x128xbf16>
    %86 = vector.shape_cast %85 : vector<1x32x128xbf16> to vector<32x128xbf16>
    %cst_81 = arith.constant dense<0.000000e+00> : vector<144x128xf32>
    %87 = tpu.matmul %84, %86, %cst_81 {dimension_numbers = #tpu.dot_dimension_numbers<[1], [0], [0], [1], [0, 0, 1, 1], [], []>} : vector<144x32xbf16>, vector<32x128xbf16>, vector<144x128xf32> -> vector<144x128xf32>
    %88 = arith.addf %83, %87 : vector<144x128xf32>
    %c30 = arith.constant 30 : index
    %c0_82 = arith.constant 0 : index
    %89 = vector.load %arg8[%c30, %c0_82] : memref<208x128xbf16, #tpu.memory_space<vmem>>, vector<144x32xbf16>
    %c12 = arith.constant 12 : index
    %c0_83 = arith.constant 0 : index
    %c0_84 = arith.constant 0 : index
    %90 = vector.load %arg4[%c12, %c0_83, %c0_84] : memref<25x32x128xbf16, #tpu.memory_space<vmem>>, vector<1x32x128xbf16>
    %91 = vector.shape_cast %90 : vector<1x32x128xbf16> to vector<32x128xbf16>
    %cst_85 = arith.constant dense<0.000000e+00> : vector<144x128xf32>
    %92 = tpu.matmul %89, %91, %cst_85 {dimension_numbers = #tpu.dot_dimension_numbers<[1], [0], [0], [1], [0, 0, 1, 1], [], []>} : vector<144x32xbf16>, vector<32x128xbf16>, vector<144x128xf32> -> vector<144x128xf32>
    %93 = arith.addf %88, %92 : vector<144x128xf32>
    %c31 = arith.constant 31 : index
    %c0_86 = arith.constant 0 : index
    %94 = vector.load %arg8[%c31, %c0_86] : memref<208x128xbf16, #tpu.memory_space<vmem>>, vector<144x32xbf16>
    %c13 = arith.constant 13 : index
    %c0_87 = arith.constant 0 : index
    %c0_88 = arith.constant 0 : index
    %95 = vector.load %arg4[%c13, %c0_87, %c0_88] : memref<25x32x128xbf16, #tpu.memory_space<vmem>>, vector<1x32x128xbf16>
    %96 = vector.shape_cast %95 : vector<1x32x128xbf16> to vector<32x128xbf16>
    %cst_89 = arith.constant dense<0.000000e+00> : vector<144x128xf32>
    %97 = tpu.matmul %94, %96, %cst_89 {dimension_numbers = #tpu.dot_dimension_numbers<[1], [0], [0], [1], [0, 0, 1, 1], [], []>} : vector<144x32xbf16>, vector<32x128xbf16>, vector<144x128xf32> -> vector<144x128xf32>
    %98 = arith.addf %93, %97 : vector<144x128xf32>
    %c32 = arith.constant 32 : index
    %c0_90 = arith.constant 0 : index
    %99 = vector.load %arg8[%c32, %c0_90] : memref<208x128xbf16, #tpu.memory_space<vmem>>, vector<144x32xbf16>
    %c14_91 = arith.constant 14 : index
    %c0_92 = arith.constant 0 : index
    %c0_93 = arith.constant 0 : index
    %100 = vector.load %arg4[%c14_91, %c0_92, %c0_93] : memref<25x32x128xbf16, #tpu.memory_space<vmem>>, vector<1x32x128xbf16>
    %101 = vector.shape_cast %100 : vector<1x32x128xbf16> to vector<32x128xbf16>
    %cst_94 = arith.constant dense<0.000000e+00> : vector<144x128xf32>
    %102 = tpu.matmul %99, %101, %cst_94 {dimension_numbers = #tpu.dot_dimension_numbers<[1], [0], [0], [1], [0, 0, 1, 1], [], []>} : vector<144x32xbf16>, vector<32x128xbf16>, vector<144x128xf32> -> vector<144x128xf32>
    %103 = arith.addf %98, %102 : vector<144x128xf32>
    %c42 = arith.constant 42 : index
    %c0_95 = arith.constant 0 : index
    %104 = vector.load %arg8[%c42, %c0_95] : memref<208x128xbf16, #tpu.memory_space<vmem>>, vector<144x32xbf16>
    %c15_96 = arith.constant 15 : index
    %c0_97 = arith.constant 0 : index
    %c0_98 = arith.constant 0 : index
    %105 = vector.load %arg4[%c15_96, %c0_97, %c0_98] : memref<25x32x128xbf16, #tpu.memory_space<vmem>>, vector<1x32x128xbf16>
    %106 = vector.shape_cast %105 : vector<1x32x128xbf16> to vector<32x128xbf16>
    %cst_99 = arith.constant dense<0.000000e+00> : vector<144x128xf32>
    %107 = tpu.matmul %104, %106, %cst_99 {dimension_numbers = #tpu.dot_dimension_numbers<[1], [0], [0], [1], [0, 0, 1, 1], [], []>} : vector<144x32xbf16>, vector<32x128xbf16>, vector<144x128xf32> -> vector<144x128xf32>
    %108 = arith.addf %103, %107 : vector<144x128xf32>
    %c43 = arith.constant 43 : index
    %c0_100 = arith.constant 0 : index
    %109 = vector.load %arg8[%c43, %c0_100] : memref<208x128xbf16, #tpu.memory_space<vmem>>, vector<144x32xbf16>
    %c16_101 = arith.constant 16 : index
    %c0_102 = arith.constant 0 : index
    %c0_103 = arith.constant 0 : index
    %110 = vector.load %arg4[%c16_101, %c0_102, %c0_103] : memref<25x32x128xbf16, #tpu.memory_space<vmem>>, vector<1x32x128xbf16>
    %111 = vector.shape_cast %110 : vector<1x32x128xbf16> to vector<32x128xbf16>
    %cst_104 = arith.constant dense<0.000000e+00> : vector<144x128xf32>
    %112 = tpu.matmul %109, %111, %cst_104 {dimension_numbers = #tpu.dot_dimension_numbers<[1], [0], [0], [1], [0, 0, 1, 1], [], []>} : vector<144x32xbf16>, vector<32x128xbf16>, vector<144x128xf32> -> vector<144x128xf32>
    %113 = arith.addf %108, %112 : vector<144x128xf32>
    %c44 = arith.constant 44 : index
    %c0_105 = arith.constant 0 : index
    %114 = vector.load %arg8[%c44, %c0_105] : memref<208x128xbf16, #tpu.memory_space<vmem>>, vector<144x32xbf16>
    %c17_106 = arith.constant 17 : index
    %c0_107 = arith.constant 0 : index
    %c0_108 = arith.constant 0 : index
    %115 = vector.load %arg4[%c17_106, %c0_107, %c0_108] : memref<25x32x128xbf16, #tpu.memory_space<vmem>>, vector<1x32x128xbf16>
    %116 = vector.shape_cast %115 : vector<1x32x128xbf16> to vector<32x128xbf16>
    %cst_109 = arith.constant dense<0.000000e+00> : vector<144x128xf32>
    %117 = tpu.matmul %114, %116, %cst_109 {dimension_numbers = #tpu.dot_dimension_numbers<[1], [0], [0], [1], [0, 0, 1, 1], [], []>} : vector<144x32xbf16>, vector<32x128xbf16>, vector<144x128xf32> -> vector<144x128xf32>
    %118 = arith.addf %113, %117 : vector<144x128xf32>
    %c45 = arith.constant 45 : index
    %c0_110 = arith.constant 0 : index
    %119 = vector.load %arg8[%c45, %c0_110] : memref<208x128xbf16, #tpu.memory_space<vmem>>, vector<144x32xbf16>
    %c18_111 = arith.constant 18 : index
    %c0_112 = arith.constant 0 : index
    %c0_113 = arith.constant 0 : index
    %120 = vector.load %arg4[%c18_111, %c0_112, %c0_113] : memref<25x32x128xbf16, #tpu.memory_space<vmem>>, vector<1x32x128xbf16>
    %121 = vector.shape_cast %120 : vector<1x32x128xbf16> to vector<32x128xbf16>
    %cst_114 = arith.constant dense<0.000000e+00> : vector<144x128xf32>
    %122 = tpu.matmul %119, %121, %cst_114 {dimension_numbers = #tpu.dot_dimension_numbers<[1], [0], [0], [1], [0, 0, 1, 1], [], []>} : vector<144x32xbf16>, vector<32x128xbf16>, vector<144x128xf32> -> vector<144x128xf32>
    %123 = arith.addf %118, %122 : vector<144x128xf32>
    %c46 = arith.constant 46 : index
    %c0_115 = arith.constant 0 : index
    %124 = vector.load %arg8[%c46, %c0_115] : memref<208x128xbf16, #tpu.memory_space<vmem>>, vector<144x32xbf16>
    %c19 = arith.constant 19 : index
    %c0_116 = arith.constant 0 : index
    %c0_117 = arith.constant 0 : index
    %125 = vector.load %arg4[%c19, %c0_116, %c0_117] : memref<25x32x128xbf16, #tpu.memory_space<vmem>>, vector<1x32x128xbf16>
    %126 = vector.shape_cast %125 : vector<1x32x128xbf16> to vector<32x128xbf16>
    %cst_118 = arith.constant dense<0.000000e+00> : vector<144x128xf32>
    %127 = tpu.matmul %124, %126, %cst_118 {dimension_numbers = #tpu.dot_dimension_numbers<[1], [0], [0], [1], [0, 0, 1, 1], [], []>} : vector<144x32xbf16>, vector<32x128xbf16>, vector<144x128xf32> -> vector<144x128xf32>
    %128 = arith.addf %123, %127 : vector<144x128xf32>
    %c56 = arith.constant 56 : index
    %c0_119 = arith.constant 0 : index
    %129 = vector.load %arg8[%c56, %c0_119] : memref<208x128xbf16, #tpu.memory_space<vmem>>, vector<144x32xbf16>
    %c20 = arith.constant 20 : index
    %c0_120 = arith.constant 0 : index
    %c0_121 = arith.constant 0 : index
    %130 = vector.load %arg4[%c20, %c0_120, %c0_121] : memref<25x32x128xbf16, #tpu.memory_space<vmem>>, vector<1x32x128xbf16>
    %131 = vector.shape_cast %130 : vector<1x32x128xbf16> to vector<32x128xbf16>
    %cst_122 = arith.constant dense<0.000000e+00> : vector<144x128xf32>
    %132 = tpu.matmul %129, %131, %cst_122 {dimension_numbers = #tpu.dot_dimension_numbers<[1], [0], [0], [1], [0, 0, 1, 1], [], []>} : vector<144x32xbf16>, vector<32x128xbf16>, vector<144x128xf32> -> vector<144x128xf32>
    %133 = arith.addf %128, %132 : vector<144x128xf32>
    %c57 = arith.constant 57 : index
    %c0_123 = arith.constant 0 : index
    %134 = vector.load %arg8[%c57, %c0_123] : memref<208x128xbf16, #tpu.memory_space<vmem>>, vector<144x32xbf16>
    %c21 = arith.constant 21 : index
    %c0_124 = arith.constant 0 : index
    %c0_125 = arith.constant 0 : index
    %135 = vector.load %arg4[%c21, %c0_124, %c0_125] : memref<25x32x128xbf16, #tpu.memory_space<vmem>>, vector<1x32x128xbf16>
    %136 = vector.shape_cast %135 : vector<1x32x128xbf16> to vector<32x128xbf16>
    %cst_126 = arith.constant dense<0.000000e+00> : vector<144x128xf32>
    %137 = tpu.matmul %134, %136, %cst_126 {dimension_numbers = #tpu.dot_dimension_numbers<[1], [0], [0], [1], [0, 0, 1, 1], [], []>} : vector<144x32xbf16>, vector<32x128xbf16>, vector<144x128xf32> -> vector<144x128xf32>
    %138 = arith.addf %133, %137 : vector<144x128xf32>
    %c58 = arith.constant 58 : index
    %c0_127 = arith.constant 0 : index
    %139 = vector.load %arg8[%c58, %c0_127] : memref<208x128xbf16, #tpu.memory_space<vmem>>, vector<144x32xbf16>
    %c22 = arith.constant 22 : index
    %c0_128 = arith.constant 0 : index
    %c0_129 = arith.constant 0 : index
    %140 = vector.load %arg4[%c22, %c0_128, %c0_129] : memref<25x32x128xbf16, #tpu.memory_space<vmem>>, vector<1x32x128xbf16>
    %141 = vector.shape_cast %140 : vector<1x32x128xbf16> to vector<32x128xbf16>
    %cst_130 = arith.constant dense<0.000000e+00> : vector<144x128xf32>
    %142 = tpu.matmul %139, %141, %cst_130 {dimension_numbers = #tpu.dot_dimension_numbers<[1], [0], [0], [1], [0, 0, 1, 1], [], []>} : vector<144x32xbf16>, vector<32x128xbf16>, vector<144x128xf32> -> vector<144x128xf32>
    %143 = arith.addf %138, %142 : vector<144x128xf32>
    %c59 = arith.constant 59 : index
    %c0_131 = arith.constant 0 : index
    %144 = vector.load %arg8[%c59, %c0_131] : memref<208x128xbf16, #tpu.memory_space<vmem>>, vector<144x32xbf16>
    %c23 = arith.constant 23 : index
    %c0_132 = arith.constant 0 : index
    %c0_133 = arith.constant 0 : index
    %145 = vector.load %arg4[%c23, %c0_132, %c0_133] : memref<25x32x128xbf16, #tpu.memory_space<vmem>>, vector<1x32x128xbf16>
    %146 = vector.shape_cast %145 : vector<1x32x128xbf16> to vector<32x128xbf16>
    %cst_134 = arith.constant dense<0.000000e+00> : vector<144x128xf32>
    %147 = tpu.matmul %144, %146, %cst_134 {dimension_numbers = #tpu.dot_dimension_numbers<[1], [0], [0], [1], [0, 0, 1, 1], [], []>} : vector<144x32xbf16>, vector<32x128xbf16>, vector<144x128xf32> -> vector<144x128xf32>
    %148 = arith.addf %143, %147 : vector<144x128xf32>
    %c60 = arith.constant 60 : index
    %c0_135 = arith.constant 0 : index
    %149 = vector.load %arg8[%c60, %c0_135] : memref<208x128xbf16, #tpu.memory_space<vmem>>, vector<144x32xbf16>
    %c24 = arith.constant 24 : index
    %c0_136 = arith.constant 0 : index
    %c0_137 = arith.constant 0 : index
    %150 = vector.load %arg4[%c24, %c0_136, %c0_137] : memref<25x32x128xbf16, #tpu.memory_space<vmem>>, vector<1x32x128xbf16>
    %151 = vector.shape_cast %150 : vector<1x32x128xbf16> to vector<32x128xbf16>
    %cst_138 = arith.constant dense<0.000000e+00> : vector<144x128xf32>
    %152 = tpu.matmul %149, %151, %cst_138 {dimension_numbers = #tpu.dot_dimension_numbers<[1], [0], [0], [1], [0, 0, 1, 1], [], []>} : vector<144x32xbf16>, vector<32x128xbf16>, vector<144x128xf32> -> vector<144x128xf32>
    %153 = arith.addf %148, %152 : vector<144x128xf32>
    %154 = vector.extract_strided_slice %153 {offsets = [0, 0], sizes = [142, 128], strides = [1, 1]} : vector<144x128xf32> to vector<142x128xf32>
    %155 = vector.extract_strided_slice %153 {offsets = [1, 0], sizes = [142, 128], strides = [1, 1]} : vector<144x128xf32> to vector<142x128xf32>
    %156 = arith.maximumf %154, %155 : vector<142x128xf32>
    %157 = vector.extract_strided_slice %156 {offsets = [0, 0], sizes = [128, 128], strides = [1, 1]} : vector<142x128xf32> to vector<128x128xf32>
    %158 = vector.extract_strided_slice %156 {offsets = [14, 0], sizes = [128, 128], strides = [1, 1]} : vector<142x128xf32> to vector<128x128xf32>
    %159 = arith.maximumf %157, %158 : vector<128x128xf32>
    %c0_139 = arith.constant 0 : index
    %c0_140 = arith.constant 0 : index
    %160 = vector.load %arg6[%c0_139, %c0_140] : memref<32x128xf32, #tpu.memory_space<vmem>>, vector<32x128xf32>
    %cst_141 = arith.constant dense<0.000000e+00> : vector<32x128xf32>
    %161 = tpu.matmul %160, %159, %cst_141 {dimension_numbers = #tpu.dot_dimension_numbers<[1], [0], [0], [1], [0, 0, 1, 1], [], []>} : vector<32x128xf32>, vector<128x128xf32>, vector<32x128xf32> -> vector<32x128xf32>
    %c0_142 = arith.constant 0 : index
    %c0_143 = arith.constant 0 : index
    %162 = vector.load %arg5[%c0_142, %c0_143] : memref<1x128xf32, #tpu.memory_space<vmem>>, vector<1x128xf32>
    %163 = vector.broadcast %162 : vector<1x128xf32> to vector<32x128xf32>
    %164 = arith.addf %161, %163 : vector<32x128xf32>
    %cst_144 = arith.constant 0.000000e+00 : f32
    %165 = vector.broadcast %cst_144 : f32 to vector<32x128xf32>
    %166 = arith.maximumf %164, %165 : vector<32x128xf32>
    %c0_145 = arith.constant 0 : index
    %c0_146 = arith.constant 0 : index
    %c0_147 = arith.constant 0 : index
    %167 = vector.load %arg7[%c0_145, %c0_146, %c0_147] : memref<1x32x128xf32, #tpu.memory_space<vmem>>, vector<1x32x128xf32>
    %168 = vector.shape_cast %167 : vector<1x32x128xf32> to vector<32x128xf32>
    %169 = vector.shape_cast %166 : vector<32x128xf32> to vector<1x32x128xf32>
    tpu.vector_store %arg7[%c0_145, %c0_146, %c0_147], %169 {strides = array<i32>} : memref<1x32x128xf32, #tpu.memory_space<vmem>>, vector<1x32x128xf32>,
    return
  }
  func.func @transform_0(%arg0: i32) -> (i32, i32, i32) {
    %c0_i32 = arith.constant 0 : i32
    %c0_i32_0 = arith.constant 0 : i32
    %c0_i32_1 = arith.constant 0 : i32
    return %arg0, %c0_i32, %c0_i32_0 : i32, i32, i32
  }
  func.func @transform_1(%arg0: i32) -> (i32, i32) {
    %c0_i32 = arith.constant 0 : i32
    %c0_i32_0 = arith.constant 0 : i32
    %c0_i32_1 = arith.constant 0 : i32
    return %c0_i32, %c0_i32_0 : i32, i32
  }
  func.func @transform_2(%arg0: i32) -> (i32, i32) {
    %c0_i32 = arith.constant 0 : i32
    %c0_i32_0 = arith.constant 0 : i32
    %c0_i32_1 = arith.constant 0 : i32
    return %c0_i32, %c0_i32_0 : i32, i32
  }
  func.func @transform_3(%arg0: i32) -> (i32, i32, i32) {
    %c0_i32 = arith.constant 0 : i32
    %c0_i32_0 = arith.constant 0 : i32
    %c0_i32_1 = arith.constant 0 : i32
    %c0_i32_2 = arith.constant 0 : i32
    return %c0_i32, %c0_i32_0, %c0_i32_1 : i32, i32, i32
  }
  func.func @transform_4(%arg0: i32) -> (i32, i32) {
    %c0_i32 = arith.constant 0 : i32
    %c0_i32_0 = arith.constant 0 : i32
    %c0_i32_1 = arith.constant 0 : i32
    return %c0_i32, %c0_i32_0 : i32, i32
  }
  func.func @transform_5(%arg0: i32) -> (i32, i32) {
    %c0_i32 = arith.constant 0 : i32
    %c0_i32_0 = arith.constant 0 : i32
    %c0_i32_1 = arith.constant 0 : i32
    return %c0_i32, %c0_i32_0 : i32, i32
  }
  func.func @transform_6(%arg0: i32) -> (i32, i32, i32) {
    %c0_i32 = arith.constant 0 : i32
    %c0_i32_0 = arith.constant 0 : i32
    %c0_i32_1 = arith.constant 0 : i32
    return %arg0, %c0_i32, %c0_i32_0 : i32, i32, i32
  }
}

</mosaic_0001>

<llo_original>
// kernel: cnn_forward.1
$region0: #{cnn_forward.1}
  #allocation0 [shape = 'u32[]', space=smem, size = 0x4, offset = 0x4, fixed_abs, tag = 'smem constant byte address 0x4 - core index']
  #allocation1 [shape = 'u32[144,128]{1,0:T(1,128)}', space=vmem, size = 0x12000, scoped, tag = 'internal scratch']
  #allocation2 [shape = 'bf16[208,128]{1,0:T(16,128)(2,1)}', space=vmem, size = 0xd000, scoped, tag = 'scratch operand']
  %s0 = inlined_call_operand.vmem [shape: bf16[2,800,128], index: 0, kind: input, shape index: {}]
  %s1 = inlined_call_operand.vmem [shape: bf16[128,128], index: 1, kind: input, shape index: {}]
  %s2 = inlined_call_operand.vmem [shape: f32[1,128], index: 2, kind: input, shape index: {}]
  %s3 = inlined_call_operand.vmem [shape: bf16[25,32,128], index: 3, kind: input, shape index: {}]
  %s4 = inlined_call_operand.vmem [shape: f32[1,128], index: 4, kind: input, shape index: {}]
  %s5 = inlined_call_operand.vmem [shape: f32[32,128], index: 5, kind: input, shape index: {}]
  %s6 = inlined_call_operand.vmem [shape: f32[2,32,128], index: 6, kind: output, shape index: {}]
  %s7 = sld [smem:[#allocation0]]
  $region57: #{cnn_forward.1} parent=0
    _
  %s9 = ssub.s32 1, %s7
  %s10 = scalar_select 0, %s9, %s7
  loop: start=0, step=1, limit=4
  $region2: #{cnn_forward.1} parent=0 // loop_pre_header
    _
  $region3: #{cnn_forward.1} parent=0 // loop_header
    %s12 = sphi 0, %s16
    %p13 = scmp.ge.s32.totalorder %s12, 4
    %s22 = sphi 0, %s24
    %s25 = sphi 0, %s22
    %s26 = sphi 0, %s25
    %s42 = sphi 0, %s26
    %s46 = sphi 0, %s46
    %s48 = sphi 0, %s46
    %s49 = sphi 0, %s48
    %s63 = sphi 0, %s49
    %s67 = sphi 0, %s67
    %s69 = sphi 0, %s67
    %s70 = sphi 0, %s69
    %s84 = sphi 0, %s70
    %s88 = sphi 0, %s88
    %s90 = sphi 0, %s88
    %s91 = sphi 0, %s90
    %s105 = sphi 0, %s91
    %s109 = sphi 0, %s109
    %s111 = sphi 0, %s109
    %s112 = sphi 0, %s111
    %s126 = sphi 0, %s112
    %s130 = sphi 0, %s130
    %s132 = sphi 0, %s130
    %s133 = sphi 0, %s132
    %s147 = sphi 0, %s133
    %s153 = sphi 0, %s155
    %s156 = sphi 0, %s153
    %s157 = sphi 0, %s156
    %s173 = sphi 0, %s157
  $region4: #{cnn_forward.1} parent=0 // loop_header_branch
    %15 = sbr.rel (%p13) target = $region8
  $region5: #{cnn_forward.1} parent=0 // loop_body
    %s17 = ssub.s32 %s12, 1
    %s18 = ssub.s32 %s12, 2
    %s19 = sadd.s32 %s12, 1
    %s20 = ssub.s32 %s12, %s19
    %p21 = scmp.eq.s32.totalorder %s20, 0
    %s23 = sadd.s32 %s22, 1
    %s24 = scalar_select %p21, %s22, %s23
    %p27 = pneg %p21
    %p28 = scmp.eq.s32.totalorder %s12, 1
    %p29 = por %p27, %p28
    %p30 = scmp.ne.s32.totalorder %s22, %s25
    %p31 = scmp.eq.s32.totalorder %s12, 0
    %p32 = por %p30, %p31
    %p33 = scmp.ne.s32.totalorder %s22, %s25
    %p34 = scmp.eq.s32.totalorder %s17, 1
    %p35 = por %p33, %p34
    %p36 = scmp.ne.s32.totalorder %s25, %s26
    %p37 = scmp.eq.s32.totalorder %s17, 0
    %p38 = por %p36, %p37
    %p39 = scmp.ne.s32.totalorder %s25, %s26
    %p40 = scmp.eq.s32.totalorder %s18, 1
    %p41 = por %p39, %p40
    %p43 = scmp.ne.s32.totalorder %s26, %s42
    %p44 = scmp.eq.s32.totalorder %s18, 0
    %p45 = por %p43, %p44
    %s47 = sadd.s32 %s46, 1
    %p50 = scmp.eq.s32.totalorder %s12, 1
    %p51 = scmp.ne.s32.totalorder %s46, %s48
    %p52 = scmp.eq.s32.totalorder %s12, 0
    %p53 = por %p51, %p52
    %p54 = scmp.ne.s32.totalorder %s46, %s48
    %p55 = scmp.eq.s32.totalorder %s17, 1
    %p56 = por %p54, %p55
    %p57 = scmp.ne.s32.totalorder %s48, %s49
    %p58 = scmp.eq.s32.totalorder %s17, 0
    %p59 = por %p57, %p58
    %p60 = scmp.ne.s32.totalorder %s48, %s49
    %p61 = scmp.eq.s32.totalorder %s18, 1
    %p62 = por %p60, %p61
    %p64 = scmp.ne.s32.totalorder %s49, %s63
    %p65 = scmp.eq.s32.totalorder %s18, 0
    %p66 = por %p64, %p65
    %s68 = sadd.s32 %s67, 1
    %p71 = scmp.eq.s32.totalorder %s12, 1
    %p72 = scmp.ne.s32.totalorder %s67, %s69
    %p73 = scmp.eq.s32.totalorder %s12, 0
    %p74 = por %p72, %p73
    %p75 = scmp.ne.s32.totalorder %s67, %s69
    %p76 = scmp.eq.s32.totalorder %s17, 1
    %p77 = por %p75, %p76
    %p78 = scmp.ne.s32.totalorder %s69, %s70
    %p79 = scmp.eq.s32.totalorder %s17, 0
    %p80 = por %p78, %p79
    %p81 = scmp.ne.s32.totalorder %s69, %s70
    %p82 = scmp.eq.s32.totalorder %s18, 1
    %p83 = por %p81, %p82
    %p85 = scmp.ne.s32.totalorder %s70, %s84
    %p86 = scmp.eq.s32.totalorder %s18, 0
    %p87 = por %p85, %p86
    %s89 = sadd.s32 %s88, 1
    %p92 = scmp.eq.s32.totalorder %s12, 1
    %p93 = scmp.ne.s32.totalorder %s88, %s90
    %p94 = scmp.eq.s32.totalorder %s12, 0
    %p95 = por %p93, %p94
    %p96 = scmp.ne.s32.totalorder %s88, %s90
    %p97 = scmp.eq.s32.totalorder %s17, 1
    %p98 = por %p96, %p97
    %p99 = scmp.ne.s32.totalorder %s90, %s91
    %p100 = scmp.eq.s32.totalorder %s17, 0
    %p101 = por %p99, %p100
    %p102 = scmp.ne.s32.totalorder %s90, %s91
    %p103 = scmp.eq.s32.totalorder %s18, 1
    %p104 = por %p102, %p103
    %p106 = scmp.ne.s32.totalorder %s91, %s105
    %p107 = scmp.eq.s32.totalorder %s18, 0
    %p108 = por %p106, %p107
    %s110 = sadd.s32 %s109, 1
    %p113 = scmp.eq.s32.totalorder %s12, 1
    %p114 = scmp.ne.s32.totalorder %s109, %s111
    %p115 = scmp.eq.s32.totalorder %s12, 0
    %p116 = por %p114, %p115
    %p117 = scmp.ne.s32.totalorder %s109, %s111
    %p118 = scmp.eq.s32.totalorder %s17, 1
    %p119 = por %p117, %p118
    %p120 = scmp.ne.s32.totalorder %s111, %s112
    %p121 = scmp.eq.s32.totalorder %s17, 0
    %p122 = por %p120, %p121
    %p123 = scmp.ne.s32.totalorder %s111, %s112
    %p124 = scmp.eq.s32.totalorder %s18, 1
    %p125 = por %p123, %p124
    %p127 = scmp.ne.s32.totalorder %s112, %s126
    %p128 = scmp.eq.s32.totalorder %s18, 0
    %p129 = por %p127, %p128
    %s131 = sadd.s32 %s130, 1
    %p134 = scmp.eq.s32.totalorder %s12, 1
    %p135 = scmp.ne.s32.totalorder %s130, %s132
    %p136 = scmp.eq.s32.totalorder %s12, 0
    %p137 = por %p135, %p136
    %p138 = scmp.ne.s32.totalorder %s130, %s132
    %p139 = scmp.eq.s32.totalorder %s17, 1
    %p140 = por %p138, %p139
    %p141 = scmp.ne.s32.totalorder %s132, %s133
    %p142 = scmp.eq.s32.totalorder %s17, 0
    %p143 = por %p141, %p142
    %p144 = scmp.ne.s32.totalorder %s132, %s133
    %p145 = scmp.eq.s32.totalorder %s18, 1
    %p146 = por %p144, %p145
    %p148 = scmp.ne.s32.totalorder %s133, %s147
    %p149 = scmp.eq.s32.totalorder %s18, 0
    %p150 = por %p148, %p149
    %s151 = ssub.s32 %s12, %s19
    %p152 = scmp.eq.s32.totalorder %s151, 0
    %s154 = sadd.s32 %s153, 1
    %s155 = scalar_select %p152, %s153, %s154
    %p158 = pneg %p152
    %p159 = scmp.eq.s32.totalorder %s12, 1
    %p160 = por %p158, %p159
    %p161 = scmp.ne.s32.totalorder %s153, %s156
    %p162 = scmp.eq.s32.totalorder %s12, 0
    %p163 = por %p161, %p162
    %p164 = scmp.ne.s32.totalorder %s153, %s156
    %p165 = scmp.eq.s32.totalorder %s17, 1
    %p166 = por %p164, %p165
    %p167 = scmp.ne.s32.totalorder %s156, %s157
    %p168 = scmp.eq.s32.totalorder %s17, 0
    %p169 = por %p167, %p168
    %p170 = scmp.ne.s32.totalorder %s156, %s157
    %p171 = scmp.eq.s32.totalorder %s18, 1
    %p172 = por %p170, %p171
    %p174 = scmp.ne.s32.totalorder %s157, %s173
    %p175 = scmp.eq.s32.totalorder %s18, 0
    %p176 = por %p174, %p175
    %p177 = scmp.le.s32.totalorder 1, %s12
    %p178 = scmp.lt.s32.totalorder %s12, 3
    %p179 = pnand %p177, %p178
    %p180 = pneg %p179
    // Predicated region
    $region9: #{cnn_forward.1} parent=5 // pred_check
      _
    $region10: #{cnn_forward.1} parent=5 // pred_check_branch
      %182 = sbr.rel (%p179) target = $region12
    $region11: #{cnn_forward.1} parent=5 // pred_region
      %s183 = ssub.s32 %s12, 1
      // Predicated region
      $region13: #{cnn_forward.1} parent=11 // pred_check
        %p184 = pneg %p59
      $region14: #{cnn_forward.1} parent=11 // pred_check_branch
        %186 = sbr.rel (%p184) target = $region16
      $region15: #{cnn_forward.1} parent=11 // pred_region
        _
      $region16: #{cnn_forward.1} parent=11 // pred_fallthru
        _
      // Predicated region
      $region17: #{cnn_forward.1} parent=11 // pred_check
        %p187 = pneg %p80
      $region18: #{cnn_forward.1} parent=11 // pred_check_branch
        %189 = sbr.rel (%p187) target = $region20
      $region19: #{cnn_forward.1} parent=11 // pred_region
        _
      $region20: #{cnn_forward.1} parent=11 // pred_fallthru
        _
      // Predicated region
      $region21: #{cnn_forward.1} parent=11 // pred_check
        %p190 = pneg %p101
      $region22: #{cnn_forward.1} parent=11 // pred_check_branch
        %192 = sbr.rel (%p190) target = $region24
      $region23: #{cnn_forward.1} parent=11 // pred_region
        _
      $region24: #{cnn_forward.1} parent=11 // pred_fallthru
        _
      // Predicated region
      $region25: #{cnn_forward.1} parent=11 // pred_check
        %p193 = pneg %p122
      $region26: #{cnn_forward.1} parent=11 // pred_check_branch
        %195 = sbr.rel (%p193) target = $region28
      $region27: #{cnn_forward.1} parent=11 // pred_region
        _
      $region28: #{cnn_forward.1} parent=11 // pred_fallthru
        _
      // Predicated region
      $region29: #{cnn_forward.1} parent=11 // pred_check
        %p196 = pneg %p143
      $region30: #{cnn_forward.1} parent=11 // pred_check_branch
        %198 = sbr.rel (%p196) target = $region32
      $region31: #{cnn_forward.1} parent=11 // pred_region
        _
      $region32: #{cnn_forward.1} parent=11 // pred_fallthru
        _
    $region12: #{cnn_forward.1} parent=5 // pred_fallthru
      _
    %p199 = scmp.lt.s32.totalorder %s12, 2
    // Predicated region
    $region33: #{cnn_forward.1} parent=5 // pred_check
      %p200 = pneg %p199
    $region34: #{cnn_forward.1} parent=5 // pred_check_branch
      %202 = sbr.rel (%p200) target = $region36
    $region35: #{cnn_forward.1} parent=5 // pred_region
      // Predicated region
      $region37: #{cnn_forward.1} parent=35 // pred_check
        %p203 = pneg %p32
      $region38: #{cnn_forward.1} parent=35 // pred_check_branch
        %205 = sbr.rel (%p203) target = $region40
      $region39: #{cnn_forward.1} parent=35 // pred_region
        %p206 = scmp.lt.s32.totalorder %s12, 1
        %s207 = scalar_select %p206, %s12, 1
        %s208 = smul.addr %s207, 100
        %s209 = smul.addr %s208, 4
        %s210 = scalar_lea.vmem %s0, %s209
      $region40: #{cnn_forward.1} parent=35 // pred_fallthru
        _
    $region36: #{cnn_forward.1} parent=5 // pred_fallthru
      _
    %p211 = scmp.le.s32.totalorder 1, %s12
    %p212 = scmp.lt.s32.totalorder %s12, 3
    %p213 = pnand %p211, %p212
    %p214 = pneg %p213
    // Predicated region
    $region41: #{cnn_forward.1} parent=5 // pred_check
      _
    $region42: #{cnn_forward.1} parent=5 // pred_check_branch
      %216 = sbr.rel (%p213) target = $region44
    $region43: #{cnn_forward.1} parent=5 // pred_region
      %s217 = ssub.s32 %s12, 1
      %p218 = scmp.lt.s32.totalorder %s17, 1
      %s219 = scalar_select %p218, %s17, 1
      %s220 = smul.addr %s219, 100
      %s221 = smul.addr %s220, 4
      %s222 = scalar_lea.vmem %s0, %s221
      %p223 = pneg %p38
      %p224 = pneg %p35
      %p225 = pneg %p59
      %p226 = pneg %p56
      %p227 = pneg %p80
      %p228 = pneg %p77
      %p229 = pneg %p101
      %p230 = pneg %p98
      %p231 = pneg %p122
      %p232 = pneg %p119
      %p233 = pneg %p143
      %p234 = pneg %p140
      %p235 = pneg %p169
      %p236 = pneg %p166
      %p237 = scmp.lt.s32.totalorder %s17, 1
      %s238 = scalar_select %p237, %s17, 1
      %s239 = smul.addr %s238, 4
      %s240 = smul.addr %s239, 8
      %s241 = scalar_lea.vmem %s6, %s240
      %p242 = scmp.lt.s32.totalorder %s17, 1
      %s243 = scalar_select %p242, %s17, 1
      %s244 = smul.addr %s243, 100
      %s245 = smul.addr %s244, 4
      %s246 = scalar_lea.vmem %s0, %s245
      %p247 = scmp.lt.s32.totalorder %s17, 1
      %s248 = scalar_select %p247, %s17, 1
      %s249 = smul.addr %s248, 4
      %s250 = smul.addr %s249, 8
      %s251 = scalar_lea.vmem %s6, %s250
      %v253 = vld [vmem:[%s246] sm:$0xf]
      %v254 = vld [vmem:[%s246 + $0x4] sm:$0xf]
      %v255 = vld [vmem:[%s246 + $0x8] sm:$0xf]
      %v256 = vld [vmem:[%s246 + $0xc] sm:$0xf]
      %v257 = vld [vmem:[%s246 + $0x10] sm:$0xf]
      %v258 = vld [vmem:[%s246 + $0x14] sm:$0xf]
      %v259 = vld [vmem:[%s246 + $0x18] sm:$0xf]
      %v260 = vld [vmem:[%s246 + $0x1c] sm:$0xf]
      %v261 = vld [vmem:[%s246 + $0x20] sm:$0xf]
      %v262 = vld [vmem:[%s246 + $0x24] sm:$0xf]
      %v263 = vld [vmem:[%s246 + $0x28] sm:$0xf]
      %v264 = vld [vmem:[%s246 + $0x2c] sm:$0xf]
      %v265 = vld [vmem:[%s246 + $0x30] sm:$0xf]
      %v266 = vld [vmem:[%s246 + $0x34] sm:$0xf]
      %v267 = vld [vmem:[%s246 + $0x38] sm:$0xf]
      %v268 = vld [vmem:[%s246 + $0x3c] sm:$0xf]
      %v269 = vld [vmem:[%s246 + $0x40] sm:$0xf]
      %v270 = vld [vmem:[%s246 + $0x44] sm:$0xf]
      %v271 = vld [vmem:[%s246 + $0x48] sm:$0xf]
      %v272 = vld [vmem:[%s246 + $0x4c] sm:$0xf]
      %v273 = vld [vmem:[%s246 + $0x50] sm:$0xf]
      %v274 = vld [vmem:[%s246 + $0x54] sm:$0xf]
      %v275 = vld [vmem:[%s246 + $0x58] sm:$0xf]
      %v276 = vld [vmem:[%s246 + $0x5c] sm:$0xf]
      %v277 = vld [vmem:[%s246 + $0x60] sm:$0xf]
      %v278 = vld [vmem:[%s1] sm:$0xf]
      %v279 = vld [vmem:[%s1 + $0x4] sm:$0xf]
      %v280 = vld [vmem:[%s1 + $0x8] sm:$0xf]
      %v281 = vld [vmem:[%s1 + $0xc] sm:$0xf]
      %v282 = vld [vmem:[%s1 + $0x10] sm:$0xf]
      %v283 = vld [vmem:[%s1 + $0x14] sm:$0xf]
      %v284 = vld [vmem:[%s1 + $0x18] sm:$0xf]
      %v285 = vld [vmem:[%s1 + $0x1c] sm:$0xf]
      %v286 = vld [vmem:[%s1 + $0x20] sm:$0xf]
      %v287 = vld [vmem:[%s1 + $0x24] sm:$0xf]
      %v288 = vld [vmem:[%s1 + $0x28] sm:$0xf]
      %v289 = vld [vmem:[%s1 + $0x2c] sm:$0xf]
      %v290 = vld [vmem:[%s1 + $0x30] sm:$0xf]
      %v291 = vld [vmem:[%s1 + $0x34] sm:$0xf]
      %v292 = vld [vmem:[%s1 + $0x38] sm:$0xf]
      %v293 = vld [vmem:[%s1 + $0x3c] sm:$0xf]
      %v319 = vunpack.c.l.b16 %v253
      %v320 = vunpack.c.l.b16 %v254
      %v321 = vunpack.c.l.b16 %v255
      %v322 = vunpack.c.l.b16 %v256
      %v323 = vunpack.c.l.b16 %v257
      %v324 = vunpack.c.l.b16 %v258
      %v325 = vunpack.c.l.b16 %v259
      %v326 = vunpack.c.l.b16 %v260
      %v327 = vunpack.c.l.b16 %v261
      %v328 = vunpack.c.l.b16 %v262
      %v329 = vunpack.c.l.b16 %v263
      %v330 = vunpack.c.l.b16 %v264
      %v331 = vunpack.c.l.b16 %v265
      %v332 = vunpack.c.l.b16 %v266
      %v333 = vunpack.c.l.b16 %v267
      %v334 = vunpack.c.l.b16 %v268
      %v335 = vunpack.c.l.b16 %v269
      %v336 = vunpack.c.l.b16 %v270
      %v337 = vunpack.c.l.b16 %v271
      %v338 = vunpack.c.l.b16 %v272
      %v339 = vunpack.c.l.b16 %v273
      %v340 = vunpack.c.l.b16 %v274
      %v341 = vunpack.c.l.b16 %v275
      %v342 = vunpack.c.l.b16 %v276
      %v343 = vunpack.c.l.b16 %v277
      %v344 = vpack.c.b16 %v320, %v319
      %v345 = vpack.c.b16 %v322, %v321
      %v346 = vpack.c.b16 %v324, %v323
      %v347 = vpack.c.b16 %v326, %v325
      %v348 = vpack.c.b16 %v328, %v327
      %v349 = vpack.c.b16 %v330, %v329
      %v350 = vpack.c.b16 %v332, %v331
      %v351 = vpack.c.b16 %v334, %v333
      %v352 = vpack.c.b16 %v336, %v335
      %v353 = vpack.c.b16 %v338, %v337
      %v354 = vpack.c.b16 %v340, %v339
      %v355 = vpack.c.b16 %v342, %v341
      %v356 = vpack.c.b16 %v343, %v343
      %v386 = vunpack.c.l.b16 %v278
      %v387 = vunpack.c.l.b16 %v279
      %v388 = vunpack.c.l.b16 %v280
      %v389 = vunpack.c.l.b16 %v281
      %v390 = vunpack.c.l.b16 %v282
      %v391 = vunpack.c.l.b16 %v283
      %v392 = vunpack.c.l.b16 %v284
      %v393 = vunpack.c.l.b16 %v285
      %v394 = vunpack.c.l.b16 %v286
      %v395 = vunpack.c.l.b16 %v287
      %v396 = vunpack.c.l.b16 %v288
      %v397 = vunpack.c.l.b16 %v289
      %v398 = vunpack.c.l.b16 %v290
      %v399 = vunpack.c.l.b16 %v291
      %v400 = vunpack.c.l.b16 %v292
      %v401 = vunpack.c.l.b16 %v293
      %v402 = vpack.c.b16 %v387, %v386
      %v403 = vpack.c.b16 %v389, %v388
      %v404 = vpack.c.b16 %v391, %v390
      %v405 = vpack.c.b16 %v393, %v392
      %v406 = vpack.c.b16 %v395, %v394
      %v407 = vpack.c.b16 %v397, %v396
      %v408 = vpack.c.b16 %v399, %v398
      %v409 = vpack.c.b16 %v401, %v400
      %418 = vmatprep.subr.bf16.mxu0 0
      %419 = vmatpush1.bf16.msra.mxu0 %v402
      %420 = vmatprep.subr.bf16.mxu0 0
      %421 = vmatpush1.bf16.msra.mxu0 %v403
      %422 = vmatprep.subr.bf16.mxu0 0
      %423 = vmatpush1.bf16.msra.mxu0 %v404
      %424 = vmatprep.subr.bf16.mxu0 0
      %425 = vmatpush1.bf16.msra.mxu0 %v405
      %426 = vmatprep.subr.bf16.mxu0 0
      %427 = vmatpush1.bf16.msra.mxu0 %v406
      %428 = vmatprep.subr.bf16.mxu0 0
      %429 = vmatpush1.bf16.msra.mxu0 %v407
      %430 = vmatprep.subr.bf16.mxu0 0
      %431 = vmatpush1.bf16.msra.mxu0 %v408
      %432 = vmatprep.subr.bf16.mxu0 0
      %433 = vmatpush1.bf16.msra.mxu0 %v409
      %434 = vmatprep.subr.bf16.mxu0 0
      %435 = vmatpush1.bf16.msra.mxu0 0
      %436 = vmatprep.subr.bf16.mxu0 0
      %437 = vmatpush1.bf16.msra.mxu0 0
      %438 = vmatprep.subr.bf16.mxu0 0
      %439 = vmatpush1.bf16.msra.mxu0 0
      %440 = vmatprep.subr.bf16.mxu0 0
      %441 = vmatpush1.bf16.msra.mxu0 0
      %442 = vmatprep.subr.bf16.mxu0 0
      %443 = vmatpush1.bf16.msra.mxu0 0
      %444 = vmatprep.subr.bf16.mxu0 0
      %445 = vmatpush1.bf16.msra.mxu0 0
      %446 = vmatprep.subr.bf16.mxu0 0
      %447 = vmatpush1.bf16.msra.mxu0 0
      %448 = vmatprep.subr.bf16.mxu0 0
      %449 = vmatpush1.bf16.msra.mxu0 0
      %450 = vmatprep.mubr.bf16.mxu0 0
      %451 = vmatmul.mubr.bf16.gmra.mrb[0].mxu0 %v344
      %v452 = vpop.f32.mrb[0].mxu0
      %v453 = vadd.f32 0.0, %v452
      %v454 = vpop.f32.mrb[0].mxu0
      %v455 = vpop.f32.mrb[0].mxu0
      %v456 = vadd.f32 0.0, %v455
      %v457 = vpop.f32.mrb[0].mxu0
      %458 = vmatprep.mubr.bf16.mxu0 0
      %459 = vmatmul.mubr.bf16.gmra.mrb[0].mxu0 %v345
      %v460 = vpop.f32.mrb[0].mxu0
      %v461 = vadd.f32 0.0, %v460
      %v462 = vpop.f32.mrb[0].mxu0
      %v463 = vpop.f32.mrb[0].mxu0
      %v464 = vadd.f32 0.0, %v463
      %v465 = vpop.f32.mrb[0].mxu0
      %466 = vmatprep.mubr.bf16.mxu0 0
      %467 = vmatmul.mubr.bf16.gmra.mrb[0].mxu0 %v346
      %v468 = vpop.f32.mrb[0].mxu0
      %v469 = vadd.f32 0.0, %v468
      %v470 = vpop.f32.mrb[0].mxu0
      %v471 = vpop.f32.mrb[0].mxu0
      %v472 = vadd.f32 0.0, %v471
      %v473 = vpop.f32.mrb[0].mxu0
      %474 = vmatprep.mubr.bf16.mxu0 0
      %475 = vmatmul.mubr.bf16.gmra.mrb[0].mxu0 %v347
      %v476 = vpop.f32.mrb[0].mxu0
      %v477 = vadd.f32 0.0, %v476
      %v478 = vpop.f32.mrb[0].mxu0
      %v479 = vpop.f32.mrb[0].mxu0
      %v480 = vadd.f32 0.0, %v479
      %v481 = vpop.f32.mrb[0].mxu0
      %482 = vmatprep.mubr.bf16.mxu0 0
      %483 = vmatmul.mubr.bf16.gmra.mrb[0].mxu0 %v348
      %v484 = vpop.f32.mrb[0].mxu0
      %v485 = vadd.f32 0.0, %v484
      %v486 = vpop.f32.mrb[0].mxu0
      %v487 = vpop.f32.mrb[0].mxu0
      %v488 = vadd.f32 0.0, %v487
      %v489 = vpop.f32.mrb[0].mxu0
      %490 = vmatprep.mubr.bf16.mxu0 0
      %491 = vmatmul.mubr.bf16.gmra.mrb[0].mxu0 %v349
      %v492 = vpop.f32.mrb[0].mxu0
      %v493 = vadd.f32 0.0, %v492
      %v494 = vpop.f32.mrb[0].mxu0
      %v495 = vpop.f32.mrb[0].mxu0
      %v496 = vadd.f32 0.0, %v495
      %v497 = vpop.f32.mrb[0].mxu0
      %498 = vmatprep.mubr.bf16.mxu0 0
      %499 = vmatmul.mubr.bf16.gmra.mrb[0].mxu0 %v350
      %v500 = vpop.f32.mrb[0].mxu0
      %v501 = vadd.f32 0.0, %v500
      %v502 = vpop.f32.mrb[0].mxu0
      %v503 = vpop.f32.mrb[0].mxu0
      %v504 = vadd.f32 0.0, %v503
      %v505 = vpop.f32.mrb[0].mxu0
      %506 = vmatprep.mubr.bf16.mxu0 0
      %507 = vmatmul.mubr.bf16.gmra.mrb[0].mxu0 %v351
      %v508 = vpop.f32.mrb[0].mxu0
      %v509 = vadd.f32 0.0, %v508
      %v510 = vpop.f32.mrb[0].mxu0
      %v511 = vpop.f32.mrb[0].mxu0
      %v512 = vadd.f32 0.0, %v511
      %v513 = vpop.f32.mrb[0].mxu0
      %514 = vmatprep.mubr.bf16.mxu0 0
      %515 = vmatmul.mubr.bf16.gmra.mrb[0].mxu0 %v352
      %v516 = vpop.f32.mrb[0].mxu0
      %v517 = vadd.f32 0.0, %v516
      %v518 = vpop.f32.mrb[0].mxu0
      %v519 = vpop.f32.mrb[0].mxu0
      %v520 = vadd.f32 0.0, %v519
      %v521 = vpop.f32.mrb[0].mxu0
      %522 = vmatprep.mubr.bf16.mxu0 0
      %523 = vmatmul.mubr.bf16.gmra.mrb[0].mxu0 %v353
      %v524 = vpop.f32.mrb[0].mxu0
      %v525 = vadd.f32 0.0, %v524
      %v526 = vpop.f32.mrb[0].mxu0
      %v527 = vpop.f32.mrb[0].mxu0
      %v528 = vadd.f32 0.0, %v527
      %v529 = vpop.f32.mrb[0].mxu0
      %530 = vmatprep.mubr.bf16.mxu0 0
      %531 = vmatmul.mubr.bf16.gmra.mrb[0].mxu0 %v354
      %v532 = vpop.f32.mrb[0].mxu0
      %v533 = vadd.f32 0.0, %v532
      %v534 = vpop.f32.mrb[0].mxu0
      %v535 = vpop.f32.mrb[0].mxu0
      %v536 = vadd.f32 0.0, %v535
      %v537 = vpop.f32.mrb[0].mxu0
      %538 = vmatprep.mubr.bf16.mxu0 0
      %539 = vmatmul.mubr.bf16.gmra.mrb[0].mxu0 %v355
      %v540 = vpop.f32.mrb[0].mxu0
      %v541 = vadd.f32 0.0, %v540
      %v542 = vpop.f32.mrb[0].mxu0
      %v543 = vpop.f32.mrb[0].mxu0
      %v544 = vadd.f32 0.0, %v543
      %v545 = vpop.f32.mrb[0].mxu0
      %546 = vmatprep.mubr.bf16.mxu0 0
      %547 = vmatmul.mubr.bf16.gmra.mrb[0].mxu0 %v356
      %v548 = vpop.f32.mrb[0].mxu0
      %v549 = vadd.f32 0.0, %v548
      %v550 = vpop.f32.mrb[0].mxu0
      %v551 = vpop.f32.mrb[0].mxu0
      %v552 = vpop.f32.mrb[0].mxu0
      %553 = vdwg.mxu0
      %v554 = vld [vmem:[%s246 + $0x64] sm:$0xf]
      %v555 = vld [vmem:[%s246 + $0x68] sm:$0xf]
      %v556 = vld [vmem:[%s246 + $0x6c] sm:$0xf]
      %v557 = vld [vmem:[%s246 + $0x70] sm:$0xf]
      %v558 = vld [vmem:[%s246 + $0x74] sm:$0xf]
      %v559 = vld [vmem:[%s246 + $0x78] sm:$0xf]
      %v560 = vld [vmem:[%s246 + $0x7c] sm:$0xf]
      %v561 = vld [vmem:[%s246 + $0x80] sm:$0xf]
      %v562 = vld [vmem:[%s246 + $0x84] sm:$0xf]
      %v563 = vld [vmem:[%s246 + $0x88] sm:$0xf]
      %v564 = vld [vmem:[%s246 + $0x8c] sm:$0xf]
      %v565 = vld [vmem:[%s246 + $0x90] sm:$0xf]
      %v566 = vld [vmem:[%s246 + $0x94] sm:$0xf]
      %v567 = vld [vmem:[%s246 + $0x98] sm:$0xf]
      %v568 = vld [vmem:[%s246 + $0x9c] sm:$0xf]
      %v569 = vld [vmem:[%s246 + $0xa0] sm:$0xf]
      %v570 = vld [vmem:[%s246 + $0xa4] sm:$0xf]
      %v571 = vld [vmem:[%s246 + $0xa8] sm:$0xf]
      %v572 = vld [vmem:[%s246 + $0xac] sm:$0xf]
      %v573 = vld [vmem:[%s246 + $0xb0] sm:$0xf]
      %v574 = vld [vmem:[%s246 + $0xb4] sm:$0xf]
      %v575 = vld [vmem:[%s246 + $0xb8] sm:$0xf]
      %v576 = vld [vmem:[%s246 + $0xbc] sm:$0xf]
      %v577 = vld [vmem:[%s246 + $0xc0] sm:$0xf]
      %v578 = vld [vmem:[%s246 + $0xc4] sm:$0xf]
      %v604 = vunpack.c.l.b16 %v554
      %v605 = vunpack.c.l.b16 %v555
      %v606 = vunpack.c.l.b16 %v556
      %v607 = vunpack.c.l.b16 %v557
      %v608 = vunpack.c.l.b16 %v558
      %v609 = vunpack.c.l.b16 %v559
      %v610 = vunpack.c.l.b16 %v560
      %v611 = vunpack.c.l.b16 %v561
      %v612 = vunpack.c.l.b16 %v562
      %v613 = vunpack.c.l.b16 %v563
      %v614 = vunpack.c.l.b16 %v564
      %v615 = vunpack.c.l.b16 %v565
      %v616 = vunpack.c.l.b16 %v566
      %v617 = vunpack.c.l.b16 %v567
      %v618 = vunpack.c.l.b16 %v568
      %v619 = vunpack.c.l.b16 %v569
      %v620 = vunpack.c.l.b16 %v570
      %v621 = vunpack.c.l.b16 %v571
      %v622 = vunpack.c.l.b16 %v572
      %v623 = vunpack.c.l.b16 %v573
      %v624 = vunpack.c.l.b16 %v574
      %v625 = vunpack.c.l.b16 %v575
      %v626 = vunpack.c.l.b16 %v576
      %v627 = vunpack.c.l.b16 %v577
      %v628 = vunpack.c.l.b16 %v578
      %v629 = vpack.c.b16 %v605, %v604
      %v630 = vpack.c.b16 %v607, %v606
      %v631 = vpack.c.b16 %v609, %v608
      %v632 = vpack.c.b16 %v611, %v610
      %v633 = vpack.c.b16 %v613, %v612
      %v634 = vpack.c.b16 %v615, %v614
      %v635 = vpack.c.b16 %v617, %v616
      %v636 = vpack.c.b16 %v619, %v618
      %v637 = vpack.c.b16 %v621, %v620
      %v638 = vpack.c.b16 %v623, %v622
      %v639 = vpack.c.b16 %v625, %v624
      %v640 = vpack.c.b16 %v627, %v626
      %v641 = vpack.c.b16 %v628, %v628
      %655 = vmatprep.subr.bf16.mxu0 0
      %656 = vmatpush1.bf16.msra.mxu0 %v402
      %657 = vmatprep.subr.bf16.mxu0 0
      %658 = vmatpush1.bf16.msra.mxu0 %v403
      %659 = vmatprep.subr.bf16.mxu0 0
      %660 = vmatpush1.bf16.msra.mxu0 %v404
      %661 = vmatprep.subr.bf16.mxu0 0
      %662 = vmatpush1.bf16.msra.mxu0 %v405
      %663 = vmatprep.subr.bf16.mxu0 0
      %664 = vmatpush1.bf16.msra.mxu0 %v406
      %665 = vmatprep.subr.bf16.mxu0 0
      %666 = vmatpush1.bf16.msra.mxu0 %v407
      %667 = vmatprep.subr.bf16.mxu0 0
      %668 = vmatpush1.bf16.msra.mxu0 %v408
      %669 = vmatprep.subr.bf16.mxu0 0
      %670 = vmatpush1.bf16.msra.mxu0 %v409
      %671 = vmatprep.subr.bf16.mxu0 0
      %672 = vmatpush1.bf16.msra.mxu0 0
      %673 = vmatprep.subr.bf16.mxu0 0
      %674 = vmatpush1.bf16.msra.mxu0 0
      %675 = vmatprep.subr.bf16.mxu0 0
      %676 = vmatpush1.bf16.msra.mxu0 0
      %677 = vmatprep.subr.bf16.mxu0 0
      %678 = vmatpush1.bf16.msra.mxu0 0
      %679 = vmatprep.subr.bf16.mxu0 0
      %680 = vmatpush1.bf16.msra.mxu0 0
      %681 = vmatprep.subr.bf16.mxu0 0
      %682 = vmatpush1.bf16.msra.mxu0 0
      %683 = vmatprep.subr.bf16.mxu0 0
      %684 = vmatpush1.bf16.msra.mxu0 0
      %685 = vmatprep.subr.bf16.mxu0 0
      %686 = vmatpush1.bf16.msra.mxu0 0
      %687 = vmatprep.mubr.bf16.mxu0 0
      %688 = vmatmul.mubr.bf16.gmra.mrb[0].mxu0 %v629
      %v689 = vpop.f32.mrb[0].mxu0
      %v690 = vadd.f32 0.0, %v689
      %v691 = vpop.f32.mrb[0].mxu0
      %v692 = vpop.f32.mrb[0].mxu0
      %v693 = vadd.f32 0.0, %v692
      %v694 = vpop.f32.mrb[0].mxu0
      %695 = vmatprep.mubr.bf16.mxu0 0
      %696 = vmatmul.mubr.bf16.gmra.mrb[0].mxu0 %v630
      %v697 = vpop.f32.mrb[0].mxu0
      %v698 = vadd.f32 0.0, %v697
      %v699 = vpop.f32.mrb[0].mxu0
      %v700 = vpop.f32.mrb[0].mxu0
      %v701 = vadd.f32 0.0, %v700
      %v702 = vpop.f32.mrb[0].mxu0
      %703 = vmatprep.mubr.bf16.mxu0 0
      %704 = vmatmul.mubr.bf16.gmra.mrb[0].mxu0 %v631
      %v705 = vpop.f32.mrb[0].mxu0
      %v706 = vadd.f32 0.0, %v705
      %v707 = vpop.f32.mrb[0].mxu0
      %v708 = vpop.f32.mrb[0].mxu0
      %v709 = vadd.f32 0.0, %v708
      %v710 = vpop.f32.mrb[0].mxu0
      %711 = vmatprep.mubr.bf16.mxu0 0
      %712 = vmatmul.mubr.bf16.gmra.mrb[0].mxu0 %v632
      %v713 = vpop.f32.mrb[0].mxu0
      %v714 = vadd.f32 0.0, %v713
      %v715 = vpop.f32.mrb[0].mxu0
      %v716 = vpop.f32.mrb[0].mxu0
      %v717 = vadd.f32 0.0, %v716
      %v718 = vpop.f32.mrb[0].mxu0
      %719 = vmatprep.mubr.bf16.mxu0 0
      %720 = vmatmul.mubr.bf16.gmra.mrb[0].mxu0 %v633
      %v721 = vpop.f32.mrb[0].mxu0
      %v722 = vadd.f32 0.0, %v721
      %v723 = vpop.f32.mrb[0].mxu0
      %v724 = vpop.f32.mrb[0].mxu0
      %v725 = vadd.f32 0.0, %v724
      %v726 = vpop.f32.mrb[0].mxu0
      %727 = vmatprep.mubr.bf16.mxu0 0
      %728 = vmatmul.mubr.bf16.gmra.mrb[0].mxu0 %v634
      %v729 = vpop.f32.mrb[0].mxu0
      %v730 = vadd.f32 0.0, %v729
      %v731 = vpop.f32.mrb[0].mxu0
      %v732 = vpop.f32.mrb[0].mxu0
      %v733 = vadd.f32 0.0, %v732
      %v734 = vpop.f32.mrb[0].mxu0
      %735 = vmatprep.mubr.bf16.mxu0 0
      %736 = vmatmul.mubr.bf16.gmra.mrb[0].mxu0 %v635
      %v737 = vpop.f32.mrb[0].mxu0
      %v738 = vadd.f32 0.0, %v737
      %v739 = vpop.f32.mrb[0].mxu0
      %v740 = vpop.f32.mrb[0].mxu0
      %v741 = vadd.f32 0.0, %v740
      %v742 = vpop.f32.mrb[0].mxu0
      %743 = vmatprep.mubr.bf16.mxu0 0
      %744 = vmatmul.mubr.bf16.gmra.mrb[0].mxu0 %v636
      %v745 = vpop.f32.mrb[0].mxu0
      %v746 = vadd.f32 0.0, %v745
      %v747 = vpop.f32.mrb[0].mxu0
      %v748 = vpop.f32.mrb[0].mxu0
      %v749 = vadd.f32 0.0, %v748
      %v750 = vpop.f32.mrb[0].mxu0
      %751 = vmatprep.mubr.bf16.mxu0 0
      %752 = vmatmul.mubr.bf16.gmra.mrb[0].mxu0 %v637
      %v753 = vpop.f32.mrb[0].mxu0
      %v754 = vadd.f32 0.0, %v753
      %v755 = vpop.f32.mrb[0].mxu0
      %v756 = vpop.f32.mrb[0].mxu0
      %v757 = vadd.f32 0.0, %v756
      %v758 = vpop.f32.mrb[0].mxu0
      %759 = vmatprep.mubr.bf16.mxu0 0
      %760 = vmatmul.mubr.bf16.gmra.mrb[0].mxu0 %v638
      %v761 = vpop.f32.mrb[0].mxu0
      %v762 = vadd.f32 0.0, %v761
      %v763 = vpop.f32.mrb[0].mxu0
      %v764 = vpop.f32.mrb[0].mxu0
      %v765 = vadd.f32 0.0, %v764
      %v766 = vpop.f32.mrb[0].mxu0
      %767 = vmatprep.mubr.bf16.mxu0 0
      %768 = vmatmul.mubr.bf16.gmra.mrb[0].mxu0 %v639
      %v769 = vpop.f32.mrb[0].mxu0
      %v770 = vadd.f32 0.0, %v769
      %v771 = vpop.f32.mrb[0].mxu0
      %v772 = vpop.f32.mrb[0].mxu0
      %v773 = vadd.f32 0.0, %v772
      %v774 = vpop.f32.mrb[0].mxu0
      %775 = vmatprep.mubr.bf16.mxu0 0
      %776 = vmatmul.mubr.bf16.gmra.mrb[0].mxu0 %v640
      %v777 = vpop.f32.mrb[0].mxu0
      %v778 = vadd.f32 0.0, %v777
      %v779 = vpop.f32.mrb[0].mxu0
      %v780 = vpop.f32.mrb[0].mxu0
      %v781 = vadd.f32 0.0, %v780
      %v782 = vpop.f32.mrb[0].mxu0
      %783 = vmatprep.mubr.bf16.mxu0 0
      %784 = vmatmul.mubr.bf16.gmra.mrb[0].mxu0 %v641
      %v785 = vpop.f32.mrb[0].mxu0
      %v786 = vadd.f32 0.0, %v785
      %v787 = vpop.f32.mrb[0].mxu0
      %v788 = vpop.f32.mrb[0].mxu0
      %v789 = vpop.f32.mrb[0].mxu0
      %790 = vdwg.mxu0
      %v791 = vmax.f32 %v453, %v690
      %v792 = vmax.f32 %v456, %v693
      %v793 = vmax.f32 %v461, %v698
      %v794 = vmax.f32 %v464, %v701
      %v795 = vmax.f32 %v469, %v706
      %v796 = vmax.f32 %v472, %v709
      %v797 = vmax.f32 %v477, %v714
      %v798 = vmax.f32 %v480, %v717
      %v799 = vmax.f32 %v485, %v722
      %v800 = vmax.f32 %v488, %v725
      %v801 = vmax.f32 %v493, %v730
      %v802 = vmax.f32 %v496, %v733
      %v803 = vmax.f32 %v501, %v738
      %v804 = vmax.f32 %v504, %v741
      %v805 = vmax.f32 %v509, %v746
      %v806 = vmax.f32 %v512, %v749
      %v807 = vmax.f32 %v517, %v754
      %v808 = vmax.f32 %v520, %v757
      %v809 = vmax.f32 %v525, %v762
      %v810 = vmax.f32 %v528, %v765
      %v811 = vmax.f32 %v533, %v770
      %v812 = vmax.f32 %v536, %v773
      %v813 = vmax.f32 %v541, %v778
      %v814 = vmax.f32 %v544, %v781
      %v815 = vmax.f32 %v549, %v786
      %v816 = vld [vmem:[%s246 + $0xc8] sm:$0xf]
      %v817 = vld [vmem:[%s246 + $0xcc] sm:$0xf]
      %v818 = vld [vmem:[%s246 + $0xd0] sm:$0xf]
      %v819 = vld [vmem:[%s246 + $0xd4] sm:$0xf]
      %v820 = vld [vmem:[%s246 + $0xd8] sm:$0xf]
      %v821 = vld [vmem:[%s246 + $0xdc] sm:$0xf]
      %v822 = vld [vmem:[%s246 + $0xe0] sm:$0xf]
      %v823 = vld [vmem:[%s246 + $0xe4] sm:$0xf]
      %v824 = vld [vmem:[%s246 + $0xe8] sm:$0xf]
      %v825 = vld [vmem:[%s246 + $0xec] sm:$0xf]
      %v826 = vld [vmem:[%s246 + $0xf0] sm:$0xf]
      %v827 = vld [vmem:[%s246 + $0xf4] sm:$0xf]
      %v828 = vld [vmem:[%s246 + $0xf8] sm:$0xf]
      %v829 = vld [vmem:[%s246 + $0xfc] sm:$0xf]
      %v830 = vld [vmem:[%s246 + $0x100] sm:$0xf]
      %v831 = vld [vmem:[%s246 + $0x104] sm:$0xf]
      %v832 = vld [vmem:[%s246 + $0x108] sm:$0xf]
      %v833 = vld [vmem:[%s246 + $0x10c] sm:$0xf]
      %v834 = vld [vmem:[%s246 + $0x110] sm:$0xf]
      %v835 = vld [vmem:[%s246 + $0x114] sm:$0xf]
      %v836 = vld [vmem:[%s246 + $0x118] sm:$0xf]
      %v837 = vld [vmem:[%s246 + $0x11c] sm:$0xf]
      %v838 = vld [vmem:[%s246 + $0x120] sm:$0xf]
      %v839 = vld [vmem:[%s246 + $0x124] sm:$0xf]
      %v840 = vld [vmem:[%s246 + $0x128] sm:$0xf]
      %v866 = vunpack.c.l.b16 %v816
      %v867 = vunpack.c.l.b16 %v817
      %v868 = vunpack.c.l.b16 %v818
      %v869 = vunpack.c.l.b16 %v819
      %v870 = vunpack.c.l.b16 %v820
      %v871 = vunpack.c.l.b16 %v821
      %v872 = vunpack.c.l.b16 %v822
      %v873 = vunpack.c.l.b16 %v823
      %v874 = vunpack.c.l.b16 %v824
      %v875 = vunpack.c.l.b16 %v825
      %v876 = vunpack.c.l.b16 %v826
      %v877 = vunpack.c.l.b16 %v827
      %v878 = vunpack.c.l.b16 %v828
      %v879 = vunpack.c.l.b16 %v829
      %v880 = vunpack.c.l.b16 %v830
      %v881 = vunpack.c.l.b16 %v831
      %v882 = vunpack.c.l.b16 %v832
      %v883 = vunpack.c.l.b16 %v833
      %v884 = vunpack.c.l.b16 %v834
      %v885 = vunpack.c.l.b16 %v835
      %v886 = vunpack.c.l.b16 %v836
      %v887 = vunpack.c.l.b16 %v837
      %v888 = vunpack.c.l.b16 %v838
      %v889 = vunpack.c.l.b16 %v839
      %v890 = vunpack.c.l.b16 %v840
      %v891 = vpack.c.b16 %v867, %v866
      %v892 = vpack.c.b16 %v869, %v868
      %v893 = vpack.c.b16 %v871, %v870
      %v894 = vpack.c.b16 %v873, %v872
      %v895 = vpack.c.b16 %v875, %v874
      %v896 = vpack.c.b16 %v877, %v876
      %v897 = vpack.c.b16 %v879, %v878
      %v898 = vpack.c.b16 %v881, %v880
      %v899 = vpack.c.b16 %v883, %v882
      %v900 = vpack.c.b16 %v885, %v884
      %v901 = vpack.c.b16 %v887, %v886
      %v902 = vpack.c.b16 %v889, %v888
      %v903 = vpack.c.b16 %v890, %v890
      %917 = vmatprep.subr.bf16.mxu0 0
      %918 = vmatpush1.bf16.msra.mxu0 %v402
      %919 = vmatprep.subr.bf16.mxu0 0
      %920 = vmatpush1.bf16.msra.mxu0 %v403
      %921 = vmatprep.subr.bf16.mxu0 0
      %922 = vmatpush1.bf16.msra.mxu0 %v404
      %923 = vmatprep.subr.bf16.mxu0 0
      %924 = vmatpush1.bf16.msra.mxu0 %v405
      %925 = vmatprep.subr.bf16.mxu0 0
      %926 = vmatpush1.bf16.msra.mxu0 %v406
      %927 = vmatprep.subr.bf16.mxu0 0
      %928 = vmatpush1.bf16.msra.mxu0 %v407
      %929 = vmatprep.subr.bf16.mxu0 0
      %930 = vmatpush1.bf16.msra.mxu0 %v408
      %931 = vmatprep.subr.bf16.mxu0 0
      %932 = vmatpush1.bf16.msra.mxu0 %v409
      %933 = vmatprep.subr.bf16.mxu0 0
      %934 = vmatpush1.bf16.msra.mxu0 0
      %935 = vmatprep.subr.bf16.mxu0 0
      %936 = vmatpush1.bf16.msra.mxu0 0
      %937 = vmatprep.subr.bf16.mxu0 0
      %938 = vmatpush1.bf16.msra.mxu0 0
      %939 = vmatprep.subr.bf16.mxu0 0
      %940 = vmatpush1.bf16.msra.mxu0 0
      %941 = vmatprep.subr.bf16.mxu0 0
      %942 = vmatpush1.bf16.msra.mxu0 0
      %943 = vmatprep.subr.bf16.mxu0 0
      %944 = vmatpush1.bf16.msra.mxu0 0
      %945 = vmatprep.subr.bf16.mxu0 0
      %946 = vmatpush1.bf16.msra.mxu0 0
      %947 = vmatprep.subr.bf16.mxu0 0
      %948 = vmatpush1.bf16.msra.mxu0 0
      %949 = vmatprep.mubr.bf16.mxu0 0
      %950 = vmatmul.mubr.bf16.gmra.mrb[0].mxu0 %v891
      %v951 = vpop.f32.mrb[0].mxu0
      %v952 = vadd.f32 0.0, %v951
      %v953 = vpop.f32.mrb[0].mxu0
      %v954 = vpop.f32.mrb[0].mxu0
      %v955 = vadd.f32 0.0, %v954
      %v956 = vpop.f32.mrb[0].mxu0
      %957 = vmatprep.mubr.bf16.mxu0 0
      %958 = vmatmul.mubr.bf16.gmra.mrb[0].mxu0 %v892
      %v959 = vpop.f32.mrb[0].mxu0
      %v960 = vadd.f32 0.0, %v959
      %v961 = vpop.f32.mrb[0].mxu0
      %v962 = vpop.f32.mrb[0].mxu0
      %v963 = vadd.f32 0.0, %v962
      %v964 = vpop.f32.mrb[0].mxu0
      %965 = vmatprep.mubr.bf16.mxu0 0
      %966 = vmatmul.mubr.bf16.gmra.mrb[0].mxu0 %v893
      %v967 = vpop.f32.mrb[0].mxu0
      %v968 = vadd.f32 0.0, %v967
      %v969 = vpop.f32.mrb[0].mxu0
      %v970 = vpop.f32.mrb[0].mxu0
      %v971 = vadd.f32 0.0, %v970
      %v972 = vpop.f32.mrb[0].mxu0
      %973 = vmatprep.mubr.bf16.mxu0 0
      %974 = vmatmul.mubr.bf16.gmra.mrb[0].mxu0 %v894
      %v975 = vpop.f32.mrb[0].mxu0
      %v976 = vadd.f32 0.0, %v975
      %v977 = vpop.f32.mrb[0].mxu0
      %v978 = vpop.f32.mrb[0].mxu0
      %v979 = vadd.f32 0.0, %v978
      %v980 = vpop.f32.mrb[0].mxu0
      %981 = vmatprep.mubr.bf16.mxu0 0
      %982 = vmatmul.mubr.bf16.gmra.mrb[0].mxu0 %v895
      %v983 = vpop.f32.mrb[0].mxu0
      %v984 = vadd.f32 0.0, %v983
      %v985 = vpop.f32.mrb[0].mxu0
      %v986 = vpop.f32.mrb[0].mxu0
      %v987 = vadd.f32 0.0, %v986
      %v988 = vpop.f32.mrb[0].mxu0
      %989 = vmatprep.mubr.bf16.mxu0 0
      %990 = vmatmul.mubr.bf16.gmra.mrb[0].mxu0 %v896
      %v991 = vpop.f32.mrb[0].mxu0
      %v992 = vadd.f32 0.0, %v991
      %v993 = vpop.f32.mrb[0].mxu0
      %v994 = vpop.f32.mrb[0].mxu0
      %v995 = vadd.f32 0.0, %v994
      %v996 = vpop.f32.mrb[0].mxu0
      %997 = vmatprep.mubr.bf16.mxu0 0
      %998 = vmatmul.mubr.bf16.gmra.mrb[0].mxu0 %v897
      %v999 = vpop.f32.mrb[0].mxu0
      %v1000 = vadd.f32 0.0, %v999
      %v1001 = vpop.f32.mrb[0].mxu0
      %v1002 = vpop.f32.mrb[0].mxu0
      %v1003 = vadd.f32 0.0, %v1002
      %v1004 = vpop.f32.mrb[0].mxu0
      %1005 = vmatprep.mubr.bf16.mxu0 0
      %1006 = vmatmul.mubr.bf16.gmra.mrb[0].mxu0 %v898
      %v1007 = vpop.f32.mrb[0].mxu0
      %v1008 = vadd.f32 0.0, %v1007
      %v1009 = vpop.f32.mrb[0].mxu0
      %v1010 = vpop.f32.mrb[0].mxu0
      %v1011 = vadd.f32 0.0, %v1010
      %v1012 = vpop.f32.mrb[0].mxu0
      %1013 = vmatprep.mubr.bf16.mxu0 0
      %1014 = vmatmul.mubr.bf16.gmra.mrb[0].mxu0 %v899
      %v1015 = vpop.f32.mrb[0].mxu0
      %v1016 = vadd.f32 0.0, %v1015
      %v1017 = vpop.f32.mrb[0].mxu0
      %v1018 = vpop.f32.mrb[0].mxu0
      %v1019 = vadd.f32 0.0, %v1018
      %v1020 = vpop.f32.mrb[0].mxu0
      %1021 = vmatprep.mubr.bf16.mxu0 0
      %1022 = vmatmul.mubr.bf16.gmra.mrb[0].mxu0 %v900
      %v1023 = vpop.f32.mrb[0].mxu0
      %v1024 = vadd.f32 0.0, %v1023
      %v1025 = vpop.f32.mrb[0].mxu0
      %v1026 = vpop.f32.mrb[0].mxu0
      %v1027 = vadd.f32 0.0, %v1026
      %v1028 = vpop.f32.mrb[0].mxu0
      %1029 = vmatprep.mubr.bf16.mxu0 0
      %1030 = vmatmul.mubr.bf16.gmra.mrb[0].mxu0 %v901
      %v1031 = vpop.f32.mrb[0].mxu0
      %v1032 = vadd.f32 0.0, %v1031
      %v1033 = vpop.f32.mrb[0].mxu0
      %v1034 = vpop.f32.mrb[0].mxu0
      %v1035 = vadd.f32 0.0, %v1034
      %v1036 = vpop.f32.mrb[0].mxu0
      %1037 = vmatprep.mubr.bf16.mxu0 0
      %1038 = vmatmul.mubr.bf16.gmra.mrb[0].mxu0 %v902
      %v1039 = vpop.f32.mrb[0].mxu0
      %v1040 = vadd.f32 0.0, %v1039
      %v1041 = vpop.f32.mrb[0].mxu0
      %v1042 = vpop.f32.mrb[0].mxu0
      %v1043 = vadd.f32 0.0, %v1042
      %v1044 = vpop.f32.mrb[0].mxu0
      %1045 = vmatprep.mubr.bf16.mxu0 0
      %1046 = vmatmul.mubr.bf16.gmra.mrb[0].mxu0 %v903
      %v1047 = vpop.f32.mrb[0].mxu0
      %v1048 = vadd.f32 0.0, %v1047
      %v1049 = vpop.f32.mrb[0].mxu0
      %v1050 = vpop.f32.mrb[0].mxu0
      %v1051 = vpop.f32.mrb[0].mxu0
      %1052 = vdwg.mxu0
      %v1053 = vmax.f32 %v791, %v952
      %v1054 = vmax.f32 %v792, %v955
      %v1055 = vmax.f32 %v793, %v960
      %v1056 = vmax.f32 %v794, %v963
      %v1057 = vmax.f32 %v795, %v968
      %v1058 = vmax.f32 %v796, %v971
      %v1059 = vmax.f32 %v797, %v976
      %v1060 = vmax.f32 %v798, %v979
      %v1061 = vmax.f32 %v799, %v984
      %v1062 = vmax.f32 %v800, %v987
      %v1063 = vmax.f32 %v801, %v992
      %v1064 = vmax.f32 %v802, %v995
      %v1065 = vmax.f32 %v803, %v1000
      %v1066 = vmax.f32 %v804, %v1003
      %v1067 = vmax.f32 %v805, %v1008
      %v1068 = vmax.f32 %v806, %v1011
      %v1069 = vmax.f32 %v807, %v1016
      %v1070 = vmax.f32 %v808, %v1019
      %v1071 = vmax.f32 %v809, %v1024
      %v1072 = vmax.f32 %v810, %v1027
      %v1073 = vmax.f32 %v811, %v1032
      %v1074 = vmax.f32 %v812, %v1035
      %v1075 = vmax.f32 %v813, %v1040
      %v1076 = vmax.f32 %v814, %v1043
      %v1077 = vmax.f32 %v815, %v1048
      %v1078 = vld [vmem:[%s246 + $0x12c] sm:$0xf]
      %v1079 = vld [vmem:[%s246 + $0x130] sm:$0xf]
      %v1080 = vld [vmem:[%s246 + $0x134] sm:$0xf]
      %v1081 = vld [vmem:[%s246 + $0x138] sm:$0xf]
      %v1082 = vld [vmem:[%s246 + $0x13c] sm:$0xf]
      %v1083 = vld [vmem:[%s246 + $0x140] sm:$0xf]
      %v1084 = vld [vmem:[%s246 + $0x144] sm:$0xf]
      %v1085 = vld [vmem:[%s246 + $0x148] sm:$0xf]
      %v1086 = vld [vmem:[%s246 + $0x14c] sm:$0xf]
      %v1087 = vld [vmem:[%s246 + $0x150] sm:$0xf]
      %v1088 = vld [vmem:[%s246 + $0x154] sm:$0xf]
      %v1089 = vld [vmem:[%s246 + $0x158] sm:$0xf]
      %v1090 = vld [vmem:[%s246 + $0x15c] sm:$0xf]
      %v1091 = vld [vmem:[%s246 + $0x160] sm:$0xf]
      %v1092 = vld [vmem:[%s246 + $0x164] sm:$0xf]
      %v1093 = vld [vmem:[%s246 + $0x168] sm:$0xf]
      %v1094 = vld [vmem:[%s246 + $0x16c] sm:$0xf]
      %v1095 = vld [vmem:[%s246 + $0x170] sm:$0xf]
      %v1096 = vld [vmem:[%s246 + $0x174] sm:$0xf]
      %v1097 = vld [vmem:[%s246 + $0x178] sm:$0xf]
      %v1098 = vld [vmem:[%s246 + $0x17c] sm:$0xf]
      %v1099 = vld [vmem:[%s246 + $0x180] sm:$0xf]
      %v1100 = vld [vmem:[%s246 + $0x184] sm:$0xf]
      %v1101 = vld [vmem:[%s246 + $0x188] sm:$0xf]
      %v1102 = vld [vmem:[%s246 + $0x18c] sm:$0xf]
      %v1128 = vunpack.c.l.b16 %v1078
      %v1129 = vunpack.c.l.b16 %v1079
      %v1130 = vunpack.c.l.b16 %v1080
      %v1131 = vunpack.c.l.b16 %v1081
      %v1132 = vunpack.c.l.b16 %v1082
      %v1133 = vunpack.c.l.b16 %v1083
      %v1134 = vunpack.c.l.b16 %v1084
      %v1135 = vunpack.c.l.b16 %v1085
      %v1136 = vunpack.c.l.b16 %v1086
      %v1137 = vunpack.c.l.b16 %v1087
      %v1138 = vunpack.c.l.b16 %v1088
      %v1139 = vunpack.c.l.b16 %v1089
      %v1140 = vunpack.c.l.b16 %v1090
      %v1141 = vunpack.c.l.b16 %v1091
      %v1142 = vunpack.c.l.b16 %v1092
      %v1143 = vunpack.c.l.b16 %v1093
      %v1144 = vunpack.c.l.b16 %v1094
      %v1145 = vunpack.c.l.b16 %v1095
      %v1146 = vunpack.c.l.b16 %v1096
      %v1147 = vunpack.c.l.b16 %v1097
      %v1148 = vunpack.c.l.b16 %v1098
      %v1149 = vunpack.c.l.b16 %v1099
      %v1150 = vunpack.c.l.b16 %v1100
      %v1151 = vunpack.c.l.b16 %v1101
      %v1152 = vunpack.c.l.b16 %v1102
      %v1153 = vpack.c.b16 %v1129, %v1128
      %v1154 = vpack.c.b16 %v1131, %v1130
      %v1155 = vpack.c.b16 %v1133, %v1132
      %v1156 = vpack.c.b16 %v1135, %v1134
      %v1157 = vpack.c.b16 %v1137, %v1136
      %v1158 = vpack.c.b16 %v1139, %v1138
      %v1159 = vpack.c.b16 %v1141, %v1140
      %v1160 = vpack.c.b16 %v1143, %v1142
      %v1161 = vpack.c.b16 %v1145, %v1144
      %v1162 = vpack.c.b16 %v1147, %v1146
      %v1163 = vpack.c.b16 %v1149, %v1148
      %v1164 = vpack.c.b16 %v1151, %v1150
      %v1165 = vpack.c.b16 %v1152, %v1152
      %1179 = vmatprep.subr.bf16.mxu0 0
      %1180 = vmatpush1.bf16.msra.mxu0 %v402
      %1181 = vmatprep.subr.bf16.mxu0 0
      %1182 = vmatpush1.bf16.msra.mxu0 %v403
      %1183 = vmatprep.subr.bf16.mxu0 0
      %1184 = vmatpush1.bf16.msra.mxu0 %v404
      %1185 = vmatprep.subr.bf16.mxu0 0
      %1186 = vmatpush1.bf16.msra.mxu0 %v405
      %1187 = vmatprep.subr.bf16.mxu0 0
      %1188 = vmatpush1.bf16.msra.mxu0 %v406
      %1189 = vmatprep.subr.bf16.mxu0 0
      %1190 = vmatpush1.bf16.msra.mxu0 %v407
      %1191 = vmatprep.subr.bf16.mxu0 0
      %1192 = vmatpush1.bf16.msra.mxu0 %v408
      %1193 = vmatprep.subr.bf16.mxu0 0
      %1194 = vmatpush1.bf16.msra.mxu0 %v409
      %1195 = vmatprep.subr.bf16.mxu0 0
      %1196 = vmatpush1.bf16.msra.mxu0 0
      %1197 = vmatprep.subr.bf16.mxu0 0
      %1198 = vmatpush1.bf16.msra.mxu0 0
      %1199 = vmatprep.subr.bf16.mxu0 0
      %1200 = vmatpush1.bf16.msra.mxu0 0
      %1201 = vmatprep.subr.bf16.mxu0 0
      %1202 = vmatpush1.bf16.msra.mxu0 0
      %1203 = vmatprep.subr.bf16.mxu0 0
      %1204 = vmatpush1.bf16.msra.mxu0 0
      %1205 = vmatprep.subr.bf16.mxu0 0
      %1206 = vmatpush1.bf16.msra.mxu0 0
      %1207 = vmatprep.subr.bf16.mxu0 0
      %1208 = vmatpush1.bf16.msra.mxu0 0
      %1209 = vmatprep.subr.bf16.mxu0 0
      %1210 = vmatpush1.bf16.msra.mxu0 0
      %1211 = vmatprep.mubr.bf16.mxu0 0
      %1212 = vmatmul.mubr.bf16.gmra.mrb[0].mxu0 %v1153
      %v1213 = vpop.f32.mrb[0].mxu0
      %v1214 = vadd.f32 0.0, %v1213
      %v1215 = vpop.f32.mrb[0].mxu0
      %v1216 = vpop.f32.mrb[0].mxu0
      %v1217 = vadd.f32 0.0, %v1216
      %v1218 = vpop.f32.mrb[0].mxu0
      %1219 = vmatprep.mubr.bf16.mxu0 0
      %1220 = vmatmul.mubr.bf16.gmra.mrb[0].mxu0 %v1154
      %v1221 = vpop.f32.mrb[0].mxu0
      %v1222 = vadd.f32 0.0, %v1221
      %v1223 = vpop.f32.mrb[0].mxu0
      %v1224 = vpop.f32.mrb[0].mxu0
      %v1225 = vadd.f32 0.0, %v1224
      %v1226 = vpop.f32.mrb[0].mxu0
      %1227 = vmatprep.mubr.bf16.mxu0 0
      %1228 = vmatmul.mubr.bf16.gmra.mrb[0].mxu0 %v1155
      %v1229 = vpop.f32.mrb[0].mxu0
      %v1230 = vadd.f32 0.0, %v1229
      %v1231 = vpop.f32.mrb[0].mxu0
      %v1232 = vpop.f32.mrb[0].mxu0
      %v1233 = vadd.f32 0.0, %v1232
      %v1234 = vpop.f32.mrb[0].mxu0
      %1235 = vmatprep.mubr.bf16.mxu0 0
      %1236 = vmatmul.mubr.bf16.gmra.mrb[0].mxu0 %v1156
      %v1237 = vpop.f32.mrb[0].mxu0
      %v1238 = vadd.f32 0.0, %v1237
      %v1239 = vpop.f32.mrb[0].mxu0
      %v1240 = vpop.f32.mrb[0].mxu0
      %v1241 = vadd.f32 0.0, %v1240
      %v1242 = vpop.f32.mrb[0].mxu0
      %1243 = vmatprep.mubr.bf16.mxu0 0
      %1244 = vmatmul.mubr.bf16.gmra.mrb[0].mxu0 %v1157
      %v1245 = vpop.f32.mrb[0].mxu0
      %v1246 = vadd.f32 0.0, %v1245
      %v1247 = vpop.f32.mrb[0].mxu0
      %v1248 = vpop.f32.mrb[0].mxu0
      %v1249 = vadd.f32 0.0, %v1248
      %v1250 = vpop.f32.mrb[0].mxu0
      %1251 = vmatprep.mubr.bf16.mxu0 0
      %1252 = vmatmul.mubr.bf16.gmra.mrb[0].mxu0 %v1158
      %v1253 = vpop.f32.mrb[0].mxu0
      %v1254 = vadd.f32 0.0, %v1253
      %v1255 = vpop.f32.mrb[0].mxu0
      %v1256 = vpop.f32.mrb[0].mxu0
      %v1257 = vadd.f32 0.0, %v1256
      %v1258 = vpop.f32.mrb[0].mxu0
      %1259 = vmatprep.mubr.bf16.mxu0 0
      %1260 = vmatmul.mubr.bf16.gmra.mrb[0].mxu0 %v1159
      %v1261 = vpop.f32.mrb[0].mxu0
      %v1262 = vadd.f32 0.0, %v1261
      %v1263 = vpop.f32.mrb[0].mxu0
      %v1264 = vpop.f32.mrb[0].mxu0
      %v1265 = vadd.f32 0.0, %v1264
      %v1266 = vpop.f32.mrb[0].mxu0
      %1267 = vmatprep.mubr.bf16.mxu0 0
      %1268 = vmatmul.mubr.bf16.gmra.mrb[0].mxu0 %v1160
      %v1269 = vpop.f32.mrb[0].mxu0
      %v1270 = vadd.f32 0.0, %v1269
      %v1271 = vpop.f32.mrb[0].mxu0
      %v1272 = vpop.f32.mrb[0].mxu0
      %v1273 = vadd.f32 0.0, %v1272
      %v1274 = vpop.f32.mrb[0].mxu0
      %1275 = vmatprep.mubr.bf16.mxu0 0
      %1276 = vmatmul.mubr.bf16.gmra.mrb[0].mxu0 %v1161
      %v1277 = vpop.f32.mrb[0].mxu0
      %v1278 = vadd.f32 0.0, %v1277
      %v1279 = vpop.f32.mrb[0].mxu0
      %v1280 = vpop.f32.mrb[0].mxu0
      %v1281 = vadd.f32 0.0, %v1280
      %v1282 = vpop.f32.mrb[0].mxu0
      %1283 = vmatprep.mubr.bf16.mxu0 0
      %1284 = vmatmul.mubr.bf16.gmra.mrb[0].mxu0 %v1162
      %v1285 = vpop.f32.mrb[0].mxu0
      %v1286 = vadd.f32 0.0, %v1285
      %v1287 = vpop.f32.mrb[0].mxu0
      %v1288 = vpop.f32.mrb[0].mxu0
      %v1289 = vadd.f32 0.0, %v1288
      %v1290 = vpop.f32.mrb[0].mxu0
      %1291 = vmatprep.mubr.bf16.mxu0 0
      %1292 = vmatmul.mubr.bf16.gmra.mrb[0].mxu0 %v1163
      %v1293 = vpop.f32.mrb[0].mxu0
      %v1294 = vadd.f32 0.0, %v1293
      %v1295 = vpop.f32.mrb[0].mxu0
      %v1296 = vpop.f32.mrb[0].mxu0
      %v1297 = vadd.f32 0.0, %v1296
      %v1298 = vpop.f32.mrb[0].mxu0
      %1299 = vmatprep.mubr.bf16.mxu0 0
      %1300 = vmatmul.mubr.bf16.gmra.mrb[0].mxu0 %v1164
      %v1301 = vpop.f32.mrb[0].mxu0
      %v1302 = vadd.f32 0.0, %v1301
      %v1303 = vpop.f32.mrb[0].mxu0
      %v1304 = vpop.f32.mrb[0].mxu0
      %v1305 = vadd.f32 0.0, %v1304
      %v1306 = vpop.f32.mrb[0].mxu0
      %1307 = vmatprep.mubr.bf16.mxu0 0
      %1308 = vmatmul.mubr.bf16.gmra.mrb[0].mxu0 %v1165
      %v1309 = vpop.f32.mrb[0].mxu0
      %v1310 = vadd.f32 0.0, %v1309
      %v1311 = vpop.f32.mrb[0].mxu0
      %v1312 = vpop.f32.mrb[0].mxu0
      %v1313 = vpop.f32.mrb[0].mxu0
      %1314 = vdwg.mxu0
      %v1315 = vmax.f32 %v1053, %v1214
      %v1316 = vmax.f32 %v1054, %v1217
      %v1317 = vmax.f32 %v1055, %v1222
      %v1318 = vmax.f32 %v1056, %v1225
      %v1319 = vmax.f32 %v1057, %v1230
      %v1320 = vmax.f32 %v1058, %v1233
      %v1321 = vmax.f32 %v1059, %v1238
      %v1322 = vmax.f32 %v1060, %v1241
      %v1323 = vmax.f32 %v1061, %v1246
      %v1324 = vmax.f32 %v1062, %v1249
      %v1325 = vmax.f32 %v1063, %v1254
      %v1326 = vmax.f32 %v1064, %v1257
      %v1327 = vmax.f32 %v1065, %v1262
      %v1328 = vmax.f32 %v1066, %v1265
      %v1329 = vmax.f32 %v1067, %v1270
      %v1330 = vmax.f32 %v1068, %v1273
      %v1331 = vmax.f32 %v1069, %v1278
      %v1332 = vmax.f32 %v1070, %v1281
      %v1333 = vmax.f32 %v1071, %v1286
      %v1334 = vmax.f32 %v1072, %v1289
      %v1335 = vmax.f32 %v1073, %v1294
      %v1336 = vmax.f32 %v1074, %v1297
      %v1337 = vmax.f32 %v1075, %v1302
      %v1338 = vmax.f32 %v1076, %v1305
      %v1339 = vmax.f32 %v1077, %v1310
      %v1340 = vld [vmem:[%s2] sm:$0x1]
      %v1342 = vlaneseq
      %v1343 = vshrl.u32 %v1342, 7
      %v1344 = vsub.s32 0, %v1343
      %v1345 = vrot.slane %v1340, %v1344
      %v1347 = vadd.f32 %v1315, %v1345
      %v1348 = vadd.f32 %v1316, %v1345
      %v1349 = vadd.f32 %v1317, %v1345
      %v1350 = vadd.f32 %v1318, %v1345
      %v1351 = vadd.f32 %v1319, %v1345
      %v1352 = vadd.f32 %v1320, %v1345
      %v1353 = vadd.f32 %v1321, %v1345
      %v1354 = vadd.f32 %v1322, %v1345
      %v1355 = vadd.f32 %v1323, %v1345
      %v1356 = vadd.f32 %v1324, %v1345
      %v1357 = vadd.f32 %v1325, %v1345
      %v1358 = vadd.f32 %v1326, %v1345
      %v1359 = vadd.f32 %v1327, %v1345
      %v1360 = vadd.f32 %v1328, %v1345
      %v1361 = vadd.f32 %v1329, %v1345
      %v1362 = vadd.f32 %v1330, %v1345
      %v1363 = vadd.f32 %v1331, %v1345
      %v1364 = vadd.f32 %v1332, %v1345
      %v1365 = vadd.f32 %v1333, %v1345
      %v1366 = vadd.f32 %v1334, %v1345
      %v1367 = vadd.f32 %v1335, %v1345
      %v1368 = vadd.f32 %v1336, %v1345
      %v1369 = vadd.f32 %v1337, %v1345
      %v1370 = vadd.f32 %v1338, %v1345
      %v1371 = vadd.f32 %v1339, %v1345
      %v1372 = vmax.f32 %v1347, 0.0
      %v1373 = vmax.f32 %v1348, 0.0
      %v1374 = vmax.f32 %v1349, 0.0
      %v1375 = vmax.f32 %v1350, 0.0
      %v1376 = vmax.f32 %v1351, 0.0
      %v1377 = vmax.f32 %v1352, 0.0
      %v1378 = vmax.f32 %v1353, 0.0
      %v1379 = vmax.f32 %v1354, 0.0
      %v1380 = vmax.f32 %v1355, 0.0
      %v1381 = vmax.f32 %v1356, 0.0
      %v1382 = vmax.f32 %v1357, 0.0
      %v1383 = vmax.f32 %v1358, 0.0
      %v1384 = vmax.f32 %v1359, 0.0
      %v1385 = vmax.f32 %v1360, 0.0
      %v1386 = vmax.f32 %v1361, 0.0
      %v1387 = vmax.f32 %v1362, 0.0
      %v1388 = vmax.f32 %v1363, 0.0
      %v1389 = vmax.f32 %v1364, 0.0
      %v1390 = vmax.f32 %v1365, 0.0
      %v1391 = vmax.f32 %v1366, 0.0
      %v1392 = vmax.f32 %v1367, 0.0
      %v1393 = vmax.f32 %v1368, 0.0
      %v1394 = vmax.f32 %v1369, 0.0
      %v1395 = vmax.f32 %v1370, 0.0
      %v1396 = vmax.f32 %v1371, 0.0
      %v1397 = vpack.c.bf16 %v1373, %v1372
      %v1398 = vpack.c.bf16 %v1375, %v1374
      %v1399 = vpack.c.bf16 %v1377, %v1376
      %v1400 = vpack.c.bf16 %v1379, %v1378
      %v1401 = vpack.c.bf16 %v1381, %v1380
      %v1402 = vpack.c.bf16 %v1383, %v1382
      %v1403 = vpack.c.bf16 %v1385, %v1384
      %v1404 = vpack.c.bf16 %v1387, %v1386
      %v1405 = vpack.c.bf16 %v1389, %v1388
      %v1406 = vpack.c.bf16 %v1391, %v1390
      %v1407 = vpack.c.bf16 %v1393, %v1392
      %v1408 = vpack.c.bf16 %v1395, %v1394
      %v1409 = vpack.c.bf16 %v1396, %v1396
      %1410 = vst [vmem:[#allocation2] sm:$0xff] %v1397
      %1411 = vst [vmem:[#allocation2 + $0x8] sm:$0xff] %v1398
      %1412 = vst [vmem:[#allocation2 + $0x10] sm:$0xff] %v1399
      %1413 = vst [vmem:[#allocation2 + $0x18] sm:$0xff] %v1400
      %1414 = vst [vmem:[#allocation2 + $0x20] sm:$0xff] %v1401
      %1415 = vst [vmem:[#allocation2 + $0x28] sm:$0xff] %v1402
      %1416 = vst [vmem:[#allocation2 + $0x30] sm:$0xff] %v1403
      %1417 = vst [vmem:[#allocation2 + $0x38] sm:$0xff] %v1404
      %1418 = vst [vmem:[#allocation2 + $0x40] sm:$0xff] %v1405
      %1419 = vst [vmem:[#allocation2 + $0x48] sm:$0xff] %v1406
      %1420 = vst [vmem:[#allocation2 + $0x50] sm:$0xff] %v1407
      %1421 = vst [vmem:[#allocation2 + $0x58] sm:$0xff] %v1408
      %1422 = vst [vmem:[#allocation2 + $0x60] sm:$0xf] %v1409
      %1423 = vst [vmem:[#allocation2 + $0x60] sm:$0xf0] 0
      %v1424 = vld [vmem:[#allocation2] sm:$0xff]
      %v1425 = vld [vmem:[#allocation2 + $0x8] sm:$0xff]
      %v1426 = vld [vmem:[#allocation2 + $0x10] sm:$0xff]
      %v1427 = vld [vmem:[#allocation2 + $0x18] sm:$0xff]
      %v1428 = vld [vmem:[#allocation2 + $0x20] sm:$0xff]
      %v1429 = vld [vmem:[#allocation2 + $0x28] sm:$0xff]
      %v1430 = vld [vmem:[#allocation2 + $0x30] sm:$0xff]
      %v1431 = vld [vmem:[#allocation2 + $0x38] sm:$0xff]
      %v1432 = vld [vmem:[#allocation2 + $0x40] sm:$0xff]
      %v1433 = vld [vmem:[%s3] sm:$0xf]
      %v1434 = vld [vmem:[%s3 + $0x4] sm:$0xf]
      %v1435 = vld [vmem:[%s3 + $0x8] sm:$0xf]
      %v1436 = vld [vmem:[%s3 + $0xc] sm:$0xf]
      %v1437 = vld [vmem:[#allocation2 + $0x48] sm:$0x1]
      %s1438 = scalar_lea.vmem %s3, 16
      %v1439 = vld [vmem:[%s1438] sm:$0xf]
      %v1440 = vld [vmem:[%s1438 + $0x4] sm:$0xf]
      %v1441 = vld [vmem:[%s1438 + $0x8] sm:$0xf]
      %v1442 = vld [vmem:[%s1438 + $0xc] sm:$0xf]
      %vm1443 = vsmask.f32 7424
      %v1445 = vshrl.u32 %v1424, 16
      %v1447 = vshll.u32 %v1424, 16
      %v1449 = vrot.slane %v1447, 1
      %v1450 = vor.u32 %v1445, %v1449
      %v1452 = vshll.u32 %v1425, 16
      %v1454 = vrot.slane %v1452, 1
      %v1455 = vsel %vm1443, %v1450, %v1454
      %v1456 = vshrl.u32 %v1425, 16
      %v1458 = vor.u32 %v1456, %v1454
      %v1460 = vshll.u32 %v1426, 16
      %v1462 = vrot.slane %v1460, 1
      %v1463 = vsel %vm1443, %v1458, %v1462
      %v1464 = vshrl.u32 %v1426, 16
      %v1466 = vor.u32 %v1464, %v1462
      %v1468 = vshll.u32 %v1427, 16
      %v1470 = vrot.slane %v1468, 1
      %v1471 = vsel %vm1443, %v1466, %v1470
      %v1472 = vshrl.u32 %v1427, 16
      %v1474 = vor.u32 %v1472, %v1470
      %v1476 = vshll.u32 %v1428, 16
      %v1478 = vrot.slane %v1476, 1
      %v1479 = vsel %vm1443, %v1474, %v1478
      %v1480 = vshrl.u32 %v1428, 16
      %v1482 = vor.u32 %v1480, %v1478
      %v1484 = vshll.u32 %v1429, 16
      %v1486 = vrot.slane %v1484, 1
      %v1487 = vsel %vm1443, %v1482, %v1486
      %v1488 = vshrl.u32 %v1429, 16
      %v1490 = vor.u32 %v1488, %v1486
      %v1492 = vshll.u32 %v1430, 16
      %v1494 = vrot.slane %v1492, 1
      %v1495 = vsel %vm1443, %v1490, %v1494
      %v1496 = vshrl.u32 %v1430, 16
      %v1498 = vor.u32 %v1496, %v1494
      %v1500 = vshll.u32 %v1431, 16
      %v1502 = vrot.slane %v1500, 1
      %v1503 = vsel %vm1443, %v1498, %v1502
      %v1504 = vshrl.u32 %v1431, 16
      %v1506 = vor.u32 %v1504, %v1502
      %v1508 = vshll.u32 %v1432, 16
      %v1510 = vrot.slane %v1508, 1
      %v1511 = vsel %vm1443, %v1506, %v1510
      %v1512 = vshrl.u32 %v1432, 16
      %v1514 = vor.u32 %v1512, %v1510
      %v1516 = vshll.u32 %v1437, 16
      %v1518 = vrot.slane %v1516, 1
      %v1519 = vsel %vm1443, %v1514, %v1518
      %v1524 = vunpack.c.l.b16 %v1439
      %v1525 = vunpack.c.l.b16 %v1440
      %v1526 = vunpack.c.l.b16 %v1441
      %v1527 = vunpack.c.l.b16 %v1442
      %v1528 = vpack.c.b16 %v1525, %v1524
      %v1529 = vpack.c.b16 %v1527, %v1526
      %vm1532 = vcmask 261120
      %v1534 = vsel %vm1532, %v1455, 0
      %v1537 = vsel %vm1532, %v1463, 0
      %v1540 = vsel %vm1532, %v1471, 0
      %v1543 = vsel %vm1532, %v1479, 0
      %v1546 = vsel %vm1532, %v1487, 0
      %v1549 = vsel %vm1532, %v1495, 0
      %v1552 = vsel %vm1532, %v1503, 0
      %v1555 = vsel %vm1532, %v1511, 0
      %v1558 = vsel %vm1532, %v1519, 0
      %1560 = vmatprep.subr.bf16.mxu0 0
      %1561 = vmatpush1.bf16.msra.mxu0 %v1528
      %1562 = vmatprep.subr.bf16.mxu0 0
      %1563 = vmatpush1.bf16.msra.mxu0 %v1529
      %1564 = vmatprep.subr.bf16.mxu0 0
      %1565 = vmatpush1.bf16.msra.mxu0 0
      %1566 = vmatprep.subr.bf16.mxu0 0
      %1567 = vmatpush1.bf16.msra.mxu0 0
      %1568 = vmatprep.subr.bf16.mxu0 0
      %1569 = vmatpush1.bf16.msra.mxu0 0
      %1570 = vmatprep.subr.bf16.mxu0 0
      %1571 = vmatpush1.bf16.msra.mxu0 0
      %1572 = vmatprep.subr.bf16.mxu0 0
      %1573 = vmatpush1.bf16.msra.mxu0 0
      %1574 = vmatprep.subr.bf16.mxu0 0
      %1575 = vmatpush1.bf16.msra.mxu0 0
      %1576 = vmatprep.subr.bf16.mxu0 0
      %1577 = vmatpush1.bf16.msra.mxu0 0
      %1578 = vmatprep.subr.bf16.mxu0 0
      %1579 = vmatpush1.bf16.msra.mxu0 0
      %1580 = vmatprep.subr.bf16.mxu0 0
      %1581 = vmatpush1.bf16.msra.mxu0 0
      %1582 = vmatprep.subr.bf16.mxu0 0
      %1583 = vmatpush1.bf16.msra.mxu0 0
      %1584 = vmatprep.subr.bf16.mxu0 0
      %1585 = vmatpush1.bf16.msra.mxu0 0
      %1586 = vmatprep.subr.bf16.mxu0 0
      %1587 = vmatpush1.bf16.msra.mxu0 0
      %1588 = vmatprep.subr.bf16.mxu0 0
      %1589 = vmatpush1.bf16.msra.mxu0 0
      %1590 = vmatprep.subr.bf16.mxu0 0
      %1591 = vmatpush1.bf16.msra.mxu0 0
      %1592 = vmatprep.mubr.bf16.mxu0 0
      %1593 = vmatmul.mubr.bf16.gmra.mrb[0].mxu0 %v1534
      %v1594 = vpop.f32.mrb[0].mxu0
      %v1595 = vadd.f32 0.0, %v1594
      %v1596 = vpop.f32.mrb[0].mxu0
      %v1597 = vpop.f32.mrb[0].mxu0
      %v1598 = vadd.f32 0.0, %v1597
      %v1599 = vpop.f32.mrb[0].mxu0
      %1600 = vmatprep.mubr.bf16.mxu0 0
      %1601 = vmatmul.mubr.bf16.gmra.mrb[0].mxu0 %v1537
      %v1602 = vpop.f32.mrb[0].mxu0
      %v1603 = vadd.f32 0.0, %v1602
      %v1604 = vpop.f32.mrb[0].mxu0
      %v1605 = vpop.f32.mrb[0].mxu0
      %v1606 = vadd.f32 0.0, %v1605
      %v1607 = vpop.f32.mrb[0].mxu0
      %1608 = vmatprep.mubr.bf16.mxu0 0
      %1609 = vmatmul.mubr.bf16.gmra.mrb[0].mxu0 %v1540
      %v1610 = vpop.f32.mrb[0].mxu0
      %v1611 = vadd.f32 0.0, %v1610
      %v1612 = vpop.f32.mrb[0].mxu0
      %v1613 = vpop.f32.mrb[0].mxu0
      %v1614 = vadd.f32 0.0, %v1613
      %v1615 = vpop.f32.mrb[0].mxu0
      %1616 = vmatprep.mubr.bf16.mxu0 0
      %1617 = vmatmul.mubr.bf16.gmra.mrb[0].mxu0 %v1543
      %v1618 = vpop.f32.mrb[0].mxu0
      %v1619 = vadd.f32 0.0, %v1618
      %v1620 = vpop.f32.mrb[0].mxu0
      %v1621 = vpop.f32.mrb[0].mxu0
      %v1622 = vadd.f32 0.0, %v1621
      %v1623 = vpop.f32.mrb[0].mxu0
      %1624 = vmatprep.mubr.bf16.mxu0 0
      %1625 = vmatmul.mubr.bf16.gmra.mrb[0].mxu0 %v1546
      %v1626 = vpop.f32.mrb[0].mxu0
      %v1627 = vadd.f32 0.0, %v1626
      %v1628 = vpop.f32.mrb[0].mxu0
      %v1629 = vpop.f32.mrb[0].mxu0
      %v1630 = vadd.f32 0.0, %v1629
      %v1631 = vpop.f32.mrb[0].mxu0
      %1632 = vmatprep.mubr.bf16.mxu0 0
      %1633 = vmatmul.mubr.bf16.gmra.mrb[0].mxu0 %v1549
      %v1634 = vpop.f32.mrb[0].mxu0
      %v1635 = vadd.f32 0.0, %v1634
      %v1636 = vpop.f32.mrb[0].mxu0
      %v1637 = vpop.f32.mrb[0].mxu0
      %v1638 = vadd.f32 0.0, %v1637
      %v1639 = vpop.f32.mrb[0].mxu0
      %1640 = vmatprep.mubr.bf16.mxu0 0
      %1641 = vmatmul.mubr.bf16.gmra.mrb[0].mxu0 %v1552
      %v1642 = vpop.f32.mrb[0].mxu0
      %v1643 = vadd.f32 0.0, %v1642
      %v1644 = vpop.f32.mrb[0].mxu0
      %v1645 = vpop.f32.mrb[0].mxu0
      %v1646 = vadd.f32 0.0, %v1645
      %v1647 = vpop.f32.mrb[0].mxu0
      %1648 = vmatprep.mubr.bf16.mxu0 0
      %1649 = vmatmul.mubr.bf16.gmra.mrb[0].mxu0 %v1555
      %v1650 = vpop.f32.mrb[0].mxu0
      %v1651 = vadd.f32 0.0, %v1650
      %v1652 = vpop.f32.mrb[0].mxu0
      %v1653 = vpop.f32.mrb[0].mxu0
      %v1654 = vadd.f32 0.0, %v1653
      %v1655 = vpop.f32.mrb[0].mxu0
      %1656 = vmatprep.mubr.bf16.mxu0 0
      %1657 = vmatmul.mubr.bf16.gmra.mrb[0].mxu0 %v1558
      %v1658 = vpop.f32.mrb[0].mxu0
      %v1659 = vadd.f32 0.0, %v1658
      %v1660 = vpop.f32.mrb[0].mxu0
      %v1661 = vpop.f32.mrb[0].mxu0
      %v1662 = vadd.f32 0.0, %v1661
      %v1663 = vpop.f32.mrb[0].mxu0
      %1664 = vdwg.mxu0
      %v1669 = vunpack.c.l.b16 %v1433
      %v1670 = vunpack.c.l.b16 %v1434
      %v1671 = vunpack.c.l.b16 %v1435
      %v1672 = vunpack.c.l.b16 %v1436
      %v1673 = vpack.c.b16 %v1670, %v1669
      %v1674 = vpack.c.b16 %v1672, %v1671
      %v1677 = vsel %vm1532, %v1424, 0
      %v1679 = vsel %vm1532, %v1425, 0
      %v1681 = vsel %vm1532, %v1426, 0
      %v1683 = vsel %vm1532, %v1427, 0
      %v1685 = vsel %vm1532, %v1428, 0
      %v1687 = vsel %vm1532, %v1429, 0
      %v1689 = vsel %vm1532, %v1430, 0
      %v1691 = vsel %vm1532, %v1431, 0
      %v1693 = vsel %vm1532, %v1432, 0
      %1695 = vmatprep.subr.bf16.mxu0 0
      %1696 = vmatpush1.bf16.msra.mxu0 %v1673
      %1697 = vmatprep.subr.bf16.mxu0 0
      %1698 = vmatpush1.bf16.msra.mxu0 %v1674
      %1699 = vmatprep.subr.bf16.mxu0 0
      %1700 = vmatpush1.bf16.msra.mxu0 0
      %1701 = vmatprep.subr.bf16.mxu0 0
      %1702 = vmatpush1.bf16.msra.mxu0 0
      %1703 = vmatprep.subr.bf16.mxu0 0
      %1704 = vmatpush1.bf16.msra.mxu0 0
      %1705 = vmatprep.subr.bf16.mxu0 0
      %1706 = vmatpush1.bf16.msra.mxu0 0
      %1707 = vmatprep.subr.bf16.mxu0 0
      %1708 = vmatpush1.bf16.msra.mxu0 0
      %1709 = vmatprep.subr.bf16.mxu0 0
      %1710 = vmatpush1.bf16.msra.mxu0 0
      %1711 = vmatprep.subr.bf16.mxu0 0
      %1712 = vmatpush1.bf16.msra.mxu0 0
      %1713 = vmatprep.subr.bf16.mxu0 0
      %1714 = vmatpush1.bf16.msra.mxu0 0
      %1715 = vmatprep.subr.bf16.mxu0 0
      %1716 = vmatpush1.bf16.msra.mxu0 0
      %1717 = vmatprep.subr.bf16.mxu0 0
      %1718 = vmatpush1.bf16.msra.mxu0 0
      %1719 = vmatprep.subr.bf16.mxu0 0
      %1720 = vmatpush1.bf16.msra.mxu0 0
      %1721 = vmatprep.subr.bf16.mxu0 0
      %1722 = vmatpush1.bf16.msra.mxu0 0
      %1723 = vmatprep.subr.bf16.mxu0 0
      %1724 = vmatpush1.bf16.msra.mxu0 0
      %1725 = vmatprep.subr.bf16.mxu0 0
      %1726 = vmatpush1.bf16.msra.mxu0 0
      %1727 = vmatprep.mubr.bf16.mxu0 0
      %1728 = vmatmul.mubr.bf16.gmra.mrb[0].mxu0 %v1677
      %v1729 = vpop.f32.mrb[0].mxu0
      %v1730 = vadd.f32 %v1595, %v1729
      %v1731 = vpop.f32.mrb[0].mxu0
      %v1732 = vpop.f32.mrb[0].mxu0
      %v1733 = vadd.f32 %v1598, %v1732
      %v1734 = vpop.f32.mrb[0].mxu0
      %1735 = vmatprep.mubr.bf16.mxu0 0
      %1736 = vmatmul.mubr.bf16.gmra.mrb[0].mxu0 %v1679
      %v1737 = vpop.f32.mrb[0].mxu0
      %v1738 = vadd.f32 %v1603, %v1737
      %v1739 = vpop.f32.mrb[0].mxu0
      %v1740 = vpop.f32.mrb[0].mxu0
      %v1741 = vadd.f32 %v1606, %v1740
      %v1742 = vpop.f32.mrb[0].mxu0
      %1743 = vmatprep.mubr.bf16.mxu0 0
      %1744 = vmatmul.mubr.bf16.gmra.mrb[0].mxu0 %v1681
      %v1745 = vpop.f32.mrb[0].mxu0
      %v1746 = vadd.f32 %v1611, %v1745
      %v1747 = vpop.f32.mrb[0].mxu0
      %v1748 = vpop.f32.mrb[0].mxu0
      %v1749 = vadd.f32 %v1614, %v1748
      %v1750 = vpop.f32.mrb[0].mxu0
      %1751 = vmatprep.mubr.bf16.mxu0 0
      %1752 = vmatmul.mubr.bf16.gmra.mrb[0].mxu0 %v1683
      %v1753 = vpop.f32.mrb[0].mxu0
      %v1754 = vadd.f32 %v1619, %v1753
      %v1755 = vpop.f32.mrb[0].mxu0
      %v1756 = vpop.f32.mrb[0].mxu0
      %v1757 = vadd.f32 %v1622, %v1756
      %v1758 = vpop.f32.mrb[0].mxu0
      %1759 = vmatprep.mubr.bf16.mxu0 0
      %1760 = vmatmul.mubr.bf16.gmra.mrb[0].mxu0 %v1685
      %v1761 = vpop.f32.mrb[0].mxu0
      %v1762 = vadd.f32 %v1627, %v1761
      %v1763 = vpop.f32.mrb[0].mxu0
      %v1764 = vpop.f32.mrb[0].mxu0
      %v1765 = vadd.f32 %v1630, %v1764
      %v1766 = vpop.f32.mrb[0].mxu0
      %1767 = vmatprep.mubr.bf16.mxu0 0
      %1768 = vmatmul.mubr.bf16.gmra.mrb[0].mxu0 %v1687
      %v1769 = vpop.f32.mrb[0].mxu0
      %v1770 = vadd.f32 %v1635, %v1769
      %v1771 = vpop.f32.mrb[0].mxu0
      %v1772 = vpop.f32.mrb[0].mxu0
      %v1773 = vadd.f32 %v1638, %v1772
      %v1774 = vpop.f32.mrb[0].mxu0
      %1775 = vmatprep.mubr.bf16.mxu0 0
      %1776 = vmatmul.mubr.bf16.gmra.mrb[0].mxu0 %v1689
      %v1777 = vpop.f32.mrb[0].mxu0
      %v1778 = vadd.f32 %v1643, %v1777
      %v1779 = vpop.f32.mrb[0].mxu0
      %v1780 = vpop.f32.mrb[0].mxu0
      %v1781 = vadd.f32 %v1646, %v1780
      %v1782 = vpop.f32.mrb[0].mxu0
      %1783 = vmatprep.mubr.bf16.mxu0 0
      %1784 = vmatmul.mubr.bf16.gmra.mrb[0].mxu0 %v1691
      %v1785 = vpop.f32.mrb[0].mxu0
      %v1786 = vadd.f32 %v1651, %v1785
      %v1787 = vpop.f32.mrb[0].mxu0
      %v1788 = vpop.f32.mrb[0].mxu0
      %v1789 = vadd.f32 %v1654, %v1788
      %v1790 = vpop.f32.mrb[0].mxu0
      %1791 = vmatprep.mubr.bf16.mxu0 0
      %1792 = vmatmul.mubr.bf16.gmra.mrb[0].mxu0 %v1693
      %v1793 = vpop.f32.mrb[0].mxu0
      %v1794 = vadd.f32 %v1659, %v1793
      %v1795 = vpop.f32.mrb[0].mxu0
      %v1796 = vpop.f32.mrb[0].mxu0
      %v1797 = vadd.f32 %v1662, %v1796
      %v1798 = vpop.f32.mrb[0].mxu0
      %1799 = vdwg.mxu0
      %v1800 = vld [vmem:[#allocation2] sm:$0xfe]
      %s1801 = scalar_lea.vmem %s3, 32
      %v1802 = vld [vmem:[%s1801] sm:$0xf]
      %v1803 = vld [vmem:[%s1801 + $0x4] sm:$0xf]
      %v1804 = vld [vmem:[%s1801 + $0x8] sm:$0xf]
      %v1805 = vld [vmem:[%s1801 + $0xc] sm:$0xf]
      %vm1816 = vcmask 1046528
      %v1817 = vrot.slane %v1800, 1
      %v1818 = vrot.slane %v1425, 1
      %v1819 = vsel %vm1816, %v1817, %v1818
      %v1820 = vrot.slane %v1426, 1
      %v1821 = vsel %vm1816, %v1818, %v1820
      %v1822 = vrot.slane %v1427, 1
      %v1823 = vsel %vm1816, %v1820, %v1822
      %v1824 = vrot.slane %v1428, 1
      %v1825 = vsel %vm1816, %v1822, %v1824
      %v1826 = vrot.slane %v1429, 1
      %v1827 = vsel %vm1816, %v1824, %v1826
      %v1828 = vrot.slane %v1430, 1
      %v1829 = vsel %vm1816, %v1826, %v1828
      %v1830 = vrot.slane %v1431, 1
      %v1831 = vsel %vm1816, %v1828, %v1830
      %v1832 = vrot.slane %v1432, 1
      %v1833 = vsel %vm1816, %v1830, %v1832
      %v1834 = vrot.slane %v1437, 1
      %v1835 = vsel %vm1816, %v1832, %v1834
      %v1840 = vunpack.c.l.b16 %v1802
      %v1841 = vunpack.c.l.b16 %v1803
      %v1842 = vunpack.c.l.b16 %v1804
      %v1843 = vunpack.c.l.b16 %v1805
      %v1844 = vpack.c.b16 %v1841, %v1840
      %v1845 = vpack.c.b16 %v1843, %v1842
      %v1849 = vsel %vm1532, %v1819, 0
      %v1852 = vsel %vm1532, %v1821, 0
      %v1855 = vsel %vm1532, %v1823, 0
      %v1858 = vsel %vm1532, %v1825, 0
      %v1861 = vsel %vm1532, %v1827, 0
      %v1864 = vsel %vm1532, %v1829, 0
      %v1867 = vsel %vm1532, %v1831, 0
      %v1870 = vsel %vm1532, %v1833, 0
      %v1873 = vsel %vm1532, %v1835, 0
      %1875 = vmatprep.subr.bf16.mxu0 0
      %1876 = vmatpush1.bf16.msra.mxu0 %v1844
      %1877 = vmatprep.subr.bf16.mxu0 0
      %1878 = vmatpush1.bf16.msra.mxu0 %v1845
      %1879 = vmatprep.subr.bf16.mxu0 0
      %1880 = vmatpush1.bf16.msra.mxu0 0
      %1881 = vmatprep.subr.bf16.mxu0 0
      %1882 = vmatpush1.bf16.msra.mxu0 0
      %1883 = vmatprep.subr.bf16.mxu0 0
      %1884 = vmatpush1.bf16.msra.mxu0 0
      %1885 = vmatprep.subr.bf16.mxu0 0
      %1886 = vmatpush1.bf16.msra.mxu0 0
      %1887 = vmatprep.subr.bf16.mxu0 0
      %1888 = vmatpush1.bf16.msra.mxu0 0
      %1889 = vmatprep.subr.bf16.mxu0 0
      %1890 = vmatpush1.bf16.msra.mxu0 0
      %1891 = vmatprep.subr.bf16.mxu0 0
      %1892 = vmatpush1.bf16.msra.mxu0 0
      %1893 = vmatprep.subr.bf16.mxu0 0
      %1894 = vmatpush1.bf16.msra.mxu0 0
      %1895 = vmatprep.subr.bf16.mxu0 0
      %1896 = vmatpush1.bf16.msra.mxu0 0
      %1897 = vmatprep.subr.bf16.mxu0 0
      %1898 = vmatpush1.bf16.msra.mxu0 0
      %1899 = vmatprep.subr.bf16.mxu0 0
      %1900 = vmatpush1.bf16.msra.mxu0 0
      %1901 = vmatprep.subr.bf16.mxu0 0
      %1902 = vmatpush1.bf16.msra.mxu0 0
      %1903 = vmatprep.subr.bf16.mxu0 0
      %1904 = vmatpush1.bf16.msra.mxu0 0
      %1905 = vmatprep.subr.bf16.mxu0 0
      %1906 = vmatpush1.bf16.msra.mxu0 0
      %1907 = vmatprep.mubr.bf16.mxu0 0
      %1908 = vmatmul.mubr.bf16.gmra.mrb[0].mxu0 %v1849
      %v1909 = vpop.f32.mrb[0].mxu0
      %v1910 = vadd.f32 0.0, %v1909
      %v1911 = vpop.f32.mrb[0].mxu0
      %v1912 = vpop.f32.mrb[0].mxu0
      %v1913 = vadd.f32 0.0, %v1912
      %v1914 = vpop.f32.mrb[0].mxu0
      %1915 = vmatprep.mubr.bf16.mxu0 0
      %1916 = vmatmul.mubr.bf16.gmra.mrb[0].mxu0 %v1852
      %v1917 = vpop.f32.mrb[0].mxu0
      %v1918 = vadd.f32 0.0, %v1917
      %v1919 = vpop.f32.mrb[0].mxu0
      %v1920 = vpop.f32.mrb[0].mxu0
      %v1921 = vadd.f32 0.0, %v1920
      %v1922 = vpop.f32.mrb[0].mxu0
      %1923 = vmatprep.mubr.bf16.mxu0 0
      %1924 = vmatmul.mubr.bf16.gmra.mrb[0].mxu0 %v1855
      %v1925 = vpop.f32.mrb[0].mxu0
      %v1926 = vadd.f32 0.0, %v1925
      %v1927 = vpop.f32.mrb[0].mxu0
      %v1928 = vpop.f32.mrb[0].mxu0
      %v1929 = vadd.f32 0.0, %v1928
      %v1930 = vpop.f32.mrb[0].mxu0
      %1931 = vmatprep.mubr.bf16.mxu0 0
      %1932 = vmatmul.mubr.bf16.gmra.mrb[0].mxu0 %v1858
      %v1933 = vpop.f32.mrb[0].mxu0
      %v1934 = vadd.f32 0.0, %v1933
      %v1935 = vpop.f32.mrb[0].mxu0
      %v1936 = vpop.f32.mrb[0].mxu0
      %v1937 = vadd.f32 0.0, %v1936
      %v1938 = vpop.f32.mrb[0].mxu0
      %1939 = vmatprep.mubr.bf16.mxu0 0
      %1940 = vmatmul.mubr.bf16.gmra.mrb[0].mxu0 %v1861
      %v1941 = vpop.f32.mrb[0].mxu0
      %v1942 = vadd.f32 0.0, %v1941
      %v1943 = vpop.f32.mrb[0].mxu0
      %v1944 = vpop.f32.mrb[0].mxu0
      %v1945 = vadd.f32 0.0, %v1944
      %v1946 = vpop.f32.mrb[0].mxu0
      %1947 = vmatprep.mubr.bf16.mxu0 0
      %1948 = vmatmul.mubr.bf16.gmra.mrb[0].mxu0 %v1864
      %v1949 = vpop.f32.mrb[0].mxu0
      %v1950 = vadd.f32 0.0, %v1949
      %v1951 = vpop.f32.mrb[0].mxu0
      %v1952 = vpop.f32.mrb[0].mxu0
      %v1953 = vadd.f32 0.0, %v1952
      %v1954 = vpop.f32.mrb[0].mxu0
      %1955 = vmatprep.mubr.bf16.mxu0 0
      %1956 = vmatmul.mubr.bf16.gmra.mrb[0].mxu0 %v1867
      %v1957 = vpop.f32.mrb[0].mxu0
      %v1958 = vadd.f32 0.0, %v1957
      %v1959 = vpop.f32.mrb[0].mxu0
      %v1960 = vpop.f32.mrb[0].mxu0
      %v1961 = vadd.f32 0.0, %v1960
      %v1962 = vpop.f32.mrb[0].mxu0
      %1963 = vmatprep.mubr.bf16.mxu0 0
      %1964 = vmatmul.mubr.bf16.gmra.mrb[0].mxu0 %v1870
      %v1965 = vpop.f32.mrb[0].mxu0
      %v1966 = vadd.f32 0.0, %v1965
      %v1967 = vpop.f32.mrb[0].mxu0
      %v1968 = vpop.f32.mrb[0].mxu0
      %v1969 = vadd.f32 0.0, %v1968
      %v1970 = vpop.f32.mrb[0].mxu0
      %1971 = vmatprep.mubr.bf16.mxu0 0
      %1972 = vmatmul.mubr.bf16.gmra.mrb[0].mxu0 %v1873
      %v1973 = vpop.f32.mrb[0].mxu0
      %v1974 = vadd.f32 0.0, %v1973
      %v1975 = vpop.f32.mrb[0].mxu0
      %v1976 = vpop.f32.mrb[0].mxu0
      %v1977 = vadd.f32 0.0, %v1976
      %v1978 = vpop.f32.mrb[0].mxu0
      %1979 = vdwg.mxu0
      %v1980 = vadd.f32 %v1730, %v1910
      %v1981 = vadd.f32 %v1733, %v1913
      %v1982 = vadd.f32 %v1738, %v1918
      %v1983 = vadd.f32 %v1741, %v1921
      %v1984 = vadd.f32 %v1746, %v1926
      %v1985 = vadd.f32 %v1749, %v1929
      %v1986 = vadd.f32 %v1754, %v1934
      %v1987 = vadd.f32 %v1757, %v1937
      %v1988 = vadd.f32 %v1762, %v1942
      %v1989 = vadd.f32 %v1765, %v1945
      %v1990 = vadd.f32 %v1770, %v1950
      %v1991 = vadd.f32 %v1773, %v1953
      %v1992 = vadd.f32 %v1778, %v1958
      %v1993 = vadd.f32 %v1781, %v1961
      %v1994 = vadd.f32 %v1786, %v1966
      %v1995 = vadd.f32 %v1789, %v1969
      %v1996 = vadd.f32 %v1794, %v1974
      %v1997 = vadd.f32 %v1797, %v1977
      %v1998 = vld [vmem:[#allocation2 + $0x48] sm:$0x3]
      %s1999 = scalar_lea.vmem %s3, 48
      %v2000 = vld [vmem:[%s1999] sm:$0xf]
      %v2001 = vld [vmem:[%s1999 + $0x4] sm:$0xf]
      %v2002 = vld [vmem:[%s1999 + $0x8] sm:$0xf]
      %v2003 = vld [vmem:[%s1999 + $0xc] sm:$0xf]
      %vm2004 = vsmask.f32 6400
      %v2006 = vshrl.u32 %v1800, 16
      %v2008 = vrot.slane %v2006, 1
      %v2009 = vshll.u32 %v1800, 16
      %v2011 = vrot.slane %v2009, 2
      %v2012 = vor.u32 %v2008, %v2011
      %v2013 = vrot.slane %v1456, 1
      %v2014 = vrot.slane %v1452, 2
      %v2015 = vor.u32 %v2013, %v2014
      %v2016 = vsel %vm2004, %v2012, %v2015
      %v2017 = vrot.slane %v1464, 1
      %v2018 = vrot.slane %v1460, 2
      %v2019 = vor.u32 %v2017, %v2018
      %v2020 = vsel %vm2004, %v2015, %v2019
      %v2021 = vrot.slane %v1472, 1
      %v2022 = vrot.slane %v1468, 2
      %v2023 = vor.u32 %v2021, %v2022
      %v2024 = vsel %vm2004, %v2019, %v2023
      %v2025 = vrot.slane %v1480, 1
      %v2026 = vrot.slane %v1476, 2
      %v2027 = vor.u32 %v2025, %v2026
      %v2028 = vsel %vm2004, %v2023, %v2027
      %v2029 = vrot.slane %v1488, 1
      %v2030 = vrot.slane %v1484, 2
      %v2031 = vor.u32 %v2029, %v2030
      %v2032 = vsel %vm2004, %v2027, %v2031
      %v2033 = vrot.slane %v1496, 1
      %v2034 = vrot.slane %v1492, 2
      %v2035 = vor.u32 %v2033, %v2034
      %v2036 = vsel %vm2004, %v2031, %v2035
      %v2037 = vrot.slane %v1504, 1
      %v2038 = vrot.slane %v1500, 2
      %v2039 = vor.u32 %v2037, %v2038
      %v2040 = vsel %vm2004, %v2035, %v2039
      %v2041 = vrot.slane %v1512, 1
      %v2042 = vrot.slane %v1508, 2
      %v2043 = vor.u32 %v2041, %v2042
      %v2044 = vsel %vm2004, %v2039, %v2043
      %v2046 = vshrl.u32 %v1998, 16
      %v2048 = vrot.slane %v2046, 1
      %v2049 = vshll.u32 %v1998, 16
      %v2051 = vrot.slane %v2049, 2
      %v2052 = vor.u32 %v2048, %v2051
      %v2053 = vsel %vm2004, %v2043, %v2052
      %v2058 = vunpack.c.l.b16 %v2000
      %v2059 = vunpack.c.l.b16 %v2001
      %v2060 = vunpack.c.l.b16 %v2002
      %v2061 = vunpack.c.l.b16 %v2003
      %v2062 = vpack.c.b16 %v2059, %v2058
      %v2063 = vpack.c.b16 %v2061, %v2060
      %v2067 = vsel %vm1532, %v2016, 0
      %v2070 = vsel %vm1532, %v2020, 0
      %v2073 = vsel %vm1532, %v2024, 0
      %v2076 = vsel %vm1532, %v2028, 0
      %v2079 = vsel %vm1532, %v2032, 0
      %v2082 = vsel %vm1532, %v2036, 0
      %v2085 = vsel %vm1532, %v2040, 0
      %v2088 = vsel %vm1532, %v2044, 0
      %v2091 = vsel %vm1532, %v2053, 0
      %2093 = vmatprep.subr.bf16.mxu0 0
      %2094 = vmatpush1.bf16.msra.mxu0 %v2062
      %2095 = vmatprep.subr.bf16.mxu0 0
      %2096 = vmatpush1.bf16.msra.mxu0 %v2063
      %2097 = vmatprep.subr.bf16.mxu0 0
      %2098 = vmatpush1.bf16.msra.mxu0 0
      %2099 = vmatprep.subr.bf16.mxu0 0
      %2100 = vmatpush1.bf16.msra.mxu0 0
      %2101 = vmatprep.subr.bf16.mxu0 0
      %2102 = vmatpush1.bf16.msra.mxu0 0
      %2103 = vmatprep.subr.bf16.mxu0 0
      %2104 = vmatpush1.bf16.msra.mxu0 0
      %2105 = vmatprep.subr.bf16.mxu0 0
      %2106 = vmatpush1.bf16.msra.mxu0 0
      %2107 = vmatprep.subr.bf16.mxu0 0
      %2108 = vmatpush1.bf16.msra.mxu0 0
      %2109 = vmatprep.subr.bf16.mxu0 0
      %2110 = vmatpush1.bf16.msra.mxu0 0
      %2111 = vmatprep.subr.bf16.mxu0 0
      %2112 = vmatpush1.bf16.msra.mxu0 0
      %2113 = vmatprep.subr.bf16.mxu0 0
      %2114 = vmatpush1.bf16.msra.mxu0 0
      %2115 = vmatprep.subr.bf16.mxu0 0
      %2116 = vmatpush1.bf16.msra.mxu0 0
      %2117 = vmatprep.subr.bf16.mxu0 0
      %2118 = vmatpush1.bf16.msra.mxu0 0
      %2119 = vmatprep.subr.bf16.mxu0 0
      %2120 = vmatpush1.bf16.msra.mxu0 0
      %2121 = vmatprep.subr.bf16.mxu0 0
      %2122 = vmatpush1.bf16.msra.mxu0 0
      %2123 = vmatprep.subr.bf16.mxu0 0
      %2124 = vmatpush1.bf16.msra.mxu0 0
      %2125 = vmatprep.mubr.bf16.mxu0 0
      %2126 = vmatmul.mubr.bf16.gmra.mrb[0].mxu0 %v2067
      %v2127 = vpop.f32.mrb[0].mxu0
      %v2128 = vadd.f32 0.0, %v2127
      %v2129 = vpop.f32.mrb[0].mxu0
      %v2130 = vpop.f32.mrb[0].mxu0
      %v2131 = vadd.f32 0.0, %v2130
      %v2132 = vpop.f32.mrb[0].mxu0
      %2133 = vmatprep.mubr.bf16.mxu0 0
      %2134 = vmatmul.mubr.bf16.gmra.mrb[0].mxu0 %v2070
      %v2135 = vpop.f32.mrb[0].mxu0
      %v2136 = vadd.f32 0.0, %v2135
      %v2137 = vpop.f32.mrb[0].mxu0
      %v2138 = vpop.f32.mrb[0].mxu0
      %v2139 = vadd.f32 0.0, %v2138
      %v2140 = vpop.f32.mrb[0].mxu0
      %2141 = vmatprep.mubr.bf16.mxu0 0
      %2142 = vmatmul.mubr.bf16.gmra.mrb[0].mxu0 %v2073
      %v2143 = vpop.f32.mrb[0].mxu0
      %v2144 = vadd.f32 0.0, %v2143
      %v2145 = vpop.f32.mrb[0].mxu0
      %v2146 = vpop.f32.mrb[0].mxu0
      %v2147 = vadd.f32 0.0, %v2146
      %v2148 = vpop.f32.mrb[0].mxu0
      %2149 = vmatprep.mubr.bf16.mxu0 0
      %2150 = vmatmul.mubr.bf16.gmra.mrb[0].mxu0 %v2076
      %v2151 = vpop.f32.mrb[0].mxu0
      %v2152 = vadd.f32 0.0, %v2151
      %v2153 = vpop.f32.mrb[0].mxu0
      %v2154 = vpop.f32.mrb[0].mxu0
      %v2155 = vadd.f32 0.0, %v2154
      %v2156 = vpop.f32.mrb[0].mxu0
      %2157 = vmatprep.mubr.bf16.mxu0 0
      %2158 = vmatmul.mubr.bf16.gmra.mrb[0].mxu0 %v2079
      %v2159 = vpop.f32.mrb[0].mxu0
      %v2160 = vadd.f32 0.0, %v2159
      %v2161 = vpop.f32.mrb[0].mxu0
      %v2162 = vpop.f32.mrb[0].mxu0
      %v2163 = vadd.f32 0.0, %v2162
      %v2164 = vpop.f32.mrb[0].mxu0
      %2165 = vmatprep.mubr.bf16.mxu0 0
      %2166 = vmatmul.mubr.bf16.gmra.mrb[0].mxu0 %v2082
      %v2167 = vpop.f32.mrb[0].mxu0
      %v2168 = vadd.f32 0.0, %v2167
      %v2169 = vpop.f32.mrb[0].mxu0
      %v2170 = vpop.f32.mrb[0].mxu0
      %v2171 = vadd.f32 0.0, %v2170
      %v2172 = vpop.f32.mrb[0].mxu0
      %2173 = vmatprep.mubr.bf16.mxu0 0
      %2174 = vmatmul.mubr.bf16.gmra.mrb[0].mxu0 %v2085
      %v2175 = vpop.f32.mrb[0].mxu0
      %v2176 = vadd.f32 0.0, %v2175
      %v2177 = vpop.f32.mrb[0].mxu0
      %v2178 = vpop.f32.mrb[0].mxu0
      %v2179 = vadd.f32 0.0, %v2178
      %v2180 = vpop.f32.mrb[0].mxu0
      %2181 = vmatprep.mubr.bf16.mxu0 0
      %2182 = vmatmul.mubr.bf16.gmra.mrb[0].mxu0 %v2088
      %v2183 = vpop.f32.mrb[0].mxu0
      %v2184 = vadd.f32 0.0, %v2183
      %v2185 = vpop.f32.mrb[0].mxu0
      %v2186 = vpop.f32.mrb[0].mxu0
      %v2187 = vadd.f32 0.0, %v2186
      %v2188 = vpop.f32.mrb[0].mxu0
      %2189 = vmatprep.mubr.bf16.mxu0 0
      %2190 = vmatmul.mubr.bf16.gmra.mrb[0].mxu0 %v2091
      %v2191 = vpop.f32.mrb[0].mxu0
      %v2192 = vadd.f32 0.0, %v2191
      %v2193 = vpop.f32.mrb[0].mxu0
      %v2194 = vpop.f32.mrb[0].mxu0
      %v2195 = vadd.f32 0.0, %v2194
      %v2196 = vpop.f32.mrb[0].mxu0
      %2197 = vdwg.mxu0
      %v2198 = vadd.f32 %v1980, %v2128
      %v2199 = vadd.f32 %v1981, %v2131
      %v2200 = vadd.f32 %v1982, %v2136
      %v2201 = vadd.f32 %v1983, %v2139
      %v2202 = vadd.f32 %v1984, %v2144
      %v2203 = vadd.f32 %v1985, %v2147
      %v2204 = vadd.f32 %v1986, %v2152
      %v2205 = vadd.f32 %v1987, %v2155
      %v2206 = vadd.f32 %v1988, %v2160
      %v2207 = vadd.f32 %v1989, %v2163
      %v2208 = vadd.f32 %v1990, %v2168
      %v2209 = vadd.f32 %v1991, %v2171
      %v2210 = vadd.f32 %v1992, %v2176
      %v2211 = vadd.f32 %v1993, %v2179
      %v2212 = vadd.f32 %v1994, %v2184
      %v2213 = vadd.f32 %v1995, %v2187
      %v2214 = vadd.f32 %v1996, %v2192
      %v2215 = vadd.f32 %v1997, %v2195
      %v2216 = vld [vmem:[#allocation2] sm:$0xfc]
      %s2217 = scalar_lea.vmem %s3, 64
      %v2218 = vld [vmem:[%s2217] sm:$0xf]
      %v2219 = vld [vmem:[%s2217 + $0x4] sm:$0xf]
      %v2220 = vld [vmem:[%s2217 + $0x8] sm:$0xf]
      %v2221 = vld [vmem:[%s2217 + $0xc] sm:$0xf]
      %vm2224 = vcmask 1045504
      %v2225 = vrot.slane %v2216, 2
      %v2226 = vrot.slane %v1425, 2
      %v2227 = vsel %vm2224, %v2225, %v2226
      %v2228 = vrot.slane %v1426, 2
      %v2229 = vsel %vm2224, %v2226, %v2228
      %v2230 = vrot.slane %v1427, 2
      %v2231 = vsel %vm2224, %v2228, %v2230
      %v2232 = vrot.slane %v1428, 2
      %v2233 = vsel %vm2224, %v2230, %v2232
      %v2234 = vrot.slane %v1429, 2
      %v2235 = vsel %vm2224, %v2232, %v2234
      %v2236 = vrot.slane %v1430, 2
      %v2237 = vsel %vm2224, %v2234, %v2236
      %v2238 = vrot.slane %v1431, 2
      %v2239 = vsel %vm2224, %v2236, %v2238
      %v2240 = vrot.slane %v1432, 2
      %v2241 = vsel %vm2224, %v2238, %v2240
      %v2242 = vrot.slane %v1998, 2
      %v2243 = vsel %vm2224, %v2240, %v2242
      %v2248 = vunpack.c.l.b16 %v2218
      %v2249 = vunpack.c.l.b16 %v2219
      %v2250 = vunpack.c.l.b16 %v2220
      %v2251 = vunpack.c.l.b16 %v2221
      %v2252 = vpack.c.b16 %v2249, %v2248
      %v2253 = vpack.c.b16 %v2251, %v2250
      %v2257 = vsel %vm1532, %v2227, 0
      %v2260 = vsel %vm1532, %v2229, 0
      %v2263 = vsel %vm1532, %v2231, 0
      %v2266 = vsel %vm1532, %v2233, 0
      %v2269 = vsel %vm1532, %v2235, 0
      %v2272 = vsel %vm1532, %v2237, 0
      %v2275 = vsel %vm1532, %v2239, 0
      %v2278 = vsel %vm1532, %v2241, 0
      %v2281 = vsel %vm1532, %v2243, 0
      %2283 = vmatprep.subr.bf16.mxu0 0
      %2284 = vmatpush1.bf16.msra.mxu0 %v2252
      %2285 = vmatprep.subr.bf16.mxu0 0
      %2286 = vmatpush1.bf16.msra.mxu0 %v2253
      %2287 = vmatprep.subr.bf16.mxu0 0
      %2288 = vmatpush1.bf16.msra.mxu0 0
      %2289 = vmatprep.subr.bf16.mxu0 0
      %2290 = vmatpush1.bf16.msra.mxu0 0
      %2291 = vmatprep.subr.bf16.mxu0 0
      %2292 = vmatpush1.bf16.msra.mxu0 0
      %2293 = vmatprep.subr.bf16.mxu0 0
      %2294 = vmatpush1.bf16.msra.mxu0 0
      %2295 = vmatprep.subr.bf16.mxu0 0
      %2296 = vmatpush1.bf16.msra.mxu0 0
      %2297 = vmatprep.subr.bf16.mxu0 0
      %2298 = vmatpush1.bf16.msra.mxu0 0
      %2299 = vmatprep.subr.bf16.mxu0 0
      %2300 = vmatpush1.bf16.msra.mxu0 0
      %2301 = vmatprep.subr.bf16.mxu0 0
      %2302 = vmatpush1.bf16.msra.mxu0 0
      %2303 = vmatprep.subr.bf16.mxu0 0
      %2304 = vmatpush1.bf16.msra.mxu0 0
      %2305 = vmatprep.subr.bf16.mxu0 0
      %2306 = vmatpush1.bf16.msra.mxu0 0
      %2307 = vmatprep.subr.bf16.mxu0 0
      %2308 = vmatpush1.bf16.msra.mxu0 0
      %2309 = vmatprep.subr.bf16.mxu0 0
      %2310 = vmatpush1.bf16.msra.mxu0 0
      %2311 = vmatprep.subr.bf16.mxu0 0
      %2312 = vmatpush1.bf16.msra.mxu0 0
      %2313 = vmatprep.subr.bf16.mxu0 0
      %2314 = vmatpush1.bf16.msra.mxu0 0
      %2315 = vmatprep.mubr.bf16.mxu0 0
      %2316 = vmatmul.mubr.bf16.gmra.mrb[0].mxu0 %v2257
      %v2317 = vpop.f32.mrb[0].mxu0
      %v2318 = vadd.f32 0.0, %v2317
      %v2319 = vpop.f32.mrb[0].mxu0
      %v2320 = vpop.f32.mrb[0].mxu0
      %v2321 = vadd.f32 0.0, %v2320
      %v2322 = vpop.f32.mrb[0].mxu0
      %2323 = vmatprep.mubr.bf16.mxu0 0
      %2324 = vmatmul.mubr.bf16.gmra.mrb[0].mxu0 %v2260
      %v2325 = vpop.f32.mrb[0].mxu0
      %v2326 = vadd.f32 0.0, %v2325
      %v2327 = vpop.f32.mrb[0].mxu0
      %v2328 = vpop.f32.mrb[0].mxu0
      %v2329 = vadd.f32 0.0, %v2328
      %v2330 = vpop.f32.mrb[0].mxu0
      %2331 = vmatprep.mubr.bf16.mxu0 0
      %2332 = vmatmul.mubr.bf16.gmra.mrb[0].mxu0 %v2263
      %v2333 = vpop.f32.mrb[0].mxu0
      %v2334 = vadd.f32 0.0, %v2333
      %v2335 = vpop.f32.mrb[0].mxu0
      %v2336 = vpop.f32.mrb[0].mxu0
      %v2337 = vadd.f32 0.0, %v2336
      %v2338 = vpop.f32.mrb[0].mxu0
      %2339 = vmatprep.mubr.bf16.mxu0 0
      %2340 = vmatmul.mubr.bf16.gmra.mrb[0].mxu0 %v2266
      %v2341 = vpop.f32.mrb[0].mxu0
      %v2342 = vadd.f32 0.0, %v2341
      %v2343 = vpop.f32.mrb[0].mxu0
      %v2344 = vpop.f32.mrb[0].mxu0
      %v2345 = vadd.f32 0.0, %v2344
      %v2346 = vpop.f32.mrb[0].mxu0
      %2347 = vmatprep.mubr.bf16.mxu0 0
      %2348 = vmatmul.mubr.bf16.gmra.mrb[0].mxu0 %v2269
      %v2349 = vpop.f32.mrb[0].mxu0
      %v2350 = vadd.f32 0.0, %v2349
      %v2351 = vpop.f32.mrb[0].mxu0
      %v2352 = vpop.f32.mrb[0].mxu0
      %v2353 = vadd.f32 0.0, %v2352
      %v2354 = vpop.f32.mrb[0].mxu0
      %2355 = vmatprep.mubr.bf16.mxu0 0
      %2356 = vmatmul.mubr.bf16.gmra.mrb[0].mxu0 %v2272
      %v2357 = vpop.f32.mrb[0].mxu0
      %v2358 = vadd.f32 0.0, %v2357
      %v2359 = vpop.f32.mrb[0].mxu0
      %v2360 = vpop.f32.mrb[0].mxu0
      %v2361 = vadd.f32 0.0, %v2360
      %v2362 = vpop.f32.mrb[0].mxu0
      %2363 = vmatprep.mubr.bf16.mxu0 0
      %2364 = vmatmul.mubr.bf16.gmra.mrb[0].mxu0 %v2275
      %v2365 = vpop.f32.mrb[0].mxu0
      %v2366 = vadd.f32 0.0, %v2365
      %v2367 = vpop.f32.mrb[0].mxu0
      %v2368 = vpop.f32.mrb[0].mxu0
      %v2369 = vadd.f32 0.0, %v2368
      %v2370 = vpop.f32.mrb[0].mxu0
      %2371 = vmatprep.mubr.bf16.mxu0 0
      %2372 = vmatmul.mubr.bf16.gmra.mrb[0].mxu0 %v2278
      %v2373 = vpop.f32.mrb[0].mxu0
      %v2374 = vadd.f32 0.0, %v2373
      %v2375 = vpop.f32.mrb[0].mxu0
      %v2376 = vpop.f32.mrb[0].mxu0
      %v2377 = vadd.f32 0.0, %v2376
      %v2378 = vpop.f32.mrb[0].mxu0
      %2379 = vmatprep.mubr.bf16.mxu0 0
      %2380 = vmatmul.mubr.bf16.gmra.mrb[0].mxu0 %v2281
      %v2381 = vpop.f32.mrb[0].mxu0
      %v2382 = vadd.f32 0.0, %v2381
      %v2383 = vpop.f32.mrb[0].mxu0
      %v2384 = vpop.f32.mrb[0].mxu0
      %v2385 = vadd.f32 0.0, %v2384
      %v2386 = vpop.f32.mrb[0].mxu0
      %2387 = vdwg.mxu0
      %v2388 = vadd.f32 %v2198, %v2318
      %v2389 = vadd.f32 %v2199, %v2321
      %v2390 = vadd.f32 %v2200, %v2326
      %v2391 = vadd.f32 %v2201, %v2329
      %v2392 = vadd.f32 %v2202, %v2334
      %v2393 = vadd.f32 %v2203, %v2337
      %v2394 = vadd.f32 %v2204, %v2342
      %v2395 = vadd.f32 %v2205, %v2345
      %v2396 = vadd.f32 %v2206, %v2350
      %v2397 = vadd.f32 %v2207, %v2353
      %v2398 = vadd.f32 %v2208, %v2358
      %v2399 = vadd.f32 %v2209, %v2361
      %v2400 = vadd.f32 %v2210, %v2366
      %v2401 = vadd.f32 %v2211, %v2369
      %v2402 = vadd.f32 %v2212, %v2374
      %v2403 = vadd.f32 %v2213, %v2377
      %v2404 = vadd.f32 %v2214, %v2382
      %v2405 = vadd.f32 %v2215, %v2385
      %v2406 = vld [vmem:[#allocation2] sm:$0x80]
      %v2407 = vld [vmem:[#allocation2 + $0x48] sm:$0x7f]
      %s2408 = scalar_lea.vmem %s3, 80
      %v2409 = vld [vmem:[%s2408] sm:$0xf]
      %v2410 = vld [vmem:[%s2408 + $0x4] sm:$0xf]
      %v2411 = vld [vmem:[%s2408 + $0x8] sm:$0xf]
      %v2412 = vld [vmem:[%s2408 + $0xc] sm:$0xf]
      %vm2415 = vcmask 1040384
      %v2416 = vrot.slane %v2406, 7
      %v2417 = vrot.slane %v1425, 7
      %v2418 = vsel %vm2415, %v2416, %v2417
      %v2419 = vrot.slane %v1426, 7
      %v2420 = vsel %vm2415, %v2417, %v2419
      %v2421 = vrot.slane %v1427, 7
      %v2422 = vsel %vm2415, %v2419, %v2421
      %v2423 = vrot.slane %v1428, 7
      %v2424 = vsel %vm2415, %v2421, %v2423
      %v2425 = vrot.slane %v1429, 7
      %v2426 = vsel %vm2415, %v2423, %v2425
      %v2427 = vrot.slane %v1430, 7
      %v2428 = vsel %vm2415, %v2425, %v2427
      %v2429 = vrot.slane %v1431, 7
      %v2430 = vsel %vm2415, %v2427, %v2429
      %v2431 = vrot.slane %v1432, 7
      %v2432 = vsel %vm2415, %v2429, %v2431
      %v2433 = vrot.slane %v2407, 7
      %v2434 = vsel %vm2415, %v2431, %v2433
      %v2439 = vunpack.c.l.b16 %v2409
      %v2440 = vunpack.c.l.b16 %v2410
      %v2441 = vunpack.c.l.b16 %v2411
      %v2442 = vunpack.c.l.b16 %v2412
      %v2443 = vpack.c.b16 %v2440, %v2439
      %v2444 = vpack.c.b16 %v2442, %v2441
      %v2448 = vsel %vm1532, %v2418, 0
      %v2451 = vsel %vm1532, %v2420, 0
      %v2454 = vsel %vm1532, %v2422, 0
      %v2457 = vsel %vm1532, %v2424, 0
      %v2460 = vsel %vm1532, %v2426, 0
      %v2463 = vsel %vm1532, %v2428, 0
      %v2466 = vsel %vm1532, %v2430, 0
      %v2469 = vsel %vm1532, %v2432, 0
      %v2472 = vsel %vm1532, %v2434, 0
      %2474 = vmatprep.subr.bf16.mxu0 0
      %2475 = vmatpush1.bf16.msra.mxu0 %v2443
      %2476 = vmatprep.subr.bf16.mxu0 0
      %2477 = vmatpush1.bf16.msra.mxu0 %v2444
      %2478 = vmatprep.subr.bf16.mxu0 0
      %2479 = vmatpush1.bf16.msra.mxu0 0
      %2480 = vmatprep.subr.bf16.mxu0 0
      %2481 = vmatpush1.bf16.msra.mxu0 0
      %2482 = vmatprep.subr.bf16.mxu0 0
      %2483 = vmatpush1.bf16.msra.mxu0 0
      %2484 = vmatprep.subr.bf16.mxu0 0
      %2485 = vmatpush1.bf16.msra.mxu0 0
      %2486 = vmatprep.subr.bf16.mxu0 0
      %2487 = vmatpush1.bf16.msra.mxu0 0
      %2488 = vmatprep.subr.bf16.mxu0 0
      %2489 = vmatpush1.bf16.msra.mxu0 0
      %2490 = vmatprep.subr.bf16.mxu0 0
      %2491 = vmatpush1.bf16.msra.mxu0 0
      %2492 = vmatprep.subr.bf16.mxu0 0
      %2493 = vmatpush1.bf16.msra.mxu0 0
      %2494 = vmatprep.subr.bf16.mxu0 0
      %2495 = vmatpush1.bf16.msra.mxu0 0
      %2496 = vmatprep.subr.bf16.mxu0 0
      %2497 = vmatpush1.bf16.msra.mxu0 0
      %2498 = vmatprep.subr.bf16.mxu0 0
      %2499 = vmatpush1.bf16.msra.mxu0 0
      %2500 = vmatprep.subr.bf16.mxu0 0
      %2501 = vmatpush1.bf16.msra.mxu0 0
      %2502 = vmatprep.subr.bf16.mxu0 0
      %2503 = vmatpush1.bf16.msra.mxu0 0
      %2504 = vmatprep.subr.bf16.mxu0 0
      %2505 = vmatpush1.bf16.msra.mxu0 0
      %2506 = vmatprep.mubr.bf16.mxu0 0
      %2507 = vmatmul.mubr.bf16.gmra.mrb[0].mxu0 %v2448
      %v2508 = vpop.f32.mrb[0].mxu0
      %v2509 = vadd.f32 0.0, %v2508
      %v2510 = vpop.f32.mrb[0].mxu0
      %v2511 = vpop.f32.mrb[0].mxu0
      %v2512 = vadd.f32 0.0, %v2511
      %v2513 = vpop.f32.mrb[0].mxu0
      %2514 = vmatprep.mubr.bf16.mxu0 0
      %2515 = vmatmul.mubr.bf16.gmra.mrb[0].mxu0 %v2451
      %v2516 = vpop.f32.mrb[0].mxu0
      %v2517 = vadd.f32 0.0, %v2516
      %v2518 = vpop.f32.mrb[0].mxu0
      %v2519 = vpop.f32.mrb[0].mxu0
      %v2520 = vadd.f32 0.0, %v2519
      %v2521 = vpop.f32.mrb[0].mxu0
      %2522 = vmatprep.mubr.bf16.mxu0 0
      %2523 = vmatmul.mubr.bf16.gmra.mrb[0].mxu0 %v2454
      %v2524 = vpop.f32.mrb[0].mxu0
      %v2525 = vadd.f32 0.0, %v2524
      %v2526 = vpop.f32.mrb[0].mxu0
      %v2527 = vpop.f32.mrb[0].mxu0
      %v2528 = vadd.f32 0.0, %v2527
      %v2529 = vpop.f32.mrb[0].mxu0
      %2530 = vmatprep.mubr.bf16.mxu0 0
      %2531 = vmatmul.mubr.bf16.gmra.mrb[0].mxu0 %v2457
      %v2532 = vpop.f32.mrb[0].mxu0
      %v2533 = vadd.f32 0.0, %v2532
      %v2534 = vpop.f32.mrb[0].mxu0
      %v2535 = vpop.f32.mrb[0].mxu0
      %v2536 = vadd.f32 0.0, %v2535
      %v2537 = vpop.f32.mrb[0].mxu0
      %2538 = vmatprep.mubr.bf16.mxu0 0
      %2539 = vmatmul.mubr.bf16.gmra.mrb[0].mxu0 %v2460
      %v2540 = vpop.f32.mrb[0].mxu0
      %v2541 = vadd.f32 0.0, %v2540
      %v2542 = vpop.f32.mrb[0].mxu0
      %v2543 = vpop.f32.mrb[0].mxu0
      %v2544 = vadd.f32 0.0, %v2543
      %v2545 = vpop.f32.mrb[0].mxu0
      %2546 = vmatprep.mubr.bf16.mxu0 0
      %2547 = vmatmul.mubr.bf16.gmra.mrb[0].mxu0 %v2463
      %v2548 = vpop.f32.mrb[0].mxu0
      %v2549 = vadd.f32 0.0, %v2548
      %v2550 = vpop.f32.mrb[0].mxu0
      %v2551 = vpop.f32.mrb[0].mxu0
      %v2552 = vadd.f32 0.0, %v2551
      %v2553 = vpop.f32.mrb[0].mxu0
      %2554 = vmatprep.mubr.bf16.mxu0 0
      %2555 = vmatmul.mubr.bf16.gmra.mrb[0].mxu0 %v2466
      %v2556 = vpop.f32.mrb[0].mxu0
      %v2557 = vadd.f32 0.0, %v2556
      %v2558 = vpop.f32.mrb[0].mxu0
      %v2559 = vpop.f32.mrb[0].mxu0
      %v2560 = vadd.f32 0.0, %v2559
      %v2561 = vpop.f32.mrb[0].mxu0
      %2562 = vmatprep.mubr.bf16.mxu0 0
      %2563 = vmatmul.mubr.bf16.gmra.mrb[0].mxu0 %v2469
      %v2564 = vpop.f32.mrb[0].mxu0
      %v2565 = vadd.f32 0.0, %v2564
      %v2566 = vpop.f32.mrb[0].mxu0
      %v2567 = vpop.f32.mrb[0].mxu0
      %v2568 = vadd.f32 0.0, %v2567
      %v2569 = vpop.f32.mrb[0].mxu0
      %2570 = vmatprep.mubr.bf16.mxu0 0
      %2571 = vmatmul.mubr.bf16.gmra.mrb[0].mxu0 %v2472
      %v2572 = vpop.f32.mrb[0].mxu0
      %v2573 = vadd.f32 0.0, %v2572
      %v2574 = vpop.f32.mrb[0].mxu0
      %v2575 = vpop.f32.mrb[0].mxu0
      %v2576 = vadd.f32 0.0, %v2575
      %v2577 = vpop.f32.mrb[0].mxu0
      %2578 = vdwg.mxu0
      %v2579 = vadd.f32 %v2388, %v2509
      %v2580 = vadd.f32 %v2389, %v2512
      %v2581 = vadd.f32 %v2390, %v2517
      %v2582 = vadd.f32 %v2391, %v2520
      %v2583 = vadd.f32 %v2392, %v2525
      %v2584 = vadd.f32 %v2393, %v2528
      %v2585 = vadd.f32 %v2394, %v2533
      %v2586 = vadd.f32 %v2395, %v2536
      %v2587 = vadd.f32 %v2396, %v2541
      %v2588 = vadd.f32 %v2397, %v2544
      %v2589 = vadd.f32 %v2398, %v2549
      %v2590 = vadd.f32 %v2399, %v2552
      %v2591 = vadd.f32 %v2400, %v2557
      %v2592 = vadd.f32 %v2401, %v2560
      %v2593 = vadd.f32 %v2402, %v2565
      %v2594 = vadd.f32 %v2403, %v2568
      %v2595 = vadd.f32 %v2404, %v2573
      %v2596 = vadd.f32 %v2405, %v2576
      %v2597 = vld [vmem:[#allocation2 + $0x48] sm:$0xff]
      %s2598 = scalar_lea.vmem %s3, 96
      %v2599 = vld [vmem:[%s2598] sm:$0xf]
      %v2600 = vld [vmem:[%s2598 + $0x4] sm:$0xf]
      %v2601 = vld [vmem:[%s2598 + $0x8] sm:$0xf]
      %v2602 = vld [vmem:[%s2598 + $0xc] sm:$0xf]
      %vm2603 = vsmask.f32 256
      %v2605 = vshrl.u32 %v2406, 16
      %v2607 = vrot.slane %v2605, 7
      %v2608 = vrot.slane %v1456, 7
      %v2609 = vor.u32 %v2608, %v1452
      %v2610 = vsel %vm2603, %v2607, %v2609
      %v2611 = vrot.slane %v1464, 7
      %v2612 = vor.u32 %v2611, %v1460
      %v2613 = vsel %vm2603, %v2608, %v2612
      %v2614 = vrot.slane %v1472, 7
      %v2615 = vor.u32 %v2614, %v1468
      %v2616 = vsel %vm2603, %v2611, %v2615
      %v2617 = vrot.slane %v1480, 7
      %v2618 = vor.u32 %v2617, %v1476
      %v2619 = vsel %vm2603, %v2614, %v2618
      %v2620 = vrot.slane %v1488, 7
      %v2621 = vor.u32 %v2620, %v1484
      %v2622 = vsel %vm2603, %v2617, %v2621
      %v2623 = vrot.slane %v1496, 7
      %v2624 = vor.u32 %v2623, %v1492
      %v2625 = vsel %vm2603, %v2620, %v2624
      %v2626 = vrot.slane %v1504, 7
      %v2627 = vor.u32 %v2626, %v1500
      %v2628 = vsel %vm2603, %v2623, %v2627
      %v2629 = vrot.slane %v1512, 7
      %v2630 = vor.u32 %v2629, %v1508
      %v2631 = vsel %vm2603, %v2626, %v2630
      %v2633 = vshrl.u32 %v2597, 16
      %v2635 = vrot.slane %v2633, 7
      %v2636 = vshll.u32 %v2597, 16
      %v2638 = vor.u32 %v2635, %v2636
      %v2639 = vsel %vm2603, %v2629, %v2638
      %v2644 = vunpack.c.l.b16 %v2599
      %v2645 = vunpack.c.l.b16 %v2600
      %v2646 = vunpack.c.l.b16 %v2601
      %v2647 = vunpack.c.l.b16 %v2602
      %v2648 = vpack.c.b16 %v2645, %v2644
      %v2649 = vpack.c.b16 %v2647, %v2646
      %v2653 = vsel %vm1532, %v2610, 0
      %v2656 = vsel %vm1532, %v2613, 0
      %v2659 = vsel %vm1532, %v2616, 0
      %v2662 = vsel %vm1532, %v2619, 0
      %v2665 = vsel %vm1532, %v2622, 0
      %v2668 = vsel %vm1532, %v2625, 0
      %v2671 = vsel %vm1532, %v2628, 0
      %v2674 = vsel %vm1532, %v2631, 0
      %v2677 = vsel %vm1532, %v2639, 0
      %2679 = vmatprep.subr.bf16.mxu0 0
      %2680 = vmatpush1.bf16.msra.mxu0 %v2648
      %2681 = vmatprep.subr.bf16.mxu0 0
      %2682 = vmatpush1.bf16.msra.mxu0 %v2649
      %2683 = vmatprep.subr.bf16.mxu0 0
      %2684 = vmatpush1.bf16.msra.mxu0 0
      %2685 = vmatprep.subr.bf16.mxu0 0
      %2686 = vmatpush1.bf16.msra.mxu0 0
      %2687 = vmatprep.subr.bf16.mxu0 0
      %2688 = vmatpush1.bf16.msra.mxu0 0
      %2689 = vmatprep.subr.bf16.mxu0 0
      %2690 = vmatpush1.bf16.msra.mxu0 0
      %2691 = vmatprep.subr.bf16.mxu0 0
      %2692 = vmatpush1.bf16.msra.mxu0 0
      %2693 = vmatprep.subr.bf16.mxu0 0
      %2694 = vmatpush1.bf16.msra.mxu0 0
      %2695 = vmatprep.subr.bf16.mxu0 0
      %2696 = vmatpush1.bf16.msra.mxu0 0
      %2697 = vmatprep.subr.bf16.mxu0 0
      %2698 = vmatpush1.bf16.msra.mxu0 0
      %2699 = vmatprep.subr.bf16.mxu0 0
      %2700 = vmatpush1.bf16.msra.mxu0 0
      %2701 = vmatprep.subr.bf16.mxu0 0
      %2702 = vmatpush1.bf16.msra.mxu0 0
      %2703 = vmatprep.subr.bf16.mxu0 0
      %2704 = vmatpush1.bf16.msra.mxu0 0
      %2705 = vmatprep.subr.bf16.mxu0 0
      %2706 = vmatpush1.bf16.msra.mxu0 0
      %2707 = vmatprep.subr.bf16.mxu0 0
      %2708 = vmatpush1.bf16.msra.mxu0 0
      %2709 = vmatprep.subr.bf16.mxu0 0
      %2710 = vmatpush1.bf16.msra.mxu0 0
      %2711 = vmatprep.mubr.bf16.mxu0 0
      %2712 = vmatmul.mubr.bf16.gmra.mrb[0].mxu0 %v2653
      %v2713 = vpop.f32.mrb[0].mxu0
      %v2714 = vadd.f32 0.0, %v2713
      %v2715 = vpop.f32.mrb[0].mxu0
      %v2716 = vpop.f32.mrb[0].mxu0
      %v2717 = vadd.f32 0.0, %v2716
      %v2718 = vpop.f32.mrb[0].mxu0
      %2719 = vmatprep.mubr.bf16.mxu0 0
      %2720 = vmatmul.mubr.bf16.gmra.mrb[0].mxu0 %v2656
      %v2721 = vpop.f32.mrb[0].mxu0
      %v2722 = vadd.f32 0.0, %v2721
      %v2723 = vpop.f32.mrb[0].mxu0
      %v2724 = vpop.f32.mrb[0].mxu0
      %v2725 = vadd.f32 0.0, %v2724
      %v2726 = vpop.f32.mrb[0].mxu0
      %2727 = vmatprep.mubr.bf16.mxu0 0
      %2728 = vmatmul.mubr.bf16.gmra.mrb[0].mxu0 %v2659
      %v2729 = vpop.f32.mrb[0].mxu0
      %v2730 = vadd.f32 0.0, %v2729
      %v2731 = vpop.f32.mrb[0].mxu0
      %v2732 = vpop.f32.mrb[0].mxu0
      %v2733 = vadd.f32 0.0, %v2732
      %v2734 = vpop.f32.mrb[0].mxu0
      %2735 = vmatprep.mubr.bf16.mxu0 0
      %2736 = vmatmul.mubr.bf16.gmra.mrb[0].mxu0 %v2662
      %v2737 = vpop.f32.mrb[0].mxu0
      %v2738 = vadd.f32 0.0, %v2737
      %v2739 = vpop.f32.mrb[0].mxu0
      %v2740 = vpop.f32.mrb[0].mxu0
      %v2741 = vadd.f32 0.0, %v2740
      %v2742 = vpop.f32.mrb[0].mxu0
      %2743 = vmatprep.mubr.bf16.mxu0 0
      %2744 = vmatmul.mubr.bf16.gmra.mrb[0].mxu0 %v2665
      %v2745 = vpop.f32.mrb[0].mxu0
      %v2746 = vadd.f32 0.0, %v2745
      %v2747 = vpop.f32.mrb[0].mxu0
      %v2748 = vpop.f32.mrb[0].mxu0
      %v2749 = vadd.f32 0.0, %v2748
      %v2750 = vpop.f32.mrb[0].mxu0
      %2751 = vmatprep.mubr.bf16.mxu0 0
      %2752 = vmatmul.mubr.bf16.gmra.mrb[0].mxu0 %v2668
      %v2753 = vpop.f32.mrb[0].mxu0
      %v2754 = vadd.f32 0.0, %v2753
      %v2755 = vpop.f32.mrb[0].mxu0
      %v2756 = vpop.f32.mrb[0].mxu0
      %v2757 = vadd.f32 0.0, %v2756
      %v2758 = vpop.f32.mrb[0].mxu0
      %2759 = vmatprep.mubr.bf16.mxu0 0
      %2760 = vmatmul.mubr.bf16.gmra.mrb[0].mxu0 %v2671
      %v2761 = vpop.f32.mrb[0].mxu0
      %v2762 = vadd.f32 0.0, %v2761
      %v2763 = vpop.f32.mrb[0].mxu0
      %v2764 = vpop.f32.mrb[0].mxu0
      %v2765 = vadd.f32 0.0, %v2764
      %v2766 = vpop.f32.mrb[0].mxu0
      %2767 = vmatprep.mubr.bf16.mxu0 0
      %2768 = vmatmul.mubr.bf16.gmra.mrb[0].mxu0 %v2674
      %v2769 = vpop.f32.mrb[0].mxu0
      %v2770 = vadd.f32 0.0, %v2769
      %v2771 = vpop.f32.mrb[0].mxu0
      %v2772 = vpop.f32.mrb[0].mxu0
      %v2773 = vadd.f32 0.0, %v2772
      %v2774 = vpop.f32.mrb[0].mxu0
      %2775 = vmatprep.mubr.bf16.mxu0 0
      %2776 = vmatmul.mubr.bf16.gmra.mrb[0].mxu0 %v2677
      %v2777 = vpop.f32.mrb[0].mxu0
      %v2778 = vadd.f32 0.0, %v2777
      %v2779 = vpop.f32.mrb[0].mxu0
      %v2780 = vpop.f32.mrb[0].mxu0
      %v2781 = vadd.f32 0.0, %v2780
      %v2782 = vpop.f32.mrb[0].mxu0
      %2783 = vdwg.mxu0
      %v2784 = vadd.f32 %v2579, %v2714
      %v2785 = vadd.f32 %v2580, %v2717
      %v2786 = vadd.f32 %v2581, %v2722
      %v2787 = vadd.f32 %v2582, %v2725
      %v2788 = vadd.f32 %v2583, %v2730
      %v2789 = vadd.f32 %v2584, %v2733
      %v2790 = vadd.f32 %v2585, %v2738
      %v2791 = vadd.f32 %v2586, %v2741
      %v2792 = vadd.f32 %v2587, %v2746
      %v2793 = vadd.f32 %v2588, %v2749
      %v2794 = vadd.f32 %v2589, %v2754
      %v2795 = vadd.f32 %v2590, %v2757
      %v2796 = vadd.f32 %v2591, %v2762
      %v2797 = vadd.f32 %v2592, %v2765
      %v2798 = vadd.f32 %v2593, %v2770
      %v2799 = vadd.f32 %v2594, %v2773
      %v2800 = vadd.f32 %v2595, %v2778
      %v2801 = vadd.f32 %v2596, %v2781
      %s2802 = scalar_lea.vmem %s3, 112
      %v2803 = vld [vmem:[%s2802] sm:$0xf]
      %v2804 = vld [vmem:[%s2802 + $0x4] sm:$0xf]
      %v2805 = vld [vmem:[%s2802 + $0x8] sm:$0xf]
      %v2806 = vld [vmem:[%s2802 + $0xc] sm:$0xf]
      %v2811 = vunpack.c.l.b16 %v2803
      %v2812 = vunpack.c.l.b16 %v2804
      %v2813 = vunpack.c.l.b16 %v2805
      %v2814 = vunpack.c.l.b16 %v2806
      %v2815 = vpack.c.b16 %v2812, %v2811
      %v2816 = vpack.c.b16 %v2814, %v2813
      %v2819 = vsel %vm1532, %v2597, 0
      %2821 = vmatprep.subr.bf16.mxu0 0
      %2822 = vmatpush1.bf16.msra.mxu0 %v2815
      %2823 = vmatprep.subr.bf16.mxu0 0
      %2824 = vmatpush1.bf16.msra.mxu0 %v2816
      %2825 = vmatprep.subr.bf16.mxu0 0
      %2826 = vmatpush1.bf16.msra.mxu0 0
      %2827 = vmatprep.subr.bf16.mxu0 0
      %2828 = vmatpush1.bf16.msra.mxu0 0
      %2829 = vmatprep.subr.bf16.mxu0 0
      %2830 = vmatpush1.bf16.msra.mxu0 0
      %2831 = vmatprep.subr.bf16.mxu0 0
      %2832 = vmatpush1.bf16.msra.mxu0 0
      %2833 = vmatprep.subr.bf16.mxu0 0
      %2834 = vmatpush1.bf16.msra.mxu0 0
      %2835 = vmatprep.subr.bf16.mxu0 0
      %2836 = vmatpush1.bf16.msra.mxu0 0
      %2837 = vmatprep.subr.bf16.mxu0 0
      %2838 = vmatpush1.bf16.msra.mxu0 0
      %2839 = vmatprep.subr.bf16.mxu0 0
      %2840 = vmatpush1.bf16.msra.mxu0 0
      %2841 = vmatprep.subr.bf16.mxu0 0
      %2842 = vmatpush1.bf16.msra.mxu0 0
      %2843 = vmatprep.subr.bf16.mxu0 0
      %2844 = vmatpush1.bf16.msra.mxu0 0
      %2845 = vmatprep.subr.bf16.mxu0 0
      %2846 = vmatpush1.bf16.msra.mxu0 0
      %2847 = vmatprep.subr.bf16.mxu0 0
      %2848 = vmatpush1.bf16.msra.mxu0 0
      %2849 = vmatprep.subr.bf16.mxu0 0
      %2850 = vmatpush1.bf16.msra.mxu0 0
      %2851 = vmatprep.subr.bf16.mxu0 0
      %2852 = vmatpush1.bf16.msra.mxu0 0
      %2853 = vmatprep.mubr.bf16.mxu0 0
      %2854 = vmatmul.mubr.bf16.gmra.mrb[0].mxu0 %v1679
      %v2855 = vpop.f32.mrb[0].mxu0
      %v2856 = vadd.f32 0.0, %v2855
      %v2857 = vpop.f32.mrb[0].mxu0
      %v2858 = vpop.f32.mrb[0].mxu0
      %v2859 = vadd.f32 0.0, %v2858
      %v2860 = vpop.f32.mrb[0].mxu0
      %2861 = vmatprep.mubr.bf16.mxu0 0
      %2862 = vmatmul.mubr.bf16.gmra.mrb[0].mxu0 %v1681
      %v2863 = vpop.f32.mrb[0].mxu0
      %v2864 = vadd.f32 0.0, %v2863
      %v2865 = vpop.f32.mrb[0].mxu0
      %v2866 = vpop.f32.mrb[0].mxu0
      %v2867 = vadd.f32 0.0, %v2866
      %v2868 = vpop.f32.mrb[0].mxu0
      %2869 = vmatprep.mubr.bf16.mxu0 0
      %2870 = vmatmul.mubr.bf16.gmra.mrb[0].mxu0 %v1683
      %v2871 = vpop.f32.mrb[0].mxu0
      %v2872 = vadd.f32 0.0, %v2871
      %v2873 = vpop.f32.mrb[0].mxu0
      %v2874 = vpop.f32.mrb[0].mxu0
      %v2875 = vadd.f32 0.0, %v2874
      %v2876 = vpop.f32.mrb[0].mxu0
      %2877 = vmatprep.mubr.bf16.mxu0 0
      %2878 = vmatmul.mubr.bf16.gmra.mrb[0].mxu0 %v1685
      %v2879 = vpop.f32.mrb[0].mxu0
      %v2880 = vadd.f32 0.0, %v2879
      %v2881 = vpop.f32.mrb[0].mxu0
      %v2882 = vpop.f32.mrb[0].mxu0
      %v2883 = vadd.f32 0.0, %v2882
      %v2884 = vpop.f32.mrb[0].mxu0
      %2885 = vmatprep.mubr.bf16.mxu0 0
      %2886 = vmatmul.mubr.bf16.gmra.mrb[0].mxu0 %v1687
      %v2887 = vpop.f32.mrb[0].mxu0
      %v2888 = vadd.f32 0.0, %v2887
      %v2889 = vpop.f32.mrb[0].mxu0
      %v2890 = vpop.f32.mrb[0].mxu0
      %v2891 = vadd.f32 0.0, %v2890
      %v2892 = vpop.f32.mrb[0].mxu0
      %2893 = vmatprep.mubr.bf16.mxu0 0
      %2894 = vmatmul.mubr.bf16.gmra.mrb[0].mxu0 %v1689
      %v2895 = vpop.f32.mrb[0].mxu0
      %v2896 = vadd.f32 0.0, %v2895
      %v2897 = vpop.f32.mrb[0].mxu0
      %v2898 = vpop.f32.mrb[0].mxu0
      %v2899 = vadd.f32 0.0, %v2898
      %v2900 = vpop.f32.mrb[0].mxu0
      %2901 = vmatprep.mubr.bf16.mxu0 0
      %2902 = vmatmul.mubr.bf16.gmra.mrb[0].mxu0 %v1691
      %v2903 = vpop.f32.mrb[0].mxu0
      %v2904 = vadd.f32 0.0, %v2903
      %v2905 = vpop.f32.mrb[0].mxu0
      %v2906 = vpop.f32.mrb[0].mxu0
      %v2907 = vadd.f32 0.0, %v2906
      %v2908 = vpop.f32.mrb[0].mxu0
      %2909 = vmatprep.mubr.bf16.mxu0 0
      %2910 = vmatmul.mubr.bf16.gmra.mrb[0].mxu0 %v1693
      %v2911 = vpop.f32.mrb[0].mxu0
      %v2912 = vadd.f32 0.0, %v2911
      %v2913 = vpop.f32.mrb[0].mxu0
      %v2914 = vpop.f32.mrb[0].mxu0
      %v2915 = vadd.f32 0.0, %v2914
      %v2916 = vpop.f32.mrb[0].mxu0
      %2917 = vmatprep.mubr.bf16.mxu0 0
      %2918 = vmatmul.mubr.bf16.gmra.mrb[0].mxu0 %v2819
      %v2919 = vpop.f32.mrb[0].mxu0
      %v2920 = vadd.f32 0.0, %v2919
      %v2921 = vpop.f32.mrb[0].mxu0
      %v2922 = vpop.f32.mrb[0].mxu0
      %v2923 = vadd.f32 0.0, %v2922
      %v2924 = vpop.f32.mrb[0].mxu0
      %2925 = vdwg.mxu0
      %v2926 = vadd.f32 %v2784, %v2856
      %v2927 = vadd.f32 %v2785, %v2859
      %v2928 = vadd.f32 %v2786, %v2864
      %v2929 = vadd.f32 %v2787, %v2867
      %v2930 = vadd.f32 %v2788, %v2872
      %v2931 = vadd.f32 %v2789, %v2875
      %v2932 = vadd.f32 %v2790, %v2880
      %v2933 = vadd.f32 %v2791, %v2883
      %v2934 = vadd.f32 %v2792, %v2888
      %v2935 = vadd.f32 %v2793, %v2891
      %v2936 = vadd.f32 %v2794, %v2896
      %v2937 = vadd.f32 %v2795, %v2899
      %v2938 = vadd.f32 %v2796, %v2904
      %v2939 = vadd.f32 %v2797, %v2907
      %v2940 = vadd.f32 %v2798, %v2912
      %v2941 = vadd.f32 %v2799, %v2915
      %v2942 = vadd.f32 %v2800, %v2920
      %v2943 = vadd.f32 %v2801, %v2923
      %v2944 = vld [vmem:[#allocation2 + $0x8] sm:$0xff]
      %v2945 = vld [vmem:[#allocation2 + $0x10] sm:$0xff]
      %v2946 = vld [vmem:[#allocation2 + $0x18] sm:$0xff]
      %v2947 = vld [vmem:[#allocation2 + $0x20] sm:$0xff]
      %v2948 = vld [vmem:[#allocation2 + $0x28] sm:$0xff]
      %v2949 = vld [vmem:[#allocation2 + $0x30] sm:$0xff]
      %v2950 = vld [vmem:[#allocation2 + $0x38] sm:$0xff]
      %v2951 = vld [vmem:[#allocation2 + $0x40] sm:$0xff]
      %v2952 = vld [vmem:[#allocation2 + $0x48] sm:$0xff]
      %v2953 = vld [vmem:[#allocation2 + $0x50] sm:$0x1]
      %s2954 = scalar_lea.vmem %s3, 128
      %v2955 = vld [vmem:[%s2954] sm:$0xf]
      %v2956 = vld [vmem:[%s2954 + $0x4] sm:$0xf]
      %v2957 = vld [vmem:[%s2954 + $0x8] sm:$0xf]
      %v2958 = vld [vmem:[%s2954 + $0xc] sm:$0xf]
      %v2960 = vshrl.u32 %v2944, 16
      %v2962 = vshll.u32 %v2944, 16
      %v2964 = vrot.slane %v2962, 1
      %v2965 = vor.u32 %v2960, %v2964
      %v2967 = vshll.u32 %v2945, 16
      %v2969 = vrot.slane %v2967, 1
      %v2970 = vsel %vm1443, %v2965, %v2969
      %v2971 = vshrl.u32 %v2945, 16
      %v2973 = vor.u32 %v2971, %v2969
      %v2975 = vshll.u32 %v2946, 16
      %v2977 = vrot.slane %v2975, 1
      %v2978 = vsel %vm1443, %v2973, %v2977
      %v2979 = vshrl.u32 %v2946, 16
      %v2981 = vor.u32 %v2979, %v2977
      %v2983 = vshll.u32 %v2947, 16
      %v2985 = vrot.slane %v2983, 1
      %v2986 = vsel %vm1443, %v2981, %v2985
      %v2987 = vshrl.u32 %v2947, 16
      %v2989 = vor.u32 %v2987, %v2985
      %v2991 = vshll.u32 %v2948, 16
      %v2993 = vrot.slane %v2991, 1
      %v2994 = vsel %vm1443, %v2989, %v2993
      %v2995 = vshrl.u32 %v2948, 16
      %v2997 = vor.u32 %v2995, %v2993
      %v2999 = vshll.u32 %v2949, 16
      %v3001 = vrot.slane %v2999, 1
      %v3002 = vsel %vm1443, %v2997, %v3001
      %v3003 = vshrl.u32 %v2949, 16
      %v3005 = vor.u32 %v3003, %v3001
      %v3007 = vshll.u32 %v2950, 16
      %v3009 = vrot.slane %v3007, 1
      %v3010 = vsel %vm1443, %v3005, %v3009
      %v3011 = vshrl.u32 %v2950, 16
      %v3013 = vor.u32 %v3011, %v3009
      %v3015 = vshll.u32 %v2951, 16
      %v3017 = vrot.slane %v3015, 1
      %v3018 = vsel %vm1443, %v3013, %v3017
      %v3019 = vshrl.u32 %v2951, 16
      %v3021 = vor.u32 %v3019, %v3017
      %v3023 = vshll.u32 %v2952, 16
      %v3025 = vrot.slane %v3023, 1
      %v3026 = vsel %vm1443, %v3021, %v3025
      %v3027 = vshrl.u32 %v2952, 16
      %v3029 = vor.u32 %v3027, %v3025
      %v3031 = vshll.u32 %v2953, 16
      %v3033 = vrot.slane %v3031, 1
      %v3034 = vsel %vm1443, %v3029, %v3033
      %v3039 = vunpack.c.l.b16 %v2955
      %v3040 = vunpack.c.l.b16 %v2956
      %v3041 = vunpack.c.l.b16 %v2957
      %v3042 = vunpack.c.l.b16 %v2958
      %v3043 = vpack.c.b16 %v3040, %v3039
      %v3044 = vpack.c.b16 %v3042, %v3041
      %v3048 = vsel %vm1532, %v2970, 0
      %v3051 = vsel %vm1532, %v2978, 0
      %v3054 = vsel %vm1532, %v2986, 0
      %v3057 = vsel %vm1532, %v2994, 0
      %v3060 = vsel %vm1532, %v3002, 0
      %v3063 = vsel %vm1532, %v3010, 0
      %v3066 = vsel %vm1532, %v3018, 0
      %v3069 = vsel %vm1532, %v3026, 0
      %v3072 = vsel %vm1532, %v3034, 0
      %3074 = vmatprep.subr.bf16.mxu0 0
      %3075 = vmatpush1.bf16.msra.mxu0 %v3043
      %3076 = vmatprep.subr.bf16.mxu0 0
      %3077 = vmatpush1.bf16.msra.mxu0 %v3044
      %3078 = vmatprep.subr.bf16.mxu0 0
      %3079 = vmatpush1.bf16.msra.mxu0 0
      %3080 = vmatprep.subr.bf16.mxu0 0
      %3081 = vmatpush1.bf16.msra.mxu0 0
      %3082 = vmatprep.subr.bf16.mxu0 0
      %3083 = vmatpush1.bf16.msra.mxu0 0
      %3084 = vmatprep.subr.bf16.mxu0 0
      %3085 = vmatpush1.bf16.msra.mxu0 0
      %3086 = vmatprep.subr.bf16.mxu0 0
      %3087 = vmatpush1.bf16.msra.mxu0 0
      %3088 = vmatprep.subr.bf16.mxu0 0
      %3089 = vmatpush1.bf16.msra.mxu0 0
      %3090 = vmatprep.subr.bf16.mxu0 0
      %3091 = vmatpush1.bf16.msra.mxu0 0
      %3092 = vmatprep.subr.bf16.mxu0 0
      %3093 = vmatpush1.bf16.msra.mxu0 0
      %3094 = vmatprep.subr.bf16.mxu0 0
      %3095 = vmatpush1.bf16.msra.mxu0 0
      %3096 = vmatprep.subr.bf16.mxu0 0
      %3097 = vmatpush1.bf16.msra.mxu0 0
      %3098 = vmatprep.subr.bf16.mxu0 0
      %3099 = vmatpush1.bf16.msra.mxu0 0
      %3100 = vmatprep.subr.bf16.mxu0 0
      %3101 = vmatpush1.bf16.msra.mxu0 0
      %3102 = vmatprep.subr.bf16.mxu0 0
      %3103 = vmatpush1.bf16.msra.mxu0 0
      %3104 = vmatprep.subr.bf16.mxu0 0
      %3105 = vmatpush1.bf16.msra.mxu0 0
      %3106 = vmatprep.mubr.bf16.mxu0 0
      %3107 = vmatmul.mubr.bf16.gmra.mrb[0].mxu0 %v3048
      %v3108 = vpop.f32.mrb[0].mxu0
      %v3109 = vadd.f32 0.0, %v3108
      %v3110 = vpop.f32.mrb[0].mxu0
      %v3111 = vpop.f32.mrb[0].mxu0
      %v3112 = vadd.f32 0.0, %v3111
      %v3113 = vpop.f32.mrb[0].mxu0
      %3114 = vmatprep.mubr.bf16.mxu0 0
      %3115 = vmatmul.mubr.bf16.gmra.mrb[0].mxu0 %v3051
      %v3116 = vpop.f32.mrb[0].mxu0
      %v3117 = vadd.f32 0.0, %v3116
      %v3118 = vpop.f32.mrb[0].mxu0
      %v3119 = vpop.f32.mrb[0].mxu0
      %v3120 = vadd.f32 0.0, %v3119
      %v3121 = vpop.f32.mrb[0].mxu0
      %3122 = vmatprep.mubr.bf16.mxu0 0
      %3123 = vmatmul.mubr.bf16.gmra.mrb[0].mxu0 %v3054
      %v3124 = vpop.f32.mrb[0].mxu0
      %v3125 = vadd.f32 0.0, %v3124
      %v3126 = vpop.f32.mrb[0].mxu0
      %v3127 = vpop.f32.mrb[0].mxu0
      %v3128 = vadd.f32 0.0, %v3127
      %v3129 = vpop.f32.mrb[0].mxu0
      %3130 = vmatprep.mubr.bf16.mxu0 0
      %3131 = vmatmul.mubr.bf16.gmra.mrb[0].mxu0 %v3057
      %v3132 = vpop.f32.mrb[0].mxu0
      %v3133 = vadd.f32 0.0, %v3132
      %v3134 = vpop.f32.mrb[0].mxu0
      %v3135 = vpop.f32.mrb[0].mxu0
      %v3136 = vadd.f32 0.0, %v3135
      %v3137 = vpop.f32.mrb[0].mxu0
      %3138 = vmatprep.mubr.bf16.mxu0 0
      %3139 = vmatmul.mubr.bf16.gmra.mrb[0].mxu0 %v3060
      %v3140 = vpop.f32.mrb[0].mxu0
      %v3141 = vadd.f32 0.0, %v3140
      %v3142 = vpop.f32.mrb[0].mxu0
      %v3143 = vpop.f32.mrb[0].mxu0
      %v3144 = vadd.f32 0.0, %v3143
      %v3145 = vpop.f32.mrb[0].mxu0
      %3146 = vmatprep.mubr.bf16.mxu0 0
      %3147 = vmatmul.mubr.bf16.gmra.mrb[0].mxu0 %v3063
      %v3148 = vpop.f32.mrb[0].mxu0
      %v3149 = vadd.f32 0.0, %v3148
      %v3150 = vpop.f32.mrb[0].mxu0
      %v3151 = vpop.f32.mrb[0].mxu0
      %v3152 = vadd.f32 0.0, %v3151
      %v3153 = vpop.f32.mrb[0].mxu0
      %3154 = vmatprep.mubr.bf16.mxu0 0
      %3155 = vmatmul.mubr.bf16.gmra.mrb[0].mxu0 %v3066
      %v3156 = vpop.f32.mrb[0].mxu0
      %v3157 = vadd.f32 0.0, %v3156
      %v3158 = vpop.f32.mrb[0].mxu0
      %v3159 = vpop.f32.mrb[0].mxu0
      %v3160 = vadd.f32 0.0, %v3159
      %v3161 = vpop.f32.mrb[0].mxu0
      %3162 = vmatprep.mubr.bf16.mxu0 0
      %3163 = vmatmul.mubr.bf16.gmra.mrb[0].mxu0 %v3069
      %v3164 = vpop.f32.mrb[0].mxu0
      %v3165 = vadd.f32 0.0, %v3164
      %v3166 = vpop.f32.mrb[0].mxu0
      %v3167 = vpop.f32.mrb[0].mxu0
      %v3168 = vadd.f32 0.0, %v3167
      %v3169 = vpop.f32.mrb[0].mxu0
      %3170 = vmatprep.mubr.bf16.mxu0 0
      %3171 = vmatmul.mubr.bf16.gmra.mrb[0].mxu0 %v3072
      %v3172 = vpop.f32.mrb[0].mxu0
      %v3173 = vadd.f32 0.0, %v3172
      %v3174 = vpop.f32.mrb[0].mxu0
      %v3175 = vpop.f32.mrb[0].mxu0
      %v3176 = vadd.f32 0.0, %v3175
      %v3177 = vpop.f32.mrb[0].mxu0
      %3178 = vdwg.mxu0
      %v3179 = vadd.f32 %v2926, %v3109
      %v3180 = vadd.f32 %v2927, %v3112
      %v3181 = vadd.f32 %v2928, %v3117
      %v3182 = vadd.f32 %v2929, %v3120
      %v3183 = vadd.f32 %v2930, %v3125
      %v3184 = vadd.f32 %v2931, %v3128
      %v3185 = vadd.f32 %v2932, %v3133
      %v3186 = vadd.f32 %v2933, %v3136
      %v3187 = vadd.f32 %v2934, %v3141
      %v3188 = vadd.f32 %v2935, %v3144
      %v3189 = vadd.f32 %v2936, %v3149
      %v3190 = vadd.f32 %v2937, %v3152
      %v3191 = vadd.f32 %v2938, %v3157
      %v3192 = vadd.f32 %v2939, %v3160
      %v3193 = vadd.f32 %v2940, %v3165
      %v3194 = vadd.f32 %v2941, %v3168
      %v3195 = vadd.f32 %v2942, %v3173
      %v3196 = vadd.f32 %v2943, %v3176
      %v3197 = vld [vmem:[#allocation2 + $0x8] sm:$0xfe]
      %s3198 = scalar_lea.vmem %s3, 144
      %v3199 = vld [vmem:[%s3198] sm:$0xf]
      %v3200 = vld [vmem:[%s3198 + $0x4] sm:$0xf]
      %v3201 = vld [vmem:[%s3198 + $0x8] sm:$0xf]
      %v3202 = vld [vmem:[%s3198 + $0xc] sm:$0xf]
      %v3213 = vrot.slane %v3197, 1
      %v3214 = vrot.slane %v2945, 1
      %v3215 = vsel %vm1816, %v3213, %v3214
      %v3216 = vrot.slane %v2946, 1
      %v3217 = vsel %vm1816, %v3214, %v3216
      %v3218 = vrot.slane %v2947, 1
      %v3219 = vsel %vm1816, %v3216, %v3218
      %v3220 = vrot.slane %v2948, 1
      %v3221 = vsel %vm1816, %v3218, %v3220
      %v3222 = vrot.slane %v2949, 1
      %v3223 = vsel %vm1816, %v3220, %v3222
      %v3224 = vrot.slane %v2950, 1
      %v3225 = vsel %vm1816, %v3222, %v3224
      %v3226 = vrot.slane %v2951, 1
      %v3227 = vsel %vm1816, %v3224, %v3226
      %v3228 = vrot.slane %v2952, 1
      %v3229 = vsel %vm1816, %v3226, %v3228
      %v3230 = vrot.slane %v2953, 1
      %v3231 = vsel %vm1816, %v3228, %v3230
      %v3236 = vunpack.c.l.b16 %v3199
      %v3237 = vunpack.c.l.b16 %v3200
      %v3238 = vunpack.c.l.b16 %v3201
      %v3239 = vunpack.c.l.b16 %v3202
      %v3240 = vpack.c.b16 %v3237, %v3236
      %v3241 = vpack.c.b16 %v3239, %v3238
      %v3245 = vsel %vm1532, %v3215, 0
      %v3248 = vsel %vm1532, %v3217, 0
      %v3251 = vsel %vm1532, %v3219, 0
      %v3254 = vsel %vm1532, %v3221, 0
      %v3257 = vsel %vm1532, %v3223, 0
      %v3260 = vsel %vm1532, %v3225, 0
      %v3263 = vsel %vm1532, %v3227, 0
      %v3266 = vsel %vm1532, %v3229, 0
      %v3269 = vsel %vm1532, %v3231, 0
      %3271 = vmatprep.subr.bf16.mxu0 0
      %3272 = vmatpush1.bf16.msra.mxu0 %v3240
      %3273 = vmatprep.subr.bf16.mxu0 0
      %3274 = vmatpush1.bf16.msra.mxu0 %v3241
      %3275 = vmatprep.subr.bf16.mxu0 0
      %3276 = vmatpush1.bf16.msra.mxu0 0
      %3277 = vmatprep.subr.bf16.mxu0 0
      %3278 = vmatpush1.bf16.msra.mxu0 0
      %3279 = vmatprep.subr.bf16.mxu0 0
      %3280 = vmatpush1.bf16.msra.mxu0 0
      %3281 = vmatprep.subr.bf16.mxu0 0
      %3282 = vmatpush1.bf16.msra.mxu0 0
      %3283 = vmatprep.subr.bf16.mxu0 0
      %3284 = vmatpush1.bf16.msra.mxu0 0
      %3285 = vmatprep.subr.bf16.mxu0 0
      %3286 = vmatpush1.bf16.msra.mxu0 0
      %3287 = vmatprep.subr.bf16.mxu0 0
      %3288 = vmatpush1.bf16.msra.mxu0 0
      %3289 = vmatprep.subr.bf16.mxu0 0
      %3290 = vmatpush1.bf16.msra.mxu0 0
      %3291 = vmatprep.subr.bf16.mxu0 0
      %3292 = vmatpush1.bf16.msra.mxu0 0
      %3293 = vmatprep.subr.bf16.mxu0 0
      %3294 = vmatpush1.bf16.msra.mxu0 0
      %3295 = vmatprep.subr.bf16.mxu0 0
      %3296 = vmatpush1.bf16.msra.mxu0 0
      %3297 = vmatprep.subr.bf16.mxu0 0
      %3298 = vmatpush1.bf16.msra.mxu0 0
      %3299 = vmatprep.subr.bf16.mxu0 0
      %3300 = vmatpush1.bf16.msra.mxu0 0
      %3301 = vmatprep.subr.bf16.mxu0 0
      %3302 = vmatpush1.bf16.msra.mxu0 0
      %3303 = vmatprep.mubr.bf16.mxu0 0
      %3304 = vmatmul.mubr.bf16.gmra.mrb[0].mxu0 %v3245
      %v3305 = vpop.f32.mrb[0].mxu0
      %v3306 = vadd.f32 0.0, %v3305
      %v3307 = vpop.f32.mrb[0].mxu0
      %v3308 = vpop.f32.mrb[0].mxu0
      %v3309 = vadd.f32 0.0, %v3308
      %v3310 = vpop.f32.mrb[0].mxu0
      %3311 = vmatprep.mubr.bf16.mxu0 0
      %3312 = vmatmul.mubr.bf16.gmra.mrb[0].mxu0 %v3248
      %v3313 = vpop.f32.mrb[0].mxu0
      %v3314 = vadd.f32 0.0, %v3313
      %v3315 = vpop.f32.mrb[0].mxu0
      %v3316 = vpop.f32.mrb[0].mxu0
      %v3317 = vadd.f32 0.0, %v3316
      %v3318 = vpop.f32.mrb[0].mxu0
      %3319 = vmatprep.mubr.bf16.mxu0 0
      %3320 = vmatmul.mubr.bf16.gmra.mrb[0].mxu0 %v3251
      %v3321 = vpop.f32.mrb[0].mxu0
      %v3322 = vadd.f32 0.0, %v3321
      %v3323 = vpop.f32.mrb[0].mxu0
      %v3324 = vpop.f32.mrb[0].mxu0
      %v3325 = vadd.f32 0.0, %v3324
      %v3326 = vpop.f32.mrb[0].mxu0
      %3327 = vmatprep.mubr.bf16.mxu0 0
      %3328 = vmatmul.mubr.bf16.gmra.mrb[0].mxu0 %v3254
      %v3329 = vpop.f32.mrb[0].mxu0
      %v3330 = vadd.f32 0.0, %v3329
      %v3331 = vpop.f32.mrb[0].mxu0
      %v3332 = vpop.f32.mrb[0].mxu0
      %v3333 = vadd.f32 0.0, %v3332
      %v3334 = vpop.f32.mrb[0].mxu0
      %3335 = vmatprep.mubr.bf16.mxu0 0
      %3336 = vmatmul.mubr.bf16.gmra.mrb[0].mxu0 %v3257
      %v3337 = vpop.f32.mrb[0].mxu0
      %v3338 = vadd.f32 0.0, %v3337
      %v3339 = vpop.f32.mrb[0].mxu0
      %v3340 = vpop.f32.mrb[0].mxu0
      %v3341 = vadd.f32 0.0, %v3340
      %v3342 = vpop.f32.mrb[0].mxu0
      %3343 = vmatprep.mubr.bf16.mxu0 0
      %3344 = vmatmul.mubr.bf16.gmra.mrb[0].mxu0 %v3260
      %v3345 = vpop.f32.mrb[0].mxu0
      %v3346 = vadd.f32 0.0, %v3345
      %v3347 = vpop.f32.mrb[0].mxu0
      %v3348 = vpop.f32.mrb[0].mxu0
      %v3349 = vadd.f32 0.0, %v3348
      %v3350 = vpop.f32.mrb[0].mxu0
      %3351 = vmatprep.mubr.bf16.mxu0 0
      %3352 = vmatmul.mubr.bf16.gmra.mrb[0].mxu0 %v3263
      %v3353 = vpop.f32.mrb[0].mxu0
      %v3354 = vadd.f32 0.0, %v3353
      %v3355 = vpop.f32.mrb[0].mxu0
      %v3356 = vpop.f32.mrb[0].mxu0
      %v3357 = vadd.f32 0.0, %v3356
      %v3358 = vpop.f32.mrb[0].mxu0
      %3359 = vmatprep.mubr.bf16.mxu0 0
      %3360 = vmatmul.mubr.bf16.gmra.mrb[0].mxu0 %v3266
      %v3361 = vpop.f32.mrb[0].mxu0
      %v3362 = vadd.f32 0.0, %v3361
      %v3363 = vpop.f32.mrb[0].mxu0
      %v3364 = vpop.f32.mrb[0].mxu0
      %v3365 = vadd.f32 0.0, %v3364
      %v3366 = vpop.f32.mrb[0].mxu0
      %3367 = vmatprep.mubr.bf16.mxu0 0
      %3368 = vmatmul.mubr.bf16.gmra.mrb[0].mxu0 %v3269
      %v3369 = vpop.f32.mrb[0].mxu0
      %v3370 = vadd.f32 0.0, %v3369
      %v3371 = vpop.f32.mrb[0].mxu0
      %v3372 = vpop.f32.mrb[0].mxu0
      %v3373 = vadd.f32 0.0, %v3372
      %v3374 = vpop.f32.mrb[0].mxu0
      %3375 = vdwg.mxu0
      %v3376 = vadd.f32 %v3179, %v3306
      %v3377 = vadd.f32 %v3180, %v3309
      %v3378 = vadd.f32 %v3181, %v3314
      %v3379 = vadd.f32 %v3182, %v3317
      %v3380 = vadd.f32 %v3183, %v3322
      %v3381 = vadd.f32 %v3184, %v3325
      %v3382 = vadd.f32 %v3185, %v3330
      %v3383 = vadd.f32 %v3186, %v3333
      %v3384 = vadd.f32 %v3187, %v3338
      %v3385 = vadd.f32 %v3188, %v3341
      %v3386 = vadd.f32 %v3189, %v3346
      %v3387 = vadd.f32 %v3190, %v3349
      %v3388 = vadd.f32 %v3191, %v3354
      %v3389 = vadd.f32 %v3192, %v3357
      %v3390 = vadd.f32 %v3193, %v3362
      %v3391 = vadd.f32 %v3194, %v3365
      %v3392 = vadd.f32 %v3195, %v3370
      %v3393 = vadd.f32 %v3196, %v3373
      %v3394 = vld [vmem:[#allocation2 + $0x8] sm:$0xc0]
      %v3395 = vld [vmem:[#allocation2 + $0x50] sm:$0x3f]
      %s3396 = scalar_lea.vmem %s3, 160
      %v3397 = vld [vmem:[%s3396] sm:$0xf]
      %v3398 = vld [vmem:[%s3396 + $0x4] sm:$0xf]
      %v3399 = vld [vmem:[%s3396 + $0x8] sm:$0xf]
      %v3400 = vld [vmem:[%s3396 + $0xc] sm:$0xf]
      %vm3403 = vcmask 1041408
      %v3404 = vrot.slane %v3394, 6
      %v3405 = vrot.slane %v2945, 6
      %v3406 = vsel %vm3403, %v3404, %v3405
      %v3407 = vrot.slane %v2946, 6
      %v3408 = vsel %vm3403, %v3405, %v3407
      %v3409 = vrot.slane %v2947, 6
      %v3410 = vsel %vm3403, %v3407, %v3409
      %v3411 = vrot.slane %v2948, 6
      %v3412 = vsel %vm3403, %v3409, %v3411
      %v3413 = vrot.slane %v2949, 6
      %v3414 = vsel %vm3403, %v3411, %v3413
      %v3415 = vrot.slane %v2950, 6
      %v3416 = vsel %vm3403, %v3413, %v3415
      %v3417 = vrot.slane %v2951, 6
      %v3418 = vsel %vm3403, %v3415, %v3417
      %v3419 = vrot.slane %v2952, 6
      %v3420 = vsel %vm3403, %v3417, %v3419
      %v3421 = vrot.slane %v3395, 6
      %v3422 = vsel %vm3403, %v3419, %v3421
      %v3427 = vunpack.c.l.b16 %v3397
      %v3428 = vunpack.c.l.b16 %v3398
      %v3429 = vunpack.c.l.b16 %v3399
      %v3430 = vunpack.c.l.b16 %v3400
      %v3431 = vpack.c.b16 %v3428, %v3427
      %v3432 = vpack.c.b16 %v3430, %v3429
      %v3436 = vsel %vm1532, %v3406, 0
      %v3439 = vsel %vm1532, %v3408, 0
      %v3442 = vsel %vm1532, %v3410, 0
      %v3445 = vsel %vm1532, %v3412, 0
      %v3448 = vsel %vm1532, %v3414, 0
      %v3451 = vsel %vm1532, %v3416, 0
      %v3454 = vsel %vm1532, %v3418, 0
      %v3457 = vsel %vm1532, %v3420, 0
      %v3460 = vsel %vm1532, %v3422, 0
      %3462 = vmatprep.subr.bf16.mxu0 0
      %3463 = vmatpush1.bf16.msra.mxu0 %v3431
      %3464 = vmatprep.subr.bf16.mxu0 0
      %3465 = vmatpush1.bf16.msra.mxu0 %v3432
      %3466 = vmatprep.subr.bf16.mxu0 0
      %3467 = vmatpush1.bf16.msra.mxu0 0
      %3468 = vmatprep.subr.bf16.mxu0 0
      %3469 = vmatpush1.bf16.msra.mxu0 0
      %3470 = vmatprep.subr.bf16.mxu0 0
      %3471 = vmatpush1.bf16.msra.mxu0 0
      %3472 = vmatprep.subr.bf16.mxu0 0
      %3473 = vmatpush1.bf16.msra.mxu0 0
      %3474 = vmatprep.subr.bf16.mxu0 0
      %3475 = vmatpush1.bf16.msra.mxu0 0
      %3476 = vmatprep.subr.bf16.mxu0 0
      %3477 = vmatpush1.bf16.msra.mxu0 0
      %3478 = vmatprep.subr.bf16.mxu0 0
      %3479 = vmatpush1.bf16.msra.mxu0 0
      %3480 = vmatprep.subr.bf16.mxu0 0
      %3481 = vmatpush1.bf16.msra.mxu0 0
      %3482 = vmatprep.subr.bf16.mxu0 0
      %3483 = vmatpush1.bf16.msra.mxu0 0
      %3484 = vmatprep.subr.bf16.mxu0 0
      %3485 = vmatpush1.bf16.msra.mxu0 0
      %3486 = vmatprep.subr.bf16.mxu0 0
      %3487 = vmatpush1.bf16.msra.mxu0 0
      %3488 = vmatprep.subr.bf16.mxu0 0
      %3489 = vmatpush1.bf16.msra.mxu0 0
      %3490 = vmatprep.subr.bf16.mxu0 0
      %3491 = vmatpush1.bf16.msra.mxu0 0
      %3492 = vmatprep.subr.bf16.mxu0 0
      %3493 = vmatpush1.bf16.msra.mxu0 0
      %3494 = vmatprep.mubr.bf16.mxu0 0
      %3495 = vmatmul.mubr.bf16.gmra.mrb[0].mxu0 %v3436
      %v3496 = vpop.f32.mrb[0].mxu0
      %v3497 = vadd.f32 0.0, %v3496
      %v3498 = vpop.f32.mrb[0].mxu0
      %v3499 = vpop.f32.mrb[0].mxu0
      %v3500 = vadd.f32 0.0, %v3499
      %v3501 = vpop.f32.mrb[0].mxu0
      %3502 = vmatprep.mubr.bf16.mxu0 0
      %3503 = vmatmul.mubr.bf16.gmra.mrb[0].mxu0 %v3439
      %v3504 = vpop.f32.mrb[0].mxu0
      %v3505 = vadd.f32 0.0, %v3504
      %v3506 = vpop.f32.mrb[0].mxu0
      %v3507 = vpop.f32.mrb[0].mxu0
      %v3508 = vadd.f32 0.0, %v3507
      %v3509 = vpop.f32.mrb[0].mxu0
      %3510 = vmatprep.mubr.bf16.mxu0 0
      %3511 = vmatmul.mubr.bf16.gmra.mrb[0].mxu0 %v3442
      %v3512 = vpop.f32.mrb[0].mxu0
      %v3513 = vadd.f32 0.0, %v3512
      %v3514 = vpop.f32.mrb[0].mxu0
      %v3515 = vpop.f32.mrb[0].mxu0
      %v3516 = vadd.f32 0.0, %v3515
      %v3517 = vpop.f32.mrb[0].mxu0
      %3518 = vmatprep.mubr.bf16.mxu0 0
      %3519 = vmatmul.mubr.bf16.gmra.mrb[0].mxu0 %v3445
      %v3520 = vpop.f32.mrb[0].mxu0
      %v3521 = vadd.f32 0.0, %v3520
      %v3522 = vpop.f32.mrb[0].mxu0
      %v3523 = vpop.f32.mrb[0].mxu0
      %v3524 = vadd.f32 0.0, %v3523
      %v3525 = vpop.f32.mrb[0].mxu0
      %3526 = vmatprep.mubr.bf16.mxu0 0
      %3527 = vmatmul.mubr.bf16.gmra.mrb[0].mxu0 %v3448
      %v3528 = vpop.f32.mrb[0].mxu0
      %v3529 = vadd.f32 0.0, %v3528
      %v3530 = vpop.f32.mrb[0].mxu0
      %v3531 = vpop.f32.mrb[0].mxu0
      %v3532 = vadd.f32 0.0, %v3531
      %v3533 = vpop.f32.mrb[0].mxu0
      %3534 = vmatprep.mubr.bf16.mxu0 0
      %3535 = vmatmul.mubr.bf16.gmra.mrb[0].mxu0 %v3451
      %v3536 = vpop.f32.mrb[0].mxu0
      %v3537 = vadd.f32 0.0, %v3536
      %v3538 = vpop.f32.mrb[0].mxu0
      %v3539 = vpop.f32.mrb[0].mxu0
      %v3540 = vadd.f32 0.0, %v3539
      %v3541 = vpop.f32.mrb[0].mxu0
      %3542 = vmatprep.mubr.bf16.mxu0 0
      %3543 = vmatmul.mubr.bf16.gmra.mrb[0].mxu0 %v3454
      %v3544 = vpop.f32.mrb[0].mxu0
      %v3545 = vadd.f32 0.0, %v3544
      %v3546 = vpop.f32.mrb[0].mxu0
      %v3547 = vpop.f32.mrb[0].mxu0
      %v3548 = vadd.f32 0.0, %v3547
      %v3549 = vpop.f32.mrb[0].mxu0
      %3550 = vmatprep.mubr.bf16.mxu0 0
      %3551 = vmatmul.mubr.bf16.gmra.mrb[0].mxu0 %v3457
      %v3552 = vpop.f32.mrb[0].mxu0
      %v3553 = vadd.f32 0.0, %v3552
      %v3554 = vpop.f32.mrb[0].mxu0
      %v3555 = vpop.f32.mrb[0].mxu0
      %v3556 = vadd.f32 0.0, %v3555
      %v3557 = vpop.f32.mrb[0].mxu0
      %3558 = vmatprep.mubr.bf16.mxu0 0
      %3559 = vmatmul.mubr.bf16.gmra.mrb[0].mxu0 %v3460
      %v3560 = vpop.f32.mrb[0].mxu0
      %v3561 = vadd.f32 0.0, %v3560
      %v3562 = vpop.f32.mrb[0].mxu0
      %v3563 = vpop.f32.mrb[0].mxu0
      %v3564 = vadd.f32 0.0, %v3563
      %v3565 = vpop.f32.mrb[0].mxu0
      %3566 = vdwg.mxu0
      %v3567 = vadd.f32 %v3376, %v3497
      %v3568 = vadd.f32 %v3377, %v3500
      %v3569 = vadd.f32 %v3378, %v3505
      %v3570 = vadd.f32 %v3379, %v3508
      %v3571 = vadd.f32 %v3380, %v3513
      %v3572 = vadd.f32 %v3381, %v3516
      %v3573 = vadd.f32 %v3382, %v3521
      %v3574 = vadd.f32 %v3383, %v3524
      %v3575 = vadd.f32 %v3384, %v3529
      %v3576 = vadd.f32 %v3385, %v3532
      %v3577 = vadd.f32 %v3386, %v3537
      %v3578 = vadd.f32 %v3387, %v3540
      %v3579 = vadd.f32 %v3388, %v3545
      %v3580 = vadd.f32 %v3389, %v3548
      %v3581 = vadd.f32 %v3390, %v3553
      %v3582 = vadd.f32 %v3391, %v3556
      %v3583 = vadd.f32 %v3392, %v3561
      %v3584 = vadd.f32 %v3393, %v3564
      %v3585 = vld [vmem:[#allocation2 + $0x50] sm:$0x7f]
      %s3586 = scalar_lea.vmem %s3, 176
      %v3587 = vld [vmem:[%s3586] sm:$0xf]
      %v3588 = vld [vmem:[%s3586 + $0x4] sm:$0xf]
      %v3589 = vld [vmem:[%s3586 + $0x8] sm:$0xf]
      %v3590 = vld [vmem:[%s3586 + $0xc] sm:$0xf]
      %vm3591 = vsmask.f32 1280
      %v3593 = vshrl.u32 %v3394, 16
      %v3595 = vrot.slane %v3593, 6
      %v3596 = vshll.u32 %v3394, 16
      %v3598 = vrot.slane %v3596, 7
      %v3599 = vor.u32 %v3595, %v3598
      %v3600 = vrot.slane %v2971, 6
      %v3601 = vrot.slane %v2967, 7
      %v3602 = vor.u32 %v3600, %v3601
      %v3603 = vsel %vm3591, %v3599, %v3602
      %v3604 = vrot.slane %v2979, 6
      %v3605 = vrot.slane %v2975, 7
      %v3606 = vor.u32 %v3604, %v3605
      %v3607 = vsel %vm3591, %v3602, %v3606
      %v3608 = vrot.slane %v2987, 6
      %v3609 = vrot.slane %v2983, 7
      %v3610 = vor.u32 %v3608, %v3609
      %v3611 = vsel %vm3591, %v3606, %v3610
      %v3612 = vrot.slane %v2995, 6
      %v3613 = vrot.slane %v2991, 7
      %v3614 = vor.u32 %v3612, %v3613
      %v3615 = vsel %vm3591, %v3610, %v3614
      %v3616 = vrot.slane %v3003, 6
      %v3617 = vrot.slane %v2999, 7
      %v3618 = vor.u32 %v3616, %v3617
      %v3619 = vsel %vm3591, %v3614, %v3618
      %v3620 = vrot.slane %v3011, 6
      %v3621 = vrot.slane %v3007, 7
      %v3622 = vor.u32 %v3620, %v3621
      %v3623 = vsel %vm3591, %v3618, %v3622
      %v3624 = vrot.slane %v3019, 6
      %v3625 = vrot.slane %v3015, 7
      %v3626 = vor.u32 %v3624, %v3625
      %v3627 = vsel %vm3591, %v3622, %v3626
      %v3628 = vrot.slane %v3027, 6
      %v3629 = vrot.slane %v3023, 7
      %v3630 = vor.u32 %v3628, %v3629
      %v3631 = vsel %vm3591, %v3626, %v3630
      %v3633 = vshrl.u32 %v3585, 16
      %v3635 = vrot.slane %v3633, 6
      %v3636 = vshll.u32 %v3585, 16
      %v3638 = vrot.slane %v3636, 7
      %v3639 = vor.u32 %v3635, %v3638
      %v3640 = vsel %vm3591, %v3630, %v3639
      %v3645 = vunpack.c.l.b16 %v3587
      %v3646 = vunpack.c.l.b16 %v3588
      %v3647 = vunpack.c.l.b16 %v3589
      %v3648 = vunpack.c.l.b16 %v3590
      %v3649 = vpack.c.b16 %v3646, %v3645
      %v3650 = vpack.c.b16 %v3648, %v3647
      %v3654 = vsel %vm1532, %v3603, 0
      %v3657 = vsel %vm1532, %v3607, 0
      %v3660 = vsel %vm1532, %v3611, 0
      %v3663 = vsel %vm1532, %v3615, 0
      %v3666 = vsel %vm1532, %v3619, 0
      %v3669 = vsel %vm1532, %v3623, 0
      %v3672 = vsel %vm1532, %v3627, 0
      %v3675 = vsel %vm1532, %v3631, 0
      %v3678 = vsel %vm1532, %v3640, 0
      %3680 = vmatprep.subr.bf16.mxu0 0
      %3681 = vmatpush1.bf16.msra.mxu0 %v3649
      %3682 = vmatprep.subr.bf16.mxu0 0
      %3683 = vmatpush1.bf16.msra.mxu0 %v3650
      %3684 = vmatprep.subr.bf16.mxu0 0
      %3685 = vmatpush1.bf16.msra.mxu0 0
      %3686 = vmatprep.subr.bf16.mxu0 0
      %3687 = vmatpush1.bf16.msra.mxu0 0
      %3688 = vmatprep.subr.bf16.mxu0 0
      %3689 = vmatpush1.bf16.msra.mxu0 0
      %3690 = vmatprep.subr.bf16.mxu0 0
      %3691 = vmatpush1.bf16.msra.mxu0 0
      %3692 = vmatprep.subr.bf16.mxu0 0
      %3693 = vmatpush1.bf16.msra.mxu0 0
      %3694 = vmatprep.subr.bf16.mxu0 0
      %3695 = vmatpush1.bf16.msra.mxu0 0
      %3696 = vmatprep.subr.bf16.mxu0 0
      %3697 = vmatpush1.bf16.msra.mxu0 0
      %3698 = vmatprep.subr.bf16.mxu0 0
      %3699 = vmatpush1.bf16.msra.mxu0 0
      %3700 = vmatprep.subr.bf16.mxu0 0
      %3701 = vmatpush1.bf16.msra.mxu0 0
      %3702 = vmatprep.subr.bf16.mxu0 0
      %3703 = vmatpush1.bf16.msra.mxu0 0
      %3704 = vmatprep.subr.bf16.mxu0 0
      %3705 = vmatpush1.bf16.msra.mxu0 0
      %3706 = vmatprep.subr.bf16.mxu0 0
      %3707 = vmatpush1.bf16.msra.mxu0 0
      %3708 = vmatprep.subr.bf16.mxu0 0
      %3709 = vmatpush1.bf16.msra.mxu0 0
      %3710 = vmatprep.subr.bf16.mxu0 0
      %3711 = vmatpush1.bf16.msra.mxu0 0
      %3712 = vmatprep.mubr.bf16.mxu0 0
      %3713 = vmatmul.mubr.bf16.gmra.mrb[0].mxu0 %v3654
      %v3714 = vpop.f32.mrb[0].mxu0
      %v3715 = vadd.f32 0.0, %v3714
      %v3716 = vpop.f32.mrb[0].mxu0
      %v3717 = vpop.f32.mrb[0].mxu0
      %v3718 = vadd.f32 0.0, %v3717
      %v3719 = vpop.f32.mrb[0].mxu0
      %3720 = vmatprep.mubr.bf16.mxu0 0
      %3721 = vmatmul.mubr.bf16.gmra.mrb[0].mxu0 %v3657
      %v3722 = vpop.f32.mrb[0].mxu0
      %v3723 = vadd.f32 0.0, %v3722
      %v3724 = vpop.f32.mrb[0].mxu0
      %v3725 = vpop.f32.mrb[0].mxu0
      %v3726 = vadd.f32 0.0, %v3725
      %v3727 = vpop.f32.mrb[0].mxu0
      %3728 = vmatprep.mubr.bf16.mxu0 0
      %3729 = vmatmul.mubr.bf16.gmra.mrb[0].mxu0 %v3660
      %v3730 = vpop.f32.mrb[0].mxu0
      %v3731 = vadd.f32 0.0, %v3730
      %v3732 = vpop.f32.mrb[0].mxu0
      %v3733 = vpop.f32.mrb[0].mxu0
      %v3734 = vadd.f32 0.0, %v3733
      %v3735 = vpop.f32.mrb[0].mxu0
      %3736 = vmatprep.mubr.bf16.mxu0 0
      %3737 = vmatmul.mubr.bf16.gmra.mrb[0].mxu0 %v3663
      %v3738 = vpop.f32.mrb[0].mxu0
      %v3739 = vadd.f32 0.0, %v3738
      %v3740 = vpop.f32.mrb[0].mxu0
      %v3741 = vpop.f32.mrb[0].mxu0
      %v3742 = vadd.f32 0.0, %v3741
      %v3743 = vpop.f32.mrb[0].mxu0
      %3744 = vmatprep.mubr.bf16.mxu0 0
      %3745 = vmatmul.mubr.bf16.gmra.mrb[0].mxu0 %v3666
      %v3746 = vpop.f32.mrb[0].mxu0
      %v3747 = vadd.f32 0.0, %v3746
      %v3748 = vpop.f32.mrb[0].mxu0
      %v3749 = vpop.f32.mrb[0].mxu0
      %v3750 = vadd.f32 0.0, %v3749
      %v3751 = vpop.f32.mrb[0].mxu0
      %3752 = vmatprep.mubr.bf16.mxu0 0
      %3753 = vmatmul.mubr.bf16.gmra.mrb[0].mxu0 %v3669
      %v3754 = vpop.f32.mrb[0].mxu0
      %v3755 = vadd.f32 0.0, %v3754
      %v3756 = vpop.f32.mrb[0].mxu0
      %v3757 = vpop.f32.mrb[0].mxu0
      %v3758 = vadd.f32 0.0, %v3757
      %v3759 = vpop.f32.mrb[0].mxu0
      %3760 = vmatprep.mubr.bf16.mxu0 0
      %3761 = vmatmul.mubr.bf16.gmra.mrb[0].mxu0 %v3672
      %v3762 = vpop.f32.mrb[0].mxu0
      %v3763 = vadd.f32 0.0, %v3762
      %v3764 = vpop.f32.mrb[0].mxu0
      %v3765 = vpop.f32.mrb[0].mxu0
      %v3766 = vadd.f32 0.0, %v3765
      %v3767 = vpop.f32.mrb[0].mxu0
      %3768 = vmatprep.mubr.bf16.mxu0 0
      %3769 = vmatmul.mubr.bf16.gmra.mrb[0].mxu0 %v3675
      %v3770 = vpop.f32.mrb[0].mxu0
      %v3771 = vadd.f32 0.0, %v3770
      %v3772 = vpop.f32.mrb[0].mxu0
      %v3773 = vpop.f32.mrb[0].mxu0
      %v3774 = vadd.f32 0.0, %v3773
      %v3775 = vpop.f32.mrb[0].mxu0
      %3776 = vmatprep.mubr.bf16.mxu0 0
      %3777 = vmatmul.mubr.bf16.gmra.mrb[0].mxu0 %v3678
      %v3778 = vpop.f32.mrb[0].mxu0
      %v3779 = vadd.f32 0.0, %v3778
      %v3780 = vpop.f32.mrb[0].mxu0
      %v3781 = vpop.f32.mrb[0].mxu0
      %v3782 = vadd.f32 0.0, %v3781
      %v3783 = vpop.f32.mrb[0].mxu0
      %3784 = vdwg.mxu0
      %v3785 = vadd.f32 %v3567, %v3715
      %v3786 = vadd.f32 %v3568, %v3718
      %v3787 = vadd.f32 %v3569, %v3723
      %v3788 = vadd.f32 %v3570, %v3726
      %v3789 = vadd.f32 %v3571, %v3731
      %v3790 = vadd.f32 %v3572, %v3734
      %v3791 = vadd.f32 %v3573, %v3739
      %v3792 = vadd.f32 %v3574, %v3742
      %v3793 = vadd.f32 %v3575, %v3747
      %v3794 = vadd.f32 %v3576, %v3750
      %v3795 = vadd.f32 %v3577, %v3755
      %v3796 = vadd.f32 %v3578, %v3758
      %v3797 = vadd.f32 %v3579, %v3763
      %v3798 = vadd.f32 %v3580, %v3766
      %v3799 = vadd.f32 %v3581, %v3771
      %v3800 = vadd.f32 %v3582, %v3774
      %v3801 = vadd.f32 %v3583, %v3779
      %v3802 = vadd.f32 %v3584, %v3782
      %v3803 = vld [vmem:[#allocation2 + $0x8] sm:$0x80]
      %s3804 = scalar_lea.vmem %s3, 192
      %v3805 = vld [vmem:[%s3804] sm:$0xf]
      %v3806 = vld [vmem:[%s3804 + $0x4] sm:$0xf]
      %v3807 = vld [vmem:[%s3804 + $0x8] sm:$0xf]
      %v3808 = vld [vmem:[%s3804 + $0xc] sm:$0xf]
      %v3811 = vrot.slane %v3803, 7
      %v3812 = vrot.slane %v2945, 7
      %v3813 = vsel %vm2415, %v3811, %v3812
      %v3814 = vrot.slane %v2946, 7
      %v3815 = vsel %vm2415, %v3812, %v3814
      %v3816 = vrot.slane %v2947, 7
      %v3817 = vsel %vm2415, %v3814, %v3816
      %v3818 = vrot.slane %v2948, 7
      %v3819 = vsel %vm2415, %v3816, %v3818
      %v3820 = vrot.slane %v2949, 7
      %v3821 = vsel %vm2415, %v3818, %v3820
      %v3822 = vrot.slane %v2950, 7
      %v3823 = vsel %vm2415, %v3820, %v3822
      %v3824 = vrot.slane %v2951, 7
      %v3825 = vsel %vm2415, %v3822, %v3824
      %v3826 = vrot.slane %v2952, 7
      %v3827 = vsel %vm2415, %v3824, %v3826
      %v3828 = vrot.slane %v3585, 7
      %v3829 = vsel %vm2415, %v3826, %v3828
      %v3834 = vunpack.c.l.b16 %v3805
      %v3835 = vunpack.c.l.b16 %v3806
      %v3836 = vunpack.c.l.b16 %v3807
      %v3837 = vunpack.c.l.b16 %v3808
      %v3838 = vpack.c.b16 %v3835, %v3834
      %v3839 = vpack.c.b16 %v3837, %v3836
      %v3843 = vsel %vm1532, %v3813, 0
      %v3846 = vsel %vm1532, %v3815, 0
      %v3849 = vsel %vm1532, %v3817, 0
      %v3852 = vsel %vm1532, %v3819, 0
      %v3855 = vsel %vm1532, %v3821, 0
      %v3858 = vsel %vm1532, %v3823, 0
      %v3861 = vsel %vm1532, %v3825, 0
      %v3864 = vsel %vm1532, %v3827, 0
      %v3867 = vsel %vm1532, %v3829, 0
      %3869 = vmatprep.subr.bf16.mxu0 0
      %3870 = vmatpush1.bf16.msra.mxu0 %v3838
      %3871 = vmatprep.subr.bf16.mxu0 0
      %3872 = vmatpush1.bf16.msra.mxu0 %v3839
      %3873 = vmatprep.subr.bf16.mxu0 0
      %3874 = vmatpush1.bf16.msra.mxu0 0
      %3875 = vmatprep.subr.bf16.mxu0 0
      %3876 = vmatpush1.bf16.msra.mxu0 0
      %3877 = vmatprep.subr.bf16.mxu0 0
      %3878 = vmatpush1.bf16.msra.mxu0 0
      %3879 = vmatprep.subr.bf16.mxu0 0
      %3880 = vmatpush1.bf16.msra.mxu0 0
      %3881 = vmatprep.subr.bf16.mxu0 0
      %3882 = vmatpush1.bf16.msra.mxu0 0
      %3883 = vmatprep.subr.bf16.mxu0 0
      %3884 = vmatpush1.bf16.msra.mxu0 0
      %3885 = vmatprep.subr.bf16.mxu0 0
      %3886 = vmatpush1.bf16.msra.mxu0 0
      %3887 = vmatprep.subr.bf16.mxu0 0
      %3888 = vmatpush1.bf16.msra.mxu0 0
      %3889 = vmatprep.subr.bf16.mxu0 0
      %3890 = vmatpush1.bf16.msra.mxu0 0
      %3891 = vmatprep.subr.bf16.mxu0 0
      %3892 = vmatpush1.bf16.msra.mxu0 0
      %3893 = vmatprep.subr.bf16.mxu0 0
      %3894 = vmatpush1.bf16.msra.mxu0 0
      %3895 = vmatprep.subr.bf16.mxu0 0
      %3896 = vmatpush1.bf16.msra.mxu0 0
      %3897 = vmatprep.subr.bf16.mxu0 0
      %3898 = vmatpush1.bf16.msra.mxu0 0
      %3899 = vmatprep.subr.bf16.mxu0 0
      %3900 = vmatpush1.bf16.msra.mxu0 0
      %3901 = vmatprep.mubr.bf16.mxu0 0
      %3902 = vmatmul.mubr.bf16.gmra.mrb[0].mxu0 %v3843
      %v3903 = vpop.f32.mrb[0].mxu0
      %v3904 = vadd.f32 0.0, %v3903
      %v3905 = vpop.f32.mrb[0].mxu0
      %v3906 = vpop.f32.mrb[0].mxu0
      %v3907 = vadd.f32 0.0, %v3906
      %v3908 = vpop.f32.mrb[0].mxu0
      %3909 = vmatprep.mubr.bf16.mxu0 0
      %3910 = vmatmul.mubr.bf16.gmra.mrb[0].mxu0 %v3846
      %v3911 = vpop.f32.mrb[0].mxu0
      %v3912 = vadd.f32 0.0, %v3911
      %v3913 = vpop.f32.mrb[0].mxu0
      %v3914 = vpop.f32.mrb[0].mxu0
      %v3915 = vadd.f32 0.0, %v3914
      %v3916 = vpop.f32.mrb[0].mxu0
      %3917 = vmatprep.mubr.bf16.mxu0 0
      %3918 = vmatmul.mubr.bf16.gmra.mrb[0].mxu0 %v3849
      %v3919 = vpop.f32.mrb[0].mxu0
      %v3920 = vadd.f32 0.0, %v3919
      %v3921 = vpop.f32.mrb[0].mxu0
      %v3922 = vpop.f32.mrb[0].mxu0
      %v3923 = vadd.f32 0.0, %v3922
      %v3924 = vpop.f32.mrb[0].mxu0
      %3925 = vmatprep.mubr.bf16.mxu0 0
      %3926 = vmatmul.mubr.bf16.gmra.mrb[0].mxu0 %v3852
      %v3927 = vpop.f32.mrb[0].mxu0
      %v3928 = vadd.f32 0.0, %v3927
      %v3929 = vpop.f32.mrb[0].mxu0
      %v3930 = vpop.f32.mrb[0].mxu0
      %v3931 = vadd.f32 0.0, %v3930
      %v3932 = vpop.f32.mrb[0].mxu0
      %3933 = vmatprep.mubr.bf16.mxu0 0
      %3934 = vmatmul.mubr.bf16.gmra.mrb[0].mxu0 %v3855
      %v3935 = vpop.f32.mrb[0].mxu0
      %v3936 = vadd.f32 0.0, %v3935
      %v3937 = vpop.f32.mrb[0].mxu0
      %v3938 = vpop.f32.mrb[0].mxu0
      %v3939 = vadd.f32 0.0, %v3938
      %v3940 = vpop.f32.mrb[0].mxu0
      %3941 = vmatprep.mubr.bf16.mxu0 0
      %3942 = vmatmul.mubr.bf16.gmra.mrb[0].mxu0 %v3858
      %v3943 = vpop.f32.mrb[0].mxu0
      %v3944 = vadd.f32 0.0, %v3943
      %v3945 = vpop.f32.mrb[0].mxu0
      %v3946 = vpop.f32.mrb[0].mxu0
      %v3947 = vadd.f32 0.0, %v3946
      %v3948 = vpop.f32.mrb[0].mxu0
      %3949 = vmatprep.mubr.bf16.mxu0 0
      %3950 = vmatmul.mubr.bf16.gmra.mrb[0].mxu0 %v3861
      %v3951 = vpop.f32.mrb[0].mxu0
      %v3952 = vadd.f32 0.0, %v3951
      %v3953 = vpop.f32.mrb[0].mxu0
      %v3954 = vpop.f32.mrb[0].mxu0
      %v3955 = vadd.f32 0.0, %v3954
      %v3956 = vpop.f32.mrb[0].mxu0
      %3957 = vmatprep.mubr.bf16.mxu0 0
      %3958 = vmatmul.mubr.bf16.gmra.mrb[0].mxu0 %v3864
      %v3959 = vpop.f32.mrb[0].mxu0
      %v3960 = vadd.f32 0.0, %v3959
      %v3961 = vpop.f32.mrb[0].mxu0
      %v3962 = vpop.f32.mrb[0].mxu0
      %v3963 = vadd.f32 0.0, %v3962
      %v3964 = vpop.f32.mrb[0].mxu0
      %3965 = vmatprep.mubr.bf16.mxu0 0
      %3966 = vmatmul.mubr.bf16.gmra.mrb[0].mxu0 %v3867
      %v3967 = vpop.f32.mrb[0].mxu0
      %v3968 = vadd.f32 0.0, %v3967
      %v3969 = vpop.f32.mrb[0].mxu0
      %v3970 = vpop.f32.mrb[0].mxu0
      %v3971 = vadd.f32 0.0, %v3970
      %v3972 = vpop.f32.mrb[0].mxu0
      %3973 = vdwg.mxu0
      %v3974 = vadd.f32 %v3785, %v3904
      %v3975 = vadd.f32 %v3786, %v3907
      %v3976 = vadd.f32 %v3787, %v3912
      %v3977 = vadd.f32 %v3788, %v3915
      %v3978 = vadd.f32 %v3789, %v3920
      %v3979 = vadd.f32 %v3790, %v3923
      %v3980 = vadd.f32 %v3791, %v3928
      %v3981 = vadd.f32 %v3792, %v3931
      %v3982 = vadd.f32 %v3793, %v3936
      %v3983 = vadd.f32 %v3794, %v3939
      %v3984 = vadd.f32 %v3795, %v3944
      %v3985 = vadd.f32 %v3796, %v3947
      %v3986 = vadd.f32 %v3797, %v3952
      %v3987 = vadd.f32 %v3798, %v3955
      %v3988 = vadd.f32 %v3799, %v3960
      %v3989 = vadd.f32 %v3800, %v3963
      %v3990 = vadd.f32 %v3801, %v3968
      %v3991 = vadd.f32 %v3802, %v3971
      %v3992 = vld [vmem:[#allocation2 + $0x50] sm:$0xff]
      %s3993 = scalar_lea.vmem %s3, 208
      %v3994 = vld [vmem:[%s3993] sm:$0xf]
      %v3995 = vld [vmem:[%s3993 + $0x4] sm:$0xf]
      %v3996 = vld [vmem:[%s3993 + $0x8] sm:$0xf]
      %v3997 = vld [vmem:[%s3993 + $0xc] sm:$0xf]
      %v3999 = vshrl.u32 %v3803, 16
      %v4001 = vrot.slane %v3999, 7
      %v4002 = vrot.slane %v2971, 7
      %v4003 = vor.u32 %v4002, %v2967
      %v4004 = vsel %vm2603, %v4001, %v4003
      %v4005 = vrot.slane %v2979, 7
      %v4006 = vor.u32 %v4005, %v2975
      %v4007 = vsel %vm2603, %v4002, %v4006
      %v4008 = vrot.slane %v2987, 7
      %v4009 = vor.u32 %v4008, %v2983
      %v4010 = vsel %vm2603, %v4005, %v4009
      %v4011 = vrot.slane %v2995, 7
      %v4012 = vor.u32 %v4011, %v2991
      %v4013 = vsel %vm2603, %v4008, %v4012
      %v4014 = vrot.slane %v3003, 7
      %v4015 = vor.u32 %v4014, %v2999
      %v4016 = vsel %vm2603, %v4011, %v4015
      %v4017 = vrot.slane %v3011, 7
      %v4018 = vor.u32 %v4017, %v3007
      %v4019 = vsel %vm2603, %v4014, %v4018
      %v4020 = vrot.slane %v3019, 7
      %v4021 = vor.u32 %v4020, %v3015
      %v4022 = vsel %vm2603, %v4017, %v4021
      %v4023 = vrot.slane %v3027, 7
      %v4024 = vor.u32 %v4023, %v3023
      %v4025 = vsel %vm2603, %v4020, %v4024
      %v4027 = vshrl.u32 %v3992, 16
      %v4029 = vrot.slane %v4027, 7
      %v4030 = vshll.u32 %v3992, 16
      %v4032 = vor.u32 %v4029, %v4030
      %v4033 = vsel %vm2603, %v4023, %v4032
      %v4038 = vunpack.c.l.b16 %v3994
      %v4039 = vunpack.c.l.b16 %v3995
      %v4040 = vunpack.c.l.b16 %v3996
      %v4041 = vunpack.c.l.b16 %v3997
      %v4042 = vpack.c.b16 %v4039, %v4038
      %v4043 = vpack.c.b16 %v4041, %v4040
      %v4047 = vsel %vm1532, %v4004, 0
      %v4050 = vsel %vm1532, %v4007, 0
      %v4053 = vsel %vm1532, %v4010, 0
      %v4056 = vsel %vm1532, %v4013, 0
      %v4059 = vsel %vm1532, %v4016, 0
      %v4062 = vsel %vm1532, %v4019, 0
      %v4065 = vsel %vm1532, %v4022, 0
      %v4068 = vsel %vm1532, %v4025, 0
      %v4071 = vsel %vm1532, %v4033, 0
      %4073 = vmatprep.subr.bf16.mxu0 0
      %4074 = vmatpush1.bf16.msra.mxu0 %v4042
      %4075 = vmatprep.subr.bf16.mxu0 0
      %4076 = vmatpush1.bf16.msra.mxu0 %v4043
      %4077 = vmatprep.subr.bf16.mxu0 0
      %4078 = vmatpush1.bf16.msra.mxu0 0
      %4079 = vmatprep.subr.bf16.mxu0 0
      %4080 = vmatpush1.bf16.msra.mxu0 0
      %4081 = vmatprep.subr.bf16.mxu0 0
      %4082 = vmatpush1.bf16.msra.mxu0 0
      %4083 = vmatprep.subr.bf16.mxu0 0
      %4084 = vmatpush1.bf16.msra.mxu0 0
      %4085 = vmatprep.subr.bf16.mxu0 0
      %4086 = vmatpush1.bf16.msra.mxu0 0
      %4087 = vmatprep.subr.bf16.mxu0 0
      %4088 = vmatpush1.bf16.msra.mxu0 0
      %4089 = vmatprep.subr.bf16.mxu0 0
      %4090 = vmatpush1.bf16.msra.mxu0 0
      %4091 = vmatprep.subr.bf16.mxu0 0
      %4092 = vmatpush1.bf16.msra.mxu0 0
      %4093 = vmatprep.subr.bf16.mxu0 0
      %4094 = vmatpush1.bf16.msra.mxu0 0
      %4095 = vmatprep.subr.bf16.mxu0 0
      %4096 = vmatpush1.bf16.msra.mxu0 0
      %4097 = vmatprep.subr.bf16.mxu0 0
      %4098 = vmatpush1.bf16.msra.mxu0 0
      %4099 = vmatprep.subr.bf16.mxu0 0
      %4100 = vmatpush1.bf16.msra.mxu0 0
      %4101 = vmatprep.subr.bf16.mxu0 0
      %4102 = vmatpush1.bf16.msra.mxu0 0
      %4103 = vmatprep.subr.bf16.mxu0 0
      %4104 = vmatpush1.bf16.msra.mxu0 0
      %4105 = vmatprep.mubr.bf16.mxu0 0
      %4106 = vmatmul.mubr.bf16.gmra.mrb[0].mxu0 %v4047
      %v4107 = vpop.f32.mrb[0].mxu0
      %v4108 = vadd.f32 0.0, %v4107
      %v4109 = vpop.f32.mrb[0].mxu0
      %v4110 = vpop.f32.mrb[0].mxu0
      %v4111 = vadd.f32 0.0, %v4110
      %v4112 = vpop.f32.mrb[0].mxu0
      %4113 = vmatprep.mubr.bf16.mxu0 0
      %4114 = vmatmul.mubr.bf16.gmra.mrb[0].mxu0 %v4050
      %v4115 = vpop.f32.mrb[0].mxu0
      %v4116 = vadd.f32 0.0, %v4115
      %v4117 = vpop.f32.mrb[0].mxu0
      %v4118 = vpop.f32.mrb[0].mxu0
      %v4119 = vadd.f32 0.0, %v4118
      %v4120 = vpop.f32.mrb[0].mxu0
      %4121 = vmatprep.mubr.bf16.mxu0 0
      %4122 = vmatmul.mubr.bf16.gmra.mrb[0].mxu0 %v4053
      %v4123 = vpop.f32.mrb[0].mxu0
      %v4124 = vadd.f32 0.0, %v4123
      %v4125 = vpop.f32.mrb[0].mxu0
      %v4126 = vpop.f32.mrb[0].mxu0
      %v4127 = vadd.f32 0.0, %v4126
      %v4128 = vpop.f32.mrb[0].mxu0
      %4129 = vmatprep.mubr.bf16.mxu0 0
      %4130 = vmatmul.mubr.bf16.gmra.mrb[0].mxu0 %v4056
      %v4131 = vpop.f32.mrb[0].mxu0
      %v4132 = vadd.f32 0.0, %v4131
      %v4133 = vpop.f32.mrb[0].mxu0
      %v4134 = vpop.f32.mrb[0].mxu0
      %v4135 = vadd.f32 0.0, %v4134
      %v4136 = vpop.f32.mrb[0].mxu0
      %4137 = vmatprep.mubr.bf16.mxu0 0
      %4138 = vmatmul.mubr.bf16.gmra.mrb[0].mxu0 %v4059
      %v4139 = vpop.f32.mrb[0].mxu0
      %v4140 = vadd.f32 0.0, %v4139
      %v4141 = vpop.f32.mrb[0].mxu0
      %v4142 = vpop.f32.mrb[0].mxu0
      %v4143 = vadd.f32 0.0, %v4142
      %v4144 = vpop.f32.mrb[0].mxu0
      %4145 = vmatprep.mubr.bf16.mxu0 0
      %4146 = vmatmul.mubr.bf16.gmra.mrb[0].mxu0 %v4062
      %v4147 = vpop.f32.mrb[0].mxu0
      %v4148 = vadd.f32 0.0, %v4147
      %v4149 = vpop.f32.mrb[0].mxu0
      %v4150 = vpop.f32.mrb[0].mxu0
      %v4151 = vadd.f32 0.0, %v4150
      %v4152 = vpop.f32.mrb[0].mxu0
      %4153 = vmatprep.mubr.bf16.mxu0 0
      %4154 = vmatmul.mubr.bf16.gmra.mrb[0].mxu0 %v4065
      %v4155 = vpop.f32.mrb[0].mxu0
      %v4156 = vadd.f32 0.0, %v4155
      %v4157 = vpop.f32.mrb[0].mxu0
      %v4158 = vpop.f32.mrb[0].mxu0
      %v4159 = vadd.f32 0.0, %v4158
      %v4160 = vpop.f32.mrb[0].mxu0
      %4161 = vmatprep.mubr.bf16.mxu0 0
      %4162 = vmatmul.mubr.bf16.gmra.mrb[0].mxu0 %v4068
      %v4163 = vpop.f32.mrb[0].mxu0
      %v4164 = vadd.f32 0.0, %v4163
      %v4165 = vpop.f32.mrb[0].mxu0
      %v4166 = vpop.f32.mrb[0].mxu0
      %v4167 = vadd.f32 0.0, %v4166
      %v4168 = vpop.f32.mrb[0].mxu0
      %4169 = vmatprep.mubr.bf16.mxu0 0
      %4170 = vmatmul.mubr.bf16.gmra.mrb[0].mxu0 %v4071
      %v4171 = vpop.f32.mrb[0].mxu0
      %v4172 = vadd.f32 0.0, %v4171
      %v4173 = vpop.f32.mrb[0].mxu0
      %v4174 = vpop.f32.mrb[0].mxu0
      %v4175 = vadd.f32 0.0, %v4174
      %v4176 = vpop.f32.mrb[0].mxu0
      %4177 = vdwg.mxu0
      %v4178 = vadd.f32 %v3974, %v4108
      %v4179 = vadd.f32 %v3975, %v4111
      %v4180 = vadd.f32 %v3976, %v4116
      %v4181 = vadd.f32 %v3977, %v4119
      %v4182 = vadd.f32 %v3978, %v4124
      %v4183 = vadd.f32 %v3979, %v4127
      %v4184 = vadd.f32 %v3980, %v4132
      %v4185 = vadd.f32 %v3981, %v4135
      %v4186 = vadd.f32 %v3982, %v4140
      %v4187 = vadd.f32 %v3983, %v4143
      %v4188 = vadd.f32 %v3984, %v4148
      %v4189 = vadd.f32 %v3985, %v4151
      %v4190 = vadd.f32 %v3986, %v4156
      %v4191 = vadd.f32 %v3987, %v4159
      %v4192 = vadd.f32 %v3988, %v4164
      %v4193 = vadd.f32 %v3989, %v4167
      %v4194 = vadd.f32 %v3990, %v4172
      %v4195 = vadd.f32 %v3991, %v4175
      %s4196 = scalar_lea.vmem %s3, 224
      %v4197 = vld [vmem:[%s4196] sm:$0xf]
      %v4198 = vld [vmem:[%s4196 + $0x4] sm:$0xf]
      %v4199 = vld [vmem:[%s4196 + $0x8] sm:$0xf]
      %v4200 = vld [vmem:[%s4196 + $0xc] sm:$0xf]
      %v4205 = vunpack.c.l.b16 %v4197
      %v4206 = vunpack.c.l.b16 %v4198
      %v4207 = vunpack.c.l.b16 %v4199
      %v4208 = vunpack.c.l.b16 %v4200
      %v4209 = vpack.c.b16 %v4206, %v4205
      %v4210 = vpack.c.b16 %v4208, %v4207
      %v4213 = vsel %vm1532, %v2945, 0
      %v4215 = vsel %vm1532, %v2946, 0
      %v4217 = vsel %vm1532, %v2947, 0
      %v4219 = vsel %vm1532, %v2948, 0
      %v4221 = vsel %vm1532, %v2949, 0
      %v4223 = vsel %vm1532, %v2950, 0
      %v4225 = vsel %vm1532, %v2951, 0
      %v4227 = vsel %vm1532, %v2952, 0
      %v4229 = vsel %vm1532, %v3992, 0
      %4231 = vmatprep.subr.bf16.mxu0 0
      %4232 = vmatpush1.bf16.msra.mxu0 %v4209
      %4233 = vmatprep.subr.bf16.mxu0 0
      %4234 = vmatpush1.bf16.msra.mxu0 %v4210
      %4235 = vmatprep.subr.bf16.mxu0 0
      %4236 = vmatpush1.bf16.msra.mxu0 0
      %4237 = vmatprep.subr.bf16.mxu0 0
      %4238 = vmatpush1.bf16.msra.mxu0 0
      %4239 = vmatprep.subr.bf16.mxu0 0
      %4240 = vmatpush1.bf16.msra.mxu0 0
      %4241 = vmatprep.subr.bf16.mxu0 0
      %4242 = vmatpush1.bf16.msra.mxu0 0
      %4243 = vmatprep.subr.bf16.mxu0 0
      %4244 = vmatpush1.bf16.msra.mxu0 0
      %4245 = vmatprep.subr.bf16.mxu0 0
      %4246 = vmatpush1.bf16.msra.mxu0 0
      %4247 = vmatprep.subr.bf16.mxu0 0
      %4248 = vmatpush1.bf16.msra.mxu0 0
      %4249 = vmatprep.subr.bf16.mxu0 0
      %4250 = vmatpush1.bf16.msra.mxu0 0
      %4251 = vmatprep.subr.bf16.mxu0 0
      %4252 = vmatpush1.bf16.msra.mxu0 0
      %4253 = vmatprep.subr.bf16.mxu0 0
      %4254 = vmatpush1.bf16.msra.mxu0 0
      %4255 = vmatprep.subr.bf16.mxu0 0
      %4256 = vmatpush1.bf16.msra.mxu0 0
      %4257 = vmatprep.subr.bf16.mxu0 0
      %4258 = vmatpush1.bf16.msra.mxu0 0
      %4259 = vmatprep.subr.bf16.mxu0 0
      %4260 = vmatpush1.bf16.msra.mxu0 0
      %4261 = vmatprep.subr.bf16.mxu0 0
      %4262 = vmatpush1.bf16.msra.mxu0 0
      %4263 = vmatprep.mubr.bf16.mxu0 0
      %4264 = vmatmul.mubr.bf16.gmra.mrb[0].mxu0 %v4213
      %v4265 = vpop.f32.mrb[0].mxu0
      %v4266 = vadd.f32 0.0, %v4265
      %v4267 = vpop.f32.mrb[0].mxu0
      %v4268 = vpop.f32.mrb[0].mxu0
      %v4269 = vadd.f32 0.0, %v4268
      %v4270 = vpop.f32.mrb[0].mxu0
      %4271 = vmatprep.mubr.bf16.mxu0 0
      %4272 = vmatmul.mubr.bf16.gmra.mrb[0].mxu0 %v4215
      %v4273 = vpop.f32.mrb[0].mxu0
      %v4274 = vadd.f32 0.0, %v4273
      %v4275 = vpop.f32.mrb[0].mxu0
      %v4276 = vpop.f32.mrb[0].mxu0
      %v4277 = vadd.f32 0.0, %v4276
      %v4278 = vpop.f32.mrb[0].mxu0
      %4279 = vmatprep.mubr.bf16.mxu0 0
      %4280 = vmatmul.mubr.bf16.gmra.mrb[0].mxu0 %v4217
      %v4281 = vpop.f32.mrb[0].mxu0
      %v4282 = vadd.f32 0.0, %v4281
      %v4283 = vpop.f32.mrb[0].mxu0
      %v4284 = vpop.f32.mrb[0].mxu0
      %v4285 = vadd.f32 0.0, %v4284
      %v4286 = vpop.f32.mrb[0].mxu0
      %4287 = vmatprep.mubr.bf16.mxu0 0
      %4288 = vmatmul.mubr.bf16.gmra.mrb[0].mxu0 %v4219
      %v4289 = vpop.f32.mrb[0].mxu0
      %v4290 = vadd.f32 0.0, %v4289
      %v4291 = vpop.f32.mrb[0].mxu0
      %v4292 = vpop.f32.mrb[0].mxu0
      %v4293 = vadd.f32 0.0, %v4292
      %v4294 = vpop.f32.mrb[0].mxu0
      %4295 = vmatprep.mubr.bf16.mxu0 0
      %4296 = vmatmul.mubr.bf16.gmra.mrb[0].mxu0 %v4221
      %v4297 = vpop.f32.mrb[0].mxu0
      %v4298 = vadd.f32 0.0, %v4297
      %v4299 = vpop.f32.mrb[0].mxu0
      %v4300 = vpop.f32.mrb[0].mxu0
      %v4301 = vadd.f32 0.0, %v4300
      %v4302 = vpop.f32.mrb[0].mxu0
      %4303 = vmatprep.mubr.bf16.mxu0 0
      %4304 = vmatmul.mubr.bf16.gmra.mrb[0].mxu0 %v4223
      %v4305 = vpop.f32.mrb[0].mxu0
      %v4306 = vadd.f32 0.0, %v4305
      %v4307 = vpop.f32.mrb[0].mxu0
      %v4308 = vpop.f32.mrb[0].mxu0
      %v4309 = vadd.f32 0.0, %v4308
      %v4310 = vpop.f32.mrb[0].mxu0
      %4311 = vmatprep.mubr.bf16.mxu0 0
      %4312 = vmatmul.mubr.bf16.gmra.mrb[0].mxu0 %v4225
      %v4313 = vpop.f32.mrb[0].mxu0
      %v4314 = vadd.f32 0.0, %v4313
      %v4315 = vpop.f32.mrb[0].mxu0
      %v4316 = vpop.f32.mrb[0].mxu0
      %v4317 = vadd.f32 0.0, %v4316
      %v4318 = vpop.f32.mrb[0].mxu0
      %4319 = vmatprep.mubr.bf16.mxu0 0
      %4320 = vmatmul.mubr.bf16.gmra.mrb[0].mxu0 %v4227
      %v4321 = vpop.f32.mrb[0].mxu0
      %v4322 = vadd.f32 0.0, %v4321
      %v4323 = vpop.f32.mrb[0].mxu0
      %v4324 = vpop.f32.mrb[0].mxu0
      %v4325 = vadd.f32 0.0, %v4324
      %v4326 = vpop.f32.mrb[0].mxu0
      %4327 = vmatprep.mubr.bf16.mxu0 0
      %4328 = vmatmul.mubr.bf16.gmra.mrb[0].mxu0 %v4229
      %v4329 = vpop.f32.mrb[0].mxu0
      %v4330 = vadd.f32 0.0, %v4329
      %v4331 = vpop.f32.mrb[0].mxu0
      %v4332 = vpop.f32.mrb[0].mxu0
      %v4333 = vadd.f32 0.0, %v4332
      %v4334 = vpop.f32.mrb[0].mxu0
      %4335 = vdwg.mxu0
      %v4336 = vadd.f32 %v4178, %v4266
      %v4337 = vadd.f32 %v4179, %v4269
      %v4338 = vadd.f32 %v4180, %v4274
      %v4339 = vadd.f32 %v4181, %v4277
      %v4340 = vadd.f32 %v4182, %v4282
      %v4341 = vadd.f32 %v4183, %v4285
      %v4342 = vadd.f32 %v4184, %v4290
      %v4343 = vadd.f32 %v4185, %v4293
      %v4344 = vadd.f32 %v4186, %v4298
      %v4345 = vadd.f32 %v4187, %v4301
      %v4346 = vadd.f32 %v4188, %v4306
      %v4347 = vadd.f32 %v4189, %v4309
      %v4348 = vadd.f32 %v4190, %v4314
      %v4349 = vadd.f32 %v4191, %v4317
      %v4350 = vadd.f32 %v4192, %v4322
      %v4351 = vadd.f32 %v4193, %v4325
      %v4352 = vadd.f32 %v4194, %v4330
      %v4353 = vadd.f32 %v4195, %v4333
      %v4354 = vld [vmem:[#allocation2 + $0x10] sm:$0xe0]
      %v4355 = vld [vmem:[#allocation2 + $0x18] sm:$0xff]
      %v4356 = vld [vmem:[#allocation2 + $0x20] sm:$0xff]
      %v4357 = vld [vmem:[#allocation2 + $0x28] sm:$0xff]
      %v4358 = vld [vmem:[#allocation2 + $0x30] sm:$0xff]
      %v4359 = vld [vmem:[#allocation2 + $0x38] sm:$0xff]
      %v4360 = vld [vmem:[#allocation2 + $0x40] sm:$0xff]
      %v4361 = vld [vmem:[#allocation2 + $0x48] sm:$0xff]
      %v4362 = vld [vmem:[#allocation2 + $0x50] sm:$0xff]
      %v4363 = vld [vmem:[#allocation2 + $0x58] sm:$0x1f]
      %s4364 = scalar_lea.vmem %s3, 240
      %v4365 = vld [vmem:[%s4364] sm:$0xf]
      %v4366 = vld [vmem:[%s4364 + $0x4] sm:$0xf]
      %v4367 = vld [vmem:[%s4364 + $0x8] sm:$0xf]
      %v4368 = vld [vmem:[%s4364 + $0xc] sm:$0xf]
      %vm4379 = vcmask 1042432
      %v4380 = vrot.slane %v4354, 5
      %v4381 = vrot.slane %v4355, 5
      %v4382 = vsel %vm4379, %v4380, %v4381
      %v4383 = vrot.slane %v4356, 5
      %v4384 = vsel %vm4379, %v4381, %v4383
      %v4385 = vrot.slane %v4357, 5
      %v4386 = vsel %vm4379, %v4383, %v4385
      %v4387 = vrot.slane %v4358, 5
      %v4388 = vsel %vm4379, %v4385, %v4387
      %v4389 = vrot.slane %v4359, 5
      %v4390 = vsel %vm4379, %v4387, %v4389
      %v4391 = vrot.slane %v4360, 5
      %v4392 = vsel %vm4379, %v4389, %v4391
      %v4393 = vrot.slane %v4361, 5
      %v4394 = vsel %vm4379, %v4391, %v4393
      %v4395 = vrot.slane %v4362, 5
      %v4396 = vsel %vm4379, %v4393, %v4395
      %v4397 = vrot.slane %v4363, 5
      %v4398 = vsel %vm4379, %v4395, %v4397
      %v4403 = vunpack.c.l.b16 %v4365
      %v4404 = vunpack.c.l.b16 %v4366
      %v4405 = vunpack.c.l.b16 %v4367
      %v4406 = vunpack.c.l.b16 %v4368
      %v4407 = vpack.c.b16 %v4404, %v4403
      %v4408 = vpack.c.b16 %v4406, %v4405
      %v4412 = vsel %vm1532, %v4382, 0
      %v4415 = vsel %vm1532, %v4384, 0
      %v4418 = vsel %vm1532, %v4386, 0
      %v4421 = vsel %vm1532, %v4388, 0
      %v4424 = vsel %vm1532, %v4390, 0
      %v4427 = vsel %vm1532, %v4392, 0
      %v4430 = vsel %vm1532, %v4394, 0
      %v4433 = vsel %vm1532, %v4396, 0
      %v4436 = vsel %vm1532, %v4398, 0
      %4438 = vmatprep.subr.bf16.mxu0 0
      %4439 = vmatpush1.bf16.msra.mxu0 %v4407
      %4440 = vmatprep.subr.bf16.mxu0 0
      %4441 = vmatpush1.bf16.msra.mxu0 %v4408
      %4442 = vmatprep.subr.bf16.mxu0 0
      %4443 = vmatpush1.bf16.msra.mxu0 0
      %4444 = vmatprep.subr.bf16.mxu0 0
      %4445 = vmatpush1.bf16.msra.mxu0 0
      %4446 = vmatprep.subr.bf16.mxu0 0
      %4447 = vmatpush1.bf16.msra.mxu0 0
      %4448 = vmatprep.subr.bf16.mxu0 0
      %4449 = vmatpush1.bf16.msra.mxu0 0
      %4450 = vmatprep.subr.bf16.mxu0 0
      %4451 = vmatpush1.bf16.msra.mxu0 0
      %4452 = vmatprep.subr.bf16.mxu0 0
      %4453 = vmatpush1.bf16.msra.mxu0 0
      %4454 = vmatprep.subr.bf16.mxu0 0
      %4455 = vmatpush1.bf16.msra.mxu0 0
      %4456 = vmatprep.subr.bf16.mxu0 0
      %4457 = vmatpush1.bf16.msra.mxu0 0
      %4458 = vmatprep.subr.bf16.mxu0 0
      %4459 = vmatpush1.bf16.msra.mxu0 0
      %4460 = vmatprep.subr.bf16.mxu0 0
      %4461 = vmatpush1.bf16.msra.mxu0 0
      %4462 = vmatprep.subr.bf16.mxu0 0
      %4463 = vmatpush1.bf16.msra.mxu0 0
      %4464 = vmatprep.subr.bf16.mxu0 0
      %4465 = vmatpush1.bf16.msra.mxu0 0
      %4466 = vmatprep.subr.bf16.mxu0 0
      %4467 = vmatpush1.bf16.msra.mxu0 0
      %4468 = vmatprep.subr.bf16.mxu0 0
      %4469 = vmatpush1.bf16.msra.mxu0 0
      %4470 = vmatprep.mubr.bf16.mxu0 0
      %4471 = vmatmul.mubr.bf16.gmra.mrb[0].mxu0 %v4412
      %v4472 = vpop.f32.mrb[0].mxu0
      %v4473 = vadd.f32 0.0, %v4472
      %v4474 = vpop.f32.mrb[0].mxu0
      %v4475 = vpop.f32.mrb[0].mxu0
      %v4476 = vadd.f32 0.0, %v4475
      %v4477 = vpop.f32.mrb[0].mxu0
      %4478 = vmatprep.mubr.bf16.mxu0 0
      %4479 = vmatmul.mubr.bf16.gmra.mrb[0].mxu0 %v4415
      %v4480 = vpop.f32.mrb[0].mxu0
      %v4481 = vadd.f32 0.0, %v4480
      %v4482 = vpop.f32.mrb[0].mxu0
      %v4483 = vpop.f32.mrb[0].mxu0
      %v4484 = vadd.f32 0.0, %v4483
      %v4485 = vpop.f32.mrb[0].mxu0
      %4486 = vmatprep.mubr.bf16.mxu0 0
      %4487 = vmatmul.mubr.bf16.gmra.mrb[0].mxu0 %v4418
      %v4488 = vpop.f32.mrb[0].mxu0
      %v4489 = vadd.f32 0.0, %v4488
      %v4490 = vpop.f32.mrb[0].mxu0
      %v4491 = vpop.f32.mrb[0].mxu0
      %v4492 = vadd.f32 0.0, %v4491
      %v4493 = vpop.f32.mrb[0].mxu0
      %4494 = vmatprep.mubr.bf16.mxu0 0
      %4495 = vmatmul.mubr.bf16.gmra.mrb[0].mxu0 %v4421
      %v4496 = vpop.f32.mrb[0].mxu0
      %v4497 = vadd.f32 0.0, %v4496
      %v4498 = vpop.f32.mrb[0].mxu0
      %v4499 = vpop.f32.mrb[0].mxu0
      %v4500 = vadd.f32 0.0, %v4499
      %v4501 = vpop.f32.mrb[0].mxu0
      %4502 = vmatprep.mubr.bf16.mxu0 0
      %4503 = vmatmul.mubr.bf16.gmra.mrb[0].mxu0 %v4424
      %v4504 = vpop.f32.mrb[0].mxu0
      %v4505 = vadd.f32 0.0, %v4504
      %v4506 = vpop.f32.mrb[0].mxu0
      %v4507 = vpop.f32.mrb[0].mxu0
      %v4508 = vadd.f32 0.0, %v4507
      %v4509 = vpop.f32.mrb[0].mxu0
      %4510 = vmatprep.mubr.bf16.mxu0 0
      %4511 = vmatmul.mubr.bf16.gmra.mrb[0].mxu0 %v4427
      %v4512 = vpop.f32.mrb[0].mxu0
      %v4513 = vadd.f32 0.0, %v4512
      %v4514 = vpop.f32.mrb[0].mxu0
      %v4515 = vpop.f32.mrb[0].mxu0
      %v4516 = vadd.f32 0.0, %v4515
      %v4517 = vpop.f32.mrb[0].mxu0
      %4518 = vmatprep.mubr.bf16.mxu0 0
      %4519 = vmatmul.mubr.bf16.gmra.mrb[0].mxu0 %v4430
      %v4520 = vpop.f32.mrb[0].mxu0
      %v4521 = vadd.f32 0.0, %v4520
      %v4522 = vpop.f32.mrb[0].mxu0
      %v4523 = vpop.f32.mrb[0].mxu0
      %v4524 = vadd.f32 0.0, %v4523
      %v4525 = vpop.f32.mrb[0].mxu0
      %4526 = vmatprep.mubr.bf16.mxu0 0
      %4527 = vmatmul.mubr.bf16.gmra.mrb[0].mxu0 %v4433
      %v4528 = vpop.f32.mrb[0].mxu0
      %v4529 = vadd.f32 0.0, %v4528
      %v4530 = vpop.f32.mrb[0].mxu0
      %v4531 = vpop.f32.mrb[0].mxu0
      %v4532 = vadd.f32 0.0, %v4531
      %v4533 = vpop.f32.mrb[0].mxu0
      %4534 = vmatprep.mubr.bf16.mxu0 0
      %4535 = vmatmul.mubr.bf16.gmra.mrb[0].mxu0 %v4436
      %v4536 = vpop.f32.mrb[0].mxu0
      %v4537 = vadd.f32 0.0, %v4536
      %v4538 = vpop.f32.mrb[0].mxu0
      %v4539 = vpop.f32.mrb[0].mxu0
      %v4540 = vadd.f32 0.0, %v4539
      %v4541 = vpop.f32.mrb[0].mxu0
      %4542 = vdwg.mxu0
      %v4543 = vadd.f32 %v4336, %v4473
      %v4544 = vadd.f32 %v4337, %v4476
      %v4545 = vadd.f32 %v4338, %v4481
      %v4546 = vadd.f32 %v4339, %v4484
      %v4547 = vadd.f32 %v4340, %v4489
      %v4548 = vadd.f32 %v4341, %v4492
      %v4549 = vadd.f32 %v4342, %v4497
      %v4550 = vadd.f32 %v4343, %v4500
      %v4551 = vadd.f32 %v4344, %v4505
      %v4552 = vadd.f32 %v4345, %v4508
      %v4553 = vadd.f32 %v4346, %v4513
      %v4554 = vadd.f32 %v4347, %v4516
      %v4555 = vadd.f32 %v4348, %v4521
      %v4556 = vadd.f32 %v4349, %v4524
      %v4557 = vadd.f32 %v4350, %v4529
      %v4558 = vadd.f32 %v4351, %v4532
      %v4559 = vadd.f32 %v4352, %v4537
      %v4560 = vadd.f32 %v4353, %v4540
      %v4561 = vld [vmem:[#allocation2 + $0x58] sm:$0x3f]
      %s4562 = scalar_lea.vmem %s3, 256
      %v4563 = vld [vmem:[%s4562] sm:$0xf]
      %v4564 = vld [vmem:[%s4562 + $0x4] sm:$0xf]
      %v4565 = vld [vmem:[%s4562 + $0x8] sm:$0xf]
      %v4566 = vld [vmem:[%s4562 + $0xc] sm:$0xf]
      %vm4567 = vsmask.f32 2304
      %v4569 = vshrl.u32 %v4354, 16
      %v4571 = vrot.slane %v4569, 5
      %v4572 = vshll.u32 %v4354, 16
      %v4574 = vrot.slane %v4572, 6
      %v4575 = vor.u32 %v4571, %v4574
      %v4577 = vshrl.u32 %v4355, 16
      %v4579 = vrot.slane %v4577, 5
      %v4580 = vshll.u32 %v4355, 16
      %v4582 = vrot.slane %v4580, 6
      %v4583 = vor.u32 %v4579, %v4582
      %v4584 = vsel %vm4567, %v4575, %v4583
      %v4586 = vshrl.u32 %v4356, 16
      %v4588 = vrot.slane %v4586, 5
      %v4589 = vshll.u32 %v4356, 16
      %v4591 = vrot.slane %v4589, 6
      %v4592 = vor.u32 %v4588, %v4591
      %v4593 = vsel %vm4567, %v4583, %v4592
      %v4595 = vshrl.u32 %v4357, 16
      %v4597 = vrot.slane %v4595, 5
      %v4598 = vshll.u32 %v4357, 16
      %v4600 = vrot.slane %v4598, 6
      %v4601 = vor.u32 %v4597, %v4600
      %v4602 = vsel %vm4567, %v4592, %v4601
      %v4604 = vshrl.u32 %v4358, 16
      %v4606 = vrot.slane %v4604, 5
      %v4607 = vshll.u32 %v4358, 16
      %v4609 = vrot.slane %v4607, 6
      %v4610 = vor.u32 %v4606, %v4609
      %v4611 = vsel %vm4567, %v4601, %v4610
      %v4613 = vshrl.u32 %v4359, 16
      %v4615 = vrot.slane %v4613, 5
      %v4616 = vshll.u32 %v4359, 16
      %v4618 = vrot.slane %v4616, 6
      %v4619 = vor.u32 %v4615, %v4618
      %v4620 = vsel %vm4567, %v4610, %v4619
      %v4622 = vshrl.u32 %v4360, 16
      %v4624 = vrot.slane %v4622, 5
      %v4625 = vshll.u32 %v4360, 16
      %v4627 = vrot.slane %v4625, 6
      %v4628 = vor.u32 %v4624, %v4627
      %v4629 = vsel %vm4567, %v4619, %v4628
      %v4631 = vshrl.u32 %v4361, 16
      %v4633 = vrot.slane %v4631, 5
      %v4634 = vshll.u32 %v4361, 16
      %v4636 = vrot.slane %v4634, 6
      %v4637 = vor.u32 %v4633, %v4636
      %v4638 = vsel %vm4567, %v4628, %v4637
      %v4640 = vshrl.u32 %v4362, 16
      %v4642 = vrot.slane %v4640, 5
      %v4643 = vshll.u32 %v4362, 16
      %v4645 = vrot.slane %v4643, 6
      %v4646 = vor.u32 %v4642, %v4645
      %v4647 = vsel %vm4567, %v4637, %v4646
      %v4649 = vshrl.u32 %v4561, 16
      %v4651 = vrot.slane %v4649, 5
      %v4652 = vshll.u32 %v4561, 16
      %v4654 = vrot.slane %v4652, 6
      %v4655 = vor.u32 %v4651, %v4654
      %v4656 = vsel %vm4567, %v4646, %v4655
      %v4661 = vunpack.c.l.b16 %v4563
      %v4662 = vunpack.c.l.b16 %v4564
      %v4663 = vunpack.c.l.b16 %v4565
      %v4664 = vunpack.c.l.b16 %v4566
      %v4665 = vpack.c.b16 %v4662, %v4661
      %v4666 = vpack.c.b16 %v4664, %v4663
      %v4670 = vsel %vm1532, %v4584, 0
      %v4673 = vsel %vm1532, %v4593, 0
      %v4676 = vsel %vm1532, %v4602, 0
      %v4679 = vsel %vm1532, %v4611, 0
      %v4682 = vsel %vm1532, %v4620, 0
      %v4685 = vsel %vm1532, %v4629, 0
      %v4688 = vsel %vm1532, %v4638, 0
      %v4691 = vsel %vm1532, %v4647, 0
      %v4694 = vsel %vm1532, %v4656, 0
      %4696 = vmatprep.subr.bf16.mxu0 0
      %4697 = vmatpush1.bf16.msra.mxu0 %v4665
      %4698 = vmatprep.subr.bf16.mxu0 0
      %4699 = vmatpush1.bf16.msra.mxu0 %v4666
      %4700 = vmatprep.subr.bf16.mxu0 0
      %4701 = vmatpush1.bf16.msra.mxu0 0
      %4702 = vmatprep.subr.bf16.mxu0 0
      %4703 = vmatpush1.bf16.msra.mxu0 0
      %4704 = vmatprep.subr.bf16.mxu0 0
      %4705 = vmatpush1.bf16.msra.mxu0 0
      %4706 = vmatprep.subr.bf16.mxu0 0
      %4707 = vmatpush1.bf16.msra.mxu0 0
      %4708 = vmatprep.subr.bf16.mxu0 0
      %4709 = vmatpush1.bf16.msra.mxu0 0
      %4710 = vmatprep.subr.bf16.mxu0 0
      %4711 = vmatpush1.bf16.msra.mxu0 0
      %4712 = vmatprep.subr.bf16.mxu0 0
      %4713 = vmatpush1.bf16.msra.mxu0 0
      %4714 = vmatprep.subr.bf16.mxu0 0
      %4715 = vmatpush1.bf16.msra.mxu0 0
      %4716 = vmatprep.subr.bf16.mxu0 0
      %4717 = vmatpush1.bf16.msra.mxu0 0
      %4718 = vmatprep.subr.bf16.mxu0 0
      %4719 = vmatpush1.bf16.msra.mxu0 0
      %4720 = vmatprep.subr.bf16.mxu0 0
      %4721 = vmatpush1.bf16.msra.mxu0 0
      %4722 = vmatprep.subr.bf16.mxu0 0
      %4723 = vmatpush1.bf16.msra.mxu0 0
      %4724 = vmatprep.subr.bf16.mxu0 0
      %4725 = vmatpush1.bf16.msra.mxu0 0
      %4726 = vmatprep.subr.bf16.mxu0 0
      %4727 = vmatpush1.bf16.msra.mxu0 0
      %4728 = vmatprep.mubr.bf16.mxu0 0
      %4729 = vmatmul.mubr.bf16.gmra.mrb[0].mxu0 %v4670
      %v4730 = vpop.f32.mrb[0].mxu0
      %v4731 = vadd.f32 0.0, %v4730
      %v4732 = vpop.f32.mrb[0].mxu0
      %v4733 = vpop.f32.mrb[0].mxu0
      %v4734 = vadd.f32 0.0, %v4733
      %v4735 = vpop.f32.mrb[0].mxu0
      %4736 = vmatprep.mubr.bf16.mxu0 0
      %4737 = vmatmul.mubr.bf16.gmra.mrb[0].mxu0 %v4673
      %v4738 = vpop.f32.mrb[0].mxu0
      %v4739 = vadd.f32 0.0, %v4738
      %v4740 = vpop.f32.mrb[0].mxu0
      %v4741 = vpop.f32.mrb[0].mxu0
      %v4742 = vadd.f32 0.0, %v4741
      %v4743 = vpop.f32.mrb[0].mxu0
      %4744 = vmatprep.mubr.bf16.mxu0 0
      %4745 = vmatmul.mubr.bf16.gmra.mrb[0].mxu0 %v4676
      %v4746 = vpop.f32.mrb[0].mxu0
      %v4747 = vadd.f32 0.0, %v4746
      %v4748 = vpop.f32.mrb[0].mxu0
      %v4749 = vpop.f32.mrb[0].mxu0
      %v4750 = vadd.f32 0.0, %v4749
      %v4751 = vpop.f32.mrb[0].mxu0
      %4752 = vmatprep.mubr.bf16.mxu0 0
      %4753 = vmatmul.mubr.bf16.gmra.mrb[0].mxu0 %v4679
      %v4754 = vpop.f32.mrb[0].mxu0
      %v4755 = vadd.f32 0.0, %v4754
      %v4756 = vpop.f32.mrb[0].mxu0
      %v4757 = vpop.f32.mrb[0].mxu0
      %v4758 = vadd.f32 0.0, %v4757
      %v4759 = vpop.f32.mrb[0].mxu0
      %4760 = vmatprep.mubr.bf16.mxu0 0
      %4761 = vmatmul.mubr.bf16.gmra.mrb[0].mxu0 %v4682
      %v4762 = vpop.f32.mrb[0].mxu0
      %v4763 = vadd.f32 0.0, %v4762
      %v4764 = vpop.f32.mrb[0].mxu0
      %v4765 = vpop.f32.mrb[0].mxu0
      %v4766 = vadd.f32 0.0, %v4765
      %v4767 = vpop.f32.mrb[0].mxu0
      %4768 = vmatprep.mubr.bf16.mxu0 0
      %4769 = vmatmul.mubr.bf16.gmra.mrb[0].mxu0 %v4685
      %v4770 = vpop.f32.mrb[0].mxu0
      %v4771 = vadd.f32 0.0, %v4770
      %v4772 = vpop.f32.mrb[0].mxu0
      %v4773 = vpop.f32.mrb[0].mxu0
      %v4774 = vadd.f32 0.0, %v4773
      %v4775 = vpop.f32.mrb[0].mxu0
      %4776 = vmatprep.mubr.bf16.mxu0 0
      %4777 = vmatmul.mubr.bf16.gmra.mrb[0].mxu0 %v4688
      %v4778 = vpop.f32.mrb[0].mxu0
      %v4779 = vadd.f32 0.0, %v4778
      %v4780 = vpop.f32.mrb[0].mxu0
      %v4781 = vpop.f32.mrb[0].mxu0
      %v4782 = vadd.f32 0.0, %v4781
      %v4783 = vpop.f32.mrb[0].mxu0
      %4784 = vmatprep.mubr.bf16.mxu0 0
      %4785 = vmatmul.mubr.bf16.gmra.mrb[0].mxu0 %v4691
      %v4786 = vpop.f32.mrb[0].mxu0
      %v4787 = vadd.f32 0.0, %v4786
      %v4788 = vpop.f32.mrb[0].mxu0
      %v4789 = vpop.f32.mrb[0].mxu0
      %v4790 = vadd.f32 0.0, %v4789
      %v4791 = vpop.f32.mrb[0].mxu0
      %4792 = vmatprep.mubr.bf16.mxu0 0
      %4793 = vmatmul.mubr.bf16.gmra.mrb[0].mxu0 %v4694
      %v4794 = vpop.f32.mrb[0].mxu0
      %v4795 = vadd.f32 0.0, %v4794
      %v4796 = vpop.f32.mrb[0].mxu0
      %v4797 = vpop.f32.mrb[0].mxu0
      %v4798 = vadd.f32 0.0, %v4797
      %v4799 = vpop.f32.mrb[0].mxu0
      %4800 = vdwg.mxu0
      %v4801 = vadd.f32 %v4543, %v4731
      %v4802 = vadd.f32 %v4544, %v4734
      %v4803 = vadd.f32 %v4545, %v4739
      %v4804 = vadd.f32 %v4546, %v4742
      %v4805 = vadd.f32 %v4547, %v4747
      %v4806 = vadd.f32 %v4548, %v4750
      %v4807 = vadd.f32 %v4549, %v4755
      %v4808 = vadd.f32 %v4550, %v4758
      %v4809 = vadd.f32 %v4551, %v4763
      %v4810 = vadd.f32 %v4552, %v4766
      %v4811 = vadd.f32 %v4553, %v4771
      %v4812 = vadd.f32 %v4554, %v4774
      %v4813 = vadd.f32 %v4555, %v4779
      %v4814 = vadd.f32 %v4556, %v4782
      %v4815 = vadd.f32 %v4557, %v4787
      %v4816 = vadd.f32 %v4558, %v4790
      %v4817 = vadd.f32 %v4559, %v4795
      %v4818 = vadd.f32 %v4560, %v4798
      %v4819 = vld [vmem:[#allocation2 + $0x10] sm:$0xc0]
      %s4820 = scalar_lea.vmem %s3, 272
      %v4821 = vld [vmem:[%s4820] sm:$0xf]
      %v4822 = vld [vmem:[%s4820 + $0x4] sm:$0xf]
      %v4823 = vld [vmem:[%s4820 + $0x8] sm:$0xf]
      %v4824 = vld [vmem:[%s4820 + $0xc] sm:$0xf]
      %v4827 = vrot.slane %v4819, 6
      %v4828 = vrot.slane %v4355, 6
      %v4829 = vsel %vm3403, %v4827, %v4828
      %v4830 = vrot.slane %v4356, 6
      %v4831 = vsel %vm3403, %v4828, %v4830
      %v4832 = vrot.slane %v4357, 6
      %v4833 = vsel %vm3403, %v4830, %v4832
      %v4834 = vrot.slane %v4358, 6
      %v4835 = vsel %vm3403, %v4832, %v4834
      %v4836 = vrot.slane %v4359, 6
      %v4837 = vsel %vm3403, %v4834, %v4836
      %v4838 = vrot.slane %v4360, 6
      %v4839 = vsel %vm3403, %v4836, %v4838
      %v4840 = vrot.slane %v4361, 6
      %v4841 = vsel %vm3403, %v4838, %v4840
      %v4842 = vrot.slane %v4362, 6
      %v4843 = vsel %vm3403, %v4840, %v4842
      %v4844 = vrot.slane %v4561, 6
      %v4845 = vsel %vm3403, %v4842, %v4844
      %v4850 = vunpack.c.l.b16 %v4821
      %v4851 = vunpack.c.l.b16 %v4822
      %v4852 = vunpack.c.l.b16 %v4823
      %v4853 = vunpack.c.l.b16 %v4824
      %v4854 = vpack.c.b16 %v4851, %v4850
      %v4855 = vpack.c.b16 %v4853, %v4852
      %v4859 = vsel %vm1532, %v4829, 0
      %v4862 = vsel %vm1532, %v4831, 0
      %v4865 = vsel %vm1532, %v4833, 0
      %v4868 = vsel %vm1532, %v4835, 0
      %v4871 = vsel %vm1532, %v4837, 0
      %v4874 = vsel %vm1532, %v4839, 0
      %v4877 = vsel %vm1532, %v4841, 0
      %v4880 = vsel %vm1532, %v4843, 0
      %v4883 = vsel %vm1532, %v4845, 0
      %4885 = vmatprep.subr.bf16.mxu0 0
      %4886 = vmatpush1.bf16.msra.mxu0 %v4854
      %4887 = vmatprep.subr.bf16.mxu0 0
      %4888 = vmatpush1.bf16.msra.mxu0 %v4855
      %4889 = vmatprep.subr.bf16.mxu0 0
      %4890 = vmatpush1.bf16.msra.mxu0 0
      %4891 = vmatprep.subr.bf16.mxu0 0
      %4892 = vmatpush1.bf16.msra.mxu0 0
      %4893 = vmatprep.subr.bf16.mxu0 0
      %4894 = vmatpush1.bf16.msra.mxu0 0
      %4895 = vmatprep.subr.bf16.mxu0 0
      %4896 = vmatpush1.bf16.msra.mxu0 0
      %4897 = vmatprep.subr.bf16.mxu0 0
      %4898 = vmatpush1.bf16.msra.mxu0 0
      %4899 = vmatprep.subr.bf16.mxu0 0
      %4900 = vmatpush1.bf16.msra.mxu0 0
      %4901 = vmatprep.subr.bf16.mxu0 0
      %4902 = vmatpush1.bf16.msra.mxu0 0
      %4903 = vmatprep.subr.bf16.mxu0 0
      %4904 = vmatpush1.bf16.msra.mxu0 0
      %4905 = vmatprep.subr.bf16.mxu0 0
      %4906 = vmatpush1.bf16.msra.mxu0 0
      %4907 = vmatprep.subr.bf16.mxu0 0
      %4908 = vmatpush1.bf16.msra.mxu0 0
      %4909 = vmatprep.subr.bf16.mxu0 0
      %4910 = vmatpush1.bf16.msra.mxu0 0
      %4911 = vmatprep.subr.bf16.mxu0 0
      %4912 = vmatpush1.bf16.msra.mxu0 0
      %4913 = vmatprep.subr.bf16.mxu0 0
      %4914 = vmatpush1.bf16.msra.mxu0 0
      %4915 = vmatprep.subr.bf16.mxu0 0
      %4916 = vmatpush1.bf16.msra.mxu0 0
      %4917 = vmatprep.mubr.bf16.mxu0 0
      %4918 = vmatmul.mubr.bf16.gmra.mrb[0].mxu0 %v4859
      %v4919 = vpop.f32.mrb[0].mxu0
      %v4920 = vadd.f32 0.0, %v4919
      %v4921 = vpop.f32.mrb[0].mxu0
      %v4922 = vpop.f32.mrb[0].mxu0
      %v4923 = vadd.f32 0.0, %v4922
      %v4924 = vpop.f32.mrb[0].mxu0
      %4925 = vmatprep.mubr.bf16.mxu0 0
      %4926 = vmatmul.mubr.bf16.gmra.mrb[0].mxu0 %v4862
      %v4927 = vpop.f32.mrb[0].mxu0
      %v4928 = vadd.f32 0.0, %v4927
      %v4929 = vpop.f32.mrb[0].mxu0
      %v4930 = vpop.f32.mrb[0].mxu0
      %v4931 = vadd.f32 0.0, %v4930
      %v4932 = vpop.f32.mrb[0].mxu0
      %4933 = vmatprep.mubr.bf16.mxu0 0
      %4934 = vmatmul.mubr.bf16.gmra.mrb[0].mxu0 %v4865
      %v4935 = vpop.f32.mrb[0].mxu0
      %v4936 = vadd.f32 0.0, %v4935
      %v4937 = vpop.f32.mrb[0].mxu0
      %v4938 = vpop.f32.mrb[0].mxu0
      %v4939 = vadd.f32 0.0, %v4938
      %v4940 = vpop.f32.mrb[0].mxu0
      %4941 = vmatprep.mubr.bf16.mxu0 0
      %4942 = vmatmul.mubr.bf16.gmra.mrb[0].mxu0 %v4868
      %v4943 = vpop.f32.mrb[0].mxu0
      %v4944 = vadd.f32 0.0, %v4943
      %v4945 = vpop.f32.mrb[0].mxu0
      %v4946 = vpop.f32.mrb[0].mxu0
      %v4947 = vadd.f32 0.0, %v4946
      %v4948 = vpop.f32.mrb[0].mxu0
      %4949 = vmatprep.mubr.bf16.mxu0 0
      %4950 = vmatmul.mubr.bf16.gmra.mrb[0].mxu0 %v4871
      %v4951 = vpop.f32.mrb[0].mxu0
      %v4952 = vadd.f32 0.0, %v4951
      %v4953 = vpop.f32.mrb[0].mxu0
      %v4954 = vpop.f32.mrb[0].mxu0
      %v4955 = vadd.f32 0.0, %v4954
      %v4956 = vpop.f32.mrb[0].mxu0
      %4957 = vmatprep.mubr.bf16.mxu0 0
      %4958 = vmatmul.mubr.bf16.gmra.mrb[0].mxu0 %v4874
      %v4959 = vpop.f32.mrb[0].mxu0
      %v4960 = vadd.f32 0.0, %v4959
      %v4961 = vpop.f32.mrb[0].mxu0
      %v4962 = vpop.f32.mrb[0].mxu0
      %v4963 = vadd.f32 0.0, %v4962
      %v4964 = vpop.f32.mrb[0].mxu0
      %4965 = vmatprep.mubr.bf16.mxu0 0
      %4966 = vmatmul.mubr.bf16.gmra.mrb[0].mxu0 %v4877
      %v4967 = vpop.f32.mrb[0].mxu0
      %v4968 = vadd.f32 0.0, %v4967
      %v4969 = vpop.f32.mrb[0].mxu0
      %v4970 = vpop.f32.mrb[0].mxu0
      %v4971 = vadd.f32 0.0, %v4970
      %v4972 = vpop.f32.mrb[0].mxu0
      %4973 = vmatprep.mubr.bf16.mxu0 0
      %4974 = vmatmul.mubr.bf16.gmra.mrb[0].mxu0 %v4880
      %v4975 = vpop.f32.mrb[0].mxu0
      %v4976 = vadd.f32 0.0, %v4975
      %v4977 = vpop.f32.mrb[0].mxu0
      %v4978 = vpop.f32.mrb[0].mxu0
      %v4979 = vadd.f32 0.0, %v4978
      %v4980 = vpop.f32.mrb[0].mxu0
      %4981 = vmatprep.mubr.bf16.mxu0 0
      %4982 = vmatmul.mubr.bf16.gmra.mrb[0].mxu0 %v4883
      %v4983 = vpop.f32.mrb[0].mxu0
      %v4984 = vadd.f32 0.0, %v4983
      %v4985 = vpop.f32.mrb[0].mxu0
      %v4986 = vpop.f32.mrb[0].mxu0
      %v4987 = vadd.f32 0.0, %v4986
      %v4988 = vpop.f32.mrb[0].mxu0
      %4989 = vdwg.mxu0
      %v4990 = vadd.f32 %v4801, %v4920
      %v4991 = vadd.f32 %v4802, %v4923
      %v4992 = vadd.f32 %v4803, %v4928
      %v4993 = vadd.f32 %v4804, %v4931
      %v4994 = vadd.f32 %v4805, %v4936
      %v4995 = vadd.f32 %v4806, %v4939
      %v4996 = vadd.f32 %v4807, %v4944
      %v4997 = vadd.f32 %v4808, %v4947
      %v4998 = vadd.f32 %v4809, %v4952
      %v4999 = vadd.f32 %v4810, %v4955
      %v5000 = vadd.f32 %v4811, %v4960
      %v5001 = vadd.f32 %v4812, %v4963
      %v5002 = vadd.f32 %v4813, %v4968
      %v5003 = vadd.f32 %v4814, %v4971
      %v5004 = vadd.f32 %v4815, %v4976
      %v5005 = vadd.f32 %v4816, %v4979
      %v5006 = vadd.f32 %v4817, %v4984
      %v5007 = vadd.f32 %v4818, %v4987
      %v5008 = vld [vmem:[#allocation2 + $0x58] sm:$0x7f]
      %s5009 = scalar_lea.vmem %s3, 288
      %v5010 = vld [vmem:[%s5009] sm:$0xf]
      %v5011 = vld [vmem:[%s5009 + $0x4] sm:$0xf]
      %v5012 = vld [vmem:[%s5009 + $0x8] sm:$0xf]
      %v5013 = vld [vmem:[%s5009 + $0xc] sm:$0xf]
      %v5015 = vshrl.u32 %v4819, 16
      %v5017 = vrot.slane %v5015, 6
      %v5018 = vshll.u32 %v4819, 16
      %v5020 = vrot.slane %v5018, 7
      %v5021 = vor.u32 %v5017, %v5020
      %v5022 = vrot.slane %v4577, 6
      %v5023 = vrot.slane %v4580, 7
      %v5024 = vor.u32 %v5022, %v5023
      %v5025 = vsel %vm3591, %v5021, %v5024
      %v5026 = vrot.slane %v4586, 6
      %v5027 = vrot.slane %v4589, 7
      %v5028 = vor.u32 %v5026, %v5027
      %v5029 = vsel %vm3591, %v5024, %v5028
      %v5030 = vrot.slane %v4595, 6
      %v5031 = vrot.slane %v4598, 7
      %v5032 = vor.u32 %v5030, %v5031
      %v5033 = vsel %vm3591, %v5028, %v5032
      %v5034 = vrot.slane %v4604, 6
      %v5035 = vrot.slane %v4607, 7
      %v5036 = vor.u32 %v5034, %v5035
      %v5037 = vsel %vm3591, %v5032, %v5036
      %v5038 = vrot.slane %v4613, 6
      %v5039 = vrot.slane %v4616, 7
      %v5040 = vor.u32 %v5038, %v5039
      %v5041 = vsel %vm3591, %v5036, %v5040
      %v5042 = vrot.slane %v4622, 6
      %v5043 = vrot.slane %v4625, 7
      %v5044 = vor.u32 %v5042, %v5043
      %v5045 = vsel %vm3591, %v5040, %v5044
      %v5046 = vrot.slane %v4631, 6
      %v5047 = vrot.slane %v4634, 7
      %v5048 = vor.u32 %v5046, %v5047
      %v5049 = vsel %vm3591, %v5044, %v5048
      %v5050 = vrot.slane %v4640, 6
      %v5051 = vrot.slane %v4643, 7
      %v5052 = vor.u32 %v5050, %v5051
      %v5053 = vsel %vm3591, %v5048, %v5052
      %v5055 = vshrl.u32 %v5008, 16
      %v5057 = vrot.slane %v5055, 6
      %v5058 = vshll.u32 %v5008, 16
      %v5060 = vrot.slane %v5058, 7
      %v5061 = vor.u32 %v5057, %v5060
      %v5062 = vsel %vm3591, %v5052, %v5061
      %v5067 = vunpack.c.l.b16 %v5010
      %v5068 = vunpack.c.l.b16 %v5011
      %v5069 = vunpack.c.l.b16 %v5012
      %v5070 = vunpack.c.l.b16 %v5013
      %v5071 = vpack.c.b16 %v5068, %v5067
      %v5072 = vpack.c.b16 %v5070, %v5069
      %v5076 = vsel %vm1532, %v5025, 0
      %v5079 = vsel %vm1532, %v5029, 0
      %v5082 = vsel %vm1532, %v5033, 0
      %v5085 = vsel %vm1532, %v5037, 0
      %v5088 = vsel %vm1532, %v5041, 0
      %v5091 = vsel %vm1532, %v5045, 0
      %v5094 = vsel %vm1532, %v5049, 0
      %v5097 = vsel %vm1532, %v5053, 0
      %v5100 = vsel %vm1532, %v5062, 0
      %5102 = vmatprep.subr.bf16.mxu0 0
      %5103 = vmatpush1.bf16.msra.mxu0 %v5071
      %5104 = vmatprep.subr.bf16.mxu0 0
      %5105 = vmatpush1.bf16.msra.mxu0 %v5072
      %5106 = vmatprep.subr.bf16.mxu0 0
      %5107 = vmatpush1.bf16.msra.mxu0 0
      %5108 = vmatprep.subr.bf16.mxu0 0
      %5109 = vmatpush1.bf16.msra.mxu0 0
      %5110 = vmatprep.subr.bf16.mxu0 0
      %5111 = vmatpush1.bf16.msra.mxu0 0
      %5112 = vmatprep.subr.bf16.mxu0 0
      %5113 = vmatpush1.bf16.msra.mxu0 0
      %5114 = vmatprep.subr.bf16.mxu0 0
      %5115 = vmatpush1.bf16.msra.mxu0 0
      %5116 = vmatprep.subr.bf16.mxu0 0
      %5117 = vmatpush1.bf16.msra.mxu0 0
      %5118 = vmatprep.subr.bf16.mxu0 0
      %5119 = vmatpush1.bf16.msra.mxu0 0
      %5120 = vmatprep.subr.bf16.mxu0 0
      %5121 = vmatpush1.bf16.msra.mxu0 0
      %5122 = vmatprep.subr.bf16.mxu0 0
      %5123 = vmatpush1.bf16.msra.mxu0 0
      %5124 = vmatprep.subr.bf16.mxu0 0
      %5125 = vmatpush1.bf16.msra.mxu0 0
      %5126 = vmatprep.subr.bf16.mxu0 0
      %5127 = vmatpush1.bf16.msra.mxu0 0
      %5128 = vmatprep.subr.bf16.mxu0 0
      %5129 = vmatpush1.bf16.msra.mxu0 0
      %5130 = vmatprep.subr.bf16.mxu0 0
      %5131 = vmatpush1.bf16.msra.mxu0 0
      %5132 = vmatprep.subr.bf16.mxu0 0
      %5133 = vmatpush1.bf16.msra.mxu0 0
      %5134 = vmatprep.mubr.bf16.mxu0 0
      %5135 = vmatmul.mubr.bf16.gmra.mrb[0].mxu0 %v5076
      %v5136 = vpop.f32.mrb[0].mxu0
      %v5137 = vadd.f32 0.0, %v5136
      %v5138 = vpop.f32.mrb[0].mxu0
      %v5139 = vpop.f32.mrb[0].mxu0
      %v5140 = vadd.f32 0.0, %v5139
      %v5141 = vpop.f32.mrb[0].mxu0
      %5142 = vmatprep.mubr.bf16.mxu0 0
      %5143 = vmatmul.mubr.bf16.gmra.mrb[0].mxu0 %v5079
      %v5144 = vpop.f32.mrb[0].mxu0
      %v5145 = vadd.f32 0.0, %v5144
      %v5146 = vpop.f32.mrb[0].mxu0
      %v5147 = vpop.f32.mrb[0].mxu0
      %v5148 = vadd.f32 0.0, %v5147
      %v5149 = vpop.f32.mrb[0].mxu0
      %5150 = vmatprep.mubr.bf16.mxu0 0
      %5151 = vmatmul.mubr.bf16.gmra.mrb[0].mxu0 %v5082
      %v5152 = vpop.f32.mrb[0].mxu0
      %v5153 = vadd.f32 0.0, %v5152
      %v5154 = vpop.f32.mrb[0].mxu0
      %v5155 = vpop.f32.mrb[0].mxu0
      %v5156 = vadd.f32 0.0, %v5155
      %v5157 = vpop.f32.mrb[0].mxu0
      %5158 = vmatprep.mubr.bf16.mxu0 0
      %5159 = vmatmul.mubr.bf16.gmra.mrb[0].mxu0 %v5085
      %v5160 = vpop.f32.mrb[0].mxu0
      %v5161 = vadd.f32 0.0, %v5160
      %v5162 = vpop.f32.mrb[0].mxu0
      %v5163 = vpop.f32.mrb[0].mxu0
      %v5164 = vadd.f32 0.0, %v5163
      %v5165 = vpop.f32.mrb[0].mxu0
      %5166 = vmatprep.mubr.bf16.mxu0 0
      %5167 = vmatmul.mubr.bf16.gmra.mrb[0].mxu0 %v5088
      %v5168 = vpop.f32.mrb[0].mxu0
      %v5169 = vadd.f32 0.0, %v5168
      %v5170 = vpop.f32.mrb[0].mxu0
      %v5171 = vpop.f32.mrb[0].mxu0
      %v5172 = vadd.f32 0.0, %v5171
      %v5173 = vpop.f32.mrb[0].mxu0
      %5174 = vmatprep.mubr.bf16.mxu0 0
      %5175 = vmatmul.mubr.bf16.gmra.mrb[0].mxu0 %v5091
      %v5176 = vpop.f32.mrb[0].mxu0
      %v5177 = vadd.f32 0.0, %v5176
      %v5178 = vpop.f32.mrb[0].mxu0
      %v5179 = vpop.f32.mrb[0].mxu0
      %v5180 = vadd.f32 0.0, %v5179
      %v5181 = vpop.f32.mrb[0].mxu0
      %5182 = vmatprep.mubr.bf16.mxu0 0
      %5183 = vmatmul.mubr.bf16.gmra.mrb[0].mxu0 %v5094
      %v5184 = vpop.f32.mrb[0].mxu0
      %v5185 = vadd.f32 0.0, %v5184
      %v5186 = vpop.f32.mrb[0].mxu0
      %v5187 = vpop.f32.mrb[0].mxu0
      %v5188 = vadd.f32 0.0, %v5187
      %v5189 = vpop.f32.mrb[0].mxu0
      %5190 = vmatprep.mubr.bf16.mxu0 0
      %5191 = vmatmul.mubr.bf16.gmra.mrb[0].mxu0 %v5097
      %v5192 = vpop.f32.mrb[0].mxu0
      %v5193 = vadd.f32 0.0, %v5192
      %v5194 = vpop.f32.mrb[0].mxu0
      %v5195 = vpop.f32.mrb[0].mxu0
      %v5196 = vadd.f32 0.0, %v5195
      %v5197 = vpop.f32.mrb[0].mxu0
      %5198 = vmatprep.mubr.bf16.mxu0 0
      %5199 = vmatmul.mubr.bf16.gmra.mrb[0].mxu0 %v5100
      %v5200 = vpop.f32.mrb[0].mxu0
      %v5201 = vadd.f32 0.0, %v5200
      %v5202 = vpop.f32.mrb[0].mxu0
      %v5203 = vpop.f32.mrb[0].mxu0
      %v5204 = vadd.f32 0.0, %v5203
      %v5205 = vpop.f32.mrb[0].mxu0
      %5206 = vdwg.mxu0
      %v5207 = vadd.f32 %v4990, %v5137
      %v5208 = vadd.f32 %v4991, %v5140
      %v5209 = vadd.f32 %v4992, %v5145
      %v5210 = vadd.f32 %v4993, %v5148
      %v5211 = vadd.f32 %v4994, %v5153
      %v5212 = vadd.f32 %v4995, %v5156
      %v5213 = vadd.f32 %v4996, %v5161
      %v5214 = vadd.f32 %v4997, %v5164
      %v5215 = vadd.f32 %v4998, %v5169
      %v5216 = vadd.f32 %v4999, %v5172
      %v5217 = vadd.f32 %v5000, %v5177
      %v5218 = vadd.f32 %v5001, %v5180
      %v5219 = vadd.f32 %v5002, %v5185
      %v5220 = vadd.f32 %v5003, %v5188
      %v5221 = vadd.f32 %v5004, %v5193
      %v5222 = vadd.f32 %v5005, %v5196
      %v5223 = vadd.f32 %v5006, %v5201
      %v5224 = vadd.f32 %v5007, %v5204
      %v5225 = vld [vmem:[#allocation2 + $0x10] sm:$0x80]
      %s5226 = scalar_lea.vmem %s3, 304
      %v5227 = vld [vmem:[%s5226] sm:$0xf]
      %v5228 = vld [vmem:[%s5226 + $0x4] sm:$0xf]
      %v5229 = vld [vmem:[%s5226 + $0x8] sm:$0xf]
      %v5230 = vld [vmem:[%s5226 + $0xc] sm:$0xf]
      %v5233 = vrot.slane %v5225, 7
      %v5234 = vrot.slane %v4355, 7
      %v5235 = vsel %vm2415, %v5233, %v5234
      %v5236 = vrot.slane %v4356, 7
      %v5237 = vsel %vm2415, %v5234, %v5236
      %v5238 = vrot.slane %v4357, 7
      %v5239 = vsel %vm2415, %v5236, %v5238
      %v5240 = vrot.slane %v4358, 7
      %v5241 = vsel %vm2415, %v5238, %v5240
      %v5242 = vrot.slane %v4359, 7
      %v5243 = vsel %vm2415, %v5240, %v5242
      %v5244 = vrot.slane %v4360, 7
      %v5245 = vsel %vm2415, %v5242, %v5244
      %v5246 = vrot.slane %v4361, 7
      %v5247 = vsel %vm2415, %v5244, %v5246
      %v5248 = vrot.slane %v4362, 7
      %v5249 = vsel %vm2415, %v5246, %v5248
      %v5250 = vrot.slane %v5008, 7
      %v5251 = vsel %vm2415, %v5248, %v5250
      %v5256 = vunpack.c.l.b16 %v5227
      %v5257 = vunpack.c.l.b16 %v5228
      %v5258 = vunpack.c.l.b16 %v5229
      %v5259 = vunpack.c.l.b16 %v5230
      %v5260 = vpack.c.b16 %v5257, %v5256
      %v5261 = vpack.c.b16 %v5259, %v5258
      %v5265 = vsel %vm1532, %v5235, 0
      %v5268 = vsel %vm1532, %v5237, 0
      %v5271 = vsel %vm1532, %v5239, 0
      %v5274 = vsel %vm1532, %v5241, 0
      %v5277 = vsel %vm1532, %v5243, 0
      %v5280 = vsel %vm1532, %v5245, 0
      %v5283 = vsel %vm1532, %v5247, 0
      %v5286 = vsel %vm1532, %v5249, 0
      %v5289 = vsel %vm1532, %v5251, 0
      %5291 = vmatprep.subr.bf16.mxu0 0
      %5292 = vmatpush1.bf16.msra.mxu0 %v5260
      %5293 = vmatprep.subr.bf16.mxu0 0
      %5294 = vmatpush1.bf16.msra.mxu0 %v5261
      %5295 = vmatprep.subr.bf16.mxu0 0
      %5296 = vmatpush1.bf16.msra.mxu0 0
      %5297 = vmatprep.subr.bf16.mxu0 0
      %5298 = vmatpush1.bf16.msra.mxu0 0
      %5299 = vmatprep.subr.bf16.mxu0 0
      %5300 = vmatpush1.bf16.msra.mxu0 0
      %5301 = vmatprep.subr.bf16.mxu0 0
      %5302 = vmatpush1.bf16.msra.mxu0 0
      %5303 = vmatprep.subr.bf16.mxu0 0
      %5304 = vmatpush1.bf16.msra.mxu0 0
      %5305 = vmatprep.subr.bf16.mxu0 0
      %5306 = vmatpush1.bf16.msra.mxu0 0
      %5307 = vmatprep.subr.bf16.mxu0 0
      %5308 = vmatpush1.bf16.msra.mxu0 0
      %5309 = vmatprep.subr.bf16.mxu0 0
      %5310 = vmatpush1.bf16.msra.mxu0 0
      %5311 = vmatprep.subr.bf16.mxu0 0
      %5312 = vmatpush1.bf16.msra.mxu0 0
      %5313 = vmatprep.subr.bf16.mxu0 0
      %5314 = vmatpush1.bf16.msra.mxu0 0
      %5315 = vmatprep.subr.bf16.mxu0 0
      %5316 = vmatpush1.bf16.msra.mxu0 0
      %5317 = vmatprep.subr.bf16.mxu0 0
      %5318 = vmatpush1.bf16.msra.mxu0 0
      %5319 = vmatprep.subr.bf16.mxu0 0
      %5320 = vmatpush1.bf16.msra.mxu0 0
      %5321 = vmatprep.subr.bf16.mxu0 0
      %5322 = vmatpush1.bf16.msra.mxu0 0
      %5323 = vmatprep.mubr.bf16.mxu0 0
      %5324 = vmatmul.mubr.bf16.gmra.mrb[0].mxu0 %v5265
      %v5325 = vpop.f32.mrb[0].mxu0
      %v5326 = vadd.f32 0.0, %v5325
      %v5327 = vpop.f32.mrb[0].mxu0
      %v5328 = vpop.f32.mrb[0].mxu0
      %v5329 = vadd.f32 0.0, %v5328
      %v5330 = vpop.f32.mrb[0].mxu0
      %5331 = vmatprep.mubr.bf16.mxu0 0
      %5332 = vmatmul.mubr.bf16.gmra.mrb[0].mxu0 %v5268
      %v5333 = vpop.f32.mrb[0].mxu0
      %v5334 = vadd.f32 0.0, %v5333
      %v5335 = vpop.f32.mrb[0].mxu0
      %v5336 = vpop.f32.mrb[0].mxu0
      %v5337 = vadd.f32 0.0, %v5336
      %v5338 = vpop.f32.mrb[0].mxu0
      %5339 = vmatprep.mubr.bf16.mxu0 0
      %5340 = vmatmul.mubr.bf16.gmra.mrb[0].mxu0 %v5271
      %v5341 = vpop.f32.mrb[0].mxu0
      %v5342 = vadd.f32 0.0, %v5341
      %v5343 = vpop.f32.mrb[0].mxu0
      %v5344 = vpop.f32.mrb[0].mxu0
      %v5345 = vadd.f32 0.0, %v5344
      %v5346 = vpop.f32.mrb[0].mxu0
      %5347 = vmatprep.mubr.bf16.mxu0 0
      %5348 = vmatmul.mubr.bf16.gmra.mrb[0].mxu0 %v5274
      %v5349 = vpop.f32.mrb[0].mxu0
      %v5350 = vadd.f32 0.0, %v5349
      %v5351 = vpop.f32.mrb[0].mxu0
      %v5352 = vpop.f32.mrb[0].mxu0
      %v5353 = vadd.f32 0.0, %v5352
      %v5354 = vpop.f32.mrb[0].mxu0
      %5355 = vmatprep.mubr.bf16.mxu0 0
      %5356 = vmatmul.mubr.bf16.gmra.mrb[0].mxu0 %v5277
      %v5357 = vpop.f32.mrb[0].mxu0
      %v5358 = vadd.f32 0.0, %v5357
      %v5359 = vpop.f32.mrb[0].mxu0
      %v5360 = vpop.f32.mrb[0].mxu0
      %v5361 = vadd.f32 0.0, %v5360
      %v5362 = vpop.f32.mrb[0].mxu0
      %5363 = vmatprep.mubr.bf16.mxu0 0
      %5364 = vmatmul.mubr.bf16.gmra.mrb[0].mxu0 %v5280
      %v5365 = vpop.f32.mrb[0].mxu0
      %v5366 = vadd.f32 0.0, %v5365
      %v5367 = vpop.f32.mrb[0].mxu0
      %v5368 = vpop.f32.mrb[0].mxu0
      %v5369 = vadd.f32 0.0, %v5368
      %v5370 = vpop.f32.mrb[0].mxu0
      %5371 = vmatprep.mubr.bf16.mxu0 0
      %5372 = vmatmul.mubr.bf16.gmra.mrb[0].mxu0 %v5283
      %v5373 = vpop.f32.mrb[0].mxu0
      %v5374 = vadd.f32 0.0, %v5373
      %v5375 = vpop.f32.mrb[0].mxu0
      %v5376 = vpop.f32.mrb[0].mxu0
      %v5377 = vadd.f32 0.0, %v5376
      %v5378 = vpop.f32.mrb[0].mxu0
      %5379 = vmatprep.mubr.bf16.mxu0 0
      %5380 = vmatmul.mubr.bf16.gmra.mrb[0].mxu0 %v5286
      %v5381 = vpop.f32.mrb[0].mxu0
      %v5382 = vadd.f32 0.0, %v5381
      %v5383 = vpop.f32.mrb[0].mxu0
      %v5384 = vpop.f32.mrb[0].mxu0
      %v5385 = vadd.f32 0.0, %v5384
      %v5386 = vpop.f32.mrb[0].mxu0
      %5387 = vmatprep.mubr.bf16.mxu0 0
      %5388 = vmatmul.mubr.bf16.gmra.mrb[0].mxu0 %v5289
      %v5389 = vpop.f32.mrb[0].mxu0
      %v5390 = vadd.f32 0.0, %v5389
      %v5391 = vpop.f32.mrb[0].mxu0
      %v5392 = vpop.f32.mrb[0].mxu0
      %v5393 = vadd.f32 0.0, %v5392
      %v5394 = vpop.f32.mrb[0].mxu0
      %5395 = vdwg.mxu0
      %v5396 = vadd.f32 %v5207, %v5326
      %v5397 = vadd.f32 %v5208, %v5329
      %v5398 = vadd.f32 %v5209, %v5334
      %v5399 = vadd.f32 %v5210, %v5337
      %v5400 = vadd.f32 %v5211, %v5342
      %v5401 = vadd.f32 %v5212, %v5345
      %v5402 = vadd.f32 %v5213, %v5350
      %v5403 = vadd.f32 %v5214, %v5353
      %v5404 = vadd.f32 %v5215, %v5358
      %v5405 = vadd.f32 %v5216, %v5361
      %v5406 = vadd.f32 %v5217, %v5366
      %v5407 = vadd.f32 %v5218, %v5369
      %v5408 = vadd.f32 %v5219, %v5374
      %v5409 = vadd.f32 %v5220, %v5377
      %v5410 = vadd.f32 %v5221, %v5382
      %v5411 = vadd.f32 %v5222, %v5385
      %v5412 = vadd.f32 %v5223, %v5390
      %v5413 = vadd.f32 %v5224, %v5393
      %v5414 = vld [vmem:[#allocation2 + $0x18] sm:$0xf0]
      %v5415 = vld [vmem:[#allocation2 + $0x20] sm:$0xff]
      %v5416 = vld [vmem:[#allocation2 + $0x28] sm:$0xff]
      %v5417 = vld [vmem:[#allocation2 + $0x30] sm:$0xff]
      %v5418 = vld [vmem:[#allocation2 + $0x38] sm:$0xff]
      %v5419 = vld [vmem:[#allocation2 + $0x40] sm:$0xff]
      %v5420 = vld [vmem:[#allocation2 + $0x48] sm:$0xff]
      %v5421 = vld [vmem:[#allocation2 + $0x50] sm:$0xff]
      %v5422 = vld [vmem:[#allocation2 + $0x58] sm:$0xff]
      %v5423 = vld [vmem:[#allocation2 + $0x60] sm:$0xf]
      %s5424 = scalar_lea.vmem %s3, 320
      %v5425 = vld [vmem:[%s5424] sm:$0xf]
      %v5426 = vld [vmem:[%s5424 + $0x4] sm:$0xf]
      %v5427 = vld [vmem:[%s5424 + $0x8] sm:$0xf]
      %v5428 = vld [vmem:[%s5424 + $0xc] sm:$0xf]
      %vm5439 = vcmask 1043456
      %v5440 = vrot.slane %v5414, 4
      %v5441 = vrot.slane %v5415, 4
      %v5442 = vsel %vm5439, %v5440, %v5441
      %v5443 = vrot.slane %v5416, 4
      %v5444 = vsel %vm5439, %v5441, %v5443
      %v5445 = vrot.slane %v5417, 4
      %v5446 = vsel %vm5439, %v5443, %v5445
      %v5447 = vrot.slane %v5418, 4
      %v5448 = vsel %vm5439, %v5445, %v5447
      %v5449 = vrot.slane %v5419, 4
      %v5450 = vsel %vm5439, %v5447, %v5449
      %v5451 = vrot.slane %v5420, 4
      %v5452 = vsel %vm5439, %v5449, %v5451
      %v5453 = vrot.slane %v5421, 4
      %v5454 = vsel %vm5439, %v5451, %v5453
      %v5455 = vrot.slane %v5422, 4
      %v5456 = vsel %vm5439, %v5453, %v5455
      %v5457 = vrot.slane %v5423, 4
      %v5458 = vsel %vm5439, %v5455, %v5457
      %v5463 = vunpack.c.l.b16 %v5425
      %v5464 = vunpack.c.l.b16 %v5426
      %v5465 = vunpack.c.l.b16 %v5427
      %v5466 = vunpack.c.l.b16 %v5428
      %v5467 = vpack.c.b16 %v5464, %v5463
      %v5468 = vpack.c.b16 %v5466, %v5465
      %v5472 = vsel %vm1532, %v5442, 0
      %v5475 = vsel %vm1532, %v5444, 0
      %v5478 = vsel %vm1532, %v5446, 0
      %v5481 = vsel %vm1532, %v5448, 0
      %v5484 = vsel %vm1532, %v5450, 0
      %v5487 = vsel %vm1532, %v5452, 0
      %v5490 = vsel %vm1532, %v5454, 0
      %v5493 = vsel %vm1532, %v5456, 0
      %v5496 = vsel %vm1532, %v5458, 0
      %5498 = vmatprep.subr.bf16.mxu0 0
      %5499 = vmatpush1.bf16.msra.mxu0 %v5467
      %5500 = vmatprep.subr.bf16.mxu0 0
      %5501 = vmatpush1.bf16.msra.mxu0 %v5468
      %5502 = vmatprep.subr.bf16.mxu0 0
      %5503 = vmatpush1.bf16.msra.mxu0 0
      %5504 = vmatprep.subr.bf16.mxu0 0
      %5505 = vmatpush1.bf16.msra.mxu0 0
      %5506 = vmatprep.subr.bf16.mxu0 0
      %5507 = vmatpush1.bf16.msra.mxu0 0
      %5508 = vmatprep.subr.bf16.mxu0 0
      %5509 = vmatpush1.bf16.msra.mxu0 0
      %5510 = vmatprep.subr.bf16.mxu0 0
      %5511 = vmatpush1.bf16.msra.mxu0 0
      %5512 = vmatprep.subr.bf16.mxu0 0
      %5513 = vmatpush1.bf16.msra.mxu0 0
      %5514 = vmatprep.subr.bf16.mxu0 0
      %5515 = vmatpush1.bf16.msra.mxu0 0
      %5516 = vmatprep.subr.bf16.mxu0 0
      %5517 = vmatpush1.bf16.msra.mxu0 0
      %5518 = vmatprep.subr.bf16.mxu0 0
      %5519 = vmatpush1.bf16.msra.mxu0 0
      %5520 = vmatprep.subr.bf16.mxu0 0
      %5521 = vmatpush1.bf16.msra.mxu0 0
      %5522 = vmatprep.subr.bf16.mxu0 0
      %5523 = vmatpush1.bf16.msra.mxu0 0
      %5524 = vmatprep.subr.bf16.mxu0 0
      %5525 = vmatpush1.bf16.msra.mxu0 0
      %5526 = vmatprep.subr.bf16.mxu0 0
      %5527 = vmatpush1.bf16.msra.mxu0 0
      %5528 = vmatprep.subr.bf16.mxu0 0
      %5529 = vmatpush1.bf16.msra.mxu0 0
      %5530 = vmatprep.mubr.bf16.mxu0 0
      %5531 = vmatmul.mubr.bf16.gmra.mrb[0].mxu0 %v5472
      %v5532 = vpop.f32.mrb[0].mxu0
      %v5533 = vadd.f32 0.0, %v5532
      %v5534 = vpop.f32.mrb[0].mxu0
      %v5535 = vpop.f32.mrb[0].mxu0
      %v5536 = vadd.f32 0.0, %v5535
      %v5537 = vpop.f32.mrb[0].mxu0
      %5538 = vmatprep.mubr.bf16.mxu0 0
      %5539 = vmatmul.mubr.bf16.gmra.mrb[0].mxu0 %v5475
      %v5540 = vpop.f32.mrb[0].mxu0
      %v5541 = vadd.f32 0.0, %v5540
      %v5542 = vpop.f32.mrb[0].mxu0
      %v5543 = vpop.f32.mrb[0].mxu0
      %v5544 = vadd.f32 0.0, %v5543
      %v5545 = vpop.f32.mrb[0].mxu0
      %5546 = vmatprep.mubr.bf16.mxu0 0
      %5547 = vmatmul.mubr.bf16.gmra.mrb[0].mxu0 %v5478
      %v5548 = vpop.f32.mrb[0].mxu0
      %v5549 = vadd.f32 0.0, %v5548
      %v5550 = vpop.f32.mrb[0].mxu0
      %v5551 = vpop.f32.mrb[0].mxu0
      %v5552 = vadd.f32 0.0, %v5551
      %v5553 = vpop.f32.mrb[0].mxu0
      %5554 = vmatprep.mubr.bf16.mxu0 0
      %5555 = vmatmul.mubr.bf16.gmra.mrb[0].mxu0 %v5481
      %v5556 = vpop.f32.mrb[0].mxu0
      %v5557 = vadd.f32 0.0, %v5556
      %v5558 = vpop.f32.mrb[0].mxu0
      %v5559 = vpop.f32.mrb[0].mxu0
      %v5560 = vadd.f32 0.0, %v5559
      %v5561 = vpop.f32.mrb[0].mxu0
      %5562 = vmatprep.mubr.bf16.mxu0 0
      %5563 = vmatmul.mubr.bf16.gmra.mrb[0].mxu0 %v5484
      %v5564 = vpop.f32.mrb[0].mxu0
      %v5565 = vadd.f32 0.0, %v5564
      %v5566 = vpop.f32.mrb[0].mxu0
      %v5567 = vpop.f32.mrb[0].mxu0
      %v5568 = vadd.f32 0.0, %v5567
      %v5569 = vpop.f32.mrb[0].mxu0
      %5570 = vmatprep.mubr.bf16.mxu0 0
      %5571 = vmatmul.mubr.bf16.gmra.mrb[0].mxu0 %v5487
      %v5572 = vpop.f32.mrb[0].mxu0
      %v5573 = vadd.f32 0.0, %v5572
      %v5574 = vpop.f32.mrb[0].mxu0
      %v5575 = vpop.f32.mrb[0].mxu0
      %v5576 = vadd.f32 0.0, %v5575
      %v5577 = vpop.f32.mrb[0].mxu0
      %5578 = vmatprep.mubr.bf16.mxu0 0
      %5579 = vmatmul.mubr.bf16.gmra.mrb[0].mxu0 %v5490
      %v5580 = vpop.f32.mrb[0].mxu0
      %v5581 = vadd.f32 0.0, %v5580
      %v5582 = vpop.f32.mrb[0].mxu0
      %v5583 = vpop.f32.mrb[0].mxu0
      %v5584 = vadd.f32 0.0, %v5583
      %v5585 = vpop.f32.mrb[0].mxu0
      %5586 = vmatprep.mubr.bf16.mxu0 0
      %5587 = vmatmul.mubr.bf16.gmra.mrb[0].mxu0 %v5493
      %v5588 = vpop.f32.mrb[0].mxu0
      %v5589 = vadd.f32 0.0, %v5588
      %v5590 = vpop.f32.mrb[0].mxu0
      %v5591 = vpop.f32.mrb[0].mxu0
      %v5592 = vadd.f32 0.0, %v5591
      %v5593 = vpop.f32.mrb[0].mxu0
      %5594 = vmatprep.mubr.bf16.mxu0 0
      %5595 = vmatmul.mubr.bf16.gmra.mrb[0].mxu0 %v5496
      %v5596 = vpop.f32.mrb[0].mxu0
      %v5597 = vadd.f32 0.0, %v5596
      %v5598 = vpop.f32.mrb[0].mxu0
      %v5599 = vpop.f32.mrb[0].mxu0
      %v5600 = vadd.f32 0.0, %v5599
      %v5601 = vpop.f32.mrb[0].mxu0
      %5602 = vdwg.mxu0
      %v5603 = vadd.f32 %v5396, %v5533
      %v5604 = vadd.f32 %v5397, %v5536
      %v5605 = vadd.f32 %v5398, %v5541
      %v5606 = vadd.f32 %v5399, %v5544
      %v5607 = vadd.f32 %v5400, %v5549
      %v5608 = vadd.f32 %v5401, %v5552
      %v5609 = vadd.f32 %v5402, %v5557
      %v5610 = vadd.f32 %v5403, %v5560
      %v5611 = vadd.f32 %v5404, %v5565
      %v5612 = vadd.f32 %v5405, %v5568
      %v5613 = vadd.f32 %v5406, %v5573
      %v5614 = vadd.f32 %v5407, %v5576
      %v5615 = vadd.f32 %v5408, %v5581
      %v5616 = vadd.f32 %v5409, %v5584
      %v5617 = vadd.f32 %v5410, %v5589
      %v5618 = vadd.f32 %v5411, %v5592
      %v5619 = vadd.f32 %v5412, %v5597
      %v5620 = vadd.f32 %v5413, %v5600
      %v5621 = vld [vmem:[#allocation2 + $0x60] sm:$0x1f]
      %s5622 = scalar_lea.vmem %s3, 336
      %v5623 = vld [vmem:[%s5622] sm:$0xf]
      %v5624 = vld [vmem:[%s5622 + $0x4] sm:$0xf]
      %v5625 = vld [vmem:[%s5622 + $0x8] sm:$0xf]
      %v5626 = vld [vmem:[%s5622 + $0xc] sm:$0xf]
      %vm5627 = vsmask.f32 3328
      %v5629 = vshrl.u32 %v5414, 16
      %v5631 = vrot.slane %v5629, 4
      %v5632 = vshll.u32 %v5414, 16
      %v5634 = vrot.slane %v5632, 5
      %v5635 = vor.u32 %v5631, %v5634
      %v5637 = vshrl.u32 %v5415, 16
      %v5639 = vrot.slane %v5637, 4
      %v5640 = vshll.u32 %v5415, 16
      %v5642 = vrot.slane %v5640, 5
      %v5643 = vor.u32 %v5639, %v5642
      %v5644 = vsel %vm5627, %v5635, %v5643
      %v5646 = vshrl.u32 %v5416, 16
      %v5648 = vrot.slane %v5646, 4
      %v5649 = vshll.u32 %v5416, 16
      %v5651 = vrot.slane %v5649, 5
      %v5652 = vor.u32 %v5648, %v5651
      %v5653 = vsel %vm5627, %v5643, %v5652
      %v5655 = vshrl.u32 %v5417, 16
      %v5657 = vrot.slane %v5655, 4
      %v5658 = vshll.u32 %v5417, 16
      %v5660 = vrot.slane %v5658, 5
      %v5661 = vor.u32 %v5657, %v5660
      %v5662 = vsel %vm5627, %v5652, %v5661
      %v5664 = vshrl.u32 %v5418, 16
      %v5666 = vrot.slane %v5664, 4
      %v5667 = vshll.u32 %v5418, 16
      %v5669 = vrot.slane %v5667, 5
      %v5670 = vor.u32 %v5666, %v5669
      %v5671 = vsel %vm5627, %v5661, %v5670
      %v5673 = vshrl.u32 %v5419, 16
      %v5675 = vrot.slane %v5673, 4
      %v5676 = vshll.u32 %v5419, 16
      %v5678 = vrot.slane %v5676, 5
      %v5679 = vor.u32 %v5675, %v5678
      %v5680 = vsel %vm5627, %v5670, %v5679
      %v5682 = vshrl.u32 %v5420, 16
      %v5684 = vrot.slane %v5682, 4
      %v5685 = vshll.u32 %v5420, 16
      %v5687 = vrot.slane %v5685, 5
      %v5688 = vor.u32 %v5684, %v5687
      %v5689 = vsel %vm5627, %v5679, %v5688
      %v5691 = vshrl.u32 %v5421, 16
      %v5693 = vrot.slane %v5691, 4
      %v5694 = vshll.u32 %v5421, 16
      %v5696 = vrot.slane %v5694, 5
      %v5697 = vor.u32 %v5693, %v5696
      %v5698 = vsel %vm5627, %v5688, %v5697
      %v5700 = vshrl.u32 %v5422, 16
      %v5702 = vrot.slane %v5700, 4
      %v5703 = vshll.u32 %v5422, 16
      %v5705 = vrot.slane %v5703, 5
      %v5706 = vor.u32 %v5702, %v5705
      %v5707 = vsel %vm5627, %v5697, %v5706
      %v5709 = vshrl.u32 %v5621, 16
      %v5711 = vrot.slane %v5709, 4
      %v5712 = vshll.u32 %v5621, 16
      %v5714 = vrot.slane %v5712, 5
      %v5715 = vor.u32 %v5711, %v5714
      %v5716 = vsel %vm5627, %v5706, %v5715
      %v5721 = vunpack.c.l.b16 %v5623
      %v5722 = vunpack.c.l.b16 %v5624
      %v5723 = vunpack.c.l.b16 %v5625
      %v5724 = vunpack.c.l.b16 %v5626
      %v5725 = vpack.c.b16 %v5722, %v5721
      %v5726 = vpack.c.b16 %v5724, %v5723
      %v5730 = vsel %vm1532, %v5644, 0
      %v5733 = vsel %vm1532, %v5653, 0
      %v5736 = vsel %vm1532, %v5662, 0
      %v5739 = vsel %vm1532, %v5671, 0
      %v5742 = vsel %vm1532, %v5680, 0
      %v5745 = vsel %vm1532, %v5689, 0
      %v5748 = vsel %vm1532, %v5698, 0
      %v5751 = vsel %vm1532, %v5707, 0
      %v5754 = vsel %vm1532, %v5716, 0
      %5756 = vmatprep.subr.bf16.mxu0 0
      %5757 = vmatpush1.bf16.msra.mxu0 %v5725
      %5758 = vmatprep.subr.bf16.mxu0 0
      %5759 = vmatpush1.bf16.msra.mxu0 %v5726
      %5760 = vmatprep.subr.bf16.mxu0 0
      %5761 = vmatpush1.bf16.msra.mxu0 0
      %5762 = vmatprep.subr.bf16.mxu0 0
      %5763 = vmatpush1.bf16.msra.mxu0 0
      %5764 = vmatprep.subr.bf16.mxu0 0
      %5765 = vmatpush1.bf16.msra.mxu0 0
      %5766 = vmatprep.subr.bf16.mxu0 0
      %5767 = vmatpush1.bf16.msra.mxu0 0
      %5768 = vmatprep.subr.bf16.mxu0 0
      %5769 = vmatpush1.bf16.msra.mxu0 0
      %5770 = vmatprep.subr.bf16.mxu0 0
      %5771 = vmatpush1.bf16.msra.mxu0 0
      %5772 = vmatprep.subr.bf16.mxu0 0
      %5773 = vmatpush1.bf16.msra.mxu0 0
      %5774 = vmatprep.subr.bf16.mxu0 0
      %5775 = vmatpush1.bf16.msra.mxu0 0
      %5776 = vmatprep.subr.bf16.mxu0 0
      %5777 = vmatpush1.bf16.msra.mxu0 0
      %5778 = vmatprep.subr.bf16.mxu0 0
      %5779 = vmatpush1.bf16.msra.mxu0 0
      %5780 = vmatprep.subr.bf16.mxu0 0
      %5781 = vmatpush1.bf16.msra.mxu0 0
      %5782 = vmatprep.subr.bf16.mxu0 0
      %5783 = vmatpush1.bf16.msra.mxu0 0
      %5784 = vmatprep.subr.bf16.mxu0 0
      %5785 = vmatpush1.bf16.msra.mxu0 0
      %5786 = vmatprep.subr.bf16.mxu0 0
      %5787 = vmatpush1.bf16.msra.mxu0 0
      %5788 = vmatprep.mubr.bf16.mxu0 0
      %5789 = vmatmul.mubr.bf16.gmra.mrb[0].mxu0 %v5730
      %v5790 = vpop.f32.mrb[0].mxu0
      %v5791 = vadd.f32 0.0, %v5790
      %v5792 = vpop.f32.mrb[0].mxu0
      %v5793 = vpop.f32.mrb[0].mxu0
      %v5794 = vadd.f32 0.0, %v5793
      %v5795 = vpop.f32.mrb[0].mxu0
      %5796 = vmatprep.mubr.bf16.mxu0 0
      %5797 = vmatmul.mubr.bf16.gmra.mrb[0].mxu0 %v5733
      %v5798 = vpop.f32.mrb[0].mxu0
      %v5799 = vadd.f32 0.0, %v5798
      %v5800 = vpop.f32.mrb[0].mxu0
      %v5801 = vpop.f32.mrb[0].mxu0
      %v5802 = vadd.f32 0.0, %v5801
      %v5803 = vpop.f32.mrb[0].mxu0
      %5804 = vmatprep.mubr.bf16.mxu0 0
      %5805 = vmatmul.mubr.bf16.gmra.mrb[0].mxu0 %v5736
      %v5806 = vpop.f32.mrb[0].mxu0
      %v5807 = vadd.f32 0.0, %v5806
      %v5808 = vpop.f32.mrb[0].mxu0
      %v5809 = vpop.f32.mrb[0].mxu0
      %v5810 = vadd.f32 0.0, %v5809
      %v5811 = vpop.f32.mrb[0].mxu0
      %5812 = vmatprep.mubr.bf16.mxu0 0
      %5813 = vmatmul.mubr.bf16.gmra.mrb[0].mxu0 %v5739
      %v5814 = vpop.f32.mrb[0].mxu0
      %v5815 = vadd.f32 0.0, %v5814
      %v5816 = vpop.f32.mrb[0].mxu0
      %v5817 = vpop.f32.mrb[0].mxu0
      %v5818 = vadd.f32 0.0, %v5817
      %v5819 = vpop.f32.mrb[0].mxu0
      %5820 = vmatprep.mubr.bf16.mxu0 0
      %5821 = vmatmul.mubr.bf16.gmra.mrb[0].mxu0 %v5742
      %v5822 = vpop.f32.mrb[0].mxu0
      %v5823 = vadd.f32 0.0, %v5822
      %v5824 = vpop.f32.mrb[0].mxu0
      %v5825 = vpop.f32.mrb[0].mxu0
      %v5826 = vadd.f32 0.0, %v5825
      %v5827 = vpop.f32.mrb[0].mxu0
      %5828 = vmatprep.mubr.bf16.mxu0 0
      %5829 = vmatmul.mubr.bf16.gmra.mrb[0].mxu0 %v5745
      %v5830 = vpop.f32.mrb[0].mxu0
      %v5831 = vadd.f32 0.0, %v5830
      %v5832 = vpop.f32.mrb[0].mxu0
      %v5833 = vpop.f32.mrb[0].mxu0
      %v5834 = vadd.f32 0.0, %v5833
      %v5835 = vpop.f32.mrb[0].mxu0
      %5836 = vmatprep.mubr.bf16.mxu0 0
      %5837 = vmatmul.mubr.bf16.gmra.mrb[0].mxu0 %v5748
      %v5838 = vpop.f32.mrb[0].mxu0
      %v5839 = vadd.f32 0.0, %v5838
      %v5840 = vpop.f32.mrb[0].mxu0
      %v5841 = vpop.f32.mrb[0].mxu0
      %v5842 = vadd.f32 0.0, %v5841
      %v5843 = vpop.f32.mrb[0].mxu0
      %5844 = vmatprep.mubr.bf16.mxu0 0
      %5845 = vmatmul.mubr.bf16.gmra.mrb[0].mxu0 %v5751
      %v5846 = vpop.f32.mrb[0].mxu0
      %v5847 = vadd.f32 0.0, %v5846
      %v5848 = vpop.f32.mrb[0].mxu0
      %v5849 = vpop.f32.mrb[0].mxu0
      %v5850 = vadd.f32 0.0, %v5849
      %v5851 = vpop.f32.mrb[0].mxu0
      %5852 = vmatprep.mubr.bf16.mxu0 0
      %5853 = vmatmul.mubr.bf16.gmra.mrb[0].mxu0 %v5754
      %v5854 = vpop.f32.mrb[0].mxu0
      %v5855 = vadd.f32 0.0, %v5854
      %v5856 = vpop.f32.mrb[0].mxu0
      %v5857 = vpop.f32.mrb[0].mxu0
      %v5858 = vadd.f32 0.0, %v5857
      %v5859 = vpop.f32.mrb[0].mxu0
      %5860 = vdwg.mxu0
      %v5861 = vadd.f32 %v5603, %v5791
      %v5862 = vadd.f32 %v5604, %v5794
      %v5863 = vadd.f32 %v5605, %v5799
      %v5864 = vadd.f32 %v5606, %v5802
      %v5865 = vadd.f32 %v5607, %v5807
      %v5866 = vadd.f32 %v5608, %v5810
      %v5867 = vadd.f32 %v5609, %v5815
      %v5868 = vadd.f32 %v5610, %v5818
      %v5869 = vadd.f32 %v5611, %v5823
      %v5870 = vadd.f32 %v5612, %v5826
      %v5871 = vadd.f32 %v5613, %v5831
      %v5872 = vadd.f32 %v5614, %v5834
      %v5873 = vadd.f32 %v5615, %v5839
      %v5874 = vadd.f32 %v5616, %v5842
      %v5875 = vadd.f32 %v5617, %v5847
      %v5876 = vadd.f32 %v5618, %v5850
      %v5877 = vadd.f32 %v5619, %v5855
      %v5878 = vadd.f32 %v5620, %v5858
      %v5879 = vld [vmem:[#allocation2 + $0x18] sm:$0xe0]
      %s5880 = scalar_lea.vmem %s3, 352
      %v5881 = vld [vmem:[%s5880] sm:$0xf]
      %v5882 = vld [vmem:[%s5880 + $0x4] sm:$0xf]
      %v5883 = vld [vmem:[%s5880 + $0x8] sm:$0xf]
      %v5884 = vld [vmem:[%s5880 + $0xc] sm:$0xf]
      %v5887 = vrot.slane %v5879, 5
      %v5888 = vrot.slane %v5415, 5
      %v5889 = vsel %vm4379, %v5887, %v5888
      %v5890 = vrot.slane %v5416, 5
      %v5891 = vsel %vm4379, %v5888, %v5890
      %v5892 = vrot.slane %v5417, 5
      %v5893 = vsel %vm4379, %v5890, %v5892
      %v5894 = vrot.slane %v5418, 5
      %v5895 = vsel %vm4379, %v5892, %v5894
      %v5896 = vrot.slane %v5419, 5
      %v5897 = vsel %vm4379, %v5894, %v5896
      %v5898 = vrot.slane %v5420, 5
      %v5899 = vsel %vm4379, %v5896, %v5898
      %v5900 = vrot.slane %v5421, 5
      %v5901 = vsel %vm4379, %v5898, %v5900
      %v5902 = vrot.slane %v5422, 5
      %v5903 = vsel %vm4379, %v5900, %v5902
      %v5904 = vrot.slane %v5621, 5
      %v5905 = vsel %vm4379, %v5902, %v5904
      %v5910 = vunpack.c.l.b16 %v5881
      %v5911 = vunpack.c.l.b16 %v5882
      %v5912 = vunpack.c.l.b16 %v5883
      %v5913 = vunpack.c.l.b16 %v5884
      %v5914 = vpack.c.b16 %v5911, %v5910
      %v5915 = vpack.c.b16 %v5913, %v5912
      %v5919 = vsel %vm1532, %v5889, 0
      %v5922 = vsel %vm1532, %v5891, 0
      %v5925 = vsel %vm1532, %v5893, 0
      %v5928 = vsel %vm1532, %v5895, 0
      %v5931 = vsel %vm1532, %v5897, 0
      %v5934 = vsel %vm1532, %v5899, 0
      %v5937 = vsel %vm1532, %v5901, 0
      %v5940 = vsel %vm1532, %v5903, 0
      %v5943 = vsel %vm1532, %v5905, 0
      %5945 = vmatprep.subr.bf16.mxu0 0
      %5946 = vmatpush1.bf16.msra.mxu0 %v5914
      %5947 = vmatprep.subr.bf16.mxu0 0
      %5948 = vmatpush1.bf16.msra.mxu0 %v5915
      %5949 = vmatprep.subr.bf16.mxu0 0
      %5950 = vmatpush1.bf16.msra.mxu0 0
      %5951 = vmatprep.subr.bf16.mxu0 0
      %5952 = vmatpush1.bf16.msra.mxu0 0
      %5953 = vmatprep.subr.bf16.mxu0 0
      %5954 = vmatpush1.bf16.msra.mxu0 0
      %5955 = vmatprep.subr.bf16.mxu0 0
      %5956 = vmatpush1.bf16.msra.mxu0 0
      %5957 = vmatprep.subr.bf16.mxu0 0
      %5958 = vmatpush1.bf16.msra.mxu0 0
      %5959 = vmatprep.subr.bf16.mxu0 0
      %5960 = vmatpush1.bf16.msra.mxu0 0
      %5961 = vmatprep.subr.bf16.mxu0 0
      %5962 = vmatpush1.bf16.msra.mxu0 0
      %5963 = vmatprep.subr.bf16.mxu0 0
      %5964 = vmatpush1.bf16.msra.mxu0 0
      %5965 = vmatprep.subr.bf16.mxu0 0
      %5966 = vmatpush1.bf16.msra.mxu0 0
      %5967 = vmatprep.subr.bf16.mxu0 0
      %5968 = vmatpush1.bf16.msra.mxu0 0
      %5969 = vmatprep.subr.bf16.mxu0 0
      %5970 = vmatpush1.bf16.msra.mxu0 0
      %5971 = vmatprep.subr.bf16.mxu0 0
      %5972 = vmatpush1.bf16.msra.mxu0 0
      %5973 = vmatprep.subr.bf16.mxu0 0
      %5974 = vmatpush1.bf16.msra.mxu0 0
      %5975 = vmatprep.subr.bf16.mxu0 0
      %5976 = vmatpush1.bf16.msra.mxu0 0
      %5977 = vmatprep.mubr.bf16.mxu0 0
      %5978 = vmatmul.mubr.bf16.gmra.mrb[0].mxu0 %v5919
      %v5979 = vpop.f32.mrb[0].mxu0
      %v5980 = vadd.f32 0.0, %v5979
      %v5981 = vpop.f32.mrb[0].mxu0
      %v5982 = vpop.f32.mrb[0].mxu0
      %v5983 = vadd.f32 0.0, %v5982
      %v5984 = vpop.f32.mrb[0].mxu0
      %5985 = vmatprep.mubr.bf16.mxu0 0
      %5986 = vmatmul.mubr.bf16.gmra.mrb[0].mxu0 %v5922
      %v5987 = vpop.f32.mrb[0].mxu0
      %v5988 = vadd.f32 0.0, %v5987
      %v5989 = vpop.f32.mrb[0].mxu0
      %v5990 = vpop.f32.mrb[0].mxu0
      %v5991 = vadd.f32 0.0, %v5990
      %v5992 = vpop.f32.mrb[0].mxu0
      %5993 = vmatprep.mubr.bf16.mxu0 0
      %5994 = vmatmul.mubr.bf16.gmra.mrb[0].mxu0 %v5925
      %v5995 = vpop.f32.mrb[0].mxu0
      %v5996 = vadd.f32 0.0, %v5995
      %v5997 = vpop.f32.mrb[0].mxu0
      %v5998 = vpop.f32.mrb[0].mxu0
      %v5999 = vadd.f32 0.0, %v5998
      %v6000 = vpop.f32.mrb[0].mxu0
      %6001 = vmatprep.mubr.bf16.mxu0 0
      %6002 = vmatmul.mubr.bf16.gmra.mrb[0].mxu0 %v5928
      %v6003 = vpop.f32.mrb[0].mxu0
      %v6004 = vadd.f32 0.0, %v6003
      %v6005 = vpop.f32.mrb[0].mxu0
      %v6006 = vpop.f32.mrb[0].mxu0
      %v6007 = vadd.f32 0.0, %v6006
      %v6008 = vpop.f32.mrb[0].mxu0
      %6009 = vmatprep.mubr.bf16.mxu0 0
      %6010 = vmatmul.mubr.bf16.gmra.mrb[0].mxu0 %v5931
      %v6011 = vpop.f32.mrb[0].mxu0
      %v6012 = vadd.f32 0.0, %v6011
      %v6013 = vpop.f32.mrb[0].mxu0
      %v6014 = vpop.f32.mrb[0].mxu0
      %v6015 = vadd.f32 0.0, %v6014
      %v6016 = vpop.f32.mrb[0].mxu0
      %6017 = vmatprep.mubr.bf16.mxu0 0
      %6018 = vmatmul.mubr.bf16.gmra.mrb[0].mxu0 %v5934
      %v6019 = vpop.f32.mrb[0].mxu0
      %v6020 = vadd.f32 0.0, %v6019
      %v6021 = vpop.f32.mrb[0].mxu0
      %v6022 = vpop.f32.mrb[0].mxu0
      %v6023 = vadd.f32 0.0, %v6022
      %v6024 = vpop.f32.mrb[0].mxu0
      %6025 = vmatprep.mubr.bf16.mxu0 0
      %6026 = vmatmul.mubr.bf16.gmra.mrb[0].mxu0 %v5937
      %v6027 = vpop.f32.mrb[0].mxu0
      %v6028 = vadd.f32 0.0, %v6027
      %v6029 = vpop.f32.mrb[0].mxu0
      %v6030 = vpop.f32.mrb[0].mxu0
      %v6031 = vadd.f32 0.0, %v6030
      %v6032 = vpop.f32.mrb[0].mxu0
      %6033 = vmatprep.mubr.bf16.mxu0 0
      %6034 = vmatmul.mubr.bf16.gmra.mrb[0].mxu0 %v5940
      %v6035 = vpop.f32.mrb[0].mxu0
      %v6036 = vadd.f32 0.0, %v6035
      %v6037 = vpop.f32.mrb[0].mxu0
      %v6038 = vpop.f32.mrb[0].mxu0
      %v6039 = vadd.f32 0.0, %v6038
      %v6040 = vpop.f32.mrb[0].mxu0
      %6041 = vmatprep.mubr.bf16.mxu0 0
      %6042 = vmatmul.mubr.bf16.gmra.mrb[0].mxu0 %v5943
      %v6043 = vpop.f32.mrb[0].mxu0
      %v6044 = vadd.f32 0.0, %v6043
      %v6045 = vpop.f32.mrb[0].mxu0
      %v6046 = vpop.f32.mrb[0].mxu0
      %v6047 = vadd.f32 0.0, %v6046
      %v6048 = vpop.f32.mrb[0].mxu0
      %6049 = vdwg.mxu0
      %v6050 = vadd.f32 %v5861, %v5980
      %v6051 = vadd.f32 %v5862, %v5983
      %v6052 = vadd.f32 %v5863, %v5988
      %v6053 = vadd.f32 %v5864, %v5991
      %v6054 = vadd.f32 %v5865, %v5996
      %v6055 = vadd.f32 %v5866, %v5999
      %v6056 = vadd.f32 %v5867, %v6004
      %v6057 = vadd.f32 %v5868, %v6007
      %v6058 = vadd.f32 %v5869, %v6012
      %v6059 = vadd.f32 %v5870, %v6015
      %v6060 = vadd.f32 %v5871, %v6020
      %v6061 = vadd.f32 %v5872, %v6023
      %v6062 = vadd.f32 %v5873, %v6028
      %v6063 = vadd.f32 %v5874, %v6031
      %v6064 = vadd.f32 %v5875, %v6036
      %v6065 = vadd.f32 %v5876, %v6039
      %v6066 = vadd.f32 %v5877, %v6044
      %v6067 = vadd.f32 %v5878, %v6047
      %v6068 = vld [vmem:[#allocation2 + $0x60] sm:$0x3f]
      %s6069 = scalar_lea.vmem %s3, 368
      %v6070 = vld [vmem:[%s6069] sm:$0xf]
      %v6071 = vld [vmem:[%s6069 + $0x4] sm:$0xf]
      %v6072 = vld [vmem:[%s6069 + $0x8] sm:$0xf]
      %v6073 = vld [vmem:[%s6069 + $0xc] sm:$0xf]
      %v6075 = vshrl.u32 %v5879, 16
      %v6077 = vrot.slane %v6075, 5
      %v6078 = vshll.u32 %v5879, 16
      %v6080 = vrot.slane %v6078, 6
      %v6081 = vor.u32 %v6077, %v6080
      %v6082 = vrot.slane %v5637, 5
      %v6083 = vrot.slane %v5640, 6
      %v6084 = vor.u32 %v6082, %v6083
      %v6085 = vsel %vm4567, %v6081, %v6084
      %v6086 = vrot.slane %v5646, 5
      %v6087 = vrot.slane %v5649, 6
      %v6088 = vor.u32 %v6086, %v6087
      %v6089 = vsel %vm4567, %v6084, %v6088
      %v6090 = vrot.slane %v5655, 5
      %v6091 = vrot.slane %v5658, 6
      %v6092 = vor.u32 %v6090, %v6091
      %v6093 = vsel %vm4567, %v6088, %v6092
      %v6094 = vrot.slane %v5664, 5
      %v6095 = vrot.slane %v5667, 6
      %v6096 = vor.u32 %v6094, %v6095
      %v6097 = vsel %vm4567, %v6092, %v6096
      %v6098 = vrot.slane %v5673, 5
      %v6099 = vrot.slane %v5676, 6
      %v6100 = vor.u32 %v6098, %v6099
      %v6101 = vsel %vm4567, %v6096, %v6100
      %v6102 = vrot.slane %v5682, 5
      %v6103 = vrot.slane %v5685, 6
      %v6104 = vor.u32 %v6102, %v6103
      %v6105 = vsel %vm4567, %v6100, %v6104
      %v6106 = vrot.slane %v5691, 5
      %v6107 = vrot.slane %v5694, 6
      %v6108 = vor.u32 %v6106, %v6107
      %v6109 = vsel %vm4567, %v6104, %v6108
      %v6110 = vrot.slane %v5700, 5
      %v6111 = vrot.slane %v5703, 6
      %v6112 = vor.u32 %v6110, %v6111
      %v6113 = vsel %vm4567, %v6108, %v6112
      %v6115 = vshrl.u32 %v6068, 16
      %v6117 = vrot.slane %v6115, 5
      %v6118 = vshll.u32 %v6068, 16
      %v6120 = vrot.slane %v6118, 6
      %v6121 = vor.u32 %v6117, %v6120
      %v6122 = vsel %vm4567, %v6112, %v6121
      %v6127 = vunpack.c.l.b16 %v6070
      %v6128 = vunpack.c.l.b16 %v6071
      %v6129 = vunpack.c.l.b16 %v6072
      %v6130 = vunpack.c.l.b16 %v6073
      %v6131 = vpack.c.b16 %v6128, %v6127
      %v6132 = vpack.c.b16 %v6130, %v6129
      %v6136 = vsel %vm1532, %v6085, 0
      %v6139 = vsel %vm1532, %v6089, 0
      %v6142 = vsel %vm1532, %v6093, 0
      %v6145 = vsel %vm1532, %v6097, 0
      %v6148 = vsel %vm1532, %v6101, 0
      %v6151 = vsel %vm1532, %v6105, 0
      %v6154 = vsel %vm1532, %v6109, 0
      %v6157 = vsel %vm1532, %v6113, 0
      %v6160 = vsel %vm1532, %v6122, 0
      %6162 = vmatprep.subr.bf16.mxu0 0
      %6163 = vmatpush1.bf16.msra.mxu0 %v6131
      %6164 = vmatprep.subr.bf16.mxu0 0
      %6165 = vmatpush1.bf16.msra.mxu0 %v6132
      %6166 = vmatprep.subr.bf16.mxu0 0
      %6167 = vmatpush1.bf16.msra.mxu0 0
      %6168 = vmatprep.subr.bf16.mxu0 0
      %6169 = vmatpush1.bf16.msra.mxu0 0
      %6170 = vmatprep.subr.bf16.mxu0 0
      %6171 = vmatpush1.bf16.msra.mxu0 0
      %6172 = vmatprep.subr.bf16.mxu0 0
      %6173 = vmatpush1.bf16.msra.mxu0 0
      %6174 = vmatprep.subr.bf16.mxu0 0
      %6175 = vmatpush1.bf16.msra.mxu0 0
      %6176 = vmatprep.subr.bf16.mxu0 0
      %6177 = vmatpush1.bf16.msra.mxu0 0
      %6178 = vmatprep.subr.bf16.mxu0 0
      %6179 = vmatpush1.bf16.msra.mxu0 0
      %6180 = vmatprep.subr.bf16.mxu0 0
      %6181 = vmatpush1.bf16.msra.mxu0 0
      %6182 = vmatprep.subr.bf16.mxu0 0
      %6183 = vmatpush1.bf16.msra.mxu0 0
      %6184 = vmatprep.subr.bf16.mxu0 0
      %6185 = vmatpush1.bf16.msra.mxu0 0
      %6186 = vmatprep.subr.bf16.mxu0 0
      %6187 = vmatpush1.bf16.msra.mxu0 0
      %6188 = vmatprep.subr.bf16.mxu0 0
      %6189 = vmatpush1.bf16.msra.mxu0 0
      %6190 = vmatprep.subr.bf16.mxu0 0
      %6191 = vmatpush1.bf16.msra.mxu0 0
      %6192 = vmatprep.subr.bf16.mxu0 0
      %6193 = vmatpush1.bf16.msra.mxu0 0
      %6194 = vmatprep.mubr.bf16.mxu0 0
      %6195 = vmatmul.mubr.bf16.gmra.mrb[0].mxu0 %v6136
      %v6196 = vpop.f32.mrb[0].mxu0
      %v6197 = vadd.f32 0.0, %v6196
      %v6198 = vpop.f32.mrb[0].mxu0
      %v6199 = vpop.f32.mrb[0].mxu0
      %v6200 = vadd.f32 0.0, %v6199
      %v6201 = vpop.f32.mrb[0].mxu0
      %6202 = vmatprep.mubr.bf16.mxu0 0
      %6203 = vmatmul.mubr.bf16.gmra.mrb[0].mxu0 %v6139
      %v6204 = vpop.f32.mrb[0].mxu0
      %v6205 = vadd.f32 0.0, %v6204
      %v6206 = vpop.f32.mrb[0].mxu0
      %v6207 = vpop.f32.mrb[0].mxu0
      %v6208 = vadd.f32 0.0, %v6207
      %v6209 = vpop.f32.mrb[0].mxu0
      %6210 = vmatprep.mubr.bf16.mxu0 0
      %6211 = vmatmul.mubr.bf16.gmra.mrb[0].mxu0 %v6142
      %v6212 = vpop.f32.mrb[0].mxu0
      %v6213 = vadd.f32 0.0, %v6212
      %v6214 = vpop.f32.mrb[0].mxu0
      %v6215 = vpop.f32.mrb[0].mxu0
      %v6216 = vadd.f32 0.0, %v6215
      %v6217 = vpop.f32.mrb[0].mxu0
      %6218 = vmatprep.mubr.bf16.mxu0 0
      %6219 = vmatmul.mubr.bf16.gmra.mrb[0].mxu0 %v6145
      %v6220 = vpop.f32.mrb[0].mxu0
      %v6221 = vadd.f32 0.0, %v6220
      %v6222 = vpop.f32.mrb[0].mxu0
      %v6223 = vpop.f32.mrb[0].mxu0
      %v6224 = vadd.f32 0.0, %v6223
      %v6225 = vpop.f32.mrb[0].mxu0
      %6226 = vmatprep.mubr.bf16.mxu0 0
      %6227 = vmatmul.mubr.bf16.gmra.mrb[0].mxu0 %v6148
      %v6228 = vpop.f32.mrb[0].mxu0
      %v6229 = vadd.f32 0.0, %v6228
      %v6230 = vpop.f32.mrb[0].mxu0
      %v6231 = vpop.f32.mrb[0].mxu0
      %v6232 = vadd.f32 0.0, %v6231
      %v6233 = vpop.f32.mrb[0].mxu0
      %6234 = vmatprep.mubr.bf16.mxu0 0
      %6235 = vmatmul.mubr.bf16.gmra.mrb[0].mxu0 %v6151
      %v6236 = vpop.f32.mrb[0].mxu0
      %v6237 = vadd.f32 0.0, %v6236
      %v6238 = vpop.f32.mrb[0].mxu0
      %v6239 = vpop.f32.mrb[0].mxu0
      %v6240 = vadd.f32 0.0, %v6239
      %v6241 = vpop.f32.mrb[0].mxu0
      %6242 = vmatprep.mubr.bf16.mxu0 0
      %6243 = vmatmul.mubr.bf16.gmra.mrb[0].mxu0 %v6154
      %v6244 = vpop.f32.mrb[0].mxu0
      %v6245 = vadd.f32 0.0, %v6244
      %v6246 = vpop.f32.mrb[0].mxu0
      %v6247 = vpop.f32.mrb[0].mxu0
      %v6248 = vadd.f32 0.0, %v6247
      %v6249 = vpop.f32.mrb[0].mxu0
      %6250 = vmatprep.mubr.bf16.mxu0 0
      %6251 = vmatmul.mubr.bf16.gmra.mrb[0].mxu0 %v6157
      %v6252 = vpop.f32.mrb[0].mxu0
      %v6253 = vadd.f32 0.0, %v6252
      %v6254 = vpop.f32.mrb[0].mxu0
      %v6255 = vpop.f32.mrb[0].mxu0
      %v6256 = vadd.f32 0.0, %v6255
      %v6257 = vpop.f32.mrb[0].mxu0
      %6258 = vmatprep.mubr.bf16.mxu0 0
      %6259 = vmatmul.mubr.bf16.gmra.mrb[0].mxu0 %v6160
      %v6260 = vpop.f32.mrb[0].mxu0
      %v6261 = vadd.f32 0.0, %v6260
      %v6262 = vpop.f32.mrb[0].mxu0
      %v6263 = vpop.f32.mrb[0].mxu0
      %v6264 = vadd.f32 0.0, %v6263
      %v6265 = vpop.f32.mrb[0].mxu0
      %6266 = vdwg.mxu0
      %v6267 = vadd.f32 %v6050, %v6197
      %v6268 = vadd.f32 %v6051, %v6200
      %v6269 = vadd.f32 %v6052, %v6205
      %v6270 = vadd.f32 %v6053, %v6208
      %v6271 = vadd.f32 %v6054, %v6213
      %v6272 = vadd.f32 %v6055, %v6216
      %v6273 = vadd.f32 %v6056, %v6221
      %v6274 = vadd.f32 %v6057, %v6224
      %v6275 = vadd.f32 %v6058, %v6229
      %v6276 = vadd.f32 %v6059, %v6232
      %v6277 = vadd.f32 %v6060, %v6237
      %v6278 = vadd.f32 %v6061, %v6240
      %v6279 = vadd.f32 %v6062, %v6245
      %v6280 = vadd.f32 %v6063, %v6248
      %v6281 = vadd.f32 %v6064, %v6253
      %v6282 = vadd.f32 %v6065, %v6256
      %v6283 = vadd.f32 %v6066, %v6261
      %v6284 = vadd.f32 %v6067, %v6264
      %v6285 = vld [vmem:[#allocation2 + $0x18] sm:$0xc0]
      %s6286 = scalar_lea.vmem %s3, 384
      %v6287 = vld [vmem:[%s6286] sm:$0xf]
      %v6288 = vld [vmem:[%s6286 + $0x4] sm:$0xf]
      %v6289 = vld [vmem:[%s6286 + $0x8] sm:$0xf]
      %v6290 = vld [vmem:[%s6286 + $0xc] sm:$0xf]
      %v6293 = vrot.slane %v6285, 6
      %v6294 = vrot.slane %v5415, 6
      %v6295 = vsel %vm3403, %v6293, %v6294
      %v6296 = vrot.slane %v5416, 6
      %v6297 = vsel %vm3403, %v6294, %v6296
      %v6298 = vrot.slane %v5417, 6
      %v6299 = vsel %vm3403, %v6296, %v6298
      %v6300 = vrot.slane %v5418, 6
      %v6301 = vsel %vm3403, %v6298, %v6300
      %v6302 = vrot.slane %v5419, 6
      %v6303 = vsel %vm3403, %v6300, %v6302
      %v6304 = vrot.slane %v5420, 6
      %v6305 = vsel %vm3403, %v6302, %v6304
      %v6306 = vrot.slane %v5421, 6
      %v6307 = vsel %vm3403, %v6304, %v6306
      %v6308 = vrot.slane %v5422, 6
      %v6309 = vsel %vm3403, %v6306, %v6308
      %v6310 = vrot.slane %v6068, 6
      %v6311 = vsel %vm3403, %v6308, %v6310
      %v6316 = vunpack.c.l.b16 %v6287
      %v6317 = vunpack.c.l.b16 %v6288
      %v6318 = vunpack.c.l.b16 %v6289
      %v6319 = vunpack.c.l.b16 %v6290
      %v6320 = vpack.c.b16 %v6317, %v6316
      %v6321 = vpack.c.b16 %v6319, %v6318
      %v6325 = vsel %vm1532, %v6295, 0
      %v6328 = vsel %vm1532, %v6297, 0
      %v6331 = vsel %vm1532, %v6299, 0
      %v6334 = vsel %vm1532, %v6301, 0
      %v6337 = vsel %vm1532, %v6303, 0
      %v6340 = vsel %vm1532, %v6305, 0
      %v6343 = vsel %vm1532, %v6307, 0
      %v6346 = vsel %vm1532, %v6309, 0
      %v6349 = vsel %vm1532, %v6311, 0
      %6351 = vmatprep.subr.bf16.mxu0 0
      %6352 = vmatpush1.bf16.msra.mxu0 %v6320
      %6353 = vmatprep.subr.bf16.mxu0 0
      %6354 = vmatpush1.bf16.msra.mxu0 %v6321
      %6355 = vmatprep.subr.bf16.mxu0 0
      %6356 = vmatpush1.bf16.msra.mxu0 0
      %6357 = vmatprep.subr.bf16.mxu0 0
      %6358 = vmatpush1.bf16.msra.mxu0 0
      %6359 = vmatprep.subr.bf16.mxu0 0
      %6360 = vmatpush1.bf16.msra.mxu0 0
      %6361 = vmatprep.subr.bf16.mxu0 0
      %6362 = vmatpush1.bf16.msra.mxu0 0
      %6363 = vmatprep.subr.bf16.mxu0 0
      %6364 = vmatpush1.bf16.msra.mxu0 0
      %6365 = vmatprep.subr.bf16.mxu0 0
      %6366 = vmatpush1.bf16.msra.mxu0 0
      %6367 = vmatprep.subr.bf16.mxu0 0
      %6368 = vmatpush1.bf16.msra.mxu0 0
      %6369 = vmatprep.subr.bf16.mxu0 0
      %6370 = vmatpush1.bf16.msra.mxu0 0
      %6371 = vmatprep.subr.bf16.mxu0 0
      %6372 = vmatpush1.bf16.msra.mxu0 0
      %6373 = vmatprep.subr.bf16.mxu0 0
      %6374 = vmatpush1.bf16.msra.mxu0 0
      %6375 = vmatprep.subr.bf16.mxu0 0
      %6376 = vmatpush1.bf16.msra.mxu0 0
      %6377 = vmatprep.subr.bf16.mxu0 0
      %6378 = vmatpush1.bf16.msra.mxu0 0
      %6379 = vmatprep.subr.bf16.mxu0 0
      %6380 = vmatpush1.bf16.msra.mxu0 0
      %6381 = vmatprep.subr.bf16.mxu0 0
      %6382 = vmatpush1.bf16.msra.mxu0 0
      %6383 = vmatprep.mubr.bf16.mxu0 0
      %6384 = vmatmul.mubr.bf16.gmra.mrb[0].mxu0 %v6325
      %v6385 = vpop.f32.mrb[0].mxu0
      %v6386 = vadd.f32 0.0, %v6385
      %v6387 = vpop.f32.mrb[0].mxu0
      %v6388 = vpop.f32.mrb[0].mxu0
      %v6389 = vadd.f32 0.0, %v6388
      %v6390 = vpop.f32.mrb[0].mxu0
      %6391 = vmatprep.mubr.bf16.mxu0 0
      %6392 = vmatmul.mubr.bf16.gmra.mrb[0].mxu0 %v6328
      %v6393 = vpop.f32.mrb[0].mxu0
      %v6394 = vadd.f32 0.0, %v6393
      %v6395 = vpop.f32.mrb[0].mxu0
      %v6396 = vpop.f32.mrb[0].mxu0
      %v6397 = vadd.f32 0.0, %v6396
      %v6398 = vpop.f32.mrb[0].mxu0
      %6399 = vmatprep.mubr.bf16.mxu0 0
      %6400 = vmatmul.mubr.bf16.gmra.mrb[0].mxu0 %v6331
      %v6401 = vpop.f32.mrb[0].mxu0
      %v6402 = vadd.f32 0.0, %v6401
      %v6403 = vpop.f32.mrb[0].mxu0
      %v6404 = vpop.f32.mrb[0].mxu0
      %v6405 = vadd.f32 0.0, %v6404
      %v6406 = vpop.f32.mrb[0].mxu0
      %6407 = vmatprep.mubr.bf16.mxu0 0
      %6408 = vmatmul.mubr.bf16.gmra.mrb[0].mxu0 %v6334
      %v6409 = vpop.f32.mrb[0].mxu0
      %v6410 = vadd.f32 0.0, %v6409
      %v6411 = vpop.f32.mrb[0].mxu0
      %v6412 = vpop.f32.mrb[0].mxu0
      %v6413 = vadd.f32 0.0, %v6412
      %v6414 = vpop.f32.mrb[0].mxu0
      %6415 = vmatprep.mubr.bf16.mxu0 0
      %6416 = vmatmul.mubr.bf16.gmra.mrb[0].mxu0 %v6337
      %v6417 = vpop.f32.mrb[0].mxu0
      %v6418 = vadd.f32 0.0, %v6417
      %v6419 = vpop.f32.mrb[0].mxu0
      %v6420 = vpop.f32.mrb[0].mxu0
      %v6421 = vadd.f32 0.0, %v6420
      %v6422 = vpop.f32.mrb[0].mxu0
      %6423 = vmatprep.mubr.bf16.mxu0 0
      %6424 = vmatmul.mubr.bf16.gmra.mrb[0].mxu0 %v6340
      %v6425 = vpop.f32.mrb[0].mxu0
      %v6426 = vadd.f32 0.0, %v6425
      %v6427 = vpop.f32.mrb[0].mxu0
      %v6428 = vpop.f32.mrb[0].mxu0
      %v6429 = vadd.f32 0.0, %v6428
      %v6430 = vpop.f32.mrb[0].mxu0
      %6431 = vmatprep.mubr.bf16.mxu0 0
      %6432 = vmatmul.mubr.bf16.gmra.mrb[0].mxu0 %v6343
      %v6433 = vpop.f32.mrb[0].mxu0
      %v6434 = vadd.f32 0.0, %v6433
      %v6435 = vpop.f32.mrb[0].mxu0
      %v6436 = vpop.f32.mrb[0].mxu0
      %v6437 = vadd.f32 0.0, %v6436
      %v6438 = vpop.f32.mrb[0].mxu0
      %6439 = vmatprep.mubr.bf16.mxu0 0
      %6440 = vmatmul.mubr.bf16.gmra.mrb[0].mxu0 %v6346
      %v6441 = vpop.f32.mrb[0].mxu0
      %v6442 = vadd.f32 0.0, %v6441
      %v6443 = vpop.f32.mrb[0].mxu0
      %v6444 = vpop.f32.mrb[0].mxu0
      %v6445 = vadd.f32 0.0, %v6444
      %v6446 = vpop.f32.mrb[0].mxu0
      %6447 = vmatprep.mubr.bf16.mxu0 0
      %6448 = vmatmul.mubr.bf16.gmra.mrb[0].mxu0 %v6349
      %v6449 = vpop.f32.mrb[0].mxu0
      %v6450 = vadd.f32 0.0, %v6449
      %v6451 = vpop.f32.mrb[0].mxu0
      %v6452 = vpop.f32.mrb[0].mxu0
      %v6453 = vadd.f32 0.0, %v6452
      %v6454 = vpop.f32.mrb[0].mxu0
      %6455 = vdwg.mxu0
      %v6456 = vadd.f32 %v6267, %v6386
      %v6457 = vadd.f32 %v6268, %v6389
      %v6458 = vadd.f32 %v6269, %v6394
      %v6459 = vadd.f32 %v6270, %v6397
      %v6460 = vadd.f32 %v6271, %v6402
      %v6461 = vadd.f32 %v6272, %v6405
      %v6462 = vadd.f32 %v6273, %v6410
      %v6463 = vadd.f32 %v6274, %v6413
      %v6464 = vadd.f32 %v6275, %v6418
      %v6465 = vadd.f32 %v6276, %v6421
      %v6466 = vadd.f32 %v6277, %v6426
      %v6467 = vadd.f32 %v6278, %v6429
      %v6468 = vadd.f32 %v6279, %v6434
      %v6469 = vadd.f32 %v6280, %v6437
      %v6470 = vadd.f32 %v6281, %v6442
      %v6471 = vadd.f32 %v6282, %v6445
      %v6472 = vadd.f32 %v6283, %v6450
      %v6473 = vadd.f32 %v6284, %v6453
      %vm6492 = vcmask 1046528
      %v6493 = vrot.slane %v6456, 1
      %v6494 = vrot.slane %v6457, 1
      %v6495 = vsel %vm6492, %v6493, %v6494
      %v6496 = vrot.slane %v6458, 1
      %v6497 = vsel %vm6492, %v6494, %v6496
      %v6498 = vrot.slane %v6459, 1
      %v6499 = vsel %vm6492, %v6496, %v6498
      %v6500 = vrot.slane %v6460, 1
      %v6501 = vsel %vm6492, %v6498, %v6500
      %v6502 = vrot.slane %v6461, 1
      %v6503 = vsel %vm6492, %v6500, %v6502
      %v6504 = vrot.slane %v6462, 1
      %v6505 = vsel %vm6492, %v6502, %v6504
      %v6506 = vrot.slane %v6463, 1
      %v6507 = vsel %vm6492, %v6504, %v6506
      %v6508 = vrot.slane %v6464, 1
      %v6509 = vsel %vm6492, %v6506, %v6508
      %v6510 = vrot.slane %v6465, 1
      %v6511 = vsel %vm6492, %v6508, %v6510
      %v6512 = vrot.slane %v6466, 1
      %v6513 = vsel %vm6492, %v6510, %v6512
      %v6514 = vrot.slane %v6467, 1
      %v6515 = vsel %vm6492, %v6512, %v6514
      %v6516 = vrot.slane %v6468, 1
      %v6517 = vsel %vm6492, %v6514, %v6516
      %v6518 = vrot.slane %v6469, 1
      %v6519 = vsel %vm6492, %v6516, %v6518
      %v6520 = vrot.slane %v6470, 1
      %v6521 = vsel %vm6492, %v6518, %v6520
      %v6522 = vrot.slane %v6471, 1
      %v6523 = vsel %vm6492, %v6520, %v6522
      %v6524 = vrot.slane %v6472, 1
      %v6525 = vsel %vm6492, %v6522, %v6524
      %v6526 = vrot.slane %v6473, 1
      %v6527 = vsel %vm6492, %v6524, %v6526
      %v6546 = vmax.f32 %v6456, %v6495
      %v6547 = vmax.f32 %v6457, %v6497
      %v6548 = vmax.f32 %v6458, %v6499
      %v6549 = vmax.f32 %v6459, %v6501
      %v6550 = vmax.f32 %v6460, %v6503
      %v6551 = vmax.f32 %v6461, %v6505
      %v6552 = vmax.f32 %v6462, %v6507
      %v6553 = vmax.f32 %v6463, %v6509
      %v6554 = vmax.f32 %v6464, %v6511
      %v6555 = vmax.f32 %v6465, %v6513
      %v6556 = vmax.f32 %v6466, %v6515
      %v6557 = vmax.f32 %v6467, %v6517
      %v6558 = vmax.f32 %v6468, %v6519
      %v6559 = vmax.f32 %v6469, %v6521
      %v6560 = vmax.f32 %v6470, %v6523
      %v6561 = vmax.f32 %v6471, %v6525
      %v6562 = vmax.f32 %v6472, %v6527
      %v6563 = vmax.f32 %v6473, %v6526
      %vm6581 = vcmask 1041408
      %v6582 = vrot.slane %v6547, 6
      %v6583 = vrot.slane %v6548, 6
      %v6584 = vsel %vm6581, %v6582, %v6583
      %v6585 = vrot.slane %v6549, 6
      %v6586 = vsel %vm6581, %v6583, %v6585
      %v6587 = vrot.slane %v6550, 6
      %v6588 = vsel %vm6581, %v6585, %v6587
      %v6589 = vrot.slane %v6551, 6
      %v6590 = vsel %vm6581, %v6587, %v6589
      %v6591 = vrot.slane %v6552, 6
      %v6592 = vsel %vm6581, %v6589, %v6591
      %v6593 = vrot.slane %v6553, 6
      %v6594 = vsel %vm6581, %v6591, %v6593
      %v6595 = vrot.slane %v6554, 6
      %v6596 = vsel %vm6581, %v6593, %v6595
      %v6597 = vrot.slane %v6555, 6
      %v6598 = vsel %vm6581, %v6595, %v6597
      %v6599 = vrot.slane %v6556, 6
      %v6600 = vsel %vm6581, %v6597, %v6599
      %v6601 = vrot.slane %v6557, 6
      %v6602 = vsel %vm6581, %v6599, %v6601
      %v6603 = vrot.slane %v6558, 6
      %v6604 = vsel %vm6581, %v6601, %v6603
      %v6605 = vrot.slane %v6559, 6
      %v6606 = vsel %vm6581, %v6603, %v6605
      %v6607 = vrot.slane %v6560, 6
      %v6608 = vsel %vm6581, %v6605, %v6607
      %v6609 = vrot.slane %v6561, 6
      %v6610 = vsel %vm6581, %v6607, %v6609
      %v6611 = vrot.slane %v6562, 6
      %v6612 = vsel %vm6581, %v6609, %v6611
      %v6613 = vrot.slane %v6563, 6
      %v6614 = vsel %vm6581, %v6611, %v6613
      %v6631 = vmax.f32 %v6546, %v6584
      %v6632 = vmax.f32 %v6547, %v6586
      %v6633 = vmax.f32 %v6548, %v6588
      %v6634 = vmax.f32 %v6549, %v6590
      %v6635 = vmax.f32 %v6550, %v6592
      %v6636 = vmax.f32 %v6551, %v6594
      %v6637 = vmax.f32 %v6552, %v6596
      %v6638 = vmax.f32 %v6553, %v6598
      %v6639 = vmax.f32 %v6554, %v6600
      %v6640 = vmax.f32 %v6555, %v6602
      %v6641 = vmax.f32 %v6556, %v6604
      %v6642 = vmax.f32 %v6557, %v6606
      %v6643 = vmax.f32 %v6558, %v6608
      %v6644 = vmax.f32 %v6559, %v6610
      %v6645 = vmax.f32 %v6560, %v6612
      %v6646 = vmax.f32 %v6561, %v6614
      %v6647 = vld [vmem:[%s5] sm:$0xff]
      %v6648 = vld [vmem:[%s5 + $0x8] sm:$0xff]
      %v6649 = vld [vmem:[%s5 + $0x10] sm:$0xff]
      %v6650 = vld [vmem:[%s5 + $0x18] sm:$0xff]
      %v6651 = vld [vmem:[%s4] sm:$0x1]
      %v6653 = vlaneseq
      %v6654 = vshrl.u32 %v6653, 7
      %v6655 = vsub.s32 0, %v6654
      %v6656 = vrot.slane %v6651, %v6655
      %6658 = vmatprep.subr.mxu0 0.0
      %6659 = vmatpush1.msra.mxu0 %v6631
      %6660 = vmatprep.subr.mxu0 0.0
      %6661 = vmatpush1.msra.mxu0 %v6632
      %6662 = vmatprep.subr.mxu0 0.0
      %6663 = vmatpush1.msra.mxu0 %v6633
      %6664 = vmatprep.subr.mxu0 0.0
      %6665 = vmatpush1.msra.mxu0 %v6634
      %6666 = vmatprep.subr.mxu0 0.0
      %6667 = vmatpush1.msra.mxu0 %v6635
      %6668 = vmatprep.subr.mxu0 0.0
      %6669 = vmatpush1.msra.mxu0 %v6636
      %6670 = vmatprep.subr.mxu0 0.0
      %6671 = vmatpush1.msra.mxu0 %v6637
      %6672 = vmatprep.subr.mxu0 0.0
      %6673 = vmatpush1.msra.mxu0 %v6638
      %6674 = vmatprep.subr.mxu0 0.0
      %6675 = vmatpush1.msra.mxu0 %v6639
      %6676 = vmatprep.subr.mxu0 0.0
      %6677 = vmatpush1.msra.mxu0 %v6640
      %6678 = vmatprep.subr.mxu0 0.0
      %6679 = vmatpush1.msra.mxu0 %v6641
      %6680 = vmatprep.subr.mxu0 0.0
      %6681 = vmatpush1.msra.mxu0 %v6642
      %6682 = vmatprep.subr.mxu0 0.0
      %6683 = vmatpush1.msra.mxu0 %v6643
      %6684 = vmatprep.subr.mxu0 0.0
      %6685 = vmatpush1.msra.mxu0 %v6644
      %6686 = vmatprep.subr.mxu0 0.0
      %6687 = vmatpush1.msra.mxu0 %v6645
      %6688 = vmatprep.subr.mxu0 0.0
      %6689 = vmatpush1.msra.mxu0 %v6646
      %6690 = vmatprep.subr.mxu0 0.0
      %6691 = vmatpush1.msra.mxu0 0.0
      %6692 = vmatprep.subr.mxu0 0.0
      %6693 = vmatpush1.msra.mxu0 0.0
      %6694 = vmatprep.subr.mxu0 0.0
      %6695 = vmatpush1.msra.mxu0 0.0
      %6696 = vmatprep.subr.mxu0 0.0
      %6697 = vmatpush1.msra.mxu0 0.0
      %6698 = vmatprep.subr.mxu0 0.0
      %6699 = vmatpush1.msra.mxu0 0.0
      %6700 = vmatprep.subr.mxu0 0.0
      %6701 = vmatpush1.msra.mxu0 0.0
      %6702 = vmatprep.subr.mxu0 0.0
      %6703 = vmatpush1.msra.mxu0 0.0
      %6704 = vmatprep.subr.mxu0 0.0
      %6705 = vmatpush1.msra.mxu0 0.0
      %6706 = vmatprep.subr.mxu0 0.0
      %6707 = vmatpush1.msra.mxu0 0.0
      %6708 = vmatprep.subr.mxu0 0.0
      %6709 = vmatpush1.msra.mxu0 0.0
      %6710 = vmatprep.subr.mxu0 0.0
      %6711 = vmatpush1.msra.mxu0 0.0
      %6712 = vmatprep.subr.mxu0 0.0
      %6713 = vmatpush1.msra.mxu0 0.0
      %6714 = vmatprep.subr.mxu0 0.0
      %6715 = vmatpush1.msra.mxu0 0.0
      %6716 = vmatprep.subr.mxu0 0.0
      %6717 = vmatpush1.msra.mxu0 0.0
      %6718 = vmatprep.subr.mxu0 0.0
      %6719 = vmatpush1.msra.mxu0 0.0
      %6720 = vmatprep.subr.mxu0 0.0
      %6721 = vmatpush1.msra.mxu0 0.0
      %6722 = vmatprep.mubr.f32.mxu0 0.0
      %6723 = vmatmul.mubr.f32.gmra.mrb[0].mxu0 %v6647
      %v6724 = vpop.f32.mrb[0].mxu0
      %v6725 = vadd.f32 %v6656, %v6724
      %v6726 = vpop.f32.mrb[0].mxu0
      %6727 = vmatprep.mubr.f32.mxu0 0.0
      %6728 = vmatmul.mubr.f32.gmra.mrb[0].mxu0 %v6648
      %v6729 = vpop.f32.mrb[0].mxu0
      %v6730 = vadd.f32 %v6656, %v6729
      %v6731 = vpop.f32.mrb[0].mxu0
      %6732 = vmatprep.mubr.f32.mxu0 0.0
      %6733 = vmatmul.mubr.f32.gmra.mrb[0].mxu0 %v6649
      %v6734 = vpop.f32.mrb[0].mxu0
      %v6735 = vadd.f32 %v6656, %v6734
      %v6736 = vpop.f32.mrb[0].mxu0
      %6737 = vmatprep.mubr.f32.mxu0 0.0
      %6738 = vmatmul.mubr.f32.gmra.mrb[0].mxu0 %v6650
      %v6739 = vpop.f32.mrb[0].mxu0
      %v6740 = vadd.f32 %v6656, %v6739
      %v6741 = vpop.f32.mrb[0].mxu0
      %6742 = vdwg.mxu0
      %v6743 = vmax.f32 %v6725, 0.0
      %v6744 = vmax.f32 %v6730, 0.0
      %v6745 = vmax.f32 %v6735, 0.0
      %v6746 = vmax.f32 %v6740, 0.0
      %6747 = vst [vmem:[%s251] sm:$0xff] %v6743
      %6748 = vst [vmem:[%s251 + $0x8] sm:$0xff] %v6744
      %6749 = vst [vmem:[%s251 + $0x10] sm:$0xff] %v6745
      %6750 = vst [vmem:[%s251 + $0x18] sm:$0xff] %v6746
      %p6751 = scmp.lt.s32.totalorder %s17, 1
      %s6752 = scalar_select %p6751, %s17, 1
      %s6753 = smul.addr %s6752, 4
      %s6754 = smul.addr %s6753, 8
      %s6755 = scalar_lea.vmem %s6, %s6754
      // Predicated region
      $region45: #{cnn_forward.1} parent=43 // pred_check
        %p6756 = pneg %p166
      $region46: #{cnn_forward.1} parent=43 // pred_check_branch
        %6758 = sbr.rel (%p6756) target = $region48
      $region47: #{cnn_forward.1} parent=43 // pred_region
        _
      $region48: #{cnn_forward.1} parent=43 // pred_fallthru
        _
    $region44: #{cnn_forward.1} parent=5 // pred_fallthru
      _
    %p6759 = scmp.le.s32.totalorder 2, %s12
    // Predicated region
    $region49: #{cnn_forward.1} parent=5 // pred_check
      %p6760 = pneg %p6759
    $region50: #{cnn_forward.1} parent=5 // pred_check_branch
      %6762 = sbr.rel (%p6760) target = $region52
    $region51: #{cnn_forward.1} parent=5 // pred_region
      %s6763 = ssub.s32 %s12, 2
      // Predicated region
      $region53: #{cnn_forward.1} parent=51 // pred_check
        %p6764 = pneg %p172
      $region54: #{cnn_forward.1} parent=51 // pred_check_branch
        %6766 = sbr.rel (%p6764) target = $region56
      $region55: #{cnn_forward.1} parent=51 // pred_region
        %p6767 = scmp.lt.s32.totalorder %s18, 1
        %s6768 = scalar_select %p6767, %s18, 1
        %s6769 = smul.addr %s6768, 4
        %s6770 = smul.addr %s6769, 8
        %s6771 = scalar_lea.vmem %s6, %s6770
      $region56: #{cnn_forward.1} parent=51 // pred_fallthru
        _
    $region52: #{cnn_forward.1} parent=5 // pred_fallthru
      _
  $region6: #{cnn_forward.1} parent=0 // loop_footer
    %s16 = sadd.s32 1, %s12
  $region7: #{cnn_forward.1} parent=0 // loop_footer_branch
    %11 = sbr.rel target = $region3
  $region8: #{cnn_forward.1} parent=0 // loop_exit
    _

</llo_original>
